<compile_context>
chip_gen: v6e
topology: v6e:2x2x1
jax: 0.10.0
libtpu: 0.0.40
codegen_flags: <defaults>
</compile_context>

<pallas_src>
import functools
import math

import numpy as np
import jax
import jax.numpy as jnp
from jax import lax
from jax.experimental import pallas as pl
from jax.experimental.pallas import tpu as pltpu

# Model constants fixed by the module definition.
D_MODEL = 300
N_HEADS = 20
D_K = 20
D_V = 20
N_Q = N_HEADS * D_K            # 400  (Q / K projection width)
N_KV = N_HEADS * (D_K + D_V)   # 800  (fused K|V projection width)
_INV_SQRT_DK = np.float32(1.0 / np.sqrt(np.float32(D_K)))
_LANE = 128


def _encoder_kernel(emb_ref, pe_ref, wq_ref, bq_ref, wkv_ref, bkv_ref,
                    out_ref, kh_sc, vh_sc, *, ts, num_ks, approx_recip):
    # emb_ref : (S, 300)   token embeddings of this batch element (f32 or bf16)
    # pe_ref  : (S, 300)   sinusoidal positional encoding (f32)
    # wq_ref  : (300, 400) lane-dense Q projection        bq_ref : (1, 400)
    # wkv_ref : (300, 800) lane-dense fused K|V proj.     bkv_ref: (1, 800)
    # out_ref : (TQ, 400)  lane-dense head-concat output tile
    # kh_sc   : (H, S, dk), vh_sc: (H, S, dv)  K/V head-split cache (compute dtype)
    s_full = emb_ref.shape[0]
    tq = out_ref.shape[0]
    cd = wq_ref.dtype                      # matmul compute dtype (f32 or bf16)
    qi = pl.program_id(1)

    # --- K/V projection + head split: once per batch element, cached in scratch.
    @pl.when(qi == 0)
    def _():
        x = emb_ref[...].astype(jnp.float32) + pe_ref[...]            # (S, 300)
        kv = jnp.dot(x.astype(cd), wkv_ref[...],
                     preferred_element_type=jnp.float32) + bkv_ref[...]
        k = kv[:, :N_Q]
        v = kv[:, N_Q:]
        kh_sc[...] = jnp.transpose(
            k.reshape(s_full, N_HEADS, D_K), (1, 0, 2)).astype(kh_sc.dtype)
        vh_sc[...] = jnp.transpose(
            v.reshape(s_full, N_HEADS, D_V), (1, 0, 2)).astype(vh_sc.dtype)

    # --- Query tile: only the (TQ, 300) slice of emb+PE is touched for qi > 0.
    q_start = pl.multiple_of(qi * tq, tq)
    xq = (emb_ref[pl.ds(q_start, tq), :].astype(jnp.float32)
          + pe_ref[pl.ds(q_start, tq), :])
    q = jnp.dot(xq.astype(cd), wq_ref[...], preferred_element_type=jnp.float32)
    q = (q + bq_ref[...]) * _INV_SQRT_DK                  # fold 1/sqrt(d_k) into Q
    qh = jnp.transpose(q.reshape(tq, N_HEADS, D_K), (1, 0, 2)).astype(cd)

    # --- Attention; no max subtraction (exact parity with the PyTorch module).
    #     Normalization applied after the PV matmul (identical algebra).
    if num_ks == 1:
        s = jnp.einsum('hqk,hsk->hqs', qh, kh_sc[...],
                       preferred_element_type=jnp.float32)           # (H, TQ, S)
        p = jnp.exp(s)
        denom = jnp.sum(p, axis=-1, keepdims=True)
        ctx = jnp.einsum('hqs,hsv->hqv', p.astype(cd), vh_sc[...],
                         preferred_element_type=jnp.float32)         # (H, TQ, dv)
    else:
        # Key-axis tiling: running (ctx, exp-sum) accumulators keep the live
        # scores block at (H, TQ, TS) instead of (H, TQ, S).
        def body(ks, carry):
            acc, den = carry
            k_start = pl.multiple_of(ks * ts, ts)
            k_blk = kh_sc[:, pl.ds(k_start, ts), :]
            v_blk = vh_sc[:, pl.ds(k_start, ts), :]
            s = jnp.einsum('hqk,hsk->hqs', qh, k_blk,
                           preferred_element_type=jnp.float32)       # (H, TQ, TS)
            p = jnp.exp(s)
            acc = acc + jnp.einsum('hqs,hsv->hqv', p.astype(cd), v_blk,
                                   preferred_element_type=jnp.float32)
            den = den + jnp.sum(p, axis=-1, keepdims=True)
            return acc, den

        ctx, denom = lax.fori_loop(
            0, num_ks, body,
            (jnp.zeros((N_HEADS, tq, D_V), jnp.float32),
             jnp.zeros((N_HEADS, tq, 1), jnp.float32)))

    inv = pl.reciprocal(denom + 1e-8, approx=approx_recip)
    ctx = ctx * inv

    # Lane-dense store: (TQ, H*dv) = (TQ, 400); head concat done in-kernel.
    out_ref[...] = jnp.transpose(ctx, (1, 0, 2)).reshape(tq, N_HEADS * D_V)


def _vmem_capacity_bytes():
    try:
        return int(pltpu.get_tpu_info().vmem_capacity_bytes)
    except Exception:
        return 64 * 1024 * 1024      # conservative: v7x per-TensorCore VMEM


def _tile_candidates(n, cap, mult):
    """Divisors of n (descending, <= cap) that are multiples of `mult` or == n."""
    cands = []
    for t in range(min(cap, n), 0, -1):
        if n % t == 0 and (t % mult == 0 or t == n):
            cands.append(t)
    # Degenerate fallback (e.g. large prime n): full extent — reintroduces the
    # unbounded live set, but stays correct.
    return cands or [n]


def _choose_attention_tiles(s, emb_bytes, compute_bytes, budget,
                            max_tq=None, max_ts=None):
    """Pick (query tile, key tile) so the estimated VMEM footprint fits `budget`."""
    max_tq = 512 if max_tq is None else max_tq
    max_ts = 2048 if max_ts is None else max_ts
    sub = 16 if compute_bytes < 4 else 8     # sublane granularity of the K/V cache

    fixed = (2 * s * D_MODEL * emb_bytes                  # emb block (double-buffered)
             + 2 * s * D_MODEL * 4                        # positional encoding
             + 2 * D_MODEL * (N_Q + N_KV) * compute_bytes  # W_q + W_k|W_v
             + 2 * N_HEADS * s * _LANE * compute_bytes    # kh/vh scratch (128-lane padded)
             + s * (D_MODEL + N_KV) * 4)                  # transient full-S x / kv at qi==0

    def live_bytes(tq, ts):
        return (2 * N_HEADS * tq * max(ts, _LANE) * 4     # scores + exp(scores)
                + 2 * N_HEADS * tq * _LANE * 4            # ctx accumulator + qh (padded)
                + 2 * tq * N_HEADS * D_V * 4              # output tile (double-buffered)
                + 2 * tq * D_MODEL * 4)                   # xq / q

    tq_cands = _tile_candidates(s, max_tq, 8)
    ts_cands = _tile_candidates(s, max_ts, sub)
    for tq in tq_cands:
        for ts in ts_cands:
            if fixed + live_bytes(tq, ts) <= budget:
                return tq, ts, fixed + live_bytes(tq, ts)
    tq, ts = tq_cands[-1], ts_cands[-1]
    return tq, ts, fixed + live_bytes(tq, ts)


def transformer_encoder_forward(src, embedding_matrix, params, *,
                                matmul_dtype=jnp.float32,
                                approx_reciprocal=True,
                                max_tq=None, max_ts=None):
    """src: (B, S) int32 token ids. Returns (memory_bank (B, S, 400), None)."""
    B, S = src.shape
    wq, bq, wkv, bkv = params

    # Glue: embedding gather + sinusoidal positional encoding (deterministic).
    emb_dtype = (jnp.bfloat16 if jnp.dtype(matmul_dtype) == jnp.dtype(jnp.bfloat16)
                 else jnp.float32)
    emb = jnp.take(embedding_matrix, src, axis=0).astype(emb_dtype)   # (B, S, 300)
    pe = _sinusoidal_pe(S, D_MODEL)                                   # (S, 300) f32

    # bf16 weights halve weight DMA and feed the wide bf16 MXU; exp / accumulation f32.
    wq_c = wq.astype(matmul_dtype)
    wkv_c = wkv.astype(matmul_dtype)

    cap = _vmem_capacity_bytes()
    budget = int(cap * 0.55)
    cb = jnp.dtype(matmul_dtype).itemsize
    eb = jnp.dtype(emb_dtype).itemsize
    tq, ts, estimate = _choose_attention_tiles(S, eb, cb, budget, max_tq, max_ts)
    num_ks = S // ts
    vmem_limit = int(min(max(32 * 2**20, 2 * estimate), int(cap * 0.9)))

    grid = (B, S // tq)
    kernel = functools.partial(_encoder_kernel, ts=ts, num_ks=num_ks,
                               approx_recip=approx_reciprocal)

    out = pl.pallas_call(
        kernel,
        out_shape=jax.ShapeDtypeStruct((B, S, N_HEADS * D_V), jnp.float32),
        grid=grid,
        in_specs=[
            pl.BlockSpec((None, S, D_MODEL), lambda b, qi: (b, 0, 0)),   # emb (per b, reused over qi)
            pl.BlockSpec((S, D_MODEL), lambda b, qi: (0, 0)),            # positional encoding
            pl.BlockSpec((D_MODEL, N_Q), lambda b, qi: (0, 0)),          # W_q (lane-dense)
            pl.BlockSpec((1, N_Q), lambda b, qi: (0, 0)),                # b_q
            pl.BlockSpec((D_MODEL, N_KV), lambda b, qi: (0, 0)),         # W_k|W_v fused
            pl.BlockSpec((1, N_KV), lambda b, qi: (0, 0)),               # b_k|b_v
        ],
        out_specs=pl.BlockSpec((None, tq, N_HEADS * D_V),
                               lambda b, qi: (b, qi, 0)),                # lane-dense out
        scratch_shapes=[
            pltpu.VMEM((N_HEADS, S, D_K), matmul_dtype),   # cached K head-split
            pltpu.VMEM((N_HEADS, S, D_V), matmul_dtype),   # cached V head-split
        ],
        compiler_params=pltpu.CompilerParams(
            # qi revisits the per-batch K/V cache sequentially -> "arbitrary";
            # b stays "parallel" for megacore sharding.
            dimension_semantics=("parallel", "arbitrary"),
            vmem_limit_bytes=vmem_limit),
    )(emb, pe, wq_c, bq, wkv_c, bkv)

    encoder_final = None
    return out, encoder_final


def _sinusoidal_pe(seq_len, d_model):
    position = np.arange(seq_len, dtype=np.float32)[:, None]
    div_term = np.exp(np.arange(0, d_model, 2, dtype=np.float32)
                      * -(math.log(10000.0) / d_model))
    pe = np.zeros((seq_len, d_model), dtype=np.float32)
    pe[:, 0::2] = np.sin(position * div_term)
    pe[:, 1::2] = np.cos(position * div_term)
    return jnp.asarray(pe)


def _init_params(key):
    """nn.Linear(300, 400) x3, stored lane-dense: W_q (300,400), W_k|W_v (300,800)."""
    keys = jax.random.split(key, 6)
    scale = 0.05

    def make_linear(kw, kb, d_out):
        w = scale * jax.random.normal(kw, (D_MODEL, d_out), dtype=jnp.float32)
        b = scale * jax.random.normal(kb, (d_out,), dtype=jnp.float32)
        return w, b

    wq, bq = make_linear(keys[0], keys[1], N_Q)
    wk, bk = make_linear(keys[2], keys[3], N_HEADS * D_K)
    wv, bv = make_linear(keys[4], keys[5], N_HEADS * D_V)
    wkv = jnp.concatenate([wk, wv], axis=1)              # (300, 800)
    bkv = jnp.concatenate([bk, bv], axis=0)              # (800,)
    return wq, bq.reshape(1, -1), wkv, bkv.reshape(1, -1)


def _reference_forward(src, embedding_matrix, params):
    """Pure-JAX reference reproducing the PyTorch forward (eval mode)."""
    wq, bq, wkv, bkv = params
    B, S = src.shape
    emb = jnp.take(embedding_matrix, src, axis=0).astype(jnp.float32)
    x = emb + _sinusoidal_pe(S, D_MODEL)[None]
    q = x @ wq + bq                                      # (B, S, 400)
    kv = x @ wkv + bkv                                   # (B, S, 800)
    k, v = kv[..., :N_Q], kv[..., N_Q:]

    def split(a, d):   # (B, S, H*d) -> (B, H, S, d); head h = columns [h*d:(h+1)*d]
        return jnp.transpose(a.reshape(B, S, N_HEADS, d), (0, 2, 1, 3))

    qh, kh, vh = split(q, D_K), split(k, D_K), split(v, D_V)
    scores = jnp.exp(jnp.einsum('bhqk,bhsk->bhqs', qh, kh) / np.sqrt(np.float32(D_K)))
    attn = scores / (jnp.sum(scores, axis=-1, keepdims=True) + 1e-8)
    ctx = jnp.einsum('bhqs,bhsv->bhqv', attn, vh)
    return jnp.transpose(ctx, (0, 2, 1, 3)).reshape(B, S, N_HEADS * D_V)


if __name__ == "__main__":
    key = jax.random.PRNGKey(0)
    k_emb, k_src, k_par, k_src2 = jax.random.split(key, 4)

    VOCAB = 50
    embedding_matrix = 0.1 * jax.random.normal(k_emb, (VOCAB, D_MODEL),
                                               dtype=jnp.float32)
    params = _init_params(k_par)

    # --- Test 1: module-sized small case (B=2, S=8); single query/key tile.
    B, S = 2, 8
    src = jax.random.randint(k_src, (B, S), 0, VOCAB, dtype=jnp.int32)
    ref = jax.block_until_ready(_reference_forward(src, embedding_matrix, params))

    memory_bank, encoder_final = transformer_encoder_forward(
        src, embedding_matrix, params, approx_reciprocal=False)
    memory_bank = jax.block_until_ready(memory_bank)
    assert memory_bank.shape == (B, S, N_HEADS * D_V)
    assert encoder_final is None
    np.testing.assert_allclose(np.asarray(memory_bank), np.asarray(ref),
                               rtol=1e-4, atol=1e-4)

    # bf16 matmul-input / bf16-embedding path; f32 accumulation, looser tolerance.
    mb_bf16, _ = transformer_encoder_forward(src, embedding_matrix, params,
                                             matmul_dtype=jnp.bfloat16)
    mb_bf16 = jax.block_until_ready(mb_bf16)
    np.testing.assert_allclose(np.asarray(mb_bf16), np.asarray(ref),
                               rtol=5e-2, atol=5e-2)

    # --- Test 2: exercises K/V scratch reuse across query tiles (qi > 0) and the
    #     key-axis accumulation loop (S=64 forced into TQ=TS=16 tiles).
    B2, S2 = 2, 64
    src2 = jax.random.randint(k_src2, (B2, S2), 0, VOCAB, dtype=jnp.int32)
    ref2 = jax.block_until_ready(_reference_forward(src2, embedding_matrix, params))
    mb2, _ = transformer_encoder_forward(src2, embedding_matrix, params,
                                         approx_reciprocal=False,
                                         max_tq=16, max_ts=16)
    mb2 = jax.block_until_ready(mb2)
    np.testing.assert_allclose(np.asarray(mb2), np.asarray(ref2),
                               rtol=1e-4, atol=1e-4)

    print("KERNEL_OK")
</pallas_src>

<mosaic_0001>
module attributes {stable_mosaic.version = 11 : i64} {
  func.func @_encoder_kernel(%arg0: i32, %arg1: i32, %arg2: memref<1x8x300xf32, #tpu.memory_space<vmem>>, %arg3: memref<8x300xf32, #tpu.memory_space<vmem>>, %arg4: memref<300x400xf32, #tpu.memory_space<vmem>>, %arg5: memref<1x400xf32, #tpu.memory_space<vmem>>, %arg6: memref<300x800xf32, #tpu.memory_space<vmem>>, %arg7: memref<1x800xf32, #tpu.memory_space<vmem>>, %arg8: memref<1x8x400xf32, #tpu.memory_space<vmem>>, %arg9: memref<20x8x20xf32, #tpu.memory_space<vmem>>, %arg10: memref<20x8x20xf32, #tpu.memory_space<vmem>>) attributes {dimension_semantics = [#tpu.dimension_semantics<parallel>, #tpu.dimension_semantics<arbitrary>], iteration_bounds = array<i64: 2, 1>, scalar_prefetch = 0 : i64, scratch_operands = 2 : i64, tpu.core_type = #tpu.core_type<tc>, window_params = [{transform_indices = @transform_0, window_bounds = array<i64: 1, 8, 300>}, {pipeline_mode = #tpu.pipeline_mode<synchronous>, transform_indices = @transform_1, window_bounds = array<i64: 8, 300>}, {pipeline_mode = #tpu.pipeline_mode<synchronous>, transform_indices = @transform_2, window_bounds = array<i64: 300, 400>}, {pipeline_mode = #tpu.pipeline_mode<synchronous>, transform_indices = @transform_3, window_bounds = array<i64: 1, 400>}, {pipeline_mode = #tpu.pipeline_mode<synchronous>, transform_indices = @transform_4, window_bounds = array<i64: 300, 800>}, {pipeline_mode = #tpu.pipeline_mode<synchronous>, transform_indices = @transform_5, window_bounds = array<i64: 1, 800>}, {transform_indices = @transform_6, window_bounds = array<i64: 1, 8, 400>}]} {
    %c0_i32 = arith.constant 0 : i32
    %0 = arith.cmpi eq, %arg1, %c0_i32 : i32
    %1 = arith.extui %0 : i1 to i32
    %c0_i32_0 = arith.constant 0 : i32
    %2 = arith.cmpi ne, %1, %c0_i32_0 : i32
    scf.if %2 {
      %c0_21 = arith.constant 0 : index
      %c0_22 = arith.constant 0 : index
      %c0_23 = arith.constant 0 : index
      %37 = vector.load %arg2[%c0_21, %c0_22, %c0_23] : memref<1x8x300xf32, #tpu.memory_space<vmem>>, vector<1x8x300xf32>
      %38 = vector.shape_cast %37 : vector<1x8x300xf32> to vector<8x300xf32>
      %c0_24 = arith.constant 0 : index
      %c0_25 = arith.constant 0 : index
      %39 = vector.load %arg3[%c0_24, %c0_25] : memref<8x300xf32, #tpu.memory_space<vmem>>, vector<8x300xf32>
      %40 = arith.addf %38, %39 : vector<8x300xf32>
      %c0_26 = arith.constant 0 : index
      %c0_27 = arith.constant 0 : index
      %41 = vector.load %arg6[%c0_26, %c0_27] : memref<300x800xf32, #tpu.memory_space<vmem>>, vector<300x800xf32>
      %cst_28 = arith.constant dense<0.000000e+00> : vector<8x800xf32>
      %42 = tpu.matmul %40, %41, %cst_28 {dimension_numbers = #tpu.dot_dimension_numbers<[1], [0], [0], [1], [0, 0, 1, 1], [], []>} : vector<8x300xf32>, vector<300x800xf32>, vector<8x800xf32> -> vector<8x800xf32>
      %c0_29 = arith.constant 0 : index
      %c0_30 = arith.constant 0 : index
      %43 = vector.load %arg7[%c0_29, %c0_30] : memref<1x800xf32, #tpu.memory_space<vmem>>, vector<1x800xf32>
      %44 = vector.broadcast %43 : vector<1x800xf32> to vector<8x800xf32>
      %45 = arith.addf %42, %44 : vector<8x800xf32>
      %46 = vector.extract_strided_slice %45 {offsets = [0, 0], sizes = [8, 400], strides = [1, 1]} : vector<8x800xf32> to vector<8x400xf32>
      %47 = vector.extract_strided_slice %45 {offsets = [0, 400], sizes = [8, 400], strides = [1, 1]} : vector<8x800xf32> to vector<8x400xf32>
      %48 = vector.shape_cast %46 : vector<8x400xf32> to vector<8x20x20xf32>
      %49 = tpu.transpose %48, [1, 0, 2] : vector<8x20x20xf32> -> vector<20x8x20xf32>
      %c0_31 = arith.constant 0 : index
      %c0_32 = arith.constant 0 : index
      %c0_33 = arith.constant 0 : index
      %50 = vector.load %arg9[%c0_31, %c0_32, %c0_33] : memref<20x8x20xf32, #tpu.memory_space<vmem>>, vector<20x8x20xf32>
      tpu.vector_store %arg9[%c0_31, %c0_32, %c0_33], %49 {strides = array<i32>} : memref<20x8x20xf32, #tpu.memory_space<vmem>>, vector<20x8x20xf32>,
      %51 = vector.shape_cast %47 : vector<8x400xf32> to vector<8x20x20xf32>
      %52 = tpu.transpose %51, [1, 0, 2] : vector<8x20x20xf32> -> vector<20x8x20xf32>
      %c0_34 = arith.constant 0 : index
      %c0_35 = arith.constant 0 : index
      %c0_36 = arith.constant 0 : index
      %53 = vector.load %arg10[%c0_34, %c0_35, %c0_36] : memref<20x8x20xf32, #tpu.memory_space<vmem>>, vector<20x8x20xf32>
      tpu.vector_store %arg10[%c0_34, %c0_35, %c0_36], %52 {strides = array<i32>} : memref<20x8x20xf32, #tpu.memory_space<vmem>>, vector<20x8x20xf32>,
    } else {
    }
    %c8_i32 = arith.constant 8 : i32
    %3 = arith.muli %arg1, %c8_i32 : i32
    %4 = tpu.assume_multiple %3, 8 : i32
    %c0 = arith.constant 0 : index
    %5 = arith.index_cast %4 : i32 to index
    %c0_1 = arith.constant 0 : index
    %6 = vector.load %arg2[%c0, %5, %c0_1] : memref<1x8x300xf32, #tpu.memory_space<vmem>>, vector<1x8x300xf32>
    %7 = vector.shape_cast %6 : vector<1x8x300xf32> to vector<8x300xf32>
    %8 = arith.index_cast %4 : i32 to index
    %c0_2 = arith.constant 0 : index
    %9 = vector.load %arg3[%8, %c0_2] : memref<8x300xf32, #tpu.memory_space<vmem>>, vector<8x300xf32>
    %10 = arith.addf %7, %9 : vector<8x300xf32>
    %c0_3 = arith.constant 0 : index
    %c0_4 = arith.constant 0 : index
    %11 = vector.load %arg4[%c0_3, %c0_4] : memref<300x400xf32, #tpu.memory_space<vmem>>, vector<300x400xf32>
    %cst = arith.constant dense<0.000000e+00> : vector<8x400xf32>
    %12 = tpu.matmul %10, %11, %cst {dimension_numbers = #tpu.dot_dimension_numbers<[1], [0], [0], [1], [0, 0, 1, 1], [], []>} : vector<8x300xf32>, vector<300x400xf32>, vector<8x400xf32> -> vector<8x400xf32>
    %c0_5 = arith.constant 0 : index
    %c0_6 = arith.constant 0 : index
    %13 = vector.load %arg5[%c0_5, %c0_6] : memref<1x400xf32, #tpu.memory_space<vmem>>, vector<1x400xf32>
    %14 = vector.broadcast %13 : vector<1x400xf32> to vector<8x400xf32>
    %15 = arith.addf %12, %14 : vector<8x400xf32>
    %cst_7 = arith.constant 0.223606795 : f32
    %16 = vector.broadcast %cst_7 : f32 to vector<8x400xf32>
    %17 = arith.mulf %15, %16 : vector<8x400xf32>
    %18 = vector.shape_cast %17 : vector<8x400xf32> to vector<8x20x20xf32>
    %19 = tpu.transpose %18, [1, 0, 2] : vector<8x20x20xf32> -> vector<20x8x20xf32>
    %c0_8 = arith.constant 0 : index
    %c0_9 = arith.constant 0 : index
    %c0_10 = arith.constant 0 : index
    %20 = vector.load %arg9[%c0_8, %c0_9, %c0_10] : memref<20x8x20xf32, #tpu.memory_space<vmem>>, vector<20x8x20xf32>
    "tpu.trace_start"() <{level = 10 : i32, message = "hqk,hsk->hqs"}> : () -> ()
    %cst_11 = arith.constant dense<0.000000e+00> : vector<20x8x8xf32>
    %21 = tpu.matmul %19, %20, %cst_11 {dimension_numbers = #tpu.dot_dimension_numbers<[2], [2], [1], [1], [0, 0, 0, 1, 1, 1], [0], [0]>} : vector<20x8x20xf32>, vector<20x8x20xf32>, vector<20x8x8xf32> -> vector<20x8x8xf32>
    "tpu.trace_stop"() : () -> ()
    %22 = math.exp %21 : vector<20x8x8xf32>
    %cst_12 = arith.constant dense<0.000000e+00> : vector<20x8xf32>
    %23 = vector.multi_reduction <add>, %22, %cst_12 [2] : vector<20x8x8xf32> to vector<20x8xf32>
    %24 = vector.shape_cast %23 : vector<20x8xf32> to vector<20x8x1xf32>
    %c0_13 = arith.constant 0 : index
    %c0_14 = arith.constant 0 : index
    %c0_15 = arith.constant 0 : index
    %25 = vector.load %arg10[%c0_13, %c0_14, %c0_15] : memref<20x8x20xf32, #tpu.memory_space<vmem>>, vector<20x8x20xf32>
    "tpu.trace_start"() <{level = 10 : i32, message = "hqs,hsv->hqv"}> : () -> ()
    %cst_16 = arith.constant dense<0.000000e+00> : vector<20x8x20xf32>
    %26 = tpu.matmul %22, %25, %cst_16 {dimension_numbers = #tpu.dot_dimension_numbers<[2], [1], [1], [2], [0, 0, 0, 1, 1, 2], [0], [0]>} : vector<20x8x8xf32>, vector<20x8x20xf32>, vector<20x8x20xf32> -> vector<20x8x20xf32>
    "tpu.trace_stop"() : () -> ()
    %cst_17 = arith.constant 9.99999993E-9 : f32
    %27 = vector.broadcast %cst_17 : f32 to vector<20x8x1xf32>
    %28 = arith.addf %24, %27 : vector<20x8x1xf32>
    %29 = tpu.reciprocal %28 : vector<20x8x1xf32> -> vector<20x8x1xf32>
    %30 = vector.broadcast %29 : vector<20x8x1xf32> to vector<20x8x20xf32>
    %31 = arith.mulf %26, %30 : vector<20x8x20xf32>
    %32 = tpu.transpose %31, [1, 0, 2] : vector<20x8x20xf32> -> vector<8x20x20xf32>
    %33 = vector.shape_cast %32 : vector<8x20x20xf32> to vector<8x400xf32>
    %c0_18 = arith.constant 0 : index
    %c0_19 = arith.constant 0 : index
    %c0_20 = arith.constant 0 : index
    %34 = vector.load %arg8[%c0_18, %c0_19, %c0_20] : memref<1x8x400xf32, #tpu.memory_space<vmem>>, vector<1x8x400xf32>
    %35 = vector.shape_cast %34 : vector<1x8x400xf32> to vector<8x400xf32>
    %36 = vector.shape_cast %33 : vector<8x400xf32> to vector<1x8x400xf32>
    tpu.vector_store %arg8[%c0_18, %c0_19, %c0_20], %36 {strides = array<i32>} : memref<1x8x400xf32, #tpu.memory_space<vmem>>, vector<1x8x400xf32>,
    return
  }
  func.func @transform_0(%arg0: i32, %arg1: i32) -> (i32, i32, i32) {
    %c0_i32 = arith.constant 0 : i32
    %c0_i32_0 = arith.constant 0 : i32
    %c0_i32_1 = arith.constant 0 : i32
    return %arg0, %c0_i32, %c0_i32_0 : i32, i32, i32
  }
  func.func @transform_1(%arg0: i32, %arg1: i32) -> (i32, i32) {
    %c0_i32 = arith.constant 0 : i32
    %c0_i32_0 = arith.constant 0 : i32
    %c0_i32_1 = arith.constant 0 : i32
    return %c0_i32, %c0_i32_0 : i32, i32
  }
  func.func @transform_2(%arg0: i32, %arg1: i32) -> (i32, i32) {
    %c0_i32 = arith.constant 0 : i32
    %c0_i32_0 = arith.constant 0 : i32
    %c0_i32_1 = arith.constant 0 : i32
    return %c0_i32, %c0_i32_0 : i32, i32
  }
  func.func @transform_3(%arg0: i32, %arg1: i32) -> (i32, i32) {
    %c0_i32 = arith.constant 0 : i32
    %c0_i32_0 = arith.constant 0 : i32
    %c0_i32_1 = arith.constant 0 : i32
    return %c0_i32, %c0_i32_0 : i32, i32
  }
  func.func @transform_4(%arg0: i32, %arg1: i32) -> (i32, i32) {
    %c0_i32 = arith.constant 0 : i32
    %c0_i32_0 = arith.constant 0 : i32
    %c0_i32_1 = arith.constant 0 : i32
    return %c0_i32, %c0_i32_0 : i32, i32
  }
  func.func @transform_5(%arg0: i32, %arg1: i32) -> (i32, i32) {
    %c0_i32 = arith.constant 0 : i32
    %c0_i32_0 = arith.constant 0 : i32
    %c0_i32_1 = arith.constant 0 : i32
    return %c0_i32, %c0_i32_0 : i32, i32
  }
  func.func @transform_6(%arg0: i32, %arg1: i32) -> (i32, i32, i32) {
    %c0_i32 = arith.constant 0 : i32
    %c0_i32_0 = arith.constant 0 : i32
    return %arg0, %arg1, %c0_i32 : i32, i32, i32
  }
}

</mosaic_0001>

<llo_original>
// kernel: tpu_custom_call.1
$region0: #{tpu_custom_call.1}
  #allocation0 [shape = 'u32[]', space=smem, size = 0x4, offset = 0x4, fixed_abs, tag = 'smem constant byte address 0x4 - core index']
  #allocation1 [shape = 'u32[144,128]{1,0:T(1,128)}', space=vmem, size = 0x12000, scoped, tag = 'internal scratch']
  #allocation2 [shape = 'f32[20,8,20]{2,1,0:T(8,128)}', space=vmem, size = 0x14000, scoped, tag = 'scratch operand']
  #allocation3 [shape = 'f32[20,8,20]{2,1,0:T(8,128)}', space=vmem, size = 0x14000, scoped, tag = 'scratch operand']
  %s0 = inlined_call_operand.vmem [shape: f32[2,8,300], index: 0, kind: input, shape index: {}]
  %s1 = inlined_call_operand.vmem [shape: f32[8,300], index: 1, kind: input, shape index: {}]
  %s2 = inlined_call_operand.vmem [shape: f32[300,400], index: 2, kind: input, shape index: {}]
  %s3 = inlined_call_operand.vmem [shape: f32[1,400], index: 3, kind: input, shape index: {}]
  %s4 = inlined_call_operand.vmem [shape: f32[300,800], index: 4, kind: input, shape index: {}]
  %s5 = inlined_call_operand.vmem [shape: f32[1,800], index: 5, kind: input, shape index: {}]
  %s6 = inlined_call_operand.hbm [shape: f32[2,8,400], index: 6, kind: output, shape index: {}]
  %s7 = sld [smem:[#allocation0]]
  $region61: #{tpu_custom_call.1} parent=0
    _
  %s9 = ssub.s32 1, %s7
  %s10 = scalar_select 0, %s9, %s7
  $region1: #{tpu_custom_call.1} parent=0
    #allocation4 [shape = 'u8[32768]{0}', space=vmem, size = 0x8000, scoped, tag = 'output window, operand 0']
    #allocation5 [shape = 's32[2]{0}', space=sflag, size = 0x8, scoped, tag = 'scoped memory for tpu_custom_call.1']
    %11 = vsyncpa [#allocation5], 0
    %s12 = scalar_lea.sflag [#allocation5], 1
    %13 = vsyncpa %s12, 0
    loop: start=0, step=1, limit=4
    $region2: #{tpu_custom_call.1} parent=1 // loop_pre_header
      _
    $region3: #{tpu_custom_call.1} parent=1 // loop_header
      %s15 = sphi 0, %s19
      %p16 = scmp.ge.s32.totalorder %s15, 4
      %s22 = sphi 0, %s34
      %s23 = sphi 0, %s30
      %s24 = sphi 0, %s22
      %s25 = sphi 0, %s23
      %s26 = sphi 0, %s24
      %s27 = sphi 0, %s25
      %s37 = sphi 0, %s39
      %s40 = sphi 0, %s37
      %s41 = sphi 0, %s40
      %s57 = sphi 0, %s41
      %s61 = sphi 0, %s61
      %s63 = sphi 0, %s61
      %s64 = sphi 0, %s63
      %s78 = sphi 0, %s64
      %s82 = sphi 0, %s82
      %s84 = sphi 0, %s82
      %s85 = sphi 0, %s84
      %s99 = sphi 0, %s85
      %s103 = sphi 0, %s103
      %s105 = sphi 0, %s103
      %s106 = sphi 0, %s105
      %s120 = sphi 0, %s106
      %s124 = sphi 0, %s124
      %s126 = sphi 0, %s124
      %s127 = sphi 0, %s126
      %s141 = sphi 0, %s127
      %s145 = sphi 0, %s145
      %s147 = sphi 0, %s145
      %s148 = sphi 0, %s147
      %s162 = sphi 0, %s148
      %s170 = sphi 0, %s172
      %s173 = sphi 0, %s170
      %s174 = sphi 0, %s173
      %s190 = sphi 0, %s174
    $region4: #{tpu_custom_call.1} parent=1 // loop_header_branch
      %18 = sbr.rel (%p16) target = $region8
    $region5: #{tpu_custom_call.1} parent=1 // loop_body
      %s20 = ssub.s32 %s15, 1
      %s21 = ssub.s32 %s15, 2
      %s28 = sadd.s32 1, %s23
      %p29 = scmp.ge.s32.totalorder %s28, 1
      %s30 = scalar_select %p29, 0, %s28
      %s31 = sadd.s32 1, %s22
      %s32 = scalar_select %p29, %s31, %s22
      %p33 = scmp.ge.s32.totalorder %s32, 2
      %s34 = scalar_select %p33, 0, %s32
      %s35 = ssub.s32 %s22, %s34
      %p36 = scmp.eq.s32.totalorder %s35, 0
      %s38 = sadd.s32 %s37, 1
      %s39 = scalar_select %p36, %s37, %s38
      %p42 = pneg %p36
      %p43 = scmp.eq.s32.totalorder %s15, 1
      %p44 = por %p42, %p43
      %p45 = scmp.ne.s32.totalorder %s37, %s40
      %p46 = scmp.eq.s32.totalorder %s15, 0
      %p47 = por %p45, %p46
      %p48 = scmp.ne.s32.totalorder %s37, %s40
      %p49 = scmp.eq.s32.totalorder %s20, 1
      %p50 = por %p48, %p49
      %p51 = scmp.ne.s32.totalorder %s40, %s41
      %p52 = scmp.eq.s32.totalorder %s20, 0
      %p53 = por %p51, %p52
      %p54 = scmp.ne.s32.totalorder %s40, %s41
      %p55 = scmp.eq.s32.totalorder %s21, 1
      %p56 = por %p54, %p55
      %p58 = scmp.ne.s32.totalorder %s41, %s57
      %p59 = scmp.eq.s32.totalorder %s21, 0
      %p60 = por %p58, %p59
      %s62 = sadd.s32 %s61, 1
      %p65 = scmp.eq.s32.totalorder %s15, 1
      %p66 = scmp.ne.s32.totalorder %s61, %s63
      %p67 = scmp.eq.s32.totalorder %s15, 0
      %p68 = por %p66, %p67
      %p69 = scmp.ne.s32.totalorder %s61, %s63
      %p70 = scmp.eq.s32.totalorder %s20, 1
      %p71 = por %p69, %p70
      %p72 = scmp.ne.s32.totalorder %s63, %s64
      %p73 = scmp.eq.s32.totalorder %s20, 0
      %p74 = por %p72, %p73
      %p75 = scmp.ne.s32.totalorder %s63, %s64
      %p76 = scmp.eq.s32.totalorder %s21, 1
      %p77 = por %p75, %p76
      %p79 = scmp.ne.s32.totalorder %s64, %s78
      %p80 = scmp.eq.s32.totalorder %s21, 0
      %p81 = por %p79, %p80
      %s83 = sadd.s32 %s82, 1
      %p86 = scmp.eq.s32.totalorder %s15, 1
      %p87 = scmp.ne.s32.totalorder %s82, %s84
      %p88 = scmp.eq.s32.totalorder %s15, 0
      %p89 = por %p87, %p88
      %p90 = scmp.ne.s32.totalorder %s82, %s84
      %p91 = scmp.eq.s32.totalorder %s20, 1
      %p92 = por %p90, %p91
      %p93 = scmp.ne.s32.totalorder %s84, %s85
      %p94 = scmp.eq.s32.totalorder %s20, 0
      %p95 = por %p93, %p94
      %p96 = scmp.ne.s32.totalorder %s84, %s85
      %p97 = scmp.eq.s32.totalorder %s21, 1
      %p98 = por %p96, %p97
      %p100 = scmp.ne.s32.totalorder %s85, %s99
      %p101 = scmp.eq.s32.totalorder %s21, 0
      %p102 = por %p100, %p101
      %s104 = sadd.s32 %s103, 1
      %p107 = scmp.eq.s32.totalorder %s15, 1
      %p108 = scmp.ne.s32.totalorder %s103, %s105
      %p109 = scmp.eq.s32.totalorder %s15, 0
      %p110 = por %p108, %p109
      %p111 = scmp.ne.s32.totalorder %s103, %s105
      %p112 = scmp.eq.s32.totalorder %s20, 1
      %p113 = por %p111, %p112
      %p114 = scmp.ne.s32.totalorder %s105, %s106
      %p115 = scmp.eq.s32.totalorder %s20, 0
      %p116 = por %p114, %p115
      %p117 = scmp.ne.s32.totalorder %s105, %s106
      %p118 = scmp.eq.s32.totalorder %s21, 1
      %p119 = por %p117, %p118
      %p121 = scmp.ne.s32.totalorder %s106, %s120
      %p122 = scmp.eq.s32.totalorder %s21, 0
      %p123 = por %p121, %p122
      %s125 = sadd.s32 %s124, 1
      %p128 = scmp.eq.s32.totalorder %s15, 1
      %p129 = scmp.ne.s32.totalorder %s124, %s126
      %p130 = scmp.eq.s32.totalorder %s15, 0
      %p131 = por %p129, %p130
      %p132 = scmp.ne.s32.totalorder %s124, %s126
      %p133 = scmp.eq.s32.totalorder %s20, 1
      %p134 = por %p132, %p133
      %p135 = scmp.ne.s32.totalorder %s126, %s127
      %p136 = scmp.eq.s32.totalorder %s20, 0
      %p137 = por %p135, %p136
      %p138 = scmp.ne.s32.totalorder %s126, %s127
      %p139 = scmp.eq.s32.totalorder %s21, 1
      %p140 = por %p138, %p139
      %p142 = scmp.ne.s32.totalorder %s127, %s141
      %p143 = scmp.eq.s32.totalorder %s21, 0
      %p144 = por %p142, %p143
      %s146 = sadd.s32 %s145, 1
      %p149 = scmp.eq.s32.totalorder %s15, 1
      %p150 = scmp.ne.s32.totalorder %s145, %s147
      %p151 = scmp.eq.s32.totalorder %s15, 0
      %p152 = por %p150, %p151
      %p153 = scmp.ne.s32.totalorder %s145, %s147
      %p154 = scmp.eq.s32.totalorder %s20, 1
      %p155 = por %p153, %p154
      %p156 = scmp.ne.s32.totalorder %s147, %s148
      %p157 = scmp.eq.s32.totalorder %s20, 0
      %p158 = por %p156, %p157
      %p159 = scmp.ne.s32.totalorder %s147, %s148
      %p160 = scmp.eq.s32.totalorder %s21, 1
      %p161 = por %p159, %p160
      %p163 = scmp.ne.s32.totalorder %s148, %s162
      %p164 = scmp.eq.s32.totalorder %s21, 0
      %p165 = por %p163, %p164
      %s166 = ssub.s32 %s22, %s34
      %s167 = ssub.s32 %s23, %s30
      %s168 = sor.u32 %s166, %s167
      %p169 = scmp.eq.s32.totalorder %s168, 0
      %s171 = sadd.s32 %s170, 1
      %s172 = scalar_select %p169, %s170, %s171
      %p175 = pneg %p169
      %p176 = scmp.eq.s32.totalorder %s15, 1
      %p177 = por %p175, %p176
      %p178 = scmp.ne.s32.totalorder %s170, %s173
      %p179 = scmp.eq.s32.totalorder %s15, 0
      %p180 = por %p178, %p179
      %p181 = scmp.ne.s32.totalorder %s170, %s173
      %p182 = scmp.eq.s32.totalorder %s20, 1
      %p183 = por %p181, %p182
      %p184 = scmp.ne.s32.totalorder %s173, %s174
      %p185 = scmp.eq.s32.totalorder %s20, 0
      %p186 = por %p184, %p185
      %p187 = scmp.ne.s32.totalorder %s173, %s174
      %p188 = scmp.eq.s32.totalorder %s21, 1
      %p189 = por %p187, %p188
      %p191 = scmp.ne.s32.totalorder %s174, %s190
      %p192 = scmp.eq.s32.totalorder %s21, 0
      %p193 = por %p191, %p192
      %p194 = scmp.le.s32.totalorder 1, %s15
      %p195 = scmp.lt.s32.totalorder %s15, 3
      %p196 = pnand %p194, %p195
      %p197 = pneg %p196
      // Predicated region
      $region9: #{tpu_custom_call.1} parent=5 // pred_check
        _
      $region10: #{tpu_custom_call.1} parent=5 // pred_check_branch
        %199 = sbr.rel (%p196) target = $region12
      $region11: #{tpu_custom_call.1} parent=5 // pred_region
        %s200 = ssub.s32 %s15, 1
        // Predicated region
        $region13: #{tpu_custom_call.1} parent=11 // pred_check
          %p201 = pneg %p74
        $region14: #{tpu_custom_call.1} parent=11 // pred_check_branch
          %203 = sbr.rel (%p201) target = $region16
        $region15: #{tpu_custom_call.1} parent=11 // pred_region
          _
        $region16: #{tpu_custom_call.1} parent=11 // pred_fallthru
          _
        // Predicated region
        $region17: #{tpu_custom_call.1} parent=11 // pred_check
          %p204 = pneg %p95
        $region18: #{tpu_custom_call.1} parent=11 // pred_check_branch
          %206 = sbr.rel (%p204) target = $region20
        $region19: #{tpu_custom_call.1} parent=11 // pred_region
          _
        $region20: #{tpu_custom_call.1} parent=11 // pred_fallthru
          _
        // Predicated region
        $region21: #{tpu_custom_call.1} parent=11 // pred_check
          %p207 = pneg %p116
        $region22: #{tpu_custom_call.1} parent=11 // pred_check_branch
          %209 = sbr.rel (%p207) target = $region24
        $region23: #{tpu_custom_call.1} parent=11 // pred_region
          _
        $region24: #{tpu_custom_call.1} parent=11 // pred_fallthru
          _
        // Predicated region
        $region25: #{tpu_custom_call.1} parent=11 // pred_check
          %p210 = pneg %p137
        $region26: #{tpu_custom_call.1} parent=11 // pred_check_branch
          %212 = sbr.rel (%p210) target = $region28
        $region27: #{tpu_custom_call.1} parent=11 // pred_region
          _
        $region28: #{tpu_custom_call.1} parent=11 // pred_fallthru
          _
        // Predicated region
        $region29: #{tpu_custom_call.1} parent=11 // pred_check
          %p213 = pneg %p158
        $region30: #{tpu_custom_call.1} parent=11 // pred_check_branch
          %215 = sbr.rel (%p213) target = $region32
        $region31: #{tpu_custom_call.1} parent=11 // pred_region
          _
        $region32: #{tpu_custom_call.1} parent=11 // pred_fallthru
          _
      $region12: #{tpu_custom_call.1} parent=5 // pred_fallthru
        _
      %p216 = scmp.lt.s32.totalorder %s15, 2
      // Predicated region
      $region33: #{tpu_custom_call.1} parent=5 // pred_check
        %p217 = pneg %p216
      $region34: #{tpu_custom_call.1} parent=5 // pred_check_branch
        %219 = sbr.rel (%p217) target = $region36
      $region35: #{tpu_custom_call.1} parent=5 // pred_region
        // Predicated region
        $region37: #{tpu_custom_call.1} parent=35 // pred_check
          %p220 = pneg %p47
        $region38: #{tpu_custom_call.1} parent=35 // pred_check_branch
          %222 = sbr.rel (%p220) target = $region40
        $region39: #{tpu_custom_call.1} parent=35 // pred_region
          %p223 = scmp.lt.s32.totalorder %s22, 1
          %s224 = scalar_select %p223, %s22, 1
          %s225 = smul.addr %s224, 3
          %s226 = smul.addr %s225, 8
          %s227 = scalar_lea.vmem %s0, %s226
        $region40: #{tpu_custom_call.1} parent=35 // pred_fallthru
          _
      $region36: #{tpu_custom_call.1} parent=5 // pred_fallthru
        _
      %p228 = scmp.le.s32.totalorder 1, %s15
      %p229 = scmp.lt.s32.totalorder %s15, 3
      %p230 = pnand %p228, %p229
      %p231 = pneg %p230
      // Predicated region
      $region41: #{tpu_custom_call.1} parent=5 // pred_check
        _
      $region42: #{tpu_custom_call.1} parent=5 // pred_check_branch
        %233 = sbr.rel (%p230) target = $region44
      $region43: #{tpu_custom_call.1} parent=5 // pred_region
        %s234 = ssub.s32 %s15, 1
        %p235 = scmp.lt.s32.totalorder %s24, 1
        %s236 = scalar_select %p235, %s24, 1
        %s237 = smul.addr %s236, 3
        %s238 = smul.addr %s237, 8
        %s239 = scalar_lea.vmem %s0, %s238
        %p240 = pneg %p53
        %p241 = pneg %p50
        %p242 = pneg %p74
        %p243 = pneg %p71
        %p244 = pneg %p95
        %p245 = pneg %p92
        %p246 = pneg %p116
        %p247 = pneg %p113
        %p248 = pneg %p137
        %p249 = pneg %p134
        %p250 = pneg %p158
        %p251 = pneg %p155
        %p252 = pneg %p186
        %p253 = pneg %p183
        %s254 = sand.u32 %s173, 1
        %s255 = scalar_lea.sflag [#allocation5], %s254
        %s256 = sand.u32 %s173, 1
        %s257 = smul.addr %s256, 32
        %s258 = scalar_lea.vmem [#allocation4], %s257
        %p259 = scmp.lt.s32.totalorder %s24, 1
        %s260 = scalar_select %p259, %s24, 1
        %s261 = smul.addr %s260, 3
        %s262 = smul.addr %s261, 8
        %s263 = scalar_lea.vmem %s0, %s262
        %p264 = scmp.eq.s32.totalorder %s25, 0
        // Predicated region
        $region45: #{tpu_custom_call.1} parent=43 // pred_check
          %p265 = pneg %p264
        $region46: #{tpu_custom_call.1} parent=43 // pred_check_branch
          %267 = sbr.rel (%p265) target = $region48
        $region47: #{tpu_custom_call.1} parent=43 // pred_region
          %v268 = vld [vmem:[%s263] sm:$0xff]
          %v269 = vld [vmem:[%s263 + $0x8] sm:$0xff]
          %v270 = vld [vmem:[%s263 + $0x10] sm:$0xff]
          %v271 = vld [vmem:[%s1] sm:$0xff]
          %v272 = vld [vmem:[%s1 + $0x8] sm:$0xff]
          %v273 = vld [vmem:[%s1 + $0x10] sm:$0xff]
          %v274 = vadd.f32 %v268, %v271
          %v275 = vadd.f32 %v269, %v272
          %v276 = vadd.f32 %v270, %v273
          %v277 = vld [vmem:[%s4] sm:$0xff]
          %v278 = vld [vmem:[%s4 + $0x8] sm:$0xff]
          %v279 = vld [vmem:[%s4 + $0x10] sm:$0xff]
          %v280 = vld [vmem:[%s4 + $0x18] sm:$0xff]
          %v281 = vld [vmem:[%s4 + $0x20] sm:$0xff]
          %v282 = vld [vmem:[%s4 + $0x28] sm:$0xff]
          %v283 = vld [vmem:[%s4 + $0x30] sm:$0xff]
          %v284 = vld [vmem:[%s4 + $0x38] sm:$0xff]
          %v285 = vld [vmem:[%s4 + $0x40] sm:$0xff]
          %v286 = vld [vmem:[%s4 + $0x48] sm:$0xff]
          %v287 = vld [vmem:[%s4 + $0x50] sm:$0xff]
          %v288 = vld [vmem:[%s4 + $0x58] sm:$0xff]
          %v289 = vld [vmem:[%s4 + $0x60] sm:$0xff]
          %v290 = vld [vmem:[%s4 + $0x68] sm:$0xff]
          %v291 = vld [vmem:[%s4 + $0x70] sm:$0xff]
          %v292 = vld [vmem:[%s4 + $0x78] sm:$0xff]
          %v293 = vld [vmem:[%s4 + $0x80] sm:$0xff]
          %v294 = vld [vmem:[%s4 + $0x88] sm:$0xff]
          %v295 = vld [vmem:[%s4 + $0x90] sm:$0xff]
          %v296 = vld [vmem:[%s4 + $0x98] sm:$0xff]
          %v297 = vld [vmem:[%s4 + $0xa0] sm:$0xff]
          %v298 = vld [vmem:[%s4 + $0xa8] sm:$0xff]
          %v299 = vld [vmem:[%s4 + $0xb0] sm:$0xff]
          %v300 = vld [vmem:[%s4 + $0xb8] sm:$0xff]
          %v301 = vld [vmem:[%s4 + $0xc0] sm:$0xff]
          %v302 = vld [vmem:[%s4 + $0xc8] sm:$0xff]
          %v303 = vld [vmem:[%s4 + $0xd0] sm:$0xff]
          %v304 = vld [vmem:[%s4 + $0xd8] sm:$0xff]
          %v305 = vld [vmem:[%s4 + $0xe0] sm:$0xff]
          %v306 = vld [vmem:[%s4 + $0xe8] sm:$0xff]
          %v307 = vld [vmem:[%s4 + $0xf0] sm:$0xff]
          %v308 = vld [vmem:[%s4 + $0xf8] sm:$0xff]
          %v309 = vld [vmem:[%s4 + $0x100] sm:$0xff]
          %v310 = vld [vmem:[%s4 + $0x108] sm:$0xff]
          %v311 = vld [vmem:[%s4 + $0x110] sm:$0xff]
          %v312 = vld [vmem:[%s4 + $0x118] sm:$0xff]
          %v313 = vld [vmem:[%s4 + $0x120] sm:$0xff]
          %v314 = vld [vmem:[%s4 + $0x128] sm:$0xff]
          %v315 = vld [vmem:[%s4 + $0x130] sm:$0xff]
          %v316 = vld [vmem:[%s4 + $0x138] sm:$0xff]
          %v317 = vld [vmem:[%s4 + $0x140] sm:$0xff]
          %v318 = vld [vmem:[%s4 + $0x148] sm:$0xff]
          %v319 = vld [vmem:[%s4 + $0x150] sm:$0xff]
          %v320 = vld [vmem:[%s4 + $0x158] sm:$0xff]
          %v321 = vld [vmem:[%s4 + $0x160] sm:$0xff]
          %v322 = vld [vmem:[%s4 + $0x168] sm:$0xff]
          %v323 = vld [vmem:[%s4 + $0x170] sm:$0xff]
          %v324 = vld [vmem:[%s4 + $0x178] sm:$0xff]
          %v325 = vld [vmem:[%s4 + $0x180] sm:$0xff]
          %v326 = vld [vmem:[%s4 + $0x188] sm:$0xff]
          %v327 = vld [vmem:[%s4 + $0x190] sm:$0xff]
          %v328 = vld [vmem:[%s4 + $0x198] sm:$0xff]
          %v329 = vld [vmem:[%s4 + $0x1a0] sm:$0xff]
          %v330 = vld [vmem:[%s4 + $0x1a8] sm:$0xff]
          %v331 = vld [vmem:[%s4 + $0x1b0] sm:$0xff]
          %v332 = vld [vmem:[%s4 + $0x1b8] sm:$0xff]
          %v333 = vld [vmem:[%s4 + $0x1c0] sm:$0xff]
          %v334 = vld [vmem:[%s4 + $0x1c8] sm:$0xff]
          %v335 = vld [vmem:[%s4 + $0x1d0] sm:$0xff]
          %v336 = vld [vmem:[%s4 + $0x1d8] sm:$0xff]
          %v337 = vld [vmem:[%s4 + $0x1e0] sm:$0xff]
          %v338 = vld [vmem:[%s4 + $0x1e8] sm:$0xff]
          %v339 = vld [vmem:[%s4 + $0x1f0] sm:$0xff]
          %v340 = vld [vmem:[%s4 + $0x1f8] sm:$0xff]
          %v341 = vld [vmem:[%s4 + $0x200] sm:$0xff]
          %v342 = vld [vmem:[%s4 + $0x208] sm:$0xff]
          %v343 = vld [vmem:[%s4 + $0x210] sm:$0xff]
          %v344 = vld [vmem:[%s4 + $0x218] sm:$0xff]
          %v345 = vld [vmem:[%s4 + $0x220] sm:$0xff]
          %v346 = vld [vmem:[%s4 + $0x228] sm:$0xff]
          %v347 = vld [vmem:[%s4 + $0x230] sm:$0xff]
          %v348 = vld [vmem:[%s4 + $0x238] sm:$0xff]
          %v349 = vld [vmem:[%s4 + $0x240] sm:$0xff]
          %v350 = vld [vmem:[%s4 + $0x248] sm:$0xff]
          %v351 = vld [vmem:[%s4 + $0x250] sm:$0xff]
          %v352 = vld [vmem:[%s4 + $0x258] sm:$0xff]
          %v353 = vld [vmem:[%s4 + $0x260] sm:$0xff]
          %v354 = vld [vmem:[%s4 + $0x268] sm:$0xff]
          %v355 = vld [vmem:[%s4 + $0x270] sm:$0xff]
          %v356 = vld [vmem:[%s4 + $0x278] sm:$0xff]
          %v357 = vld [vmem:[%s4 + $0x280] sm:$0xff]
          %v358 = vld [vmem:[%s4 + $0x288] sm:$0xff]
          %v359 = vld [vmem:[%s4 + $0x290] sm:$0xff]
          %v360 = vld [vmem:[%s4 + $0x298] sm:$0xff]
          %v361 = vld [vmem:[%s4 + $0x2a0] sm:$0xff]
          %v362 = vld [vmem:[%s4 + $0x2a8] sm:$0xff]
          %v363 = vld [vmem:[%s4 + $0x2b0] sm:$0xff]
          %v364 = vld [vmem:[%s4 + $0x2b8] sm:$0xff]
          %v365 = vld [vmem:[%s4 + $0x2c0] sm:$0xff]
          %v366 = vld [vmem:[%s4 + $0x2c8] sm:$0xff]
          %v367 = vld [vmem:[%s4 + $0x2d0] sm:$0xff]
          %v368 = vld [vmem:[%s4 + $0x2d8] sm:$0xff]
          %v369 = vld [vmem:[%s4 + $0x2e0] sm:$0xff]
          %v370 = vld [vmem:[%s4 + $0x2e8] sm:$0xff]
          %v371 = vld [vmem:[%s4 + $0x2f0] sm:$0xff]
          %v372 = vld [vmem:[%s4 + $0x2f8] sm:$0xff]
          %v373 = vld [vmem:[%s4 + $0x300] sm:$0xff]
          %v374 = vld [vmem:[%s4 + $0x308] sm:$0xff]
          %v375 = vld [vmem:[%s4 + $0x310] sm:$0xff]
          %v376 = vld [vmem:[%s4 + $0x318] sm:$0xff]
          %v377 = vld [vmem:[%s4 + $0x320] sm:$0xff]
          %v378 = vld [vmem:[%s4 + $0x328] sm:$0xff]
          %v379 = vld [vmem:[%s4 + $0x330] sm:$0xff]
          %v380 = vld [vmem:[%s4 + $0x338] sm:$0xff]
          %v381 = vld [vmem:[%s4 + $0x340] sm:$0xff]
          %v382 = vld [vmem:[%s4 + $0x348] sm:$0xff]
          %v383 = vld [vmem:[%s4 + $0x350] sm:$0xff]
          %v384 = vld [vmem:[%s4 + $0x358] sm:$0xff]
          %v385 = vld [vmem:[%s4 + $0x360] sm:$0xff]
          %v386 = vld [vmem:[%s4 + $0x368] sm:$0xff]
          %v387 = vld [vmem:[%s4 + $0x370] sm:$0xff]
          %v388 = vld [vmem:[%s4 + $0x378] sm:$0xff]
          %v389 = vld [vmem:[%s4 + $0x380] sm:$0xff]
          %v390 = vld [vmem:[%s4 + $0x388] sm:$0xff]
          %v391 = vld [vmem:[%s4 + $0x390] sm:$0xff]
          %v392 = vld [vmem:[%s4 + $0x398] sm:$0xff]
          %v393 = vld [vmem:[%s4 + $0x3a0] sm:$0xff]
          %v394 = vld [vmem:[%s4 + $0x3a8] sm:$0xff]
          %v395 = vld [vmem:[%s4 + $0x3b0] sm:$0xff]
          %v396 = vld [vmem:[%s4 + $0x3b8] sm:$0xff]
          %v397 = vld [vmem:[%s4 + $0x3c0] sm:$0xff]
          %v398 = vld [vmem:[%s4 + $0x3c8] sm:$0xff]
          %v399 = vld [vmem:[%s4 + $0x3d0] sm:$0xff]
          %v400 = vld [vmem:[%s4 + $0x3d8] sm:$0xff]
          %v401 = vld [vmem:[%s4 + $0x3e0] sm:$0xff]
          %v402 = vld [vmem:[%s4 + $0x3e8] sm:$0xff]
          %v403 = vld [vmem:[%s4 + $0x3f0] sm:$0xff]
          %v404 = vld [vmem:[%s4 + $0x3f8] sm:$0xff]
          %v405 = vld [vmem:[%s4 + $0x400] sm:$0xff]
          %v406 = vld [vmem:[%s4 + $0x408] sm:$0xff]
          %v407 = vld [vmem:[%s4 + $0x410] sm:$0xff]
          %v408 = vld [vmem:[%s4 + $0x418] sm:$0xff]
          %v409 = vld [vmem:[%s4 + $0x420] sm:$0xff]
          %v410 = vld [vmem:[%s4 + $0x428] sm:$0xff]
          %v411 = vld [vmem:[%s4 + $0x430] sm:$0xff]
          %v412 = vld [vmem:[%s4 + $0x438] sm:$0xff]
          %v413 = vld [vmem:[%s4 + $0x440] sm:$0xff]
          %v414 = vld [vmem:[%s4 + $0x448] sm:$0xff]
          %v415 = vld [vmem:[%s4 + $0x450] sm:$0xff]
          %v416 = vld [vmem:[%s4 + $0x458] sm:$0xff]
          %v417 = vld [vmem:[%s4 + $0x460] sm:$0xff]
          %v418 = vld [vmem:[%s4 + $0x468] sm:$0xff]
          %v419 = vld [vmem:[%s4 + $0x470] sm:$0xff]
          %v420 = vld [vmem:[%s4 + $0x478] sm:$0xff]
          %v421 = vld [vmem:[%s4 + $0x480] sm:$0xff]
          %v422 = vld [vmem:[%s4 + $0x488] sm:$0xff]
          %v423 = vld [vmem:[%s4 + $0x490] sm:$0xff]
          %v424 = vld [vmem:[%s4 + $0x498] sm:$0xff]
          %v425 = vld [vmem:[%s4 + $0x4a0] sm:$0xff]
          %v426 = vld [vmem:[%s4 + $0x4a8] sm:$0xff]
          %v427 = vld [vmem:[%s4 + $0x4b0] sm:$0xff]
          %v428 = vld [vmem:[%s4 + $0x4b8] sm:$0xff]
          %v429 = vld [vmem:[%s4 + $0x4c0] sm:$0xff]
          %v430 = vld [vmem:[%s4 + $0x4c8] sm:$0xff]
          %v431 = vld [vmem:[%s4 + $0x4d0] sm:$0xff]
          %v432 = vld [vmem:[%s4 + $0x4d8] sm:$0xff]
          %v433 = vld [vmem:[%s4 + $0x4e0] sm:$0xff]
          %v434 = vld [vmem:[%s4 + $0x4e8] sm:$0xff]
          %v435 = vld [vmem:[%s4 + $0x4f0] sm:$0xff]
          %v436 = vld [vmem:[%s4 + $0x4f8] sm:$0xff]
          %v437 = vld [vmem:[%s4 + $0x500] sm:$0xff]
          %v438 = vld [vmem:[%s4 + $0x508] sm:$0xff]
          %v439 = vld [vmem:[%s4 + $0x510] sm:$0xff]
          %v440 = vld [vmem:[%s4 + $0x518] sm:$0xff]
          %v441 = vld [vmem:[%s4 + $0x520] sm:$0xff]
          %v442 = vld [vmem:[%s4 + $0x528] sm:$0xff]
          %v443 = vld [vmem:[%s4 + $0x530] sm:$0xff]
          %v444 = vld [vmem:[%s4 + $0x538] sm:$0xff]
          %v445 = vld [vmem:[%s4 + $0x540] sm:$0xff]
          %v446 = vld [vmem:[%s4 + $0x548] sm:$0xff]
          %v447 = vld [vmem:[%s4 + $0x550] sm:$0xff]
          %v448 = vld [vmem:[%s4 + $0x558] sm:$0xff]
          %v449 = vld [vmem:[%s4 + $0x560] sm:$0xff]
          %v450 = vld [vmem:[%s4 + $0x568] sm:$0xff]
          %v451 = vld [vmem:[%s4 + $0x570] sm:$0xff]
          %v452 = vld [vmem:[%s4 + $0x578] sm:$0xff]
          %v453 = vld [vmem:[%s4 + $0x580] sm:$0xff]
          %v454 = vld [vmem:[%s4 + $0x588] sm:$0xff]
          %v455 = vld [vmem:[%s4 + $0x590] sm:$0xff]
          %v456 = vld [vmem:[%s4 + $0x598] sm:$0xff]
          %v457 = vld [vmem:[%s4 + $0x5a0] sm:$0xff]
          %v458 = vld [vmem:[%s4 + $0x5a8] sm:$0xff]
          %v459 = vld [vmem:[%s4 + $0x5b0] sm:$0xff]
          %v460 = vld [vmem:[%s4 + $0x5b8] sm:$0xff]
          %v461 = vld [vmem:[%s4 + $0x5c0] sm:$0xff]
          %v462 = vld [vmem:[%s4 + $0x5c8] sm:$0xff]
          %v463 = vld [vmem:[%s4 + $0x5d0] sm:$0xff]
          %v464 = vld [vmem:[%s4 + $0x5d8] sm:$0xff]
          %v465 = vld [vmem:[%s4 + $0x5e0] sm:$0xff]
          %v466 = vld [vmem:[%s4 + $0x5e8] sm:$0xff]
          %v467 = vld [vmem:[%s4 + $0x5f0] sm:$0xff]
          %v468 = vld [vmem:[%s4 + $0x5f8] sm:$0xff]
          %v469 = vld [vmem:[%s4 + $0x600] sm:$0xff]
          %v470 = vld [vmem:[%s4 + $0x608] sm:$0xff]
          %v471 = vld [vmem:[%s4 + $0x610] sm:$0xff]
          %v472 = vld [vmem:[%s4 + $0x618] sm:$0xff]
          %v473 = vld [vmem:[%s4 + $0x620] sm:$0xff]
          %v474 = vld [vmem:[%s4 + $0x628] sm:$0xff]
          %v475 = vld [vmem:[%s4 + $0x630] sm:$0xff]
          %v476 = vld [vmem:[%s4 + $0x638] sm:$0xff]
          %v477 = vld [vmem:[%s4 + $0x640] sm:$0xff]
          %v478 = vld [vmem:[%s4 + $0x648] sm:$0xff]
          %v479 = vld [vmem:[%s4 + $0x650] sm:$0xff]
          %v480 = vld [vmem:[%s4 + $0x658] sm:$0xff]
          %v481 = vld [vmem:[%s4 + $0x660] sm:$0xff]
          %v482 = vld [vmem:[%s4 + $0x668] sm:$0xff]
          %v483 = vld [vmem:[%s4 + $0x670] sm:$0xff]
          %v484 = vld [vmem:[%s4 + $0x678] sm:$0xff]
          %v485 = vld [vmem:[%s4 + $0x680] sm:$0xff]
          %v486 = vld [vmem:[%s4 + $0x688] sm:$0xff]
          %v487 = vld [vmem:[%s4 + $0x690] sm:$0xff]
          %v488 = vld [vmem:[%s4 + $0x698] sm:$0xff]
          %v489 = vld [vmem:[%s4 + $0x6a0] sm:$0xff]
          %v490 = vld [vmem:[%s4 + $0x6a8] sm:$0xff]
          %v491 = vld [vmem:[%s4 + $0x6b0] sm:$0xff]
          %v492 = vld [vmem:[%s4 + $0x6b8] sm:$0xff]
          %v493 = vld [vmem:[%s4 + $0x6c0] sm:$0xff]
          %v494 = vld [vmem:[%s4 + $0x6c8] sm:$0xff]
          %v495 = vld [vmem:[%s4 + $0x6d0] sm:$0xff]
          %v496 = vld [vmem:[%s4 + $0x6d8] sm:$0xff]
          %v497 = vld [vmem:[%s4 + $0x6e0] sm:$0xff]
          %v498 = vld [vmem:[%s4 + $0x6e8] sm:$0xff]
          %v499 = vld [vmem:[%s4 + $0x6f0] sm:$0xff]
          %v500 = vld [vmem:[%s4 + $0x6f8] sm:$0xff]
          %v501 = vld [vmem:[%s4 + $0x700] sm:$0xff]
          %v502 = vld [vmem:[%s4 + $0x708] sm:$0xff]
          %v503 = vld [vmem:[%s4 + $0x710] sm:$0xff]
          %v504 = vld [vmem:[%s4 + $0x718] sm:$0xff]
          %v505 = vld [vmem:[%s4 + $0x720] sm:$0xff]
          %v506 = vld [vmem:[%s4 + $0x728] sm:$0xff]
          %v507 = vld [vmem:[%s4 + $0x730] sm:$0xff]
          %v508 = vld [vmem:[%s4 + $0x738] sm:$0xff]
          %v509 = vld [vmem:[%s4 + $0x740] sm:$0xff]
          %v510 = vld [vmem:[%s4 + $0x748] sm:$0xff]
          %v511 = vld [vmem:[%s4 + $0x750] sm:$0xff]
          %v512 = vld [vmem:[%s4 + $0x758] sm:$0xff]
          %v513 = vld [vmem:[%s4 + $0x760] sm:$0xff]
          %v514 = vld [vmem:[%s4 + $0x768] sm:$0xff]
          %v515 = vld [vmem:[%s4 + $0x770] sm:$0xff]
          %v516 = vld [vmem:[%s4 + $0x778] sm:$0xff]
          %v517 = vld [vmem:[%s4 + $0x780] sm:$0xff]
          %v518 = vld [vmem:[%s4 + $0x788] sm:$0xff]
          %v519 = vld [vmem:[%s4 + $0x790] sm:$0xff]
          %v520 = vld [vmem:[%s4 + $0x798] sm:$0xff]
          %v521 = vld [vmem:[%s4 + $0x7a0] sm:$0xff]
          %v522 = vld [vmem:[%s4 + $0x7a8] sm:$0xff]
          %v523 = vld [vmem:[%s4 + $0x7b0] sm:$0xff]
          %v524 = vld [vmem:[%s4 + $0x7b8] sm:$0xff]
          %v525 = vld [vmem:[%s4 + $0x7c0] sm:$0xff]
          %v526 = vld [vmem:[%s4 + $0x7c8] sm:$0xff]
          %v527 = vld [vmem:[%s4 + $0x7d0] sm:$0xff]
          %v528 = vld [vmem:[%s4 + $0x7d8] sm:$0xff]
          %v529 = vld [vmem:[%s4 + $0x7e0] sm:$0xff]
          %v530 = vld [vmem:[%s4 + $0x7e8] sm:$0xff]
          %v531 = vld [vmem:[%s4 + $0x7f0] sm:$0xff]
          %v532 = vld [vmem:[%s4 + $0x7f8] sm:$0xff]
          %v533 = vld [vmem:[%s4 + $0x800] sm:$0xff]
          %v534 = vld [vmem:[%s4 + $0x808] sm:$0xff]
          %v535 = vld [vmem:[%s4 + $0x810] sm:$0xff]
          %v536 = vld [vmem:[%s4 + $0x818] sm:$0xf]
          %v537 = vld [vmem:[%s4 + $0x820] sm:$0xf]
          %v538 = vld [vmem:[%s4 + $0x828] sm:$0xf]
          %v539 = vld [vmem:[%s4 + $0x830] sm:$0xf]
          %v540 = vld [vmem:[%s4 + $0x838] sm:$0xf]
          %v541 = vld [vmem:[%s4 + $0x840] sm:$0xf]
          %v542 = vld [vmem:[%s4 + $0x848] sm:$0xf]
          %v543 = vld [vmem:[%s5] sm:$0x7f]
          %v545 = vlaneseq
          %v546 = vshrl.u32 %v545, 7
          %v547 = vsub.s32 0, %v546
          %v548 = vrot.slane %v543, %v547
          %v549 = vlaneseq
          %v550 = vshrl.u32 %v549, 7
          %v551 = vsub.s32 1, %v550
          %v552 = vrot.slane %v543, %v551
          %v553 = vlaneseq
          %v554 = vshrl.u32 %v553, 7
          %v555 = vsub.s32 2, %v554
          %v556 = vrot.slane %v543, %v555
          %v557 = vlaneseq
          %v558 = vshrl.u32 %v557, 7
          %v559 = vsub.s32 3, %v558
          %v560 = vrot.slane %v543, %v559
          %v561 = vlaneseq
          %v562 = vshrl.u32 %v561, 7
          %v563 = vsub.s32 4, %v562
          %v564 = vrot.slane %v543, %v563
          %v565 = vlaneseq
          %v566 = vshrl.u32 %v565, 7
          %v567 = vsub.s32 5, %v566
          %v568 = vrot.slane %v543, %v567
          %v569 = vlaneseq
          %v570 = vshrl.u32 %v569, 7
          %v571 = vsub.s32 6, %v570
          %v572 = vrot.slane %v543, %v571
          %vm580 = vcmask 359424
          %v582 = vsel %vm580, %v276, 0
          %vm584 = vcmask 1043456
          %v586 = vsel %vm584, %v536, 0
          %v589 = vsel %vm584, %v537, 0
          %v592 = vsel %vm584, %v538, 0
          %v595 = vsel %vm584, %v539, 0
          %v598 = vsel %vm584, %v540, 0
          %v601 = vsel %vm584, %v541, 0
          %v604 = vsel %vm584, %v542, 0
          %606 = vmatprep.subr.mxu0 %v383
          %607 = vmatpush1.msra.mxu0 %v382
          %608 = vmatprep.subr.mxu0 %v376
          %609 = vmatpush1.msra.mxu0 %v375
          %610 = vmatprep.subr.mxu0 %v369
          %611 = vmatpush1.msra.mxu0 %v368
          %612 = vmatprep.subr.mxu0 %v362
          %613 = vmatpush1.msra.mxu0 %v361
          %614 = vmatprep.subr.mxu0 %v355
          %615 = vmatpush1.msra.mxu0 %v354
          %616 = vmatprep.subr.mxu0 %v348
          %617 = vmatpush1.msra.mxu0 %v347
          %618 = vmatprep.subr.mxu0 %v341
          %619 = vmatpush1.msra.mxu0 %v340
          %620 = vmatprep.subr.mxu0 %v334
          %621 = vmatpush1.msra.mxu0 %v333
          %622 = vmatprep.subr.mxu0 %v327
          %623 = vmatpush1.msra.mxu0 %v326
          %624 = vmatprep.subr.mxu0 %v320
          %625 = vmatpush1.msra.mxu0 %v319
          %626 = vmatprep.subr.mxu0 %v313
          %627 = vmatpush1.msra.mxu0 %v312
          %628 = vmatprep.subr.mxu0 %v306
          %629 = vmatpush1.msra.mxu0 %v305
          %630 = vmatprep.subr.mxu0 %v299
          %631 = vmatpush1.msra.mxu0 %v298
          %632 = vmatprep.subr.mxu0 %v292
          %633 = vmatpush1.msra.mxu0 %v291
          %634 = vmatprep.subr.mxu0 %v285
          %635 = vmatpush1.msra.mxu0 %v284
          %636 = vmatprep.subr.mxu0 %v278
          %637 = vmatpush1.msra.mxu0 %v277
          %638 = vmatprep.subr.mxu0 %v495
          %639 = vmatpush2.msra.mxu0 %v494
          %640 = vmatprep.subr.mxu0 %v488
          %641 = vmatpush2.msra.mxu0 %v487
          %642 = vmatprep.subr.mxu0 %v481
          %643 = vmatpush2.msra.mxu0 %v480
          %644 = vmatprep.subr.mxu0 %v474
          %645 = vmatpush2.msra.mxu0 %v473
          %646 = vmatprep.subr.mxu0 %v467
          %647 = vmatpush2.msra.mxu0 %v466
          %648 = vmatprep.subr.mxu0 %v460
          %649 = vmatpush2.msra.mxu0 %v459
          %650 = vmatprep.subr.mxu0 %v453
          %651 = vmatpush2.msra.mxu0 %v452
          %652 = vmatprep.subr.mxu0 %v446
          %653 = vmatpush2.msra.mxu0 %v445
          %654 = vmatprep.subr.mxu0 %v439
          %655 = vmatpush2.msra.mxu0 %v438
          %656 = vmatprep.subr.mxu0 %v432
          %657 = vmatpush2.msra.mxu0 %v431
          %658 = vmatprep.subr.mxu0 %v425
          %659 = vmatpush2.msra.mxu0 %v424
          %660 = vmatprep.subr.mxu0 %v418
          %661 = vmatpush2.msra.mxu0 %v417
          %662 = vmatprep.subr.mxu0 %v411
          %663 = vmatpush2.msra.mxu0 %v410
          %664 = vmatprep.subr.mxu0 %v404
          %665 = vmatpush2.msra.mxu0 %v403
          %666 = vmatprep.subr.mxu0 %v397
          %667 = vmatpush2.msra.mxu0 %v396
          %668 = vmatprep.subr.mxu0 %v390
          %669 = vmatpush2.msra.mxu0 %v389
          %670 = vmatprep.mubr.f32.mxu0 %v275
          %671 = vmatmul.mubr.f32.gmra.mxu0 %v274
          %v672 = vpop.f32.mrf.mxu0
          %v673 = vadd.f32 %v548, %v672
          %v674 = vpop.f32.mrf.mxu0
          %v675 = vadd.f32 %v552, %v674
          %676 = vdwg.mxu0
          %677 = vmatprep.subr.mxu0 0.0
          %678 = vmatpush1.msra.mxu0 0.0
          %679 = vmatprep.subr.mxu0 0.0
          %680 = vmatpush1.msra.mxu0 0.0
          %681 = vmatprep.subr.mxu0 0.0
          %682 = vmatpush1.msra.mxu0 0.0
          %683 = vmatprep.subr.mxu0 0.0
          %684 = vmatpush1.msra.mxu0 0.0
          %685 = vmatprep.subr.mxu0 0.0
          %686 = vmatpush1.msra.mxu0 0.0
          %687 = vmatprep.subr.mxu0 0.0
          %688 = vmatpush1.msra.mxu0 0.0
          %689 = vmatprep.subr.mxu0 0.0
          %690 = vmatpush1.msra.mxu0 0.0
          %691 = vmatprep.subr.mxu0 0.0
          %692 = vmatpush1.msra.mxu0 0.0
          %693 = vmatprep.subr.mxu0 0.0
          %694 = vmatpush1.msra.mxu0 0.0
          %695 = vmatprep.subr.mxu0 0.0
          %696 = vmatpush1.msra.mxu0 0.0
          %697 = vmatprep.subr.mxu0 %v589
          %698 = vmatpush1.msra.mxu0 %v586
          %699 = vmatprep.subr.mxu0 %v530
          %700 = vmatpush1.msra.mxu0 %v529
          %701 = vmatprep.subr.mxu0 %v523
          %702 = vmatpush1.msra.mxu0 %v522
          %703 = vmatprep.subr.mxu0 %v516
          %704 = vmatpush1.msra.mxu0 %v515
          %705 = vmatprep.subr.mxu0 %v509
          %706 = vmatpush1.msra.mxu0 %v508
          %707 = vmatprep.subr.mxu0 %v502
          %708 = vmatpush1.msra.mxu0 %v501
          %709 = vmatprep.subr.mxu0 0.0
          %710 = vmatpush2.msra.mxu0 0.0
          %711 = vmatprep.subr.mxu0 0.0
          %712 = vmatpush2.msra.mxu0 0.0
          %713 = vmatprep.subr.mxu0 0.0
          %714 = vmatpush2.msra.mxu0 0.0
          %715 = vmatprep.subr.mxu0 0.0
          %716 = vmatpush2.msra.mxu0 0.0
          %717 = vmatprep.subr.mxu0 0.0
          %718 = vmatpush2.msra.mxu0 0.0
          %719 = vmatprep.subr.mxu0 0.0
          %720 = vmatpush2.msra.mxu0 0.0
          %721 = vmatprep.subr.mxu0 0.0
          %722 = vmatpush2.msra.mxu0 0.0
          %723 = vmatprep.subr.mxu0 0.0
          %724 = vmatpush2.msra.mxu0 0.0
          %725 = vmatprep.subr.mxu0 0.0
          %726 = vmatpush2.msra.mxu0 0.0
          %727 = vmatprep.subr.mxu0 0.0
          %728 = vmatpush2.msra.mxu0 0.0
          %729 = vmatprep.subr.mxu0 0.0
          %730 = vmatpush2.msra.mxu0 0.0
          %731 = vmatprep.subr.mxu0 0.0
          %732 = vmatpush2.msra.mxu0 0.0
          %733 = vmatprep.subr.mxu0 0.0
          %734 = vmatpush2.msra.mxu0 0.0
          %735 = vmatprep.subr.mxu0 0.0
          %736 = vmatpush2.msra.mxu0 0.0
          %737 = vmatprep.subr.mxu0 0.0
          %738 = vmatpush2.msra.mxu0 0.0
          %739 = vmatprep.subr.mxu0 0.0
          %740 = vmatpush2.msra.mxu0 0.0
          %741 = vmatprep.mubr.f32.mxu0 0.0
          %742 = vmatmul.mubr.f32.gmra.mxu0 %v582
          %v743 = vpop.f32.mrf.mxu0
          %v744 = vadd.f32 %v673, %v743
          %v745 = vpop.f32.mrf.mxu0
          %v746 = vadd.f32 %v675, %v745
          %747 = vdwg.mxu0
          %748 = vmatprep.subr.mxu0 %v385
          %749 = vmatpush1.msra.mxu0 %v384
          %750 = vmatprep.subr.mxu0 %v378
          %751 = vmatpush1.msra.mxu0 %v377
          %752 = vmatprep.subr.mxu0 %v371
          %753 = vmatpush1.msra.mxu0 %v370
          %754 = vmatprep.subr.mxu0 %v364
          %755 = vmatpush1.msra.mxu0 %v363
          %756 = vmatprep.subr.mxu0 %v357
          %757 = vmatpush1.msra.mxu0 %v356
          %758 = vmatprep.subr.mxu0 %v350
          %759 = vmatpush1.msra.mxu0 %v349
          %760 = vmatprep.subr.mxu0 %v343
          %761 = vmatpush1.msra.mxu0 %v342
          %762 = vmatprep.subr.mxu0 %v336
          %763 = vmatpush1.msra.mxu0 %v335
          %764 = vmatprep.subr.mxu0 %v329
          %765 = vmatpush1.msra.mxu0 %v328
          %766 = vmatprep.subr.mxu0 %v322
          %767 = vmatpush1.msra.mxu0 %v321
          %768 = vmatprep.subr.mxu0 %v315
          %769 = vmatpush1.msra.mxu0 %v314
          %770 = vmatprep.subr.mxu0 %v308
          %771 = vmatpush1.msra.mxu0 %v307
          %772 = vmatprep.subr.mxu0 %v301
          %773 = vmatpush1.msra.mxu0 %v300
          %774 = vmatprep.subr.mxu0 %v294
          %775 = vmatpush1.msra.mxu0 %v293
          %776 = vmatprep.subr.mxu0 %v287
          %777 = vmatpush1.msra.mxu0 %v286
          %778 = vmatprep.subr.mxu0 %v280
          %779 = vmatpush1.msra.mxu0 %v279
          %780 = vmatprep.subr.mxu0 %v497
          %781 = vmatpush2.msra.mxu0 %v496
          %782 = vmatprep.subr.mxu0 %v490
          %783 = vmatpush2.msra.mxu0 %v489
          %784 = vmatprep.subr.mxu0 %v483
          %785 = vmatpush2.msra.mxu0 %v482
          %786 = vmatprep.subr.mxu0 %v476
          %787 = vmatpush2.msra.mxu0 %v475
          %788 = vmatprep.subr.mxu0 %v469
          %789 = vmatpush2.msra.mxu0 %v468
          %790 = vmatprep.subr.mxu0 %v462
          %791 = vmatpush2.msra.mxu0 %v461
          %792 = vmatprep.subr.mxu0 %v455
          %793 = vmatpush2.msra.mxu0 %v454
          %794 = vmatprep.subr.mxu0 %v448
          %795 = vmatpush2.msra.mxu0 %v447
          %796 = vmatprep.subr.mxu0 %v441
          %797 = vmatpush2.msra.mxu0 %v440
          %798 = vmatprep.subr.mxu0 %v434
          %799 = vmatpush2.msra.mxu0 %v433
          %800 = vmatprep.subr.mxu0 %v427
          %801 = vmatpush2.msra.mxu0 %v426
          %802 = vmatprep.subr.mxu0 %v420
          %803 = vmatpush2.msra.mxu0 %v419
          %804 = vmatprep.subr.mxu0 %v413
          %805 = vmatpush2.msra.mxu0 %v412
          %806 = vmatprep.subr.mxu0 %v406
          %807 = vmatpush2.msra.mxu0 %v405
          %808 = vmatprep.subr.mxu0 %v399
          %809 = vmatpush2.msra.mxu0 %v398
          %810 = vmatprep.subr.mxu0 %v392
          %811 = vmatpush2.msra.mxu0 %v391
          %812 = vmatprep.mubr.f32.mxu0 %v275
          %813 = vmatmul.mubr.f32.gmra.mxu0 %v274
          %v814 = vpop.f32.mrf.mxu0
          %v815 = vadd.f32 %v556, %v814
          %v816 = vpop.f32.mrf.mxu0
          %v817 = vadd.f32 %v560, %v816
          %818 = vdwg.mxu0
          %819 = vmatprep.subr.mxu0 0.0
          %820 = vmatpush1.msra.mxu0 0.0
          %821 = vmatprep.subr.mxu0 0.0
          %822 = vmatpush1.msra.mxu0 0.0
          %823 = vmatprep.subr.mxu0 0.0
          %824 = vmatpush1.msra.mxu0 0.0
          %825 = vmatprep.subr.mxu0 0.0
          %826 = vmatpush1.msra.mxu0 0.0
          %827 = vmatprep.subr.mxu0 0.0
          %828 = vmatpush1.msra.mxu0 0.0
          %829 = vmatprep.subr.mxu0 0.0
          %830 = vmatpush1.msra.mxu0 0.0
          %831 = vmatprep.subr.mxu0 0.0
          %832 = vmatpush1.msra.mxu0 0.0
          %833 = vmatprep.subr.mxu0 0.0
          %834 = vmatpush1.msra.mxu0 0.0
          %835 = vmatprep.subr.mxu0 0.0
          %836 = vmatpush1.msra.mxu0 0.0
          %837 = vmatprep.subr.mxu0 0.0
          %838 = vmatpush1.msra.mxu0 0.0
          %839 = vmatprep.subr.mxu0 %v595
          %840 = vmatpush1.msra.mxu0 %v592
          %841 = vmatprep.subr.mxu0 %v532
          %842 = vmatpush1.msra.mxu0 %v531
          %843 = vmatprep.subr.mxu0 %v525
          %844 = vmatpush1.msra.mxu0 %v524
          %845 = vmatprep.subr.mxu0 %v518
          %846 = vmatpush1.msra.mxu0 %v517
          %847 = vmatprep.subr.mxu0 %v511
          %848 = vmatpush1.msra.mxu0 %v510
          %849 = vmatprep.subr.mxu0 %v504
          %850 = vmatpush1.msra.mxu0 %v503
          %851 = vmatprep.subr.mxu0 0.0
          %852 = vmatpush2.msra.mxu0 0.0
          %853 = vmatprep.subr.mxu0 0.0
          %854 = vmatpush2.msra.mxu0 0.0
          %855 = vmatprep.subr.mxu0 0.0
          %856 = vmatpush2.msra.mxu0 0.0
          %857 = vmatprep.subr.mxu0 0.0
          %858 = vmatpush2.msra.mxu0 0.0
          %859 = vmatprep.subr.mxu0 0.0
          %860 = vmatpush2.msra.mxu0 0.0
          %861 = vmatprep.subr.mxu0 0.0
          %862 = vmatpush2.msra.mxu0 0.0
          %863 = vmatprep.subr.mxu0 0.0
          %864 = vmatpush2.msra.mxu0 0.0
          %865 = vmatprep.subr.mxu0 0.0
          %866 = vmatpush2.msra.mxu0 0.0
          %867 = vmatprep.subr.mxu0 0.0
          %868 = vmatpush2.msra.mxu0 0.0
          %869 = vmatprep.subr.mxu0 0.0
          %870 = vmatpush2.msra.mxu0 0.0
          %871 = vmatprep.subr.mxu0 0.0
          %872 = vmatpush2.msra.mxu0 0.0
          %873 = vmatprep.subr.mxu0 0.0
          %874 = vmatpush2.msra.mxu0 0.0
          %875 = vmatprep.subr.mxu0 0.0
          %876 = vmatpush2.msra.mxu0 0.0
          %877 = vmatprep.subr.mxu0 0.0
          %878 = vmatpush2.msra.mxu0 0.0
          %879 = vmatprep.subr.mxu0 0.0
          %880 = vmatpush2.msra.mxu0 0.0
          %881 = vmatprep.subr.mxu0 0.0
          %882 = vmatpush2.msra.mxu0 0.0
          %883 = vmatprep.mubr.f32.mxu0 0.0
          %884 = vmatmul.mubr.f32.gmra.mxu0 %v582
          %v885 = vpop.f32.mrf.mxu0
          %v886 = vadd.f32 %v815, %v885
          %v887 = vpop.f32.mrf.mxu0
          %v888 = vadd.f32 %v817, %v887
          %889 = vdwg.mxu0
          %890 = vmatprep.subr.mxu0 %v387
          %891 = vmatpush1.msra.mxu0 %v386
          %892 = vmatprep.subr.mxu0 %v380
          %893 = vmatpush1.msra.mxu0 %v379
          %894 = vmatprep.subr.mxu0 %v373
          %895 = vmatpush1.msra.mxu0 %v372
          %896 = vmatprep.subr.mxu0 %v366
          %897 = vmatpush1.msra.mxu0 %v365
          %898 = vmatprep.subr.mxu0 %v359
          %899 = vmatpush1.msra.mxu0 %v358
          %900 = vmatprep.subr.mxu0 %v352
          %901 = vmatpush1.msra.mxu0 %v351
          %902 = vmatprep.subr.mxu0 %v345
          %903 = vmatpush1.msra.mxu0 %v344
          %904 = vmatprep.subr.mxu0 %v338
          %905 = vmatpush1.msra.mxu0 %v337
          %906 = vmatprep.subr.mxu0 %v331
          %907 = vmatpush1.msra.mxu0 %v330
          %908 = vmatprep.subr.mxu0 %v324
          %909 = vmatpush1.msra.mxu0 %v323
          %910 = vmatprep.subr.mxu0 %v317
          %911 = vmatpush1.msra.mxu0 %v316
          %912 = vmatprep.subr.mxu0 %v310
          %913 = vmatpush1.msra.mxu0 %v309
          %914 = vmatprep.subr.mxu0 %v303
          %915 = vmatpush1.msra.mxu0 %v302
          %916 = vmatprep.subr.mxu0 %v296
          %917 = vmatpush1.msra.mxu0 %v295
          %918 = vmatprep.subr.mxu0 %v289
          %919 = vmatpush1.msra.mxu0 %v288
          %920 = vmatprep.subr.mxu0 %v282
          %921 = vmatpush1.msra.mxu0 %v281
          %922 = vmatprep.subr.mxu0 %v499
          %923 = vmatpush2.msra.mxu0 %v498
          %924 = vmatprep.subr.mxu0 %v492
          %925 = vmatpush2.msra.mxu0 %v491
          %926 = vmatprep.subr.mxu0 %v485
          %927 = vmatpush2.msra.mxu0 %v484
          %928 = vmatprep.subr.mxu0 %v478
          %929 = vmatpush2.msra.mxu0 %v477
          %930 = vmatprep.subr.mxu0 %v471
          %931 = vmatpush2.msra.mxu0 %v470
          %932 = vmatprep.subr.mxu0 %v464
          %933 = vmatpush2.msra.mxu0 %v463
          %934 = vmatprep.subr.mxu0 %v457
          %935 = vmatpush2.msra.mxu0 %v456
          %936 = vmatprep.subr.mxu0 %v450
          %937 = vmatpush2.msra.mxu0 %v449
          %938 = vmatprep.subr.mxu0 %v443
          %939 = vmatpush2.msra.mxu0 %v442
          %940 = vmatprep.subr.mxu0 %v436
          %941 = vmatpush2.msra.mxu0 %v435
          %942 = vmatprep.subr.mxu0 %v429
          %943 = vmatpush2.msra.mxu0 %v428
          %944 = vmatprep.subr.mxu0 %v422
          %945 = vmatpush2.msra.mxu0 %v421
          %946 = vmatprep.subr.mxu0 %v415
          %947 = vmatpush2.msra.mxu0 %v414
          %948 = vmatprep.subr.mxu0 %v408
          %949 = vmatpush2.msra.mxu0 %v407
          %950 = vmatprep.subr.mxu0 %v401
          %951 = vmatpush2.msra.mxu0 %v400
          %952 = vmatprep.subr.mxu0 %v394
          %953 = vmatpush2.msra.mxu0 %v393
          %954 = vmatprep.mubr.f32.mxu0 %v275
          %955 = vmatmul.mubr.f32.gmra.mxu0 %v274
          %v956 = vpop.f32.mrf.mxu0
          %v957 = vadd.f32 %v564, %v956
          %v958 = vpop.f32.mrf.mxu0
          %v959 = vadd.f32 %v568, %v958
          %960 = vdwg.mxu0
          %961 = vmatprep.subr.mxu0 0.0
          %962 = vmatpush1.msra.mxu0 0.0
          %963 = vmatprep.subr.mxu0 0.0
          %964 = vmatpush1.msra.mxu0 0.0
          %965 = vmatprep.subr.mxu0 0.0
          %966 = vmatpush1.msra.mxu0 0.0
          %967 = vmatprep.subr.mxu0 0.0
          %968 = vmatpush1.msra.mxu0 0.0
          %969 = vmatprep.subr.mxu0 0.0
          %970 = vmatpush1.msra.mxu0 0.0
          %971 = vmatprep.subr.mxu0 0.0
          %972 = vmatpush1.msra.mxu0 0.0
          %973 = vmatprep.subr.mxu0 0.0
          %974 = vmatpush1.msra.mxu0 0.0
          %975 = vmatprep.subr.mxu0 0.0
          %976 = vmatpush1.msra.mxu0 0.0
          %977 = vmatprep.subr.mxu0 0.0
          %978 = vmatpush1.msra.mxu0 0.0
          %979 = vmatprep.subr.mxu0 0.0
          %980 = vmatpush1.msra.mxu0 0.0
          %981 = vmatprep.subr.mxu0 %v601
          %982 = vmatpush1.msra.mxu0 %v598
          %983 = vmatprep.subr.mxu0 %v534
          %984 = vmatpush1.msra.mxu0 %v533
          %985 = vmatprep.subr.mxu0 %v527
          %986 = vmatpush1.msra.mxu0 %v526
          %987 = vmatprep.subr.mxu0 %v520
          %988 = vmatpush1.msra.mxu0 %v519
          %989 = vmatprep.subr.mxu0 %v513
          %990 = vmatpush1.msra.mxu0 %v512
          %991 = vmatprep.subr.mxu0 %v506
          %992 = vmatpush1.msra.mxu0 %v505
          %993 = vmatprep.subr.mxu0 0.0
          %994 = vmatpush2.msra.mxu0 0.0
          %995 = vmatprep.subr.mxu0 0.0
          %996 = vmatpush2.msra.mxu0 0.0
          %997 = vmatprep.subr.mxu0 0.0
          %998 = vmatpush2.msra.mxu0 0.0
          %999 = vmatprep.subr.mxu0 0.0
          %1000 = vmatpush2.msra.mxu0 0.0
          %1001 = vmatprep.subr.mxu0 0.0
          %1002 = vmatpush2.msra.mxu0 0.0
          %1003 = vmatprep.subr.mxu0 0.0
          %1004 = vmatpush2.msra.mxu0 0.0
          %1005 = vmatprep.subr.mxu0 0.0
          %1006 = vmatpush2.msra.mxu0 0.0
          %1007 = vmatprep.subr.mxu0 0.0
          %1008 = vmatpush2.msra.mxu0 0.0
          %1009 = vmatprep.subr.mxu0 0.0
          %1010 = vmatpush2.msra.mxu0 0.0
          %1011 = vmatprep.subr.mxu0 0.0
          %1012 = vmatpush2.msra.mxu0 0.0
          %1013 = vmatprep.subr.mxu0 0.0
          %1014 = vmatpush2.msra.mxu0 0.0
          %1015 = vmatprep.subr.mxu0 0.0
          %1016 = vmatpush2.msra.mxu0 0.0
          %1017 = vmatprep.subr.mxu0 0.0
          %1018 = vmatpush2.msra.mxu0 0.0
          %1019 = vmatprep.subr.mxu0 0.0
          %1020 = vmatpush2.msra.mxu0 0.0
          %1021 = vmatprep.subr.mxu0 0.0
          %1022 = vmatpush2.msra.mxu0 0.0
          %1023 = vmatprep.subr.mxu0 0.0
          %1024 = vmatpush2.msra.mxu0 0.0
          %1025 = vmatprep.mubr.f32.mxu0 0.0
          %1026 = vmatmul.mubr.f32.gmra.mxu0 %v582
          %v1027 = vpop.f32.mrf.mxu0
          %v1028 = vadd.f32 %v957, %v1027
          %v1029 = vpop.f32.mrf.mxu0
          %v1030 = vadd.f32 %v959, %v1029
          %1031 = vdwg.mxu0
          %1032 = vmatprep.subr.mxu0 0.0
          %1033 = vmatpush1.msra.mxu0 %v388
          %1034 = vmatprep.subr.mxu0 0.0
          %1035 = vmatpush1.msra.mxu0 %v381
          %1036 = vmatprep.subr.mxu0 0.0
          %1037 = vmatpush1.msra.mxu0 %v374
          %1038 = vmatprep.subr.mxu0 0.0
          %1039 = vmatpush1.msra.mxu0 %v367
          %1040 = vmatprep.subr.mxu0 0.0
          %1041 = vmatpush1.msra.mxu0 %v360
          %1042 = vmatprep.subr.mxu0 0.0
          %1043 = vmatpush1.msra.mxu0 %v353
          %1044 = vmatprep.subr.mxu0 0.0
          %1045 = vmatpush1.msra.mxu0 %v346
          %1046 = vmatprep.subr.mxu0 0.0
          %1047 = vmatpush1.msra.mxu0 %v339
          %1048 = vmatprep.subr.mxu0 0.0
          %1049 = vmatpush1.msra.mxu0 %v332
          %1050 = vmatprep.subr.mxu0 0.0
          %1051 = vmatpush1.msra.mxu0 %v325
          %1052 = vmatprep.subr.mxu0 0.0
          %1053 = vmatpush1.msra.mxu0 %v318
          %1054 = vmatprep.subr.mxu0 0.0
          %1055 = vmatpush1.msra.mxu0 %v311
          %1056 = vmatprep.subr.mxu0 0.0
          %1057 = vmatpush1.msra.mxu0 %v304
          %1058 = vmatprep.subr.mxu0 0.0
          %1059 = vmatpush1.msra.mxu0 %v297
          %1060 = vmatprep.subr.mxu0 0.0
          %1061 = vmatpush1.msra.mxu0 %v290
          %1062 = vmatprep.subr.mxu0 0.0
          %1063 = vmatpush1.msra.mxu0 %v283
          %1064 = vmatprep.subr.mxu0 0.0
          %1065 = vmatpush2.msra.mxu0 %v500
          %1066 = vmatprep.subr.mxu0 0.0
          %1067 = vmatpush2.msra.mxu0 %v493
          %1068 = vmatprep.subr.mxu0 0.0
          %1069 = vmatpush2.msra.mxu0 %v486
          %1070 = vmatprep.subr.mxu0 0.0
          %1071 = vmatpush2.msra.mxu0 %v479
          %1072 = vmatprep.subr.mxu0 0.0
          %1073 = vmatpush2.msra.mxu0 %v472
          %1074 = vmatprep.subr.mxu0 0.0
          %1075 = vmatpush2.msra.mxu0 %v465
          %1076 = vmatprep.subr.mxu0 0.0
          %1077 = vmatpush2.msra.mxu0 %v458
          %1078 = vmatprep.subr.mxu0 0.0
          %1079 = vmatpush2.msra.mxu0 %v451
          %1080 = vmatprep.subr.mxu0 0.0
          %1081 = vmatpush2.msra.mxu0 %v444
          %1082 = vmatprep.subr.mxu0 0.0
          %1083 = vmatpush2.msra.mxu0 %v437
          %1084 = vmatprep.subr.mxu0 0.0
          %1085 = vmatpush2.msra.mxu0 %v430
          %1086 = vmatprep.subr.mxu0 0.0
          %1087 = vmatpush2.msra.mxu0 %v423
          %1088 = vmatprep.subr.mxu0 0.0
          %1089 = vmatpush2.msra.mxu0 %v416
          %1090 = vmatprep.subr.mxu0 0.0
          %1091 = vmatpush2.msra.mxu0 %v409
          %1092 = vmatprep.subr.mxu0 0.0
          %1093 = vmatpush2.msra.mxu0 %v402
          %1094 = vmatprep.subr.mxu0 0.0
          %1095 = vmatpush2.msra.mxu0 %v395
          %1096 = vmatprep.mubr.f32.mxu0 %v275
          %1097 = vmatmul.mubr.f32.gmra.mxu0 %v274
          %v1098 = vpop.f32.mrf.mxu0
          %v1099 = vadd.f32 %v572, %v1098
          %v1100 = vpop.f32.mrf.mxu0
          %1101 = vdwg.mxu0
          %1102 = vmatprep.subr.mxu0 0.0
          %1103 = vmatpush1.msra.mxu0 0.0
          %1104 = vmatprep.subr.mxu0 0.0
          %1105 = vmatpush1.msra.mxu0 0.0
          %1106 = vmatprep.subr.mxu0 0.0
          %1107 = vmatpush1.msra.mxu0 0.0
          %1108 = vmatprep.subr.mxu0 0.0
          %1109 = vmatpush1.msra.mxu0 0.0
          %1110 = vmatprep.subr.mxu0 0.0
          %1111 = vmatpush1.msra.mxu0 0.0
          %1112 = vmatprep.subr.mxu0 0.0
          %1113 = vmatpush1.msra.mxu0 0.0
          %1114 = vmatprep.subr.mxu0 0.0
          %1115 = vmatpush1.msra.mxu0 0.0
          %1116 = vmatprep.subr.mxu0 0.0
          %1117 = vmatpush1.msra.mxu0 0.0
          %1118 = vmatprep.subr.mxu0 0.0
          %1119 = vmatpush1.msra.mxu0 0.0
          %1120 = vmatprep.subr.mxu0 0.0
          %1121 = vmatpush1.msra.mxu0 0.0
          %1122 = vmatprep.subr.mxu0 0.0
          %1123 = vmatpush1.msra.mxu0 %v604
          %1124 = vmatprep.subr.mxu0 0.0
          %1125 = vmatpush1.msra.mxu0 %v535
          %1126 = vmatprep.subr.mxu0 0.0
          %1127 = vmatpush1.msra.mxu0 %v528
          %1128 = vmatprep.subr.mxu0 0.0
          %1129 = vmatpush1.msra.mxu0 %v521
          %1130 = vmatprep.subr.mxu0 0.0
          %1131 = vmatpush1.msra.mxu0 %v514
          %1132 = vmatprep.subr.mxu0 0.0
          %1133 = vmatpush1.msra.mxu0 %v507
          %1134 = vmatprep.subr.mxu0 0.0
          %1135 = vmatpush2.msra.mxu0 0.0
          %1136 = vmatprep.subr.mxu0 0.0
          %1137 = vmatpush2.msra.mxu0 0.0
          %1138 = vmatprep.subr.mxu0 0.0
          %1139 = vmatpush2.msra.mxu0 0.0
          %1140 = vmatprep.subr.mxu0 0.0
          %1141 = vmatpush2.msra.mxu0 0.0
          %1142 = vmatprep.subr.mxu0 0.0
          %1143 = vmatpush2.msra.mxu0 0.0
          %1144 = vmatprep.subr.mxu0 0.0
          %1145 = vmatpush2.msra.mxu0 0.0
          %1146 = vmatprep.subr.mxu0 0.0
          %1147 = vmatpush2.msra.mxu0 0.0
          %1148 = vmatprep.subr.mxu0 0.0
          %1149 = vmatpush2.msra.mxu0 0.0
          %1150 = vmatprep.subr.mxu0 0.0
          %1151 = vmatpush2.msra.mxu0 0.0
          %1152 = vmatprep.subr.mxu0 0.0
          %1153 = vmatpush2.msra.mxu0 0.0
          %1154 = vmatprep.subr.mxu0 0.0
          %1155 = vmatpush2.msra.mxu0 0.0
          %1156 = vmatprep.subr.mxu0 0.0
          %1157 = vmatpush2.msra.mxu0 0.0
          %1158 = vmatprep.subr.mxu0 0.0
          %1159 = vmatpush2.msra.mxu0 0.0
          %1160 = vmatprep.subr.mxu0 0.0
          %1161 = vmatpush2.msra.mxu0 0.0
          %1162 = vmatprep.subr.mxu0 0.0
          %1163 = vmatpush2.msra.mxu0 0.0
          %1164 = vmatprep.subr.mxu0 0.0
          %1165 = vmatpush2.msra.mxu0 0.0
          %1166 = vmatprep.mubr.f32.mxu0 0.0
          %1167 = vmatmul.mubr.f32.gmra.mxu0 %v582
          %v1168 = vpop.f32.mrf.mxu0
          %v1169 = vadd.f32 %v1099, %v1168
          %v1170 = vpop.f32.mrf.mxu0
          %1171 = vdwg.mxu0
          %1173 = vrot.lane.b32.xlu0 %v744, 108
          %v1174 = vpop.permute.xlu0 %1173
          %1176 = vrot.lane.b32.xlu0 %v744, 88
          %v1177 = vpop.permute.xlu0 %1176
          %1179 = vrot.lane.b32.xlu0 %v744, 68
          %v1180 = vpop.permute.xlu0 %1179
          %1182 = vrot.lane.b32.xlu0 %v744, 48
          %v1183 = vpop.permute.xlu0 %1182
          %1185 = vrot.lane.b32.xlu0 %v744, 28
          %v1186 = vpop.permute.xlu0 %1185
          %1189 = vrot.lane.b32.xlu0 %v744, 8
          %v1190 = vpop.permute.xlu0 %1189
          %1191 = vrot.lane.b32.xlu0 %v746, 8
          %v1192 = vpop.permute.xlu0 %1191
          %vm1193 = vcmask 64512
          %v1194 = vsel %vm1193, %v1190, %v1192
          %1196 = vrot.lane.b32.xlu0 %v746, 116
          %v1197 = vpop.permute.xlu0 %1196
          %1199 = vrot.lane.b32.xlu0 %v746, 96
          %v1200 = vpop.permute.xlu0 %1199
          %1202 = vrot.lane.b32.xlu0 %v746, 76
          %v1203 = vpop.permute.xlu0 %1202
          %1205 = vrot.lane.b32.xlu0 %v746, 56
          %v1206 = vpop.permute.xlu0 %1205
          %1208 = vrot.lane.b32.xlu0 %v746, 36
          %v1209 = vpop.permute.xlu0 %1208
          %1212 = vrot.lane.b32.xlu0 %v746, 16
          %v1213 = vpop.permute.xlu0 %1212
          %1214 = vrot.lane.b32.xlu0 %v886, 16
          %v1215 = vpop.permute.xlu0 %1214
          %vm1216 = vcmask 130048
          %v1217 = vsel %vm1216, %v1213, %v1215
          %1219 = vrot.lane.b32.xlu0 %v886, 124
          %v1220 = vpop.permute.xlu0 %1219
          %1222 = vrot.lane.b32.xlu0 %v886, 104
          %v1223 = vpop.permute.xlu0 %1222
          %1225 = vrot.lane.b32.xlu0 %v886, 84
          %v1226 = vpop.permute.xlu0 %1225
          %1228 = vrot.lane.b32.xlu0 %v886, 64
          %v1229 = vpop.permute.xlu0 %1228
          %1231 = vrot.lane.b32.xlu0 %v886, 44
          %v1232 = vpop.permute.xlu0 %1231
          %1234 = vrot.lane.b32.xlu0 %v886, 24
          %v1235 = vpop.permute.xlu0 %1234
          %1238 = vrot.lane.b32.xlu0 %v886, 4
          %v1239 = vpop.permute.xlu0 %1238
          %1240 = vrot.lane.b32.xlu0 %v888, 4
          %v1241 = vpop.permute.xlu0 %1240
          %vm1242 = vcmask 31744
          %v1243 = vsel %vm1242, %v1239, %v1241
          %v1245 = vcombine.low %v744, %v1177
          %v1246 = vcombine.high %v744, %v1177
          %v1248 = vunpack.c.l.s4 1983009808
          %v1249 = vunpack.c.0.s8 %v1248
          %v1250 = vlaneseq
          %v1251 = vshrl.u32 %v1250, 7
          %v1252 = vsub.s32 %v1249, %v1251
          %v1253 = vrot.slane %v1245, %v1252
          %v1255 = vunpack.c.l.s4 1983009808
          %v1256 = vunpack.c.0.s8 %v1255
          %v1257 = vlaneseq
          %v1258 = vshrl.u32 %v1257, 7
          %v1259 = vsub.s32 %v1256, %v1258
          %v1260 = vrot.slane %v1246, %v1259
          %v1261 = vcombine.low %v1174, %v1180
          %v1262 = vcombine.high %v1174, %v1180
          %v1264 = vunpack.c.l.s4 1983009808
          %v1265 = vunpack.c.0.s8 %v1264
          %v1266 = vlaneseq
          %v1267 = vshrl.u32 %v1266, 7
          %v1268 = vsub.s32 %v1265, %v1267
          %v1269 = vrot.slane %v1261, %v1268
          %v1271 = vunpack.c.l.s4 1983009808
          %v1272 = vunpack.c.0.s8 %v1271
          %v1273 = vlaneseq
          %v1274 = vshrl.u32 %v1273, 7
          %v1275 = vsub.s32 %v1272, %v1274
          %v1276 = vrot.slane %v1262, %v1275
          %v1277 = vcombine.low %v1183, %v1194
          %v1278 = vcombine.high %v1183, %v1194
          %v1280 = vunpack.c.l.s4 1983009808
          %v1281 = vunpack.c.0.s8 %v1280
          %v1282 = vlaneseq
          %v1283 = vshrl.u32 %v1282, 7
          %v1284 = vsub.s32 %v1281, %v1283
          %v1285 = vrot.slane %v1277, %v1284
          %v1287 = vunpack.c.l.s4 1983009808
          %v1288 = vunpack.c.0.s8 %v1287
          %v1289 = vlaneseq
          %v1290 = vshrl.u32 %v1289, 7
          %v1291 = vsub.s32 %v1288, %v1290
          %v1292 = vrot.slane %v1278, %v1291
          %v1293 = vcombine.low %v1186, %v1197
          %v1294 = vcombine.high %v1186, %v1197
          %v1296 = vunpack.c.l.s4 1983009808
          %v1297 = vunpack.c.0.s8 %v1296
          %v1298 = vlaneseq
          %v1299 = vshrl.u32 %v1298, 7
          %v1300 = vsub.s32 %v1297, %v1299
          %v1301 = vrot.slane %v1293, %v1300
          %v1303 = vunpack.c.l.s4 1983009808
          %v1304 = vunpack.c.0.s8 %v1303
          %v1305 = vlaneseq
          %v1306 = vshrl.u32 %v1305, 7
          %v1307 = vsub.s32 %v1304, %v1306
          %v1308 = vrot.slane %v1294, %v1307
          %v1309 = vcombine.low %v1253, %v1269
          %v1310 = vcombine.high %v1253, %v1269
          %v1312 = vunpack.c.l.s4 1934713408
          %v1313 = vunpack.c.0.s8 %v1312
          %v1314 = vlaneseq
          %v1315 = vshrl.u32 %v1314, 7
          %v1316 = vsub.s32 %v1313, %v1315
          %v1317 = vrot.slane %v1309, %v1316
          %v1319 = vunpack.c.l.s4 1934713408
          %v1320 = vunpack.c.0.s8 %v1319
          %v1321 = vlaneseq
          %v1322 = vshrl.u32 %v1321, 7
          %v1323 = vsub.s32 %v1320, %v1322
          %v1324 = vrot.slane %v1310, %v1323
          %v1325 = vcombine.low %v1260, %v1276
          %v1326 = vcombine.high %v1260, %v1276
          %v1328 = vunpack.c.l.s4 1934713408
          %v1329 = vunpack.c.0.s8 %v1328
          %v1330 = vlaneseq
          %v1331 = vshrl.u32 %v1330, 7
          %v1332 = vsub.s32 %v1329, %v1331
          %v1333 = vrot.slane %v1325, %v1332
          %v1335 = vunpack.c.l.s4 1934713408
          %v1336 = vunpack.c.0.s8 %v1335
          %v1337 = vlaneseq
          %v1338 = vshrl.u32 %v1337, 7
          %v1339 = vsub.s32 %v1336, %v1338
          %v1340 = vrot.slane %v1326, %v1339
          %v1341 = vcombine.low %v1285, %v1301
          %v1342 = vcombine.high %v1285, %v1301
          %v1344 = vunpack.c.l.s4 1934713408
          %v1345 = vunpack.c.0.s8 %v1344
          %v1346 = vlaneseq
          %v1347 = vshrl.u32 %v1346, 7
          %v1348 = vsub.s32 %v1345, %v1347
          %v1349 = vrot.slane %v1341, %v1348
          %v1351 = vunpack.c.l.s4 1934713408
          %v1352 = vunpack.c.0.s8 %v1351
          %v1353 = vlaneseq
          %v1354 = vshrl.u32 %v1353, 7
          %v1355 = vsub.s32 %v1352, %v1354
          %v1356 = vrot.slane %v1342, %v1355
          %v1357 = vcombine.low %v1292, %v1308
          %v1358 = vcombine.high %v1292, %v1308
          %v1360 = vunpack.c.l.s4 1934713408
          %v1361 = vunpack.c.0.s8 %v1360
          %v1362 = vlaneseq
          %v1363 = vshrl.u32 %v1362, 7
          %v1364 = vsub.s32 %v1361, %v1363
          %v1365 = vrot.slane %v1357, %v1364
          %v1367 = vunpack.c.l.s4 1934713408
          %v1368 = vunpack.c.0.s8 %v1367
          %v1369 = vlaneseq
          %v1370 = vshrl.u32 %v1369, 7
          %v1371 = vsub.s32 %v1368, %v1370
          %v1372 = vrot.slane %v1358, %v1371
          %v1373 = vcombine.low %v1317, %v1349
          %v1374 = vcombine.high %v1317, %v1349
          %v1375 = vcombine.low %v1324, %v1356
          %v1376 = vcombine.high %v1324, %v1356
          %v1377 = vcombine.low %v1333, %v1365
          %v1378 = vcombine.high %v1333, %v1365
          %v1379 = vcombine.low %v1340, %v1372
          %v1380 = vcombine.high %v1340, %v1372
          %v1381 = vcombine.low %v1200, %v1206
          %v1382 = vcombine.high %v1200, %v1206
          %v1384 = vunpack.c.l.s4 1983009808
          %v1385 = vunpack.c.0.s8 %v1384
          %v1386 = vlaneseq
          %v1387 = vshrl.u32 %v1386, 7
          %v1388 = vsub.s32 %v1385, %v1387
          %v1389 = vrot.slane %v1381, %v1388
          %v1391 = vunpack.c.l.s4 1983009808
          %v1392 = vunpack.c.0.s8 %v1391
          %v1393 = vlaneseq
          %v1394 = vshrl.u32 %v1393, 7
          %v1395 = vsub.s32 %v1392, %v1394
          %v1396 = vrot.slane %v1382, %v1395
          %v1397 = vcombine.low %v1203, %v1209
          %v1398 = vcombine.high %v1203, %v1209
          %v1400 = vunpack.c.l.s4 1983009808
          %v1401 = vunpack.c.0.s8 %v1400
          %v1402 = vlaneseq
          %v1403 = vshrl.u32 %v1402, 7
          %v1404 = vsub.s32 %v1401, %v1403
          %v1405 = vrot.slane %v1397, %v1404
          %v1407 = vunpack.c.l.s4 1983009808
          %v1408 = vunpack.c.0.s8 %v1407
          %v1409 = vlaneseq
          %v1410 = vshrl.u32 %v1409, 7
          %v1411 = vsub.s32 %v1408, %v1410
          %v1412 = vrot.slane %v1398, %v1411
          %v1413 = vcombine.low %v1217, %v1223
          %v1414 = vcombine.high %v1217, %v1223
          %v1416 = vunpack.c.l.s4 1983009808
          %v1417 = vunpack.c.0.s8 %v1416
          %v1418 = vlaneseq
          %v1419 = vshrl.u32 %v1418, 7
          %v1420 = vsub.s32 %v1417, %v1419
          %v1421 = vrot.slane %v1413, %v1420
          %v1423 = vunpack.c.l.s4 1983009808
          %v1424 = vunpack.c.0.s8 %v1423
          %v1425 = vlaneseq
          %v1426 = vshrl.u32 %v1425, 7
          %v1427 = vsub.s32 %v1424, %v1426
          %v1428 = vrot.slane %v1414, %v1427
          %v1429 = vcombine.low %v1220, %v1226
          %v1430 = vcombine.high %v1220, %v1226
          %v1432 = vunpack.c.l.s4 1983009808
          %v1433 = vunpack.c.0.s8 %v1432
          %v1434 = vlaneseq
          %v1435 = vshrl.u32 %v1434, 7
          %v1436 = vsub.s32 %v1433, %v1435
          %v1437 = vrot.slane %v1429, %v1436
          %v1439 = vunpack.c.l.s4 1983009808
          %v1440 = vunpack.c.0.s8 %v1439
          %v1441 = vlaneseq
          %v1442 = vshrl.u32 %v1441, 7
          %v1443 = vsub.s32 %v1440, %v1442
          %v1444 = vrot.slane %v1430, %v1443
          %v1445 = vcombine.low %v1389, %v1405
          %v1446 = vcombine.high %v1389, %v1405
          %v1448 = vunpack.c.l.s4 1934713408
          %v1449 = vunpack.c.0.s8 %v1448
          %v1450 = vlaneseq
          %v1451 = vshrl.u32 %v1450, 7
          %v1452 = vsub.s32 %v1449, %v1451
          %v1453 = vrot.slane %v1445, %v1452
          %v1455 = vunpack.c.l.s4 1934713408
          %v1456 = vunpack.c.0.s8 %v1455
          %v1457 = vlaneseq
          %v1458 = vshrl.u32 %v1457, 7
          %v1459 = vsub.s32 %v1456, %v1458
          %v1460 = vrot.slane %v1446, %v1459
          %v1461 = vcombine.low %v1396, %v1412
          %v1462 = vcombine.high %v1396, %v1412
          %v1464 = vunpack.c.l.s4 1934713408
          %v1465 = vunpack.c.0.s8 %v1464
          %v1466 = vlaneseq
          %v1467 = vshrl.u32 %v1466, 7
          %v1468 = vsub.s32 %v1465, %v1467
          %v1469 = vrot.slane %v1461, %v1468
          %v1471 = vunpack.c.l.s4 1934713408
          %v1472 = vunpack.c.0.s8 %v1471
          %v1473 = vlaneseq
          %v1474 = vshrl.u32 %v1473, 7
          %v1475 = vsub.s32 %v1472, %v1474
          %v1476 = vrot.slane %v1462, %v1475
          %v1477 = vcombine.low %v1421, %v1437
          %v1478 = vcombine.high %v1421, %v1437
          %v1480 = vunpack.c.l.s4 1934713408
          %v1481 = vunpack.c.0.s8 %v1480
          %v1482 = vlaneseq
          %v1483 = vshrl.u32 %v1482, 7
          %v1484 = vsub.s32 %v1481, %v1483
          %v1485 = vrot.slane %v1477, %v1484
          %v1487 = vunpack.c.l.s4 1934713408
          %v1488 = vunpack.c.0.s8 %v1487
          %v1489 = vlaneseq
          %v1490 = vshrl.u32 %v1489, 7
          %v1491 = vsub.s32 %v1488, %v1490
          %v1492 = vrot.slane %v1478, %v1491
          %v1493 = vcombine.low %v1428, %v1444
          %v1494 = vcombine.high %v1428, %v1444
          %v1496 = vunpack.c.l.s4 1934713408
          %v1497 = vunpack.c.0.s8 %v1496
          %v1498 = vlaneseq
          %v1499 = vshrl.u32 %v1498, 7
          %v1500 = vsub.s32 %v1497, %v1499
          %v1501 = vrot.slane %v1493, %v1500
          %v1503 = vunpack.c.l.s4 1934713408
          %v1504 = vunpack.c.0.s8 %v1503
          %v1505 = vlaneseq
          %v1506 = vshrl.u32 %v1505, 7
          %v1507 = vsub.s32 %v1504, %v1506
          %v1508 = vrot.slane %v1494, %v1507
          %v1509 = vcombine.low %v1453, %v1485
          %v1510 = vcombine.high %v1453, %v1485
          %v1511 = vcombine.low %v1460, %v1492
          %v1512 = vcombine.high %v1460, %v1492
          %v1513 = vcombine.low %v1469, %v1501
          %v1514 = vcombine.high %v1469, %v1501
          %v1515 = vcombine.low %v1476, %v1508
          %v1516 = vcombine.high %v1476, %v1508
          %v1517 = vcombine.low %v1229, %v1235
          %v1518 = vcombine.high %v1229, %v1235
          %v1520 = vunpack.c.l.s4 1983009808
          %v1521 = vunpack.c.0.s8 %v1520
          %v1522 = vlaneseq
          %v1523 = vshrl.u32 %v1522, 7
          %v1524 = vsub.s32 %v1521, %v1523
          %v1525 = vrot.slane %v1517, %v1524
          %v1527 = vunpack.c.l.s4 1983009808
          %v1528 = vunpack.c.0.s8 %v1527
          %v1529 = vlaneseq
          %v1530 = vshrl.u32 %v1529, 7
          %v1531 = vsub.s32 %v1528, %v1530
          %v1532 = vrot.slane %v1518, %v1531
          %v1533 = vcombine.low %v1232, %v1243
          %v1534 = vcombine.high %v1232, %v1243
          %v1536 = vunpack.c.l.s4 1983009808
          %v1537 = vunpack.c.0.s8 %v1536
          %v1538 = vlaneseq
          %v1539 = vshrl.u32 %v1538, 7
          %v1540 = vsub.s32 %v1537, %v1539
          %v1541 = vrot.slane %v1533, %v1540
          %v1543 = vunpack.c.l.s4 1983009808
          %v1544 = vunpack.c.0.s8 %v1543
          %v1545 = vlaneseq
          %v1546 = vshrl.u32 %v1545, 7
          %v1547 = vsub.s32 %v1544, %v1546
          %v1548 = vrot.slane %v1534, %v1547
          %v1549 = vcombine.low %v1525, %v1541
          %v1550 = vcombine.high %v1525, %v1541
          %v1552 = vunpack.c.l.s4 1934713408
          %v1553 = vunpack.c.0.s8 %v1552
          %v1554 = vlaneseq
          %v1555 = vshrl.u32 %v1554, 7
          %v1556 = vsub.s32 %v1553, %v1555
          %v1557 = vrot.slane %v1549, %v1556
          %v1559 = vunpack.c.l.s4 1934713408
          %v1560 = vunpack.c.0.s8 %v1559
          %v1561 = vlaneseq
          %v1562 = vshrl.u32 %v1561, 7
          %v1563 = vsub.s32 %v1560, %v1562
          %v1564 = vrot.slane %v1550, %v1563
          %v1565 = vcombine.low %v1532, %v1548
          %v1566 = vcombine.high %v1532, %v1548
          %v1568 = vunpack.c.l.s4 1934713408
          %v1569 = vunpack.c.0.s8 %v1568
          %v1570 = vlaneseq
          %v1571 = vshrl.u32 %v1570, 7
          %v1572 = vsub.s32 %v1569, %v1571
          %v1573 = vrot.slane %v1565, %v1572
          %v1575 = vunpack.c.l.s4 1934713408
          %v1576 = vunpack.c.0.s8 %v1575
          %v1577 = vlaneseq
          %v1578 = vshrl.u32 %v1577, 7
          %v1579 = vsub.s32 %v1576, %v1578
          %v1580 = vrot.slane %v1566, %v1579
          %v1581 = vcombine.high %v1557, 0.0
          %v1582 = vcombine.high %v1564, 0.0
          %v1583 = vcombine.high %v1573, 0.0
          %v1584 = vcombine.high %v1580, 0.0
          %v1585 = vcombine.low %v1373, %v1375
          %v1586 = vcombine.high %v1373, %v1375
          %v1588 = vunpack.c.l.s4 1983009808
          %v1589 = vunpack.c.0.s8 %v1588
          %v1590 = vlaneseq
          %v1591 = vshrl.u32 %v1590, 7
          %v1592 = vsub.s32 %v1589, %v1591
          %v1593 = vrot.slane %v1585, %v1592
          %v1595 = vunpack.c.l.s4 1983009808
          %v1596 = vunpack.c.0.s8 %v1595
          %v1597 = vlaneseq
          %v1598 = vshrl.u32 %v1597, 7
          %v1599 = vsub.s32 %v1596, %v1598
          %v1600 = vrot.slane %v1586, %v1599
          %v1601 = vcombine.low %v1374, %v1376
          %v1602 = vcombine.high %v1374, %v1376
          %v1604 = vunpack.c.l.s4 1983009808
          %v1605 = vunpack.c.0.s8 %v1604
          %v1606 = vlaneseq
          %v1607 = vshrl.u32 %v1606, 7
          %v1608 = vsub.s32 %v1605, %v1607
          %v1609 = vrot.slane %v1601, %v1608
          %v1611 = vunpack.c.l.s4 1983009808
          %v1612 = vunpack.c.0.s8 %v1611
          %v1613 = vlaneseq
          %v1614 = vshrl.u32 %v1613, 7
          %v1615 = vsub.s32 %v1612, %v1614
          %v1616 = vrot.slane %v1602, %v1615
          %v1617 = vcombine.low %v1377, %v1379
          %v1618 = vcombine.high %v1377, %v1379
          %v1620 = vunpack.c.l.s4 1983009808
          %v1621 = vunpack.c.0.s8 %v1620
          %v1622 = vlaneseq
          %v1623 = vshrl.u32 %v1622, 7
          %v1624 = vsub.s32 %v1621, %v1623
          %v1625 = vrot.slane %v1617, %v1624
          %v1627 = vunpack.c.l.s4 1983009808
          %v1628 = vunpack.c.0.s8 %v1627
          %v1629 = vlaneseq
          %v1630 = vshrl.u32 %v1629, 7
          %v1631 = vsub.s32 %v1628, %v1630
          %v1632 = vrot.slane %v1618, %v1631
          %v1633 = vcombine.low %v1378, %v1380
          %v1634 = vcombine.high %v1378, %v1380
          %v1636 = vunpack.c.l.s4 1983009808
          %v1637 = vunpack.c.0.s8 %v1636
          %v1638 = vlaneseq
          %v1639 = vshrl.u32 %v1638, 7
          %v1640 = vsub.s32 %v1637, %v1639
          %v1641 = vrot.slane %v1633, %v1640
          %v1643 = vunpack.c.l.s4 1983009808
          %v1644 = vunpack.c.0.s8 %v1643
          %v1645 = vlaneseq
          %v1646 = vshrl.u32 %v1645, 7
          %v1647 = vsub.s32 %v1644, %v1646
          %v1648 = vrot.slane %v1634, %v1647
          %v1649 = vcombine.low %v1593, %v1609
          %v1650 = vcombine.high %v1593, %v1609
          %v1652 = vunpack.c.l.s4 1934713408
          %v1653 = vunpack.c.0.s8 %v1652
          %v1654 = vlaneseq
          %v1655 = vshrl.u32 %v1654, 7
          %v1656 = vsub.s32 %v1653, %v1655
          %v1657 = vrot.slane %v1649, %v1656
          %v1659 = vunpack.c.l.s4 1934713408
          %v1660 = vunpack.c.0.s8 %v1659
          %v1661 = vlaneseq
          %v1662 = vshrl.u32 %v1661, 7
          %v1663 = vsub.s32 %v1660, %v1662
          %v1664 = vrot.slane %v1650, %v1663
          %v1665 = vcombine.low %v1600, %v1616
          %v1666 = vcombine.high %v1600, %v1616
          %v1668 = vunpack.c.l.s4 1934713408
          %v1669 = vunpack.c.0.s8 %v1668
          %v1670 = vlaneseq
          %v1671 = vshrl.u32 %v1670, 7
          %v1672 = vsub.s32 %v1669, %v1671
          %v1673 = vrot.slane %v1665, %v1672
          %v1675 = vunpack.c.l.s4 1934713408
          %v1676 = vunpack.c.0.s8 %v1675
          %v1677 = vlaneseq
          %v1678 = vshrl.u32 %v1677, 7
          %v1679 = vsub.s32 %v1676, %v1678
          %v1680 = vrot.slane %v1666, %v1679
          %v1681 = vcombine.low %v1625, %v1641
          %v1682 = vcombine.high %v1625, %v1641
          %v1684 = vunpack.c.l.s4 1934713408
          %v1685 = vunpack.c.0.s8 %v1684
          %v1686 = vlaneseq
          %v1687 = vshrl.u32 %v1686, 7
          %v1688 = vsub.s32 %v1685, %v1687
          %v1689 = vrot.slane %v1681, %v1688
          %v1691 = vunpack.c.l.s4 1934713408
          %v1692 = vunpack.c.0.s8 %v1691
          %v1693 = vlaneseq
          %v1694 = vshrl.u32 %v1693, 7
          %v1695 = vsub.s32 %v1692, %v1694
          %v1696 = vrot.slane %v1682, %v1695
          %v1697 = vcombine.low %v1632, %v1648
          %v1698 = vcombine.high %v1632, %v1648
          %v1700 = vunpack.c.l.s4 1934713408
          %v1701 = vunpack.c.0.s8 %v1700
          %v1702 = vlaneseq
          %v1703 = vshrl.u32 %v1702, 7
          %v1704 = vsub.s32 %v1701, %v1703
          %v1705 = vrot.slane %v1697, %v1704
          %v1707 = vunpack.c.l.s4 1934713408
          %v1708 = vunpack.c.0.s8 %v1707
          %v1709 = vlaneseq
          %v1710 = vshrl.u32 %v1709, 7
          %v1711 = vsub.s32 %v1708, %v1710
          %v1712 = vrot.slane %v1698, %v1711
          %v1713 = vcombine.low %v1657, %v1689
          %v1714 = vcombine.high %v1657, %v1689
          %v1715 = vcombine.low %v1664, %v1696
          %v1716 = vcombine.high %v1664, %v1696
          %v1717 = vcombine.low %v1673, %v1705
          %v1718 = vcombine.high %v1673, %v1705
          %v1719 = vcombine.low %v1680, %v1712
          %v1720 = vcombine.high %v1680, %v1712
          %v1721 = vcombine.low %v1509, %v1511
          %v1722 = vcombine.high %v1509, %v1511
          %v1724 = vunpack.c.l.s4 1983009808
          %v1725 = vunpack.c.0.s8 %v1724
          %v1726 = vlaneseq
          %v1727 = vshrl.u32 %v1726, 7
          %v1728 = vsub.s32 %v1725, %v1727
          %v1729 = vrot.slane %v1721, %v1728
          %v1731 = vunpack.c.l.s4 1983009808
          %v1732 = vunpack.c.0.s8 %v1731
          %v1733 = vlaneseq
          %v1734 = vshrl.u32 %v1733, 7
          %v1735 = vsub.s32 %v1732, %v1734
          %v1736 = vrot.slane %v1722, %v1735
          %v1737 = vcombine.low %v1510, %v1512
          %v1738 = vcombine.high %v1510, %v1512
          %v1740 = vunpack.c.l.s4 1983009808
          %v1741 = vunpack.c.0.s8 %v1740
          %v1742 = vlaneseq
          %v1743 = vshrl.u32 %v1742, 7
          %v1744 = vsub.s32 %v1741, %v1743
          %v1745 = vrot.slane %v1737, %v1744
          %v1747 = vunpack.c.l.s4 1983009808
          %v1748 = vunpack.c.0.s8 %v1747
          %v1749 = vlaneseq
          %v1750 = vshrl.u32 %v1749, 7
          %v1751 = vsub.s32 %v1748, %v1750
          %v1752 = vrot.slane %v1738, %v1751
          %v1753 = vcombine.low %v1513, %v1515
          %v1754 = vcombine.high %v1513, %v1515
          %v1756 = vunpack.c.l.s4 1983009808
          %v1757 = vunpack.c.0.s8 %v1756
          %v1758 = vlaneseq
          %v1759 = vshrl.u32 %v1758, 7
          %v1760 = vsub.s32 %v1757, %v1759
          %v1761 = vrot.slane %v1753, %v1760
          %v1763 = vunpack.c.l.s4 1983009808
          %v1764 = vunpack.c.0.s8 %v1763
          %v1765 = vlaneseq
          %v1766 = vshrl.u32 %v1765, 7
          %v1767 = vsub.s32 %v1764, %v1766
          %v1768 = vrot.slane %v1754, %v1767
          %v1769 = vcombine.low %v1514, %v1516
          %v1770 = vcombine.high %v1514, %v1516
          %v1772 = vunpack.c.l.s4 1983009808
          %v1773 = vunpack.c.0.s8 %v1772
          %v1774 = vlaneseq
          %v1775 = vshrl.u32 %v1774, 7
          %v1776 = vsub.s32 %v1773, %v1775
          %v1777 = vrot.slane %v1769, %v1776
          %v1779 = vunpack.c.l.s4 1983009808
          %v1780 = vunpack.c.0.s8 %v1779
          %v1781 = vlaneseq
          %v1782 = vshrl.u32 %v1781, 7
          %v1783 = vsub.s32 %v1780, %v1782
          %v1784 = vrot.slane %v1770, %v1783
          %v1785 = vcombine.low %v1729, %v1745
          %v1786 = vcombine.high %v1729, %v1745
          %v1788 = vunpack.c.l.s4 1934713408
          %v1789 = vunpack.c.0.s8 %v1788
          %v1790 = vlaneseq
          %v1791 = vshrl.u32 %v1790, 7
          %v1792 = vsub.s32 %v1789, %v1791
          %v1793 = vrot.slane %v1785, %v1792
          %v1795 = vunpack.c.l.s4 1934713408
          %v1796 = vunpack.c.0.s8 %v1795
          %v1797 = vlaneseq
          %v1798 = vshrl.u32 %v1797, 7
          %v1799 = vsub.s32 %v1796, %v1798
          %v1800 = vrot.slane %v1786, %v1799
          %v1801 = vcombine.low %v1736, %v1752
          %v1802 = vcombine.high %v1736, %v1752
          %v1804 = vunpack.c.l.s4 1934713408
          %v1805 = vunpack.c.0.s8 %v1804
          %v1806 = vlaneseq
          %v1807 = vshrl.u32 %v1806, 7
          %v1808 = vsub.s32 %v1805, %v1807
          %v1809 = vrot.slane %v1801, %v1808
          %v1811 = vunpack.c.l.s4 1934713408
          %v1812 = vunpack.c.0.s8 %v1811
          %v1813 = vlaneseq
          %v1814 = vshrl.u32 %v1813, 7
          %v1815 = vsub.s32 %v1812, %v1814
          %v1816 = vrot.slane %v1802, %v1815
          %v1817 = vcombine.low %v1761, %v1777
          %v1818 = vcombine.high %v1761, %v1777
          %v1820 = vunpack.c.l.s4 1934713408
          %v1821 = vunpack.c.0.s8 %v1820
          %v1822 = vlaneseq
          %v1823 = vshrl.u32 %v1822, 7
          %v1824 = vsub.s32 %v1821, %v1823
          %v1825 = vrot.slane %v1817, %v1824
          %v1827 = vunpack.c.l.s4 1934713408
          %v1828 = vunpack.c.0.s8 %v1827
          %v1829 = vlaneseq
          %v1830 = vshrl.u32 %v1829, 7
          %v1831 = vsub.s32 %v1828, %v1830
          %v1832 = vrot.slane %v1818, %v1831
          %v1833 = vcombine.low %v1768, %v1784
          %v1834 = vcombine.high %v1768, %v1784
          %v1836 = vunpack.c.l.s4 1934713408
          %v1837 = vunpack.c.0.s8 %v1836
          %v1838 = vlaneseq
          %v1839 = vshrl.u32 %v1838, 7
          %v1840 = vsub.s32 %v1837, %v1839
          %v1841 = vrot.slane %v1833, %v1840
          %v1843 = vunpack.c.l.s4 1934713408
          %v1844 = vunpack.c.0.s8 %v1843
          %v1845 = vlaneseq
          %v1846 = vshrl.u32 %v1845, 7
          %v1847 = vsub.s32 %v1844, %v1846
          %v1848 = vrot.slane %v1834, %v1847
          %v1849 = vcombine.low %v1793, %v1825
          %v1850 = vcombine.high %v1793, %v1825
          %v1851 = vcombine.low %v1800, %v1832
          %v1852 = vcombine.high %v1800, %v1832
          %v1853 = vcombine.low %v1809, %v1841
          %v1854 = vcombine.high %v1809, %v1841
          %v1855 = vcombine.low %v1816, %v1848
          %v1856 = vcombine.high %v1816, %v1848
          %v1857 = vcombine.low %v1557, %v1564
          %v1859 = vunpack.c.l.s4 1983009808
          %v1860 = vunpack.c.0.s8 %v1859
          %v1861 = vlaneseq
          %v1862 = vshrl.u32 %v1861, 7
          %v1863 = vsub.s32 %v1860, %v1862
          %v1864 = vrot.slane %v1857, %v1863
          %v1865 = vcombine.low %v1581, %v1582
          %v1867 = vunpack.c.l.s4 1983009808
          %v1868 = vunpack.c.0.s8 %v1867
          %v1869 = vlaneseq
          %v1870 = vshrl.u32 %v1869, 7
          %v1871 = vsub.s32 %v1868, %v1870
          %v1872 = vrot.slane %v1865, %v1871
          %v1873 = vcombine.low %v1573, %v1580
          %v1875 = vunpack.c.l.s4 1983009808
          %v1876 = vunpack.c.0.s8 %v1875
          %v1877 = vlaneseq
          %v1878 = vshrl.u32 %v1877, 7
          %v1879 = vsub.s32 %v1876, %v1878
          %v1880 = vrot.slane %v1873, %v1879
          %v1881 = vcombine.low %v1583, %v1584
          %v1883 = vunpack.c.l.s4 1983009808
          %v1884 = vunpack.c.0.s8 %v1883
          %v1885 = vlaneseq
          %v1886 = vshrl.u32 %v1885, 7
          %v1887 = vsub.s32 %v1884, %v1886
          %v1888 = vrot.slane %v1881, %v1887
          %v1889 = vcombine.low %v1864, %v1872
          %v1890 = vcombine.high %v1864, %v1872
          %v1892 = vunpack.c.l.s4 1934713408
          %v1893 = vunpack.c.0.s8 %v1892
          %v1894 = vlaneseq
          %v1895 = vshrl.u32 %v1894, 7
          %v1896 = vsub.s32 %v1893, %v1895
          %v1897 = vrot.slane %v1889, %v1896
          %v1899 = vunpack.c.l.s4 1934713408
          %v1900 = vunpack.c.0.s8 %v1899
          %v1901 = vlaneseq
          %v1902 = vshrl.u32 %v1901, 7
          %v1903 = vsub.s32 %v1900, %v1902
          %v1904 = vrot.slane %v1890, %v1903
          %v1905 = vcombine.low %v1880, %v1888
          %v1906 = vcombine.high %v1880, %v1888
          %v1908 = vunpack.c.l.s4 1934713408
          %v1909 = vunpack.c.0.s8 %v1908
          %v1910 = vlaneseq
          %v1911 = vshrl.u32 %v1910, 7
          %v1912 = vsub.s32 %v1909, %v1911
          %v1913 = vrot.slane %v1905, %v1912
          %v1915 = vunpack.c.l.s4 1934713408
          %v1916 = vunpack.c.0.s8 %v1915
          %v1917 = vlaneseq
          %v1918 = vshrl.u32 %v1917, 7
          %v1919 = vsub.s32 %v1916, %v1918
          %v1920 = vrot.slane %v1906, %v1919
          %v1921 = vcombine.low %v1897, %v1913
          %v1922 = vcombine.high %v1897, %v1913
          %v1923 = vcombine.low %v1904, %v1920
          %v1924 = vcombine.high %v1904, %v1920
          %vm1925 = vcmask 162816
          %1926 = vst.msk [vmem:[#allocation2] sm:$0xff] %vm1925, %v1713
          %1927 = vst.msk [vmem:[#allocation2 + $0x8] sm:$0xff] %vm1925, %v1714
          %1928 = vst.msk [vmem:[#allocation2 + $0x10] sm:$0xff] %vm1925, %v1715
          %1929 = vst.msk [vmem:[#allocation2 + $0x18] sm:$0xff] %vm1925, %v1716
          %1930 = vst.msk [vmem:[#allocation2 + $0x20] sm:$0xff] %vm1925, %v1717
          %1931 = vst.msk [vmem:[#allocation2 + $0x28] sm:$0xff] %vm1925, %v1718
          %1932 = vst.msk [vmem:[#allocation2 + $0x30] sm:$0xff] %vm1925, %v1719
          %1933 = vst.msk [vmem:[#allocation2 + $0x38] sm:$0xff] %vm1925, %v1720
          %1934 = vst.msk [vmem:[#allocation2 + $0x40] sm:$0xff] %vm1925, %v1849
          %1935 = vst.msk [vmem:[#allocation2 + $0x48] sm:$0xff] %vm1925, %v1850
          %1936 = vst.msk [vmem:[#allocation2 + $0x50] sm:$0xff] %vm1925, %v1851
          %1937 = vst.msk [vmem:[#allocation2 + $0x58] sm:$0xff] %vm1925, %v1852
          %1938 = vst.msk [vmem:[#allocation2 + $0x60] sm:$0xff] %vm1925, %v1853
          %1939 = vst.msk [vmem:[#allocation2 + $0x68] sm:$0xff] %vm1925, %v1854
          %1940 = vst.msk [vmem:[#allocation2 + $0x70] sm:$0xff] %vm1925, %v1855
          %1941 = vst.msk [vmem:[#allocation2 + $0x78] sm:$0xff] %vm1925, %v1856
          %1942 = vst.msk [vmem:[#allocation2 + $0x80] sm:$0xff] %vm1925, %v1921
          %1943 = vst.msk [vmem:[#allocation2 + $0x88] sm:$0xff] %vm1925, %v1922
          %1944 = vst.msk [vmem:[#allocation2 + $0x90] sm:$0xff] %vm1925, %v1923
          %1945 = vst.msk [vmem:[#allocation2 + $0x98] sm:$0xff] %vm1925, %v1924
          %1946 = vrot.lane.b32.xlu0 %v888, 108
          %v1947 = vpop.permute.xlu0 %1946
          %1948 = vrot.lane.b32.xlu0 %v888, 88
          %v1949 = vpop.permute.xlu0 %1948
          %1950 = vrot.lane.b32.xlu0 %v888, 68
          %v1951 = vpop.permute.xlu0 %1950
          %1952 = vrot.lane.b32.xlu0 %v888, 48
          %v1953 = vpop.permute.xlu0 %1952
          %1955 = vrot.lane.b32.xlu0 %v888, 28
          %v1956 = vpop.permute.xlu0 %1955
          %1957 = vrot.lane.b32.xlu0 %v1028, 28
          %v1958 = vpop.permute.xlu0 %1957
          %vm1959 = vcmask 228352
          %v1960 = vsel %vm1959, %v1956, %v1958
          %1961 = vrot.lane.b32.xlu0 %v1028, 8
          %v1962 = vpop.permute.xlu0 %1961
          %1963 = vrot.lane.b32.xlu0 %v1028, 116
          %v1964 = vpop.permute.xlu0 %1963
          %1965 = vrot.lane.b32.xlu0 %v1028, 96
          %v1966 = vpop.permute.xlu0 %1965
          %1967 = vrot.lane.b32.xlu0 %v1028, 76
          %v1968 = vpop.permute.xlu0 %1967
          %1969 = vrot.lane.b32.xlu0 %v1028, 56
          %v1970 = vpop.permute.xlu0 %1969
          %1971 = vrot.lane.b32.xlu0 %v1028, 36
          %v1972 = vpop.permute.xlu0 %1971
          %1974 = vrot.lane.b32.xlu0 %v1030, 16
          %v1975 = vpop.permute.xlu0 %1974
          %1976 = vrot.lane.b32.xlu0 %v1030, 124
          %v1977 = vpop.permute.xlu0 %1976
          %1978 = vrot.lane.b32.xlu0 %v1030, 104
          %v1979 = vpop.permute.xlu0 %1978
          %1980 = vrot.lane.b32.xlu0 %v1030, 84
          %v1981 = vpop.permute.xlu0 %1980
          %1982 = vrot.lane.b32.xlu0 %v1030, 64
          %v1983 = vpop.permute.xlu0 %1982
          %1984 = vrot.lane.b32.xlu0 %v1030, 44
          %v1985 = vpop.permute.xlu0 %1984
          %1987 = vrot.lane.b32.xlu0 %v1030, 24
          %v1988 = vpop.permute.xlu0 %1987
          %1989 = vrot.lane.b32.xlu0 %v1169, 24
          %v1990 = vpop.permute.xlu0 %1989
          %vm1991 = vcmask 195584
          %v1992 = vsel %vm1991, %v1988, %v1990
          %1993 = vrot.lane.b32.xlu0 %v1169, 4
          %v1994 = vpop.permute.xlu0 %1993
          %1995 = vrot.lane.b32.xlu0 %v888, 112
          %v1996 = vpop.permute.xlu0 %1995
          %1997 = vrot.lane.b32.xlu0 %v1947, 112
          %v1998 = vpop.permute.xlu0 %1997
          %1999 = vrot.lane.b32.xlu0 %v1949, 112
          %v2000 = vpop.permute.xlu0 %1999
          %2001 = vrot.lane.b32.xlu0 %v1951, 112
          %v2002 = vpop.permute.xlu0 %2001
          %2003 = vrot.lane.b32.xlu0 %v1953, 112
          %v2004 = vpop.permute.xlu0 %2003
          %2005 = vrot.lane.b32.xlu0 %v1960, 112
          %v2006 = vpop.permute.xlu0 %2005
          %2007 = vrot.lane.b32.xlu0 %v1962, 112
          %v2008 = vpop.permute.xlu0 %2007
          %2009 = vrot.lane.b32.xlu0 %v1964, 112
          %v2010 = vpop.permute.xlu0 %2009
          %2011 = vrot.lane.b32.xlu0 %v1966, 112
          %v2012 = vpop.permute.xlu0 %2011
          %2013 = vrot.lane.b32.xlu0 %v1968, 112
          %v2014 = vpop.permute.xlu0 %2013
          %2015 = vrot.lane.b32.xlu0 %v1970, 112
          %v2016 = vpop.permute.xlu0 %2015
          %2017 = vrot.lane.b32.xlu0 %v1972, 112
          %v2018 = vpop.permute.xlu0 %2017
          %2019 = vrot.lane.b32.xlu0 %v1975, 112
          %v2020 = vpop.permute.xlu0 %2019
          %2021 = vrot.lane.b32.xlu0 %v1977, 112
          %v2022 = vpop.permute.xlu0 %2021
          %2023 = vrot.lane.b32.xlu0 %v1979, 112
          %v2024 = vpop.permute.xlu0 %2023
          %2025 = vrot.lane.b32.xlu0 %v1981, 112
          %v2026 = vpop.permute.xlu0 %2025
          %2027 = vrot.lane.b32.xlu0 %v1983, 112
          %v2028 = vpop.permute.xlu0 %2027
          %2029 = vrot.lane.b32.xlu0 %v1985, 112
          %v2030 = vpop.permute.xlu0 %2029
          %2031 = vrot.lane.b32.xlu0 %v1992, 112
          %v2032 = vpop.permute.xlu0 %2031
          %2033 = vrot.lane.b32.xlu0 %v1994, 112
          %v2034 = vpop.permute.xlu0 %2033
          %v2055 = vcombine.low %v1996, %v2000
          %v2056 = vcombine.high %v1996, %v2000
          %v2058 = vunpack.c.l.s4 1983009808
          %v2059 = vunpack.c.0.s8 %v2058
          %v2060 = vlaneseq
          %v2061 = vshrl.u32 %v2060, 7
          %v2062 = vsub.s32 %v2059, %v2061
          %v2063 = vrot.slane %v2055, %v2062
          %v2065 = vunpack.c.l.s4 1983009808
          %v2066 = vunpack.c.0.s8 %v2065
          %v2067 = vlaneseq
          %v2068 = vshrl.u32 %v2067, 7
          %v2069 = vsub.s32 %v2066, %v2068
          %v2070 = vrot.slane %v2056, %v2069
          %v2071 = vcombine.low %v1998, %v2002
          %v2072 = vcombine.high %v1998, %v2002
          %v2074 = vunpack.c.l.s4 1983009808
          %v2075 = vunpack.c.0.s8 %v2074
          %v2076 = vlaneseq
          %v2077 = vshrl.u32 %v2076, 7
          %v2078 = vsub.s32 %v2075, %v2077
          %v2079 = vrot.slane %v2071, %v2078
          %v2081 = vunpack.c.l.s4 1983009808
          %v2082 = vunpack.c.0.s8 %v2081
          %v2083 = vlaneseq
          %v2084 = vshrl.u32 %v2083, 7
          %v2085 = vsub.s32 %v2082, %v2084
          %v2086 = vrot.slane %v2072, %v2085
          %v2087 = vcombine.low %v2004, %v2008
          %v2088 = vcombine.high %v2004, %v2008
          %v2090 = vunpack.c.l.s4 1983009808
          %v2091 = vunpack.c.0.s8 %v2090
          %v2092 = vlaneseq
          %v2093 = vshrl.u32 %v2092, 7
          %v2094 = vsub.s32 %v2091, %v2093
          %v2095 = vrot.slane %v2087, %v2094
          %v2097 = vunpack.c.l.s4 1983009808
          %v2098 = vunpack.c.0.s8 %v2097
          %v2099 = vlaneseq
          %v2100 = vshrl.u32 %v2099, 7
          %v2101 = vsub.s32 %v2098, %v2100
          %v2102 = vrot.slane %v2088, %v2101
          %v2103 = vcombine.low %v2006, %v2010
          %v2104 = vcombine.high %v2006, %v2010
          %v2106 = vunpack.c.l.s4 1983009808
          %v2107 = vunpack.c.0.s8 %v2106
          %v2108 = vlaneseq
          %v2109 = vshrl.u32 %v2108, 7
          %v2110 = vsub.s32 %v2107, %v2109
          %v2111 = vrot.slane %v2103, %v2110
          %v2113 = vunpack.c.l.s4 1983009808
          %v2114 = vunpack.c.0.s8 %v2113
          %v2115 = vlaneseq
          %v2116 = vshrl.u32 %v2115, 7
          %v2117 = vsub.s32 %v2114, %v2116
          %v2118 = vrot.slane %v2104, %v2117
          %v2119 = vcombine.low %v2063, %v2079
          %v2120 = vcombine.high %v2063, %v2079
          %v2122 = vunpack.c.l.s4 1934713408
          %v2123 = vunpack.c.0.s8 %v2122
          %v2124 = vlaneseq
          %v2125 = vshrl.u32 %v2124, 7
          %v2126 = vsub.s32 %v2123, %v2125
          %v2127 = vrot.slane %v2119, %v2126
          %v2129 = vunpack.c.l.s4 1934713408
          %v2130 = vunpack.c.0.s8 %v2129
          %v2131 = vlaneseq
          %v2132 = vshrl.u32 %v2131, 7
          %v2133 = vsub.s32 %v2130, %v2132
          %v2134 = vrot.slane %v2120, %v2133
          %v2135 = vcombine.low %v2070, %v2086
          %v2136 = vcombine.high %v2070, %v2086
          %v2138 = vunpack.c.l.s4 1934713408
          %v2139 = vunpack.c.0.s8 %v2138
          %v2140 = vlaneseq
          %v2141 = vshrl.u32 %v2140, 7
          %v2142 = vsub.s32 %v2139, %v2141
          %v2143 = vrot.slane %v2135, %v2142
          %v2145 = vunpack.c.l.s4 1934713408
          %v2146 = vunpack.c.0.s8 %v2145
          %v2147 = vlaneseq
          %v2148 = vshrl.u32 %v2147, 7
          %v2149 = vsub.s32 %v2146, %v2148
          %v2150 = vrot.slane %v2136, %v2149
          %v2151 = vcombine.low %v2095, %v2111
          %v2152 = vcombine.high %v2095, %v2111
          %v2154 = vunpack.c.l.s4 1934713408
          %v2155 = vunpack.c.0.s8 %v2154
          %v2156 = vlaneseq
          %v2157 = vshrl.u32 %v2156, 7
          %v2158 = vsub.s32 %v2155, %v2157
          %v2159 = vrot.slane %v2151, %v2158
          %v2161 = vunpack.c.l.s4 1934713408
          %v2162 = vunpack.c.0.s8 %v2161
          %v2163 = vlaneseq
          %v2164 = vshrl.u32 %v2163, 7
          %v2165 = vsub.s32 %v2162, %v2164
          %v2166 = vrot.slane %v2152, %v2165
          %v2167 = vcombine.low %v2102, %v2118
          %v2168 = vcombine.high %v2102, %v2118
          %v2170 = vunpack.c.l.s4 1934713408
          %v2171 = vunpack.c.0.s8 %v2170
          %v2172 = vlaneseq
          %v2173 = vshrl.u32 %v2172, 7
          %v2174 = vsub.s32 %v2171, %v2173
          %v2175 = vrot.slane %v2167, %v2174
          %v2177 = vunpack.c.l.s4 1934713408
          %v2178 = vunpack.c.0.s8 %v2177
          %v2179 = vlaneseq
          %v2180 = vshrl.u32 %v2179, 7
          %v2181 = vsub.s32 %v2178, %v2180
          %v2182 = vrot.slane %v2168, %v2181
          %v2183 = vcombine.low %v2127, %v2159
          %v2184 = vcombine.high %v2127, %v2159
          %v2185 = vcombine.low %v2134, %v2166
          %v2186 = vcombine.high %v2134, %v2166
          %v2187 = vcombine.low %v2143, %v2175
          %v2188 = vcombine.high %v2143, %v2175
          %v2189 = vcombine.low %v2150, %v2182
          %v2190 = vcombine.high %v2150, %v2182
          %v2191 = vcombine.low %v2012, %v2016
          %v2192 = vcombine.high %v2012, %v2016
          %v2194 = vunpack.c.l.s4 1983009808
          %v2195 = vunpack.c.0.s8 %v2194
          %v2196 = vlaneseq
          %v2197 = vshrl.u32 %v2196, 7
          %v2198 = vsub.s32 %v2195, %v2197
          %v2199 = vrot.slane %v2191, %v2198
          %v2201 = vunpack.c.l.s4 1983009808
          %v2202 = vunpack.c.0.s8 %v2201
          %v2203 = vlaneseq
          %v2204 = vshrl.u32 %v2203, 7
          %v2205 = vsub.s32 %v2202, %v2204
          %v2206 = vrot.slane %v2192, %v2205
          %v2207 = vcombine.low %v2014, %v2018
          %v2208 = vcombine.high %v2014, %v2018
          %v2210 = vunpack.c.l.s4 1983009808
          %v2211 = vunpack.c.0.s8 %v2210
          %v2212 = vlaneseq
          %v2213 = vshrl.u32 %v2212, 7
          %v2214 = vsub.s32 %v2211, %v2213
          %v2215 = vrot.slane %v2207, %v2214
          %v2217 = vunpack.c.l.s4 1983009808
          %v2218 = vunpack.c.0.s8 %v2217
          %v2219 = vlaneseq
          %v2220 = vshrl.u32 %v2219, 7
          %v2221 = vsub.s32 %v2218, %v2220
          %v2222 = vrot.slane %v2208, %v2221
          %v2223 = vcombine.low %v2020, %v2024
          %v2224 = vcombine.high %v2020, %v2024
          %v2226 = vunpack.c.l.s4 1983009808
          %v2227 = vunpack.c.0.s8 %v2226
          %v2228 = vlaneseq
          %v2229 = vshrl.u32 %v2228, 7
          %v2230 = vsub.s32 %v2227, %v2229
          %v2231 = vrot.slane %v2223, %v2230
          %v2233 = vunpack.c.l.s4 1983009808
          %v2234 = vunpack.c.0.s8 %v2233
          %v2235 = vlaneseq
          %v2236 = vshrl.u32 %v2235, 7
          %v2237 = vsub.s32 %v2234, %v2236
          %v2238 = vrot.slane %v2224, %v2237
          %v2239 = vcombine.low %v2022, %v2026
          %v2240 = vcombine.high %v2022, %v2026
          %v2242 = vunpack.c.l.s4 1983009808
          %v2243 = vunpack.c.0.s8 %v2242
          %v2244 = vlaneseq
          %v2245 = vshrl.u32 %v2244, 7
          %v2246 = vsub.s32 %v2243, %v2245
          %v2247 = vrot.slane %v2239, %v2246
          %v2249 = vunpack.c.l.s4 1983009808
          %v2250 = vunpack.c.0.s8 %v2249
          %v2251 = vlaneseq
          %v2252 = vshrl.u32 %v2251, 7
          %v2253 = vsub.s32 %v2250, %v2252
          %v2254 = vrot.slane %v2240, %v2253
          %v2255 = vcombine.low %v2199, %v2215
          %v2256 = vcombine.high %v2199, %v2215
          %v2258 = vunpack.c.l.s4 1934713408
          %v2259 = vunpack.c.0.s8 %v2258
          %v2260 = vlaneseq
          %v2261 = vshrl.u32 %v2260, 7
          %v2262 = vsub.s32 %v2259, %v2261
          %v2263 = vrot.slane %v2255, %v2262
          %v2265 = vunpack.c.l.s4 1934713408
          %v2266 = vunpack.c.0.s8 %v2265
          %v2267 = vlaneseq
          %v2268 = vshrl.u32 %v2267, 7
          %v2269 = vsub.s32 %v2266, %v2268
          %v2270 = vrot.slane %v2256, %v2269
          %v2271 = vcombine.low %v2206, %v2222
          %v2272 = vcombine.high %v2206, %v2222
          %v2274 = vunpack.c.l.s4 1934713408
          %v2275 = vunpack.c.0.s8 %v2274
          %v2276 = vlaneseq
          %v2277 = vshrl.u32 %v2276, 7
          %v2278 = vsub.s32 %v2275, %v2277
          %v2279 = vrot.slane %v2271, %v2278
          %v2281 = vunpack.c.l.s4 1934713408
          %v2282 = vunpack.c.0.s8 %v2281
          %v2283 = vlaneseq
          %v2284 = vshrl.u32 %v2283, 7
          %v2285 = vsub.s32 %v2282, %v2284
          %v2286 = vrot.slane %v2272, %v2285
          %v2287 = vcombine.low %v2231, %v2247
          %v2288 = vcombine.high %v2231, %v2247
          %v2290 = vunpack.c.l.s4 1934713408
          %v2291 = vunpack.c.0.s8 %v2290
          %v2292 = vlaneseq
          %v2293 = vshrl.u32 %v2292, 7
          %v2294 = vsub.s32 %v2291, %v2293
          %v2295 = vrot.slane %v2287, %v2294
          %v2297 = vunpack.c.l.s4 1934713408
          %v2298 = vunpack.c.0.s8 %v2297
          %v2299 = vlaneseq
          %v2300 = vshrl.u32 %v2299, 7
          %v2301 = vsub.s32 %v2298, %v2300
          %v2302 = vrot.slane %v2288, %v2301
          %v2303 = vcombine.low %v2238, %v2254
          %v2304 = vcombine.high %v2238, %v2254
          %v2306 = vunpack.c.l.s4 1934713408
          %v2307 = vunpack.c.0.s8 %v2306
          %v2308 = vlaneseq
          %v2309 = vshrl.u32 %v2308, 7
          %v2310 = vsub.s32 %v2307, %v2309
          %v2311 = vrot.slane %v2303, %v2310
          %v2313 = vunpack.c.l.s4 1934713408
          %v2314 = vunpack.c.0.s8 %v2313
          %v2315 = vlaneseq
          %v2316 = vshrl.u32 %v2315, 7
          %v2317 = vsub.s32 %v2314, %v2316
          %v2318 = vrot.slane %v2304, %v2317
          %v2319 = vcombine.low %v2263, %v2295
          %v2320 = vcombine.high %v2263, %v2295
          %v2321 = vcombine.low %v2270, %v2302
          %v2322 = vcombine.high %v2270, %v2302
          %v2323 = vcombine.low %v2279, %v2311
          %v2324 = vcombine.high %v2279, %v2311
          %v2325 = vcombine.low %v2286, %v2318
          %v2326 = vcombine.high %v2286, %v2318
          %v2327 = vcombine.low %v2028, %v2032
          %v2328 = vcombine.high %v2028, %v2032
          %v2330 = vunpack.c.l.s4 1983009808
          %v2331 = vunpack.c.0.s8 %v2330
          %v2332 = vlaneseq
          %v2333 = vshrl.u32 %v2332, 7
          %v2334 = vsub.s32 %v2331, %v2333
          %v2335 = vrot.slane %v2327, %v2334
          %v2337 = vunpack.c.l.s4 1983009808
          %v2338 = vunpack.c.0.s8 %v2337
          %v2339 = vlaneseq
          %v2340 = vshrl.u32 %v2339, 7
          %v2341 = vsub.s32 %v2338, %v2340
          %v2342 = vrot.slane %v2328, %v2341
          %v2343 = vcombine.low %v2030, %v2034
          %v2344 = vcombine.high %v2030, %v2034
          %v2346 = vunpack.c.l.s4 1983009808
          %v2347 = vunpack.c.0.s8 %v2346
          %v2348 = vlaneseq
          %v2349 = vshrl.u32 %v2348, 7
          %v2350 = vsub.s32 %v2347, %v2349
          %v2351 = vrot.slane %v2343, %v2350
          %v2353 = vunpack.c.l.s4 1983009808
          %v2354 = vunpack.c.0.s8 %v2353
          %v2355 = vlaneseq
          %v2356 = vshrl.u32 %v2355, 7
          %v2357 = vsub.s32 %v2354, %v2356
          %v2358 = vrot.slane %v2344, %v2357
          %v2359 = vcombine.low %v2335, %v2351
          %v2360 = vcombine.high %v2335, %v2351
          %v2362 = vunpack.c.l.s4 1934713408
          %v2363 = vunpack.c.0.s8 %v2362
          %v2364 = vlaneseq
          %v2365 = vshrl.u32 %v2364, 7
          %v2366 = vsub.s32 %v2363, %v2365
          %v2367 = vrot.slane %v2359, %v2366
          %v2369 = vunpack.c.l.s4 1934713408
          %v2370 = vunpack.c.0.s8 %v2369
          %v2371 = vlaneseq
          %v2372 = vshrl.u32 %v2371, 7
          %v2373 = vsub.s32 %v2370, %v2372
          %v2374 = vrot.slane %v2360, %v2373
          %v2375 = vcombine.low %v2342, %v2358
          %v2376 = vcombine.high %v2342, %v2358
          %v2378 = vunpack.c.l.s4 1934713408
          %v2379 = vunpack.c.0.s8 %v2378
          %v2380 = vlaneseq
          %v2381 = vshrl.u32 %v2380, 7
          %v2382 = vsub.s32 %v2379, %v2381
          %v2383 = vrot.slane %v2375, %v2382
          %v2385 = vunpack.c.l.s4 1934713408
          %v2386 = vunpack.c.0.s8 %v2385
          %v2387 = vlaneseq
          %v2388 = vshrl.u32 %v2387, 7
          %v2389 = vsub.s32 %v2386, %v2388
          %v2390 = vrot.slane %v2376, %v2389
          %v2391 = vcombine.high %v2367, 0.0
          %v2392 = vcombine.high %v2374, 0.0
          %v2393 = vcombine.high %v2383, 0.0
          %v2394 = vcombine.high %v2390, 0.0
          %v2395 = vcombine.low %v2183, %v2185
          %v2396 = vcombine.high %v2183, %v2185
          %v2398 = vunpack.c.l.s4 1983009808
          %v2399 = vunpack.c.0.s8 %v2398
          %v2400 = vlaneseq
          %v2401 = vshrl.u32 %v2400, 7
          %v2402 = vsub.s32 %v2399, %v2401
          %v2403 = vrot.slane %v2395, %v2402
          %v2405 = vunpack.c.l.s4 1983009808
          %v2406 = vunpack.c.0.s8 %v2405
          %v2407 = vlaneseq
          %v2408 = vshrl.u32 %v2407, 7
          %v2409 = vsub.s32 %v2406, %v2408
          %v2410 = vrot.slane %v2396, %v2409
          %v2411 = vcombine.low %v2184, %v2186
          %v2412 = vcombine.high %v2184, %v2186
          %v2414 = vunpack.c.l.s4 1983009808
          %v2415 = vunpack.c.0.s8 %v2414
          %v2416 = vlaneseq
          %v2417 = vshrl.u32 %v2416, 7
          %v2418 = vsub.s32 %v2415, %v2417
          %v2419 = vrot.slane %v2411, %v2418
          %v2421 = vunpack.c.l.s4 1983009808
          %v2422 = vunpack.c.0.s8 %v2421
          %v2423 = vlaneseq
          %v2424 = vshrl.u32 %v2423, 7
          %v2425 = vsub.s32 %v2422, %v2424
          %v2426 = vrot.slane %v2412, %v2425
          %v2427 = vcombine.low %v2187, %v2189
          %v2428 = vcombine.high %v2187, %v2189
          %v2430 = vunpack.c.l.s4 1983009808
          %v2431 = vunpack.c.0.s8 %v2430
          %v2432 = vlaneseq
          %v2433 = vshrl.u32 %v2432, 7
          %v2434 = vsub.s32 %v2431, %v2433
          %v2435 = vrot.slane %v2427, %v2434
          %v2437 = vunpack.c.l.s4 1983009808
          %v2438 = vunpack.c.0.s8 %v2437
          %v2439 = vlaneseq
          %v2440 = vshrl.u32 %v2439, 7
          %v2441 = vsub.s32 %v2438, %v2440
          %v2442 = vrot.slane %v2428, %v2441
          %v2443 = vcombine.low %v2188, %v2190
          %v2444 = vcombine.high %v2188, %v2190
          %v2446 = vunpack.c.l.s4 1983009808
          %v2447 = vunpack.c.0.s8 %v2446
          %v2448 = vlaneseq
          %v2449 = vshrl.u32 %v2448, 7
          %v2450 = vsub.s32 %v2447, %v2449
          %v2451 = vrot.slane %v2443, %v2450
          %v2453 = vunpack.c.l.s4 1983009808
          %v2454 = vunpack.c.0.s8 %v2453
          %v2455 = vlaneseq
          %v2456 = vshrl.u32 %v2455, 7
          %v2457 = vsub.s32 %v2454, %v2456
          %v2458 = vrot.slane %v2444, %v2457
          %v2459 = vcombine.low %v2403, %v2419
          %v2460 = vcombine.high %v2403, %v2419
          %v2462 = vunpack.c.l.s4 1934713408
          %v2463 = vunpack.c.0.s8 %v2462
          %v2464 = vlaneseq
          %v2465 = vshrl.u32 %v2464, 7
          %v2466 = vsub.s32 %v2463, %v2465
          %v2467 = vrot.slane %v2459, %v2466
          %v2469 = vunpack.c.l.s4 1934713408
          %v2470 = vunpack.c.0.s8 %v2469
          %v2471 = vlaneseq
          %v2472 = vshrl.u32 %v2471, 7
          %v2473 = vsub.s32 %v2470, %v2472
          %v2474 = vrot.slane %v2460, %v2473
          %v2475 = vcombine.low %v2410, %v2426
          %v2476 = vcombine.high %v2410, %v2426
          %v2478 = vunpack.c.l.s4 1934713408
          %v2479 = vunpack.c.0.s8 %v2478
          %v2480 = vlaneseq
          %v2481 = vshrl.u32 %v2480, 7
          %v2482 = vsub.s32 %v2479, %v2481
          %v2483 = vrot.slane %v2475, %v2482
          %v2485 = vunpack.c.l.s4 1934713408
          %v2486 = vunpack.c.0.s8 %v2485
          %v2487 = vlaneseq
          %v2488 = vshrl.u32 %v2487, 7
          %v2489 = vsub.s32 %v2486, %v2488
          %v2490 = vrot.slane %v2476, %v2489
          %v2491 = vcombine.low %v2435, %v2451
          %v2492 = vcombine.high %v2435, %v2451
          %v2494 = vunpack.c.l.s4 1934713408
          %v2495 = vunpack.c.0.s8 %v2494
          %v2496 = vlaneseq
          %v2497 = vshrl.u32 %v2496, 7
          %v2498 = vsub.s32 %v2495, %v2497
          %v2499 = vrot.slane %v2491, %v2498
          %v2501 = vunpack.c.l.s4 1934713408
          %v2502 = vunpack.c.0.s8 %v2501
          %v2503 = vlaneseq
          %v2504 = vshrl.u32 %v2503, 7
          %v2505 = vsub.s32 %v2502, %v2504
          %v2506 = vrot.slane %v2492, %v2505
          %v2507 = vcombine.low %v2442, %v2458
          %v2508 = vcombine.high %v2442, %v2458
          %v2510 = vunpack.c.l.s4 1934713408
          %v2511 = vunpack.c.0.s8 %v2510
          %v2512 = vlaneseq
          %v2513 = vshrl.u32 %v2512, 7
          %v2514 = vsub.s32 %v2511, %v2513
          %v2515 = vrot.slane %v2507, %v2514
          %v2517 = vunpack.c.l.s4 1934713408
          %v2518 = vunpack.c.0.s8 %v2517
          %v2519 = vlaneseq
          %v2520 = vshrl.u32 %v2519, 7
          %v2521 = vsub.s32 %v2518, %v2520
          %v2522 = vrot.slane %v2508, %v2521
          %v2523 = vcombine.low %v2467, %v2499
          %v2524 = vcombine.high %v2467, %v2499
          %v2525 = vcombine.low %v2474, %v2506
          %v2526 = vcombine.high %v2474, %v2506
          %v2527 = vcombine.low %v2483, %v2515
          %v2528 = vcombine.high %v2483, %v2515
          %v2529 = vcombine.low %v2490, %v2522
          %v2530 = vcombine.high %v2490, %v2522
          %v2531 = vcombine.low %v2319, %v2321
          %v2532 = vcombine.high %v2319, %v2321
          %v2534 = vunpack.c.l.s4 1983009808
          %v2535 = vunpack.c.0.s8 %v2534
          %v2536 = vlaneseq
          %v2537 = vshrl.u32 %v2536, 7
          %v2538 = vsub.s32 %v2535, %v2537
          %v2539 = vrot.slane %v2531, %v2538
          %v2541 = vunpack.c.l.s4 1983009808
          %v2542 = vunpack.c.0.s8 %v2541
          %v2543 = vlaneseq
          %v2544 = vshrl.u32 %v2543, 7
          %v2545 = vsub.s32 %v2542, %v2544
          %v2546 = vrot.slane %v2532, %v2545
          %v2547 = vcombine.low %v2320, %v2322
          %v2548 = vcombine.high %v2320, %v2322
          %v2550 = vunpack.c.l.s4 1983009808
          %v2551 = vunpack.c.0.s8 %v2550
          %v2552 = vlaneseq
          %v2553 = vshrl.u32 %v2552, 7
          %v2554 = vsub.s32 %v2551, %v2553
          %v2555 = vrot.slane %v2547, %v2554
          %v2557 = vunpack.c.l.s4 1983009808
          %v2558 = vunpack.c.0.s8 %v2557
          %v2559 = vlaneseq
          %v2560 = vshrl.u32 %v2559, 7
          %v2561 = vsub.s32 %v2558, %v2560
          %v2562 = vrot.slane %v2548, %v2561
          %v2563 = vcombine.low %v2323, %v2325
          %v2564 = vcombine.high %v2323, %v2325
          %v2566 = vunpack.c.l.s4 1983009808
          %v2567 = vunpack.c.0.s8 %v2566
          %v2568 = vlaneseq
          %v2569 = vshrl.u32 %v2568, 7
          %v2570 = vsub.s32 %v2567, %v2569
          %v2571 = vrot.slane %v2563, %v2570
          %v2573 = vunpack.c.l.s4 1983009808
          %v2574 = vunpack.c.0.s8 %v2573
          %v2575 = vlaneseq
          %v2576 = vshrl.u32 %v2575, 7
          %v2577 = vsub.s32 %v2574, %v2576
          %v2578 = vrot.slane %v2564, %v2577
          %v2579 = vcombine.low %v2324, %v2326
          %v2580 = vcombine.high %v2324, %v2326
          %v2582 = vunpack.c.l.s4 1983009808
          %v2583 = vunpack.c.0.s8 %v2582
          %v2584 = vlaneseq
          %v2585 = vshrl.u32 %v2584, 7
          %v2586 = vsub.s32 %v2583, %v2585
          %v2587 = vrot.slane %v2579, %v2586
          %v2589 = vunpack.c.l.s4 1983009808
          %v2590 = vunpack.c.0.s8 %v2589
          %v2591 = vlaneseq
          %v2592 = vshrl.u32 %v2591, 7
          %v2593 = vsub.s32 %v2590, %v2592
          %v2594 = vrot.slane %v2580, %v2593
          %v2595 = vcombine.low %v2539, %v2555
          %v2596 = vcombine.high %v2539, %v2555
          %v2598 = vunpack.c.l.s4 1934713408
          %v2599 = vunpack.c.0.s8 %v2598
          %v2600 = vlaneseq
          %v2601 = vshrl.u32 %v2600, 7
          %v2602 = vsub.s32 %v2599, %v2601
          %v2603 = vrot.slane %v2595, %v2602
          %v2605 = vunpack.c.l.s4 1934713408
          %v2606 = vunpack.c.0.s8 %v2605
          %v2607 = vlaneseq
          %v2608 = vshrl.u32 %v2607, 7
          %v2609 = vsub.s32 %v2606, %v2608
          %v2610 = vrot.slane %v2596, %v2609
          %v2611 = vcombine.low %v2546, %v2562
          %v2612 = vcombine.high %v2546, %v2562
          %v2614 = vunpack.c.l.s4 1934713408
          %v2615 = vunpack.c.0.s8 %v2614
          %v2616 = vlaneseq
          %v2617 = vshrl.u32 %v2616, 7
          %v2618 = vsub.s32 %v2615, %v2617
          %v2619 = vrot.slane %v2611, %v2618
          %v2621 = vunpack.c.l.s4 1934713408
          %v2622 = vunpack.c.0.s8 %v2621
          %v2623 = vlaneseq
          %v2624 = vshrl.u32 %v2623, 7
          %v2625 = vsub.s32 %v2622, %v2624
          %v2626 = vrot.slane %v2612, %v2625
          %v2627 = vcombine.low %v2571, %v2587
          %v2628 = vcombine.high %v2571, %v2587
          %v2630 = vunpack.c.l.s4 1934713408
          %v2631 = vunpack.c.0.s8 %v2630
          %v2632 = vlaneseq
          %v2633 = vshrl.u32 %v2632, 7
          %v2634 = vsub.s32 %v2631, %v2633
          %v2635 = vrot.slane %v2627, %v2634
          %v2637 = vunpack.c.l.s4 1934713408
          %v2638 = vunpack.c.0.s8 %v2637
          %v2639 = vlaneseq
          %v2640 = vshrl.u32 %v2639, 7
          %v2641 = vsub.s32 %v2638, %v2640
          %v2642 = vrot.slane %v2628, %v2641
          %v2643 = vcombine.low %v2578, %v2594
          %v2644 = vcombine.high %v2578, %v2594
          %v2646 = vunpack.c.l.s4 1934713408
          %v2647 = vunpack.c.0.s8 %v2646
          %v2648 = vlaneseq
          %v2649 = vshrl.u32 %v2648, 7
          %v2650 = vsub.s32 %v2647, %v2649
          %v2651 = vrot.slane %v2643, %v2650
          %v2653 = vunpack.c.l.s4 1934713408
          %v2654 = vunpack.c.0.s8 %v2653
          %v2655 = vlaneseq
          %v2656 = vshrl.u32 %v2655, 7
          %v2657 = vsub.s32 %v2654, %v2656
          %v2658 = vrot.slane %v2644, %v2657
          %v2659 = vcombine.low %v2603, %v2635
          %v2660 = vcombine.high %v2603, %v2635
          %v2661 = vcombine.low %v2610, %v2642
          %v2662 = vcombine.high %v2610, %v2642
          %v2663 = vcombine.low %v2619, %v2651
          %v2664 = vcombine.high %v2619, %v2651
          %v2665 = vcombine.low %v2626, %v2658
          %v2666 = vcombine.high %v2626, %v2658
          %v2667 = vcombine.low %v2367, %v2374
          %v2669 = vunpack.c.l.s4 1983009808
          %v2670 = vunpack.c.0.s8 %v2669
          %v2671 = vlaneseq
          %v2672 = vshrl.u32 %v2671, 7
          %v2673 = vsub.s32 %v2670, %v2672
          %v2674 = vrot.slane %v2667, %v2673
          %v2675 = vcombine.low %v2391, %v2392
          %v2677 = vunpack.c.l.s4 1983009808
          %v2678 = vunpack.c.0.s8 %v2677
          %v2679 = vlaneseq
          %v2680 = vshrl.u32 %v2679, 7
          %v2681 = vsub.s32 %v2678, %v2680
          %v2682 = vrot.slane %v2675, %v2681
          %v2683 = vcombine.low %v2383, %v2390
          %v2685 = vunpack.c.l.s4 1983009808
          %v2686 = vunpack.c.0.s8 %v2685
          %v2687 = vlaneseq
          %v2688 = vshrl.u32 %v2687, 7
          %v2689 = vsub.s32 %v2686, %v2688
          %v2690 = vrot.slane %v2683, %v2689
          %v2691 = vcombine.low %v2393, %v2394
          %v2693 = vunpack.c.l.s4 1983009808
          %v2694 = vunpack.c.0.s8 %v2693
          %v2695 = vlaneseq
          %v2696 = vshrl.u32 %v2695, 7
          %v2697 = vsub.s32 %v2694, %v2696
          %v2698 = vrot.slane %v2691, %v2697
          %v2699 = vcombine.low %v2674, %v2682
          %v2700 = vcombine.high %v2674, %v2682
          %v2702 = vunpack.c.l.s4 1934713408
          %v2703 = vunpack.c.0.s8 %v2702
          %v2704 = vlaneseq
          %v2705 = vshrl.u32 %v2704, 7
          %v2706 = vsub.s32 %v2703, %v2705
          %v2707 = vrot.slane %v2699, %v2706
          %v2709 = vunpack.c.l.s4 1934713408
          %v2710 = vunpack.c.0.s8 %v2709
          %v2711 = vlaneseq
          %v2712 = vshrl.u32 %v2711, 7
          %v2713 = vsub.s32 %v2710, %v2712
          %v2714 = vrot.slane %v2700, %v2713
          %v2715 = vcombine.low %v2690, %v2698
          %v2716 = vcombine.high %v2690, %v2698
          %v2718 = vunpack.c.l.s4 1934713408
          %v2719 = vunpack.c.0.s8 %v2718
          %v2720 = vlaneseq
          %v2721 = vshrl.u32 %v2720, 7
          %v2722 = vsub.s32 %v2719, %v2721
          %v2723 = vrot.slane %v2715, %v2722
          %v2725 = vunpack.c.l.s4 1934713408
          %v2726 = vunpack.c.0.s8 %v2725
          %v2727 = vlaneseq
          %v2728 = vshrl.u32 %v2727, 7
          %v2729 = vsub.s32 %v2726, %v2728
          %v2730 = vrot.slane %v2716, %v2729
          %v2731 = vcombine.low %v2707, %v2723
          %v2732 = vcombine.high %v2707, %v2723
          %v2733 = vcombine.low %v2714, %v2730
          %v2734 = vcombine.high %v2714, %v2730
          %2735 = vst.msk [vmem:[#allocation3] sm:$0xff] %vm1925, %v2523
          %2736 = vst.msk [vmem:[#allocation3 + $0x8] sm:$0xff] %vm1925, %v2524
          %2737 = vst.msk [vmem:[#allocation3 + $0x10] sm:$0xff] %vm1925, %v2525
          %2738 = vst.msk [vmem:[#allocation3 + $0x18] sm:$0xff] %vm1925, %v2526
          %2739 = vst.msk [vmem:[#allocation3 + $0x20] sm:$0xff] %vm1925, %v2527
          %2740 = vst.msk [vmem:[#allocation3 + $0x28] sm:$0xff] %vm1925, %v2528
          %2741 = vst.msk [vmem:[#allocation3 + $0x30] sm:$0xff] %vm1925, %v2529
          %2742 = vst.msk [vmem:[#allocation3 + $0x38] sm:$0xff] %vm1925, %v2530
          %2743 = vst.msk [vmem:[#allocation3 + $0x40] sm:$0xff] %vm1925, %v2659
          %2744 = vst.msk [vmem:[#allocation3 + $0x48] sm:$0xff] %vm1925, %v2660
          %2745 = vst.msk [vmem:[#allocation3 + $0x50] sm:$0xff] %vm1925, %v2661
          %2746 = vst.msk [vmem:[#allocation3 + $0x58] sm:$0xff] %vm1925, %v2662
          %2747 = vst.msk [vmem:[#allocation3 + $0x60] sm:$0xff] %vm1925, %v2663
          %2748 = vst.msk [vmem:[#allocation3 + $0x68] sm:$0xff] %vm1925, %v2664
          %2749 = vst.msk [vmem:[#allocation3 + $0x70] sm:$0xff] %vm1925, %v2665
          %2750 = vst.msk [vmem:[#allocation3 + $0x78] sm:$0xff] %vm1925, %v2666
          %2751 = vst.msk [vmem:[#allocation3 + $0x80] sm:$0xff] %vm1925, %v2731
          %2752 = vst.msk [vmem:[#allocation3 + $0x88] sm:$0xff] %vm1925, %v2732
          %2753 = vst.msk [vmem:[#allocation3 + $0x90] sm:$0xff] %vm1925, %v2733
          %2754 = vst.msk [vmem:[#allocation3 + $0x98] sm:$0xff] %vm1925, %v2734
        $region48: #{tpu_custom_call.1} parent=43 // pred_fallthru
          _
        %s2755 = smul.u32 %s25, 8
        %s2756 = sshra.s32 %s2755, 3
        %s2757 = sand.u32 %s2755, 7
        %s2758 = smul.u32 %s2756, 3
        %s2759 = smul.addr %s2758, 8
        %s2760 = scalar_lea.vmem %s263, %s2759
        %v2761 = vld [vmem:[%s2760] sm:$0xff]
        %v2762 = vld [vmem:[%s2760 + $0x8] sm:$0xff]
        %v2763 = vld [vmem:[%s2760 + $0x10] sm:$0xff]
        %s2764 = smul.addr %s2758, 8
        %s2765 = scalar_lea.vmem %s1, %s2764
        %v2766 = vld [vmem:[%s2765] sm:$0xff]
        %v2767 = vld [vmem:[%s2765 + $0x8] sm:$0xff]
        %v2768 = vld [vmem:[%s2765 + $0x10] sm:$0xff]
        %v2769 = vadd.f32 %v2761, %v2766
        %v2770 = vadd.f32 %v2762, %v2767
        %v2771 = vadd.f32 %v2763, %v2768
        %v2772 = vld [vmem:[%s2] sm:$0xff]
        %v2773 = vld [vmem:[%s2 + $0x8] sm:$0xff]
        %v2774 = vld [vmem:[%s2 + $0x10] sm:$0xff]
        %v2775 = vld [vmem:[%s2 + $0x18] sm:$0xff]
        %v2776 = vld [vmem:[%s2 + $0x20] sm:$0xff]
        %v2777 = vld [vmem:[%s2 + $0x28] sm:$0xff]
        %v2778 = vld [vmem:[%s2 + $0x30] sm:$0xff]
        %v2779 = vld [vmem:[%s2 + $0x38] sm:$0xff]
        %v2780 = vld [vmem:[%s2 + $0x40] sm:$0xff]
        %v2781 = vld [vmem:[%s2 + $0x48] sm:$0xff]
        %v2782 = vld [vmem:[%s2 + $0x50] sm:$0xff]
        %v2783 = vld [vmem:[%s2 + $0x58] sm:$0xff]
        %v2784 = vld [vmem:[%s2 + $0x60] sm:$0xff]
        %v2785 = vld [vmem:[%s2 + $0x68] sm:$0xff]
        %v2786 = vld [vmem:[%s2 + $0x70] sm:$0xff]
        %v2787 = vld [vmem:[%s2 + $0x78] sm:$0xff]
        %v2788 = vld [vmem:[%s2 + $0x80] sm:$0xff]
        %v2789 = vld [vmem:[%s2 + $0x88] sm:$0xff]
        %v2790 = vld [vmem:[%s2 + $0x90] sm:$0xff]
        %v2791 = vld [vmem:[%s2 + $0x98] sm:$0xff]
        %v2792 = vld [vmem:[%s2 + $0xa0] sm:$0xff]
        %v2793 = vld [vmem:[%s2 + $0xa8] sm:$0xff]
        %v2794 = vld [vmem:[%s2 + $0xb0] sm:$0xff]
        %v2795 = vld [vmem:[%s2 + $0xb8] sm:$0xff]
        %v2796 = vld [vmem:[%s2 + $0xc0] sm:$0xff]
        %v2797 = vld [vmem:[%s2 + $0xc8] sm:$0xff]
        %v2798 = vld [vmem:[%s2 + $0xd0] sm:$0xff]
        %v2799 = vld [vmem:[%s2 + $0xd8] sm:$0xff]
        %v2800 = vld [vmem:[%s2 + $0xe0] sm:$0xff]
        %v2801 = vld [vmem:[%s2 + $0xe8] sm:$0xff]
        %v2802 = vld [vmem:[%s2 + $0xf0] sm:$0xff]
        %v2803 = vld [vmem:[%s2 + $0xf8] sm:$0xff]
        %v2804 = vld [vmem:[%s2 + $0x100] sm:$0xff]
        %v2805 = vld [vmem:[%s2 + $0x108] sm:$0xff]
        %v2806 = vld [vmem:[%s2 + $0x110] sm:$0xff]
        %v2807 = vld [vmem:[%s2 + $0x118] sm:$0xff]
        %v2808 = vld [vmem:[%s2 + $0x120] sm:$0xff]
        %v2809 = vld [vmem:[%s2 + $0x128] sm:$0xff]
        %v2810 = vld [vmem:[%s2 + $0x130] sm:$0xff]
        %v2811 = vld [vmem:[%s2 + $0x138] sm:$0xff]
        %v2812 = vld [vmem:[%s2 + $0x140] sm:$0xff]
        %v2813 = vld [vmem:[%s2 + $0x148] sm:$0xff]
        %v2814 = vld [vmem:[%s2 + $0x150] sm:$0xff]
        %v2815 = vld [vmem:[%s2 + $0x158] sm:$0xff]
        %v2816 = vld [vmem:[%s2 + $0x160] sm:$0xff]
        %v2817 = vld [vmem:[%s2 + $0x168] sm:$0xff]
        %v2818 = vld [vmem:[%s2 + $0x170] sm:$0xff]
        %v2819 = vld [vmem:[%s2 + $0x178] sm:$0xff]
        %v2820 = vld [vmem:[%s2 + $0x180] sm:$0xff]
        %v2821 = vld [vmem:[%s2 + $0x188] sm:$0xff]
        %v2822 = vld [vmem:[%s2 + $0x190] sm:$0xff]
        %v2823 = vld [vmem:[%s2 + $0x198] sm:$0xff]
        %v2824 = vld [vmem:[%s2 + $0x1a0] sm:$0xff]
        %v2825 = vld [vmem:[%s2 + $0x1a8] sm:$0xff]
        %v2826 = vld [vmem:[%s2 + $0x1b0] sm:$0xff]
        %v2827 = vld [vmem:[%s2 + $0x1b8] sm:$0xff]
        %v2828 = vld [vmem:[%s2 + $0x1c0] sm:$0xff]
        %v2829 = vld [vmem:[%s2 + $0x1c8] sm:$0xff]
        %v2830 = vld [vmem:[%s2 + $0x1d0] sm:$0xff]
        %v2831 = vld [vmem:[%s2 + $0x1d8] sm:$0xff]
        %v2832 = vld [vmem:[%s2 + $0x1e0] sm:$0xff]
        %v2833 = vld [vmem:[%s2 + $0x1e8] sm:$0xff]
        %v2834 = vld [vmem:[%s2 + $0x1f0] sm:$0xff]
        %v2835 = vld [vmem:[%s2 + $0x1f8] sm:$0xff]
        %v2836 = vld [vmem:[%s2 + $0x200] sm:$0xff]
        %v2837 = vld [vmem:[%s2 + $0x208] sm:$0xff]
        %v2838 = vld [vmem:[%s2 + $0x210] sm:$0xff]
        %v2839 = vld [vmem:[%s2 + $0x218] sm:$0xff]
        %v2840 = vld [vmem:[%s2 + $0x220] sm:$0xff]
        %v2841 = vld [vmem:[%s2 + $0x228] sm:$0xff]
        %v2842 = vld [vmem:[%s2 + $0x230] sm:$0xff]
        %v2843 = vld [vmem:[%s2 + $0x238] sm:$0xff]
        %v2844 = vld [vmem:[%s2 + $0x240] sm:$0xff]
        %v2845 = vld [vmem:[%s2 + $0x248] sm:$0xff]
        %v2846 = vld [vmem:[%s2 + $0x250] sm:$0xff]
        %v2847 = vld [vmem:[%s2 + $0x258] sm:$0xff]
        %v2848 = vld [vmem:[%s2 + $0x260] sm:$0xff]
        %v2849 = vld [vmem:[%s2 + $0x268] sm:$0xff]
        %v2850 = vld [vmem:[%s2 + $0x270] sm:$0xff]
        %v2851 = vld [vmem:[%s2 + $0x278] sm:$0xff]
        %v2852 = vld [vmem:[%s2 + $0x280] sm:$0xff]
        %v2853 = vld [vmem:[%s2 + $0x288] sm:$0xff]
        %v2854 = vld [vmem:[%s2 + $0x290] sm:$0xff]
        %v2855 = vld [vmem:[%s2 + $0x298] sm:$0xff]
        %v2856 = vld [vmem:[%s2 + $0x2a0] sm:$0xff]
        %v2857 = vld [vmem:[%s2 + $0x2a8] sm:$0xff]
        %v2858 = vld [vmem:[%s2 + $0x2b0] sm:$0xff]
        %v2859 = vld [vmem:[%s2 + $0x2b8] sm:$0xff]
        %v2860 = vld [vmem:[%s2 + $0x2c0] sm:$0xff]
        %v2861 = vld [vmem:[%s2 + $0x2c8] sm:$0xff]
        %v2862 = vld [vmem:[%s2 + $0x2d0] sm:$0xff]
        %v2863 = vld [vmem:[%s2 + $0x2d8] sm:$0xff]
        %v2864 = vld [vmem:[%s2 + $0x2e0] sm:$0xff]
        %v2865 = vld [vmem:[%s2 + $0x2e8] sm:$0xff]
        %v2866 = vld [vmem:[%s2 + $0x2f0] sm:$0xff]
        %v2867 = vld [vmem:[%s2 + $0x2f8] sm:$0xff]
        %v2868 = vld [vmem:[%s2 + $0x300] sm:$0xff]
        %v2869 = vld [vmem:[%s2 + $0x308] sm:$0xff]
        %v2870 = vld [vmem:[%s2 + $0x310] sm:$0xff]
        %v2871 = vld [vmem:[%s2 + $0x318] sm:$0xff]
        %v2872 = vld [vmem:[%s2 + $0x320] sm:$0xff]
        %v2873 = vld [vmem:[%s2 + $0x328] sm:$0xff]
        %v2874 = vld [vmem:[%s2 + $0x330] sm:$0xff]
        %v2875 = vld [vmem:[%s2 + $0x338] sm:$0xff]
        %v2876 = vld [vmem:[%s2 + $0x340] sm:$0xff]
        %v2877 = vld [vmem:[%s2 + $0x348] sm:$0xff]
        %v2878 = vld [vmem:[%s2 + $0x350] sm:$0xff]
        %v2879 = vld [vmem:[%s2 + $0x358] sm:$0xff]
        %v2880 = vld [vmem:[%s2 + $0x360] sm:$0xff]
        %v2881 = vld [vmem:[%s2 + $0x368] sm:$0xff]
        %v2882 = vld [vmem:[%s2 + $0x370] sm:$0xff]
        %v2883 = vld [vmem:[%s2 + $0x378] sm:$0xff]
        %v2884 = vld [vmem:[%s2 + $0x380] sm:$0xff]
        %v2885 = vld [vmem:[%s2 + $0x388] sm:$0xff]
        %v2886 = vld [vmem:[%s2 + $0x390] sm:$0xff]
        %v2887 = vld [vmem:[%s2 + $0x398] sm:$0xff]
        %v2888 = vld [vmem:[%s2 + $0x3a0] sm:$0xff]
        %v2889 = vld [vmem:[%s2 + $0x3a8] sm:$0xff]
        %v2890 = vld [vmem:[%s2 + $0x3b0] sm:$0xff]
        %v2891 = vld [vmem:[%s2 + $0x3b8] sm:$0xff]
        %v2892 = vld [vmem:[%s2 + $0x3c0] sm:$0xff]
        %v2893 = vld [vmem:[%s2 + $0x3c8] sm:$0xff]
        %v2894 = vld [vmem:[%s2 + $0x3d0] sm:$0xff]
        %v2895 = vld [vmem:[%s2 + $0x3d8] sm:$0xff]
        %v2896 = vld [vmem:[%s2 + $0x3e0] sm:$0xff]
        %v2897 = vld [vmem:[%s2 + $0x3e8] sm:$0xff]
        %v2898 = vld [vmem:[%s2 + $0x3f0] sm:$0xff]
        %v2899 = vld [vmem:[%s2 + $0x3f8] sm:$0xff]
        %v2900 = vld [vmem:[%s2 + $0x400] sm:$0xff]
        %v2901 = vld [vmem:[%s2 + $0x408] sm:$0xff]
        %v2902 = vld [vmem:[%s2 + $0x410] sm:$0xff]
        %v2903 = vld [vmem:[%s2 + $0x418] sm:$0xff]
        %v2904 = vld [vmem:[%s2 + $0x420] sm:$0xff]
        %v2905 = vld [vmem:[%s2 + $0x428] sm:$0xff]
        %v2906 = vld [vmem:[%s2 + $0x430] sm:$0xff]
        %v2907 = vld [vmem:[%s2 + $0x438] sm:$0xff]
        %v2908 = vld [vmem:[%s2 + $0x440] sm:$0xff]
        %v2909 = vld [vmem:[%s2 + $0x448] sm:$0xff]
        %v2910 = vld [vmem:[%s2 + $0x450] sm:$0xff]
        %v2911 = vld [vmem:[%s2 + $0x458] sm:$0xff]
        %v2912 = vld [vmem:[%s2 + $0x460] sm:$0xff]
        %v2913 = vld [vmem:[%s2 + $0x468] sm:$0xff]
        %v2914 = vld [vmem:[%s2 + $0x470] sm:$0xff]
        %v2915 = vld [vmem:[%s2 + $0x478] sm:$0xff]
        %v2916 = vld [vmem:[%s2 + $0x480] sm:$0xff]
        %v2917 = vld [vmem:[%s2 + $0x488] sm:$0xff]
        %v2918 = vld [vmem:[%s2 + $0x490] sm:$0xff]
        %v2919 = vld [vmem:[%s2 + $0x498] sm:$0xff]
        %v2920 = vld [vmem:[%s2 + $0x4a0] sm:$0xf]
        %v2921 = vld [vmem:[%s2 + $0x4a8] sm:$0xf]
        %v2922 = vld [vmem:[%s2 + $0x4b0] sm:$0xf]
        %v2923 = vld [vmem:[%s2 + $0x4b8] sm:$0xf]
        %v2924 = vld [vmem:[%s3] sm:$0xf]
        %v2926 = vlaneseq
        %v2927 = vshrl.u32 %v2926, 7
        %v2928 = vsub.s32 0, %v2927
        %v2929 = vrot.slane %v2924, %v2928
        %v2930 = vlaneseq
        %v2931 = vshrl.u32 %v2930, 7
        %v2932 = vsub.s32 1, %v2931
        %v2933 = vrot.slane %v2924, %v2932
        %v2934 = vlaneseq
        %v2935 = vshrl.u32 %v2934, 7
        %v2936 = vsub.s32 2, %v2935
        %v2937 = vrot.slane %v2924, %v2936
        %v2938 = vlaneseq
        %v2939 = vshrl.u32 %v2938, 7
        %v2940 = vsub.s32 3, %v2939
        %v2941 = vrot.slane %v2924, %v2940
        %vm2946 = vcmask 359424
        %v2948 = vsel %vm2946, %v2771, 0
        %vm2950 = vcmask 1043456
        %v2952 = vsel %vm2950, %v2920, 0
        %v2955 = vsel %vm2950, %v2921, 0
        %v2958 = vsel %vm2950, %v2922, 0
        %v2961 = vsel %vm2950, %v2923, 0
        %2963 = vmatprep.subr.mxu0 %v2833
        %2964 = vmatpush1.msra.mxu0 %v2832
        %2965 = vmatprep.subr.mxu0 %v2829
        %2966 = vmatpush1.msra.mxu0 %v2828
        %2967 = vmatprep.subr.mxu0 %v2825
        %2968 = vmatpush1.msra.mxu0 %v2824
        %2969 = vmatprep.subr.mxu0 %v2821
        %2970 = vmatpush1.msra.mxu0 %v2820
        %2971 = vmatprep.subr.mxu0 %v2817
        %2972 = vmatpush1.msra.mxu0 %v2816
        %2973 = vmatprep.subr.mxu0 %v2813
        %2974 = vmatpush1.msra.mxu0 %v2812
        %2975 = vmatprep.subr.mxu0 %v2809
        %2976 = vmatpush1.msra.mxu0 %v2808
        %2977 = vmatprep.subr.mxu0 %v2805
        %2978 = vmatpush1.msra.mxu0 %v2804
        %2979 = vmatprep.subr.mxu0 %v2801
        %2980 = vmatpush1.msra.mxu0 %v2800
        %2981 = vmatprep.subr.mxu0 %v2797
        %2982 = vmatpush1.msra.mxu0 %v2796
        %2983 = vmatprep.subr.mxu0 %v2793
        %2984 = vmatpush1.msra.mxu0 %v2792
        %2985 = vmatprep.subr.mxu0 %v2789
        %2986 = vmatpush1.msra.mxu0 %v2788
        %2987 = vmatprep.subr.mxu0 %v2785
        %2988 = vmatpush1.msra.mxu0 %v2784
        %2989 = vmatprep.subr.mxu0 %v2781
        %2990 = vmatpush1.msra.mxu0 %v2780
        %2991 = vmatprep.subr.mxu0 %v2777
        %2992 = vmatpush1.msra.mxu0 %v2776
        %2993 = vmatprep.subr.mxu0 %v2773
        %2994 = vmatpush1.msra.mxu0 %v2772
        %2995 = vmatprep.subr.mxu0 %v2897
        %2996 = vmatpush2.msra.mxu0 %v2896
        %2997 = vmatprep.subr.mxu0 %v2893
        %2998 = vmatpush2.msra.mxu0 %v2892
        %2999 = vmatprep.subr.mxu0 %v2889
        %3000 = vmatpush2.msra.mxu0 %v2888
        %3001 = vmatprep.subr.mxu0 %v2885
        %3002 = vmatpush2.msra.mxu0 %v2884
        %3003 = vmatprep.subr.mxu0 %v2881
        %3004 = vmatpush2.msra.mxu0 %v2880
        %3005 = vmatprep.subr.mxu0 %v2877
        %3006 = vmatpush2.msra.mxu0 %v2876
        %3007 = vmatprep.subr.mxu0 %v2873
        %3008 = vmatpush2.msra.mxu0 %v2872
        %3009 = vmatprep.subr.mxu0 %v2869
        %3010 = vmatpush2.msra.mxu0 %v2868
        %3011 = vmatprep.subr.mxu0 %v2865
        %3012 = vmatpush2.msra.mxu0 %v2864
        %3013 = vmatprep.subr.mxu0 %v2861
        %3014 = vmatpush2.msra.mxu0 %v2860
        %3015 = vmatprep.subr.mxu0 %v2857
        %3016 = vmatpush2.msra.mxu0 %v2856
        %3017 = vmatprep.subr.mxu0 %v2853
        %3018 = vmatpush2.msra.mxu0 %v2852
        %3019 = vmatprep.subr.mxu0 %v2849
        %3020 = vmatpush2.msra.mxu0 %v2848
        %3021 = vmatprep.subr.mxu0 %v2845
        %3022 = vmatpush2.msra.mxu0 %v2844
        %3023 = vmatprep.subr.mxu0 %v2841
        %3024 = vmatpush2.msra.mxu0 %v2840
        %3025 = vmatprep.subr.mxu0 %v2837
        %3026 = vmatpush2.msra.mxu0 %v2836
        %3027 = vmatprep.mubr.f32.mxu0 %v2770
        %3028 = vmatmul.mubr.f32.gmra.mxu0 %v2769
        %v3029 = vpop.f32.mrf.mxu0
        %v3030 = vadd.f32 %v2929, %v3029
        %v3031 = vpop.f32.mrf.mxu0
        %v3032 = vadd.f32 %v2933, %v3031
        %3033 = vdwg.mxu0
        %3034 = vmatprep.subr.mxu0 0.0
        %3035 = vmatpush1.msra.mxu0 0.0
        %3036 = vmatprep.subr.mxu0 0.0
        %3037 = vmatpush1.msra.mxu0 0.0
        %3038 = vmatprep.subr.mxu0 0.0
        %3039 = vmatpush1.msra.mxu0 0.0
        %3040 = vmatprep.subr.mxu0 0.0
        %3041 = vmatpush1.msra.mxu0 0.0
        %3042 = vmatprep.subr.mxu0 0.0
        %3043 = vmatpush1.msra.mxu0 0.0
        %3044 = vmatprep.subr.mxu0 0.0
        %3045 = vmatpush1.msra.mxu0 0.0
        %3046 = vmatprep.subr.mxu0 0.0
        %3047 = vmatpush1.msra.mxu0 0.0
        %3048 = vmatprep.subr.mxu0 0.0
        %3049 = vmatpush1.msra.mxu0 0.0
        %3050 = vmatprep.subr.mxu0 0.0
        %3051 = vmatpush1.msra.mxu0 0.0
        %3052 = vmatprep.subr.mxu0 0.0
        %3053 = vmatpush1.msra.mxu0 0.0
        %3054 = vmatprep.subr.mxu0 %v2955
        %3055 = vmatpush1.msra.mxu0 %v2952
        %3056 = vmatprep.subr.mxu0 %v2917
        %3057 = vmatpush1.msra.mxu0 %v2916
        %3058 = vmatprep.subr.mxu0 %v2913
        %3059 = vmatpush1.msra.mxu0 %v2912
        %3060 = vmatprep.subr.mxu0 %v2909
        %3061 = vmatpush1.msra.mxu0 %v2908
        %3062 = vmatprep.subr.mxu0 %v2905
        %3063 = vmatpush1.msra.mxu0 %v2904
        %3064 = vmatprep.subr.mxu0 %v2901
        %3065 = vmatpush1.msra.mxu0 %v2900
        %3066 = vmatprep.subr.mxu0 0.0
        %3067 = vmatpush2.msra.mxu0 0.0
        %3068 = vmatprep.subr.mxu0 0.0
        %3069 = vmatpush2.msra.mxu0 0.0
        %3070 = vmatprep.subr.mxu0 0.0
        %3071 = vmatpush2.msra.mxu0 0.0
        %3072 = vmatprep.subr.mxu0 0.0
        %3073 = vmatpush2.msra.mxu0 0.0
        %3074 = vmatprep.subr.mxu0 0.0
        %3075 = vmatpush2.msra.mxu0 0.0
        %3076 = vmatprep.subr.mxu0 0.0
        %3077 = vmatpush2.msra.mxu0 0.0
        %3078 = vmatprep.subr.mxu0 0.0
        %3079 = vmatpush2.msra.mxu0 0.0
        %3080 = vmatprep.subr.mxu0 0.0
        %3081 = vmatpush2.msra.mxu0 0.0
        %3082 = vmatprep.subr.mxu0 0.0
        %3083 = vmatpush2.msra.mxu0 0.0
        %3084 = vmatprep.subr.mxu0 0.0
        %3085 = vmatpush2.msra.mxu0 0.0
        %3086 = vmatprep.subr.mxu0 0.0
        %3087 = vmatpush2.msra.mxu0 0.0
        %3088 = vmatprep.subr.mxu0 0.0
        %3089 = vmatpush2.msra.mxu0 0.0
        %3090 = vmatprep.subr.mxu0 0.0
        %3091 = vmatpush2.msra.mxu0 0.0
        %3092 = vmatprep.subr.mxu0 0.0
        %3093 = vmatpush2.msra.mxu0 0.0
        %3094 = vmatprep.subr.mxu0 0.0
        %3095 = vmatpush2.msra.mxu0 0.0
        %3096 = vmatprep.subr.mxu0 0.0
        %3097 = vmatpush2.msra.mxu0 0.0
        %3098 = vmatprep.mubr.f32.mxu0 0.0
        %3099 = vmatmul.mubr.f32.gmra.mxu0 %v2948
        %v3100 = vpop.f32.mrf.mxu0
        %v3101 = vadd.f32 %v3030, %v3100
        %v3102 = vpop.f32.mrf.mxu0
        %v3103 = vadd.f32 %v3032, %v3102
        %3104 = vdwg.mxu0
        %3105 = vmatprep.subr.mxu0 %v2835
        %3106 = vmatpush1.msra.mxu0 %v2834
        %3107 = vmatprep.subr.mxu0 %v2831
        %3108 = vmatpush1.msra.mxu0 %v2830
        %3109 = vmatprep.subr.mxu0 %v2827
        %3110 = vmatpush1.msra.mxu0 %v2826
        %3111 = vmatprep.subr.mxu0 %v2823
        %3112 = vmatpush1.msra.mxu0 %v2822
        %3113 = vmatprep.subr.mxu0 %v2819
        %3114 = vmatpush1.msra.mxu0 %v2818
        %3115 = vmatprep.subr.mxu0 %v2815
        %3116 = vmatpush1.msra.mxu0 %v2814
        %3117 = vmatprep.subr.mxu0 %v2811
        %3118 = vmatpush1.msra.mxu0 %v2810
        %3119 = vmatprep.subr.mxu0 %v2807
        %3120 = vmatpush1.msra.mxu0 %v2806
        %3121 = vmatprep.subr.mxu0 %v2803
        %3122 = vmatpush1.msra.mxu0 %v2802
        %3123 = vmatprep.subr.mxu0 %v2799
        %3124 = vmatpush1.msra.mxu0 %v2798
        %3125 = vmatprep.subr.mxu0 %v2795
        %3126 = vmatpush1.msra.mxu0 %v2794
        %3127 = vmatprep.subr.mxu0 %v2791
        %3128 = vmatpush1.msra.mxu0 %v2790
        %3129 = vmatprep.subr.mxu0 %v2787
        %3130 = vmatpush1.msra.mxu0 %v2786
        %3131 = vmatprep.subr.mxu0 %v2783
        %3132 = vmatpush1.msra.mxu0 %v2782
        %3133 = vmatprep.subr.mxu0 %v2779
        %3134 = vmatpush1.msra.mxu0 %v2778
        %3135 = vmatprep.subr.mxu0 %v2775
        %3136 = vmatpush1.msra.mxu0 %v2774
        %3137 = vmatprep.subr.mxu0 %v2899
        %3138 = vmatpush2.msra.mxu0 %v2898
        %3139 = vmatprep.subr.mxu0 %v2895
        %3140 = vmatpush2.msra.mxu0 %v2894
        %3141 = vmatprep.subr.mxu0 %v2891
        %3142 = vmatpush2.msra.mxu0 %v2890
        %3143 = vmatprep.subr.mxu0 %v2887
        %3144 = vmatpush2.msra.mxu0 %v2886
        %3145 = vmatprep.subr.mxu0 %v2883
        %3146 = vmatpush2.msra.mxu0 %v2882
        %3147 = vmatprep.subr.mxu0 %v2879
        %3148 = vmatpush2.msra.mxu0 %v2878
        %3149 = vmatprep.subr.mxu0 %v2875
        %3150 = vmatpush2.msra.mxu0 %v2874
        %3151 = vmatprep.subr.mxu0 %v2871
        %3152 = vmatpush2.msra.mxu0 %v2870
        %3153 = vmatprep.subr.mxu0 %v2867
        %3154 = vmatpush2.msra.mxu0 %v2866
        %3155 = vmatprep.subr.mxu0 %v2863
        %3156 = vmatpush2.msra.mxu0 %v2862
        %3157 = vmatprep.subr.mxu0 %v2859
        %3158 = vmatpush2.msra.mxu0 %v2858
        %3159 = vmatprep.subr.mxu0 %v2855
        %3160 = vmatpush2.msra.mxu0 %v2854
        %3161 = vmatprep.subr.mxu0 %v2851
        %3162 = vmatpush2.msra.mxu0 %v2850
        %3163 = vmatprep.subr.mxu0 %v2847
        %3164 = vmatpush2.msra.mxu0 %v2846
        %3165 = vmatprep.subr.mxu0 %v2843
        %3166 = vmatpush2.msra.mxu0 %v2842
        %3167 = vmatprep.subr.mxu0 %v2839
        %3168 = vmatpush2.msra.mxu0 %v2838
        %3169 = vmatprep.mubr.f32.mxu0 %v2770
        %3170 = vmatmul.mubr.f32.gmra.mxu0 %v2769
        %v3171 = vpop.f32.mrf.mxu0
        %v3172 = vadd.f32 %v2937, %v3171
        %v3173 = vpop.f32.mrf.mxu0
        %v3174 = vadd.f32 %v2941, %v3173
        %3175 = vdwg.mxu0
        %3176 = vmatprep.subr.mxu0 0.0
        %3177 = vmatpush1.msra.mxu0 0.0
        %3178 = vmatprep.subr.mxu0 0.0
        %3179 = vmatpush1.msra.mxu0 0.0
        %3180 = vmatprep.subr.mxu0 0.0
        %3181 = vmatpush1.msra.mxu0 0.0
        %3182 = vmatprep.subr.mxu0 0.0
        %3183 = vmatpush1.msra.mxu0 0.0
        %3184 = vmatprep.subr.mxu0 0.0
        %3185 = vmatpush1.msra.mxu0 0.0
        %3186 = vmatprep.subr.mxu0 0.0
        %3187 = vmatpush1.msra.mxu0 0.0
        %3188 = vmatprep.subr.mxu0 0.0
        %3189 = vmatpush1.msra.mxu0 0.0
        %3190 = vmatprep.subr.mxu0 0.0
        %3191 = vmatpush1.msra.mxu0 0.0
        %3192 = vmatprep.subr.mxu0 0.0
        %3193 = vmatpush1.msra.mxu0 0.0
        %3194 = vmatprep.subr.mxu0 0.0
        %3195 = vmatpush1.msra.mxu0 0.0
        %3196 = vmatprep.subr.mxu0 %v2961
        %3197 = vmatpush1.msra.mxu0 %v2958
        %3198 = vmatprep.subr.mxu0 %v2919
        %3199 = vmatpush1.msra.mxu0 %v2918
        %3200 = vmatprep.subr.mxu0 %v2915
        %3201 = vmatpush1.msra.mxu0 %v2914
        %3202 = vmatprep.subr.mxu0 %v2911
        %3203 = vmatpush1.msra.mxu0 %v2910
        %3204 = vmatprep.subr.mxu0 %v2907
        %3205 = vmatpush1.msra.mxu0 %v2906
        %3206 = vmatprep.subr.mxu0 %v2903
        %3207 = vmatpush1.msra.mxu0 %v2902
        %3208 = vmatprep.subr.mxu0 0.0
        %3209 = vmatpush2.msra.mxu0 0.0
        %3210 = vmatprep.subr.mxu0 0.0
        %3211 = vmatpush2.msra.mxu0 0.0
        %3212 = vmatprep.subr.mxu0 0.0
        %3213 = vmatpush2.msra.mxu0 0.0
        %3214 = vmatprep.subr.mxu0 0.0
        %3215 = vmatpush2.msra.mxu0 0.0
        %3216 = vmatprep.subr.mxu0 0.0
        %3217 = vmatpush2.msra.mxu0 0.0
        %3218 = vmatprep.subr.mxu0 0.0
        %3219 = vmatpush2.msra.mxu0 0.0
        %3220 = vmatprep.subr.mxu0 0.0
        %3221 = vmatpush2.msra.mxu0 0.0
        %3222 = vmatprep.subr.mxu0 0.0
        %3223 = vmatpush2.msra.mxu0 0.0
        %3224 = vmatprep.subr.mxu0 0.0
        %3225 = vmatpush2.msra.mxu0 0.0
        %3226 = vmatprep.subr.mxu0 0.0
        %3227 = vmatpush2.msra.mxu0 0.0
        %3228 = vmatprep.subr.mxu0 0.0
        %3229 = vmatpush2.msra.mxu0 0.0
        %3230 = vmatprep.subr.mxu0 0.0
        %3231 = vmatpush2.msra.mxu0 0.0
        %3232 = vmatprep.subr.mxu0 0.0
        %3233 = vmatpush2.msra.mxu0 0.0
        %3234 = vmatprep.subr.mxu0 0.0
        %3235 = vmatpush2.msra.mxu0 0.0
        %3236 = vmatprep.subr.mxu0 0.0
        %3237 = vmatpush2.msra.mxu0 0.0
        %3238 = vmatprep.subr.mxu0 0.0
        %3239 = vmatpush2.msra.mxu0 0.0
        %3240 = vmatprep.mubr.f32.mxu0 0.0
        %3241 = vmatmul.mubr.f32.gmra.mxu0 %v2948
        %v3242 = vpop.f32.mrf.mxu0
        %v3243 = vadd.f32 %v3172, %v3242
        %v3244 = vpop.f32.mrf.mxu0
        %v3245 = vadd.f32 %v3174, %v3244
        %3246 = vdwg.mxu0
        %v3247 = vmul.f32 %v3101, 0.2236068
        %v3248 = vmul.f32 %v3103, 0.2236068
        %v3249 = vmul.f32 %v3243, 0.2236068
        %v3250 = vmul.f32 %v3245, 0.2236068
        %3252 = vrot.lane.b32.xlu0 %v3247, 108
        %v3253 = vpop.permute.xlu0 %3252
        %3255 = vrot.lane.b32.xlu0 %v3247, 88
        %v3256 = vpop.permute.xlu0 %3255
        %3258 = vrot.lane.b32.xlu0 %v3247, 68
        %v3259 = vpop.permute.xlu0 %3258
        %3261 = vrot.lane.b32.xlu0 %v3247, 48
        %v3262 = vpop.permute.xlu0 %3261
        %3264 = vrot.lane.b32.xlu0 %v3247, 28
        %v3265 = vpop.permute.xlu0 %3264
        %3268 = vrot.lane.b32.xlu0 %v3247, 8
        %v3269 = vpop.permute.xlu0 %3268
        %3270 = vrot.lane.b32.xlu0 %v3248, 8
        %v3271 = vpop.permute.xlu0 %3270
        %vm3272 = vcmask 64512
        %v3273 = vsel %vm3272, %v3269, %v3271
        %3275 = vrot.lane.b32.xlu0 %v3248, 116
        %v3276 = vpop.permute.xlu0 %3275
        %3278 = vrot.lane.b32.xlu0 %v3248, 96
        %v3279 = vpop.permute.xlu0 %3278
        %3281 = vrot.lane.b32.xlu0 %v3248, 76
        %v3282 = vpop.permute.xlu0 %3281
        %3284 = vrot.lane.b32.xlu0 %v3248, 56
        %v3285 = vpop.permute.xlu0 %3284
        %3287 = vrot.lane.b32.xlu0 %v3248, 36
        %v3288 = vpop.permute.xlu0 %3287
        %3291 = vrot.lane.b32.xlu0 %v3248, 16
        %v3292 = vpop.permute.xlu0 %3291
        %3293 = vrot.lane.b32.xlu0 %v3249, 16
        %v3294 = vpop.permute.xlu0 %3293
        %vm3295 = vcmask 130048
        %v3296 = vsel %vm3295, %v3292, %v3294
        %3298 = vrot.lane.b32.xlu0 %v3249, 124
        %v3299 = vpop.permute.xlu0 %3298
        %3301 = vrot.lane.b32.xlu0 %v3249, 104
        %v3302 = vpop.permute.xlu0 %3301
        %3304 = vrot.lane.b32.xlu0 %v3249, 84
        %v3305 = vpop.permute.xlu0 %3304
        %3307 = vrot.lane.b32.xlu0 %v3249, 64
        %v3308 = vpop.permute.xlu0 %3307
        %3310 = vrot.lane.b32.xlu0 %v3249, 44
        %v3311 = vpop.permute.xlu0 %3310
        %3313 = vrot.lane.b32.xlu0 %v3249, 24
        %v3314 = vpop.permute.xlu0 %3313
        %3317 = vrot.lane.b32.xlu0 %v3249, 4
        %v3318 = vpop.permute.xlu0 %3317
        %3319 = vrot.lane.b32.xlu0 %v3250, 4
        %v3320 = vpop.permute.xlu0 %3319
        %vm3321 = vcmask 31744
        %v3322 = vsel %vm3321, %v3318, %v3320
        %v3324 = vcombine.low %v3247, %v3256
        %v3325 = vcombine.high %v3247, %v3256
        %v3327 = vunpack.c.l.s4 1983009808
        %v3328 = vunpack.c.0.s8 %v3327
        %v3329 = vlaneseq
        %v3330 = vshrl.u32 %v3329, 7
        %v3331 = vsub.s32 %v3328, %v3330
        %v3332 = vrot.slane %v3324, %v3331
        %v3334 = vunpack.c.l.s4 1983009808
        %v3335 = vunpack.c.0.s8 %v3334
        %v3336 = vlaneseq
        %v3337 = vshrl.u32 %v3336, 7
        %v3338 = vsub.s32 %v3335, %v3337
        %v3339 = vrot.slane %v3325, %v3338
        %v3340 = vcombine.low %v3253, %v3259
        %v3341 = vcombine.high %v3253, %v3259
        %v3343 = vunpack.c.l.s4 1983009808
        %v3344 = vunpack.c.0.s8 %v3343
        %v3345 = vlaneseq
        %v3346 = vshrl.u32 %v3345, 7
        %v3347 = vsub.s32 %v3344, %v3346
        %v3348 = vrot.slane %v3340, %v3347
        %v3350 = vunpack.c.l.s4 1983009808
        %v3351 = vunpack.c.0.s8 %v3350
        %v3352 = vlaneseq
        %v3353 = vshrl.u32 %v3352, 7
        %v3354 = vsub.s32 %v3351, %v3353
        %v3355 = vrot.slane %v3341, %v3354
        %v3356 = vcombine.low %v3262, %v3273
        %v3357 = vcombine.high %v3262, %v3273
        %v3359 = vunpack.c.l.s4 1983009808
        %v3360 = vunpack.c.0.s8 %v3359
        %v3361 = vlaneseq
        %v3362 = vshrl.u32 %v3361, 7
        %v3363 = vsub.s32 %v3360, %v3362
        %v3364 = vrot.slane %v3356, %v3363
        %v3366 = vunpack.c.l.s4 1983009808
        %v3367 = vunpack.c.0.s8 %v3366
        %v3368 = vlaneseq
        %v3369 = vshrl.u32 %v3368, 7
        %v3370 = vsub.s32 %v3367, %v3369
        %v3371 = vrot.slane %v3357, %v3370
        %v3372 = vcombine.low %v3265, %v3276
        %v3373 = vcombine.high %v3265, %v3276
        %v3375 = vunpack.c.l.s4 1983009808
        %v3376 = vunpack.c.0.s8 %v3375
        %v3377 = vlaneseq
        %v3378 = vshrl.u32 %v3377, 7
        %v3379 = vsub.s32 %v3376, %v3378
        %v3380 = vrot.slane %v3372, %v3379
        %v3382 = vunpack.c.l.s4 1983009808
        %v3383 = vunpack.c.0.s8 %v3382
        %v3384 = vlaneseq
        %v3385 = vshrl.u32 %v3384, 7
        %v3386 = vsub.s32 %v3383, %v3385
        %v3387 = vrot.slane %v3373, %v3386
        %v3388 = vcombine.low %v3332, %v3348
        %v3389 = vcombine.high %v3332, %v3348
        %v3391 = vunpack.c.l.s4 1934713408
        %v3392 = vunpack.c.0.s8 %v3391
        %v3393 = vlaneseq
        %v3394 = vshrl.u32 %v3393, 7
        %v3395 = vsub.s32 %v3392, %v3394
        %v3396 = vrot.slane %v3388, %v3395
        %v3398 = vunpack.c.l.s4 1934713408
        %v3399 = vunpack.c.0.s8 %v3398
        %v3400 = vlaneseq
        %v3401 = vshrl.u32 %v3400, 7
        %v3402 = vsub.s32 %v3399, %v3401
        %v3403 = vrot.slane %v3389, %v3402
        %v3404 = vcombine.low %v3339, %v3355
        %v3405 = vcombine.high %v3339, %v3355
        %v3407 = vunpack.c.l.s4 1934713408
        %v3408 = vunpack.c.0.s8 %v3407
        %v3409 = vlaneseq
        %v3410 = vshrl.u32 %v3409, 7
        %v3411 = vsub.s32 %v3408, %v3410
        %v3412 = vrot.slane %v3404, %v3411
        %v3414 = vunpack.c.l.s4 1934713408
        %v3415 = vunpack.c.0.s8 %v3414
        %v3416 = vlaneseq
        %v3417 = vshrl.u32 %v3416, 7
        %v3418 = vsub.s32 %v3415, %v3417
        %v3419 = vrot.slane %v3405, %v3418
        %v3420 = vcombine.low %v3364, %v3380
        %v3421 = vcombine.high %v3364, %v3380
        %v3423 = vunpack.c.l.s4 1934713408
        %v3424 = vunpack.c.0.s8 %v3423
        %v3425 = vlaneseq
        %v3426 = vshrl.u32 %v3425, 7
        %v3427 = vsub.s32 %v3424, %v3426
        %v3428 = vrot.slane %v3420, %v3427
        %v3430 = vunpack.c.l.s4 1934713408
        %v3431 = vunpack.c.0.s8 %v3430
        %v3432 = vlaneseq
        %v3433 = vshrl.u32 %v3432, 7
        %v3434 = vsub.s32 %v3431, %v3433
        %v3435 = vrot.slane %v3421, %v3434
        %v3436 = vcombine.low %v3371, %v3387
        %v3437 = vcombine.high %v3371, %v3387
        %v3439 = vunpack.c.l.s4 1934713408
        %v3440 = vunpack.c.0.s8 %v3439
        %v3441 = vlaneseq
        %v3442 = vshrl.u32 %v3441, 7
        %v3443 = vsub.s32 %v3440, %v3442
        %v3444 = vrot.slane %v3436, %v3443
        %v3446 = vunpack.c.l.s4 1934713408
        %v3447 = vunpack.c.0.s8 %v3446
        %v3448 = vlaneseq
        %v3449 = vshrl.u32 %v3448, 7
        %v3450 = vsub.s32 %v3447, %v3449
        %v3451 = vrot.slane %v3437, %v3450
        %v3452 = vcombine.low %v3396, %v3428
        %v3453 = vcombine.high %v3396, %v3428
        %v3454 = vcombine.low %v3403, %v3435
        %v3455 = vcombine.high %v3403, %v3435
        %v3456 = vcombine.low %v3412, %v3444
        %v3457 = vcombine.high %v3412, %v3444
        %v3458 = vcombine.low %v3419, %v3451
        %v3459 = vcombine.high %v3419, %v3451
        %v3460 = vcombine.low %v3279, %v3285
        %v3461 = vcombine.high %v3279, %v3285
        %v3463 = vunpack.c.l.s4 1983009808
        %v3464 = vunpack.c.0.s8 %v3463
        %v3465 = vlaneseq
        %v3466 = vshrl.u32 %v3465, 7
        %v3467 = vsub.s32 %v3464, %v3466
        %v3468 = vrot.slane %v3460, %v3467
        %v3470 = vunpack.c.l.s4 1983009808
        %v3471 = vunpack.c.0.s8 %v3470
        %v3472 = vlaneseq
        %v3473 = vshrl.u32 %v3472, 7
        %v3474 = vsub.s32 %v3471, %v3473
        %v3475 = vrot.slane %v3461, %v3474
        %v3476 = vcombine.low %v3282, %v3288
        %v3477 = vcombine.high %v3282, %v3288
        %v3479 = vunpack.c.l.s4 1983009808
        %v3480 = vunpack.c.0.s8 %v3479
        %v3481 = vlaneseq
        %v3482 = vshrl.u32 %v3481, 7
        %v3483 = vsub.s32 %v3480, %v3482
        %v3484 = vrot.slane %v3476, %v3483
        %v3486 = vunpack.c.l.s4 1983009808
        %v3487 = vunpack.c.0.s8 %v3486
        %v3488 = vlaneseq
        %v3489 = vshrl.u32 %v3488, 7
        %v3490 = vsub.s32 %v3487, %v3489
        %v3491 = vrot.slane %v3477, %v3490
        %v3492 = vcombine.low %v3296, %v3302
        %v3493 = vcombine.high %v3296, %v3302
        %v3495 = vunpack.c.l.s4 1983009808
        %v3496 = vunpack.c.0.s8 %v3495
        %v3497 = vlaneseq
        %v3498 = vshrl.u32 %v3497, 7
        %v3499 = vsub.s32 %v3496, %v3498
        %v3500 = vrot.slane %v3492, %v3499
        %v3502 = vunpack.c.l.s4 1983009808
        %v3503 = vunpack.c.0.s8 %v3502
        %v3504 = vlaneseq
        %v3505 = vshrl.u32 %v3504, 7
        %v3506 = vsub.s32 %v3503, %v3505
        %v3507 = vrot.slane %v3493, %v3506
        %v3508 = vcombine.low %v3299, %v3305
        %v3509 = vcombine.high %v3299, %v3305
        %v3511 = vunpack.c.l.s4 1983009808
        %v3512 = vunpack.c.0.s8 %v3511
        %v3513 = vlaneseq
        %v3514 = vshrl.u32 %v3513, 7
        %v3515 = vsub.s32 %v3512, %v3514
        %v3516 = vrot.slane %v3508, %v3515
        %v3518 = vunpack.c.l.s4 1983009808
        %v3519 = vunpack.c.0.s8 %v3518
        %v3520 = vlaneseq
        %v3521 = vshrl.u32 %v3520, 7
        %v3522 = vsub.s32 %v3519, %v3521
        %v3523 = vrot.slane %v3509, %v3522
        %v3524 = vcombine.low %v3468, %v3484
        %v3525 = vcombine.high %v3468, %v3484
        %v3527 = vunpack.c.l.s4 1934713408
        %v3528 = vunpack.c.0.s8 %v3527
        %v3529 = vlaneseq
        %v3530 = vshrl.u32 %v3529, 7
        %v3531 = vsub.s32 %v3528, %v3530
        %v3532 = vrot.slane %v3524, %v3531
        %v3534 = vunpack.c.l.s4 1934713408
        %v3535 = vunpack.c.0.s8 %v3534
        %v3536 = vlaneseq
        %v3537 = vshrl.u32 %v3536, 7
        %v3538 = vsub.s32 %v3535, %v3537
        %v3539 = vrot.slane %v3525, %v3538
        %v3540 = vcombine.low %v3475, %v3491
        %v3541 = vcombine.high %v3475, %v3491
        %v3543 = vunpack.c.l.s4 1934713408
        %v3544 = vunpack.c.0.s8 %v3543
        %v3545 = vlaneseq
        %v3546 = vshrl.u32 %v3545, 7
        %v3547 = vsub.s32 %v3544, %v3546
        %v3548 = vrot.slane %v3540, %v3547
        %v3550 = vunpack.c.l.s4 1934713408
        %v3551 = vunpack.c.0.s8 %v3550
        %v3552 = vlaneseq
        %v3553 = vshrl.u32 %v3552, 7
        %v3554 = vsub.s32 %v3551, %v3553
        %v3555 = vrot.slane %v3541, %v3554
        %v3556 = vcombine.low %v3500, %v3516
        %v3557 = vcombine.high %v3500, %v3516
        %v3559 = vunpack.c.l.s4 1934713408
        %v3560 = vunpack.c.0.s8 %v3559
        %v3561 = vlaneseq
        %v3562 = vshrl.u32 %v3561, 7
        %v3563 = vsub.s32 %v3560, %v3562
        %v3564 = vrot.slane %v3556, %v3563
        %v3566 = vunpack.c.l.s4 1934713408
        %v3567 = vunpack.c.0.s8 %v3566
        %v3568 = vlaneseq
        %v3569 = vshrl.u32 %v3568, 7
        %v3570 = vsub.s32 %v3567, %v3569
        %v3571 = vrot.slane %v3557, %v3570
        %v3572 = vcombine.low %v3507, %v3523
        %v3573 = vcombine.high %v3507, %v3523
        %v3575 = vunpack.c.l.s4 1934713408
        %v3576 = vunpack.c.0.s8 %v3575
        %v3577 = vlaneseq
        %v3578 = vshrl.u32 %v3577, 7
        %v3579 = vsub.s32 %v3576, %v3578
        %v3580 = vrot.slane %v3572, %v3579
        %v3582 = vunpack.c.l.s4 1934713408
        %v3583 = vunpack.c.0.s8 %v3582
        %v3584 = vlaneseq
        %v3585 = vshrl.u32 %v3584, 7
        %v3586 = vsub.s32 %v3583, %v3585
        %v3587 = vrot.slane %v3573, %v3586
        %v3588 = vcombine.low %v3532, %v3564
        %v3589 = vcombine.high %v3532, %v3564
        %v3590 = vcombine.low %v3539, %v3571
        %v3591 = vcombine.high %v3539, %v3571
        %v3592 = vcombine.low %v3548, %v3580
        %v3593 = vcombine.high %v3548, %v3580
        %v3594 = vcombine.low %v3555, %v3587
        %v3595 = vcombine.high %v3555, %v3587
        %v3596 = vcombine.low %v3308, %v3314
        %v3597 = vcombine.high %v3308, %v3314
        %v3599 = vunpack.c.l.s4 1983009808
        %v3600 = vunpack.c.0.s8 %v3599
        %v3601 = vlaneseq
        %v3602 = vshrl.u32 %v3601, 7
        %v3603 = vsub.s32 %v3600, %v3602
        %v3604 = vrot.slane %v3596, %v3603
        %v3606 = vunpack.c.l.s4 1983009808
        %v3607 = vunpack.c.0.s8 %v3606
        %v3608 = vlaneseq
        %v3609 = vshrl.u32 %v3608, 7
        %v3610 = vsub.s32 %v3607, %v3609
        %v3611 = vrot.slane %v3597, %v3610
        %v3612 = vcombine.low %v3311, %v3322
        %v3613 = vcombine.high %v3311, %v3322
        %v3615 = vunpack.c.l.s4 1983009808
        %v3616 = vunpack.c.0.s8 %v3615
        %v3617 = vlaneseq
        %v3618 = vshrl.u32 %v3617, 7
        %v3619 = vsub.s32 %v3616, %v3618
        %v3620 = vrot.slane %v3612, %v3619
        %v3622 = vunpack.c.l.s4 1983009808
        %v3623 = vunpack.c.0.s8 %v3622
        %v3624 = vlaneseq
        %v3625 = vshrl.u32 %v3624, 7
        %v3626 = vsub.s32 %v3623, %v3625
        %v3627 = vrot.slane %v3613, %v3626
        %v3628 = vcombine.low %v3604, %v3620
        %v3629 = vcombine.high %v3604, %v3620
        %v3631 = vunpack.c.l.s4 1934713408
        %v3632 = vunpack.c.0.s8 %v3631
        %v3633 = vlaneseq
        %v3634 = vshrl.u32 %v3633, 7
        %v3635 = vsub.s32 %v3632, %v3634
        %v3636 = vrot.slane %v3628, %v3635
        %v3638 = vunpack.c.l.s4 1934713408
        %v3639 = vunpack.c.0.s8 %v3638
        %v3640 = vlaneseq
        %v3641 = vshrl.u32 %v3640, 7
        %v3642 = vsub.s32 %v3639, %v3641
        %v3643 = vrot.slane %v3629, %v3642
        %v3644 = vcombine.low %v3611, %v3627
        %v3645 = vcombine.high %v3611, %v3627
        %v3647 = vunpack.c.l.s4 1934713408
        %v3648 = vunpack.c.0.s8 %v3647
        %v3649 = vlaneseq
        %v3650 = vshrl.u32 %v3649, 7
        %v3651 = vsub.s32 %v3648, %v3650
        %v3652 = vrot.slane %v3644, %v3651
        %v3654 = vunpack.c.l.s4 1934713408
        %v3655 = vunpack.c.0.s8 %v3654
        %v3656 = vlaneseq
        %v3657 = vshrl.u32 %v3656, 7
        %v3658 = vsub.s32 %v3655, %v3657
        %v3659 = vrot.slane %v3645, %v3658
        %v3660 = vcombine.high %v3636, 0.0
        %v3661 = vcombine.high %v3643, 0.0
        %v3662 = vcombine.high %v3652, 0.0
        %v3663 = vcombine.high %v3659, 0.0
        %v3664 = vcombine.low %v3452, %v3454
        %v3665 = vcombine.high %v3452, %v3454
        %v3667 = vunpack.c.l.s4 1983009808
        %v3668 = vunpack.c.0.s8 %v3667
        %v3669 = vlaneseq
        %v3670 = vshrl.u32 %v3669, 7
        %v3671 = vsub.s32 %v3668, %v3670
        %v3672 = vrot.slane %v3664, %v3671
        %v3674 = vunpack.c.l.s4 1983009808
        %v3675 = vunpack.c.0.s8 %v3674
        %v3676 = vlaneseq
        %v3677 = vshrl.u32 %v3676, 7
        %v3678 = vsub.s32 %v3675, %v3677
        %v3679 = vrot.slane %v3665, %v3678
        %v3680 = vcombine.low %v3453, %v3455
        %v3681 = vcombine.high %v3453, %v3455
        %v3683 = vunpack.c.l.s4 1983009808
        %v3684 = vunpack.c.0.s8 %v3683
        %v3685 = vlaneseq
        %v3686 = vshrl.u32 %v3685, 7
        %v3687 = vsub.s32 %v3684, %v3686
        %v3688 = vrot.slane %v3680, %v3687
        %v3690 = vunpack.c.l.s4 1983009808
        %v3691 = vunpack.c.0.s8 %v3690
        %v3692 = vlaneseq
        %v3693 = vshrl.u32 %v3692, 7
        %v3694 = vsub.s32 %v3691, %v3693
        %v3695 = vrot.slane %v3681, %v3694
        %v3696 = vcombine.low %v3456, %v3458
        %v3697 = vcombine.high %v3456, %v3458
        %v3699 = vunpack.c.l.s4 1983009808
        %v3700 = vunpack.c.0.s8 %v3699
        %v3701 = vlaneseq
        %v3702 = vshrl.u32 %v3701, 7
        %v3703 = vsub.s32 %v3700, %v3702
        %v3704 = vrot.slane %v3696, %v3703
        %v3706 = vunpack.c.l.s4 1983009808
        %v3707 = vunpack.c.0.s8 %v3706
        %v3708 = vlaneseq
        %v3709 = vshrl.u32 %v3708, 7
        %v3710 = vsub.s32 %v3707, %v3709
        %v3711 = vrot.slane %v3697, %v3710
        %v3712 = vcombine.low %v3457, %v3459
        %v3713 = vcombine.high %v3457, %v3459
        %v3715 = vunpack.c.l.s4 1983009808
        %v3716 = vunpack.c.0.s8 %v3715
        %v3717 = vlaneseq
        %v3718 = vshrl.u32 %v3717, 7
        %v3719 = vsub.s32 %v3716, %v3718
        %v3720 = vrot.slane %v3712, %v3719
        %v3722 = vunpack.c.l.s4 1983009808
        %v3723 = vunpack.c.0.s8 %v3722
        %v3724 = vlaneseq
        %v3725 = vshrl.u32 %v3724, 7
        %v3726 = vsub.s32 %v3723, %v3725
        %v3727 = vrot.slane %v3713, %v3726
        %v3728 = vcombine.low %v3672, %v3688
        %v3729 = vcombine.high %v3672, %v3688
        %v3731 = vunpack.c.l.s4 1934713408
        %v3732 = vunpack.c.0.s8 %v3731
        %v3733 = vlaneseq
        %v3734 = vshrl.u32 %v3733, 7
        %v3735 = vsub.s32 %v3732, %v3734
        %v3736 = vrot.slane %v3728, %v3735
        %v3738 = vunpack.c.l.s4 1934713408
        %v3739 = vunpack.c.0.s8 %v3738
        %v3740 = vlaneseq
        %v3741 = vshrl.u32 %v3740, 7
        %v3742 = vsub.s32 %v3739, %v3741
        %v3743 = vrot.slane %v3729, %v3742
        %v3744 = vcombine.low %v3679, %v3695
        %v3745 = vcombine.high %v3679, %v3695
        %v3747 = vunpack.c.l.s4 1934713408
        %v3748 = vunpack.c.0.s8 %v3747
        %v3749 = vlaneseq
        %v3750 = vshrl.u32 %v3749, 7
        %v3751 = vsub.s32 %v3748, %v3750
        %v3752 = vrot.slane %v3744, %v3751
        %v3754 = vunpack.c.l.s4 1934713408
        %v3755 = vunpack.c.0.s8 %v3754
        %v3756 = vlaneseq
        %v3757 = vshrl.u32 %v3756, 7
        %v3758 = vsub.s32 %v3755, %v3757
        %v3759 = vrot.slane %v3745, %v3758
        %v3760 = vcombine.low %v3704, %v3720
        %v3761 = vcombine.high %v3704, %v3720
        %v3763 = vunpack.c.l.s4 1934713408
        %v3764 = vunpack.c.0.s8 %v3763
        %v3765 = vlaneseq
        %v3766 = vshrl.u32 %v3765, 7
        %v3767 = vsub.s32 %v3764, %v3766
        %v3768 = vrot.slane %v3760, %v3767
        %v3770 = vunpack.c.l.s4 1934713408
        %v3771 = vunpack.c.0.s8 %v3770
        %v3772 = vlaneseq
        %v3773 = vshrl.u32 %v3772, 7
        %v3774 = vsub.s32 %v3771, %v3773
        %v3775 = vrot.slane %v3761, %v3774
        %v3776 = vcombine.low %v3711, %v3727
        %v3777 = vcombine.high %v3711, %v3727
        %v3779 = vunpack.c.l.s4 1934713408
        %v3780 = vunpack.c.0.s8 %v3779
        %v3781 = vlaneseq
        %v3782 = vshrl.u32 %v3781, 7
        %v3783 = vsub.s32 %v3780, %v3782
        %v3784 = vrot.slane %v3776, %v3783
        %v3786 = vunpack.c.l.s4 1934713408
        %v3787 = vunpack.c.0.s8 %v3786
        %v3788 = vlaneseq
        %v3789 = vshrl.u32 %v3788, 7
        %v3790 = vsub.s32 %v3787, %v3789
        %v3791 = vrot.slane %v3777, %v3790
        %v3792 = vcombine.low %v3736, %v3768
        %v3793 = vcombine.high %v3736, %v3768
        %v3794 = vcombine.low %v3743, %v3775
        %v3795 = vcombine.high %v3743, %v3775
        %v3796 = vcombine.low %v3752, %v3784
        %v3797 = vcombine.high %v3752, %v3784
        %v3798 = vcombine.low %v3759, %v3791
        %v3799 = vcombine.high %v3759, %v3791
        %v3800 = vcombine.low %v3588, %v3590
        %v3801 = vcombine.high %v3588, %v3590
        %v3803 = vunpack.c.l.s4 1983009808
        %v3804 = vunpack.c.0.s8 %v3803
        %v3805 = vlaneseq
        %v3806 = vshrl.u32 %v3805, 7
        %v3807 = vsub.s32 %v3804, %v3806
        %v3808 = vrot.slane %v3800, %v3807
        %v3810 = vunpack.c.l.s4 1983009808
        %v3811 = vunpack.c.0.s8 %v3810
        %v3812 = vlaneseq
        %v3813 = vshrl.u32 %v3812, 7
        %v3814 = vsub.s32 %v3811, %v3813
        %v3815 = vrot.slane %v3801, %v3814
        %v3816 = vcombine.low %v3589, %v3591
        %v3817 = vcombine.high %v3589, %v3591
        %v3819 = vunpack.c.l.s4 1983009808
        %v3820 = vunpack.c.0.s8 %v3819
        %v3821 = vlaneseq
        %v3822 = vshrl.u32 %v3821, 7
        %v3823 = vsub.s32 %v3820, %v3822
        %v3824 = vrot.slane %v3816, %v3823
        %v3826 = vunpack.c.l.s4 1983009808
        %v3827 = vunpack.c.0.s8 %v3826
        %v3828 = vlaneseq
        %v3829 = vshrl.u32 %v3828, 7
        %v3830 = vsub.s32 %v3827, %v3829
        %v3831 = vrot.slane %v3817, %v3830
        %v3832 = vcombine.low %v3592, %v3594
        %v3833 = vcombine.high %v3592, %v3594
        %v3835 = vunpack.c.l.s4 1983009808
        %v3836 = vunpack.c.0.s8 %v3835
        %v3837 = vlaneseq
        %v3838 = vshrl.u32 %v3837, 7
        %v3839 = vsub.s32 %v3836, %v3838
        %v3840 = vrot.slane %v3832, %v3839
        %v3842 = vunpack.c.l.s4 1983009808
        %v3843 = vunpack.c.0.s8 %v3842
        %v3844 = vlaneseq
        %v3845 = vshrl.u32 %v3844, 7
        %v3846 = vsub.s32 %v3843, %v3845
        %v3847 = vrot.slane %v3833, %v3846
        %v3848 = vcombine.low %v3593, %v3595
        %v3849 = vcombine.high %v3593, %v3595
        %v3851 = vunpack.c.l.s4 1983009808
        %v3852 = vunpack.c.0.s8 %v3851
        %v3853 = vlaneseq
        %v3854 = vshrl.u32 %v3853, 7
        %v3855 = vsub.s32 %v3852, %v3854
        %v3856 = vrot.slane %v3848, %v3855
        %v3858 = vunpack.c.l.s4 1983009808
        %v3859 = vunpack.c.0.s8 %v3858
        %v3860 = vlaneseq
        %v3861 = vshrl.u32 %v3860, 7
        %v3862 = vsub.s32 %v3859, %v3861
        %v3863 = vrot.slane %v3849, %v3862
        %v3864 = vcombine.low %v3808, %v3824
        %v3865 = vcombine.high %v3808, %v3824
        %v3867 = vunpack.c.l.s4 1934713408
        %v3868 = vunpack.c.0.s8 %v3867
        %v3869 = vlaneseq
        %v3870 = vshrl.u32 %v3869, 7
        %v3871 = vsub.s32 %v3868, %v3870
        %v3872 = vrot.slane %v3864, %v3871
        %v3874 = vunpack.c.l.s4 1934713408
        %v3875 = vunpack.c.0.s8 %v3874
        %v3876 = vlaneseq
        %v3877 = vshrl.u32 %v3876, 7
        %v3878 = vsub.s32 %v3875, %v3877
        %v3879 = vrot.slane %v3865, %v3878
        %v3880 = vcombine.low %v3815, %v3831
        %v3881 = vcombine.high %v3815, %v3831
        %v3883 = vunpack.c.l.s4 1934713408
        %v3884 = vunpack.c.0.s8 %v3883
        %v3885 = vlaneseq
        %v3886 = vshrl.u32 %v3885, 7
        %v3887 = vsub.s32 %v3884, %v3886
        %v3888 = vrot.slane %v3880, %v3887
        %v3890 = vunpack.c.l.s4 1934713408
        %v3891 = vunpack.c.0.s8 %v3890
        %v3892 = vlaneseq
        %v3893 = vshrl.u32 %v3892, 7
        %v3894 = vsub.s32 %v3891, %v3893
        %v3895 = vrot.slane %v3881, %v3894
        %v3896 = vcombine.low %v3840, %v3856
        %v3897 = vcombine.high %v3840, %v3856
        %v3899 = vunpack.c.l.s4 1934713408
        %v3900 = vunpack.c.0.s8 %v3899
        %v3901 = vlaneseq
        %v3902 = vshrl.u32 %v3901, 7
        %v3903 = vsub.s32 %v3900, %v3902
        %v3904 = vrot.slane %v3896, %v3903
        %v3906 = vunpack.c.l.s4 1934713408
        %v3907 = vunpack.c.0.s8 %v3906
        %v3908 = vlaneseq
        %v3909 = vshrl.u32 %v3908, 7
        %v3910 = vsub.s32 %v3907, %v3909
        %v3911 = vrot.slane %v3897, %v3910
        %v3912 = vcombine.low %v3847, %v3863
        %v3913 = vcombine.high %v3847, %v3863
        %v3915 = vunpack.c.l.s4 1934713408
        %v3916 = vunpack.c.0.s8 %v3915
        %v3917 = vlaneseq
        %v3918 = vshrl.u32 %v3917, 7
        %v3919 = vsub.s32 %v3916, %v3918
        %v3920 = vrot.slane %v3912, %v3919
        %v3922 = vunpack.c.l.s4 1934713408
        %v3923 = vunpack.c.0.s8 %v3922
        %v3924 = vlaneseq
        %v3925 = vshrl.u32 %v3924, 7
        %v3926 = vsub.s32 %v3923, %v3925
        %v3927 = vrot.slane %v3913, %v3926
        %v3928 = vcombine.low %v3872, %v3904
        %v3929 = vcombine.high %v3872, %v3904
        %v3930 = vcombine.low %v3879, %v3911
        %v3931 = vcombine.high %v3879, %v3911
        %v3932 = vcombine.low %v3888, %v3920
        %v3933 = vcombine.high %v3888, %v3920
        %v3934 = vcombine.low %v3895, %v3927
        %v3935 = vcombine.high %v3895, %v3927
        %v3936 = vcombine.low %v3636, %v3643
        %v3938 = vunpack.c.l.s4 1983009808
        %v3939 = vunpack.c.0.s8 %v3938
        %v3940 = vlaneseq
        %v3941 = vshrl.u32 %v3940, 7
        %v3942 = vsub.s32 %v3939, %v3941
        %v3943 = vrot.slane %v3936, %v3942
        %v3944 = vcombine.low %v3660, %v3661
        %v3946 = vunpack.c.l.s4 1983009808
        %v3947 = vunpack.c.0.s8 %v3946
        %v3948 = vlaneseq
        %v3949 = vshrl.u32 %v3948, 7
        %v3950 = vsub.s32 %v3947, %v3949
        %v3951 = vrot.slane %v3944, %v3950
        %v3952 = vcombine.low %v3652, %v3659
        %v3954 = vunpack.c.l.s4 1983009808
        %v3955 = vunpack.c.0.s8 %v3954
        %v3956 = vlaneseq
        %v3957 = vshrl.u32 %v3956, 7
        %v3958 = vsub.s32 %v3955, %v3957
        %v3959 = vrot.slane %v3952, %v3958
        %v3960 = vcombine.low %v3662, %v3663
        %v3962 = vunpack.c.l.s4 1983009808
        %v3963 = vunpack.c.0.s8 %v3962
        %v3964 = vlaneseq
        %v3965 = vshrl.u32 %v3964, 7
        %v3966 = vsub.s32 %v3963, %v3965
        %v3967 = vrot.slane %v3960, %v3966
        %v3968 = vcombine.low %v3943, %v3951
        %v3969 = vcombine.high %v3943, %v3951
        %v3971 = vunpack.c.l.s4 1934713408
        %v3972 = vunpack.c.0.s8 %v3971
        %v3973 = vlaneseq
        %v3974 = vshrl.u32 %v3973, 7
        %v3975 = vsub.s32 %v3972, %v3974
        %v3976 = vrot.slane %v3968, %v3975
        %v3978 = vunpack.c.l.s4 1934713408
        %v3979 = vunpack.c.0.s8 %v3978
        %v3980 = vlaneseq
        %v3981 = vshrl.u32 %v3980, 7
        %v3982 = vsub.s32 %v3979, %v3981
        %v3983 = vrot.slane %v3969, %v3982
        %v3984 = vcombine.low %v3959, %v3967
        %v3985 = vcombine.high %v3959, %v3967
        %v3987 = vunpack.c.l.s4 1934713408
        %v3988 = vunpack.c.0.s8 %v3987
        %v3989 = vlaneseq
        %v3990 = vshrl.u32 %v3989, 7
        %v3991 = vsub.s32 %v3988, %v3990
        %v3992 = vrot.slane %v3984, %v3991
        %v3994 = vunpack.c.l.s4 1934713408
        %v3995 = vunpack.c.0.s8 %v3994
        %v3996 = vlaneseq
        %v3997 = vshrl.u32 %v3996, 7
        %v3998 = vsub.s32 %v3995, %v3997
        %v3999 = vrot.slane %v3985, %v3998
        %v4000 = vcombine.low %v3976, %v3992
        %v4001 = vcombine.high %v3976, %v3992
        %v4002 = vcombine.low %v3983, %v3999
        %v4003 = vcombine.high %v3983, %v3999
        %v4004 = vld [vmem:[#allocation2] sm:$0xff]
        %v4005 = vld [vmem:[#allocation2 + $0x8] sm:$0xff]
        %v4006 = vld [vmem:[#allocation2 + $0x10] sm:$0xff]
        %v4007 = vld [vmem:[#allocation2 + $0x18] sm:$0xff]
        %v4008 = vld [vmem:[#allocation2 + $0x20] sm:$0xff]
        %v4009 = vld [vmem:[#allocation2 + $0x28] sm:$0xff]
        %v4010 = vld [vmem:[#allocation2 + $0x30] sm:$0xff]
        %v4011 = vld [vmem:[#allocation2 + $0x38] sm:$0xff]
        %v4012 = vld [vmem:[#allocation2 + $0x40] sm:$0xff]
        %v4013 = vld [vmem:[#allocation2 + $0x48] sm:$0xff]
        %v4014 = vld [vmem:[#allocation2 + $0x50] sm:$0xff]
        %v4015 = vld [vmem:[#allocation2 + $0x58] sm:$0xff]
        %v4016 = vld [vmem:[#allocation2 + $0x60] sm:$0xff]
        %v4017 = vld [vmem:[#allocation2 + $0x68] sm:$0xff]
        %v4018 = vld [vmem:[#allocation2 + $0x70] sm:$0xff]
        %v4019 = vld [vmem:[#allocation2 + $0x78] sm:$0xff]
        %v4020 = vld [vmem:[#allocation2 + $0x80] sm:$0xff]
        %v4021 = vld [vmem:[#allocation2 + $0x88] sm:$0xff]
        %v4022 = vld [vmem:[#allocation2 + $0x90] sm:$0xff]
        %v4023 = vld [vmem:[#allocation2 + $0x98] sm:$0xff]
        %vm4024 = vcmask 162816
        %v4026 = vsel %vm4024, %v3792, 0
        %v4029 = vsel %vm4024, %v4004, 0
        %4031 = vmatprep.subr.mxu0 0.0
        %4032 = vmatpush1.xpose.msra.mxu0 0.0
        %4033 = vmatprep.subr.mxu0 0.0
        %4034 = vmatpush1.xpose.msra.mxu0 0.0
        %4035 = vmatprep.subr.mxu0 0.0
        %4036 = vmatpush1.xpose.msra.mxu0 0.0
        %4037 = vmatprep.subr.mxu0 0.0
        %4038 = vmatpush1.xpose.msra.mxu0 0.0
        %4039 = vmatprep.subr.mxu0 0.0
        %4040 = vmatpush1.xpose.msra.mxu0 0.0
        %4041 = vmatprep.subr.mxu0 0.0
        %4042 = vmatpush1.xpose.msra.mxu0 0.0
        %4043 = vmatprep.subr.mxu0 0.0
        %4044 = vmatpush1.xpose.msra.mxu0 0.0
        %4045 = vmatprep.subr.mxu0 0.0
        %4046 = vmatpush1.xpose.msra.mxu0 0.0
        %4047 = vmatprep.subr.mxu0 0.0
        %4048 = vmatpush1.xpose.msra.mxu0 0.0
        %4049 = vmatprep.subr.mxu0 0.0
        %4050 = vmatpush1.xpose.msra.mxu0 0.0
        %4051 = vmatprep.subr.mxu0 0.0
        %4052 = vmatpush1.xpose.msra.mxu0 0.0
        %4053 = vmatprep.subr.mxu0 0.0
        %4054 = vmatpush1.xpose.msra.mxu0 0.0
        %4055 = vmatprep.subr.mxu0 0.0
        %4056 = vmatpush1.xpose.msra.mxu0 0.0
        %4057 = vmatprep.subr.mxu0 0.0
        %4058 = vmatpush1.xpose.msra.mxu0 0.0
        %4059 = vmatprep.subr.mxu0 0.0
        %4060 = vmatpush1.xpose.msra.mxu0 0.0
        %4061 = vmatprep.subr.mxu0 0.0
        %4062 = vmatpush1.xpose.msra.mxu0 %v4029
        %4063 = vmatprep.subr.mxu0 0.0
        %4064 = vmatpush2.xpose.msra.mxu0 0.0
        %4065 = vmatprep.subr.mxu0 0.0
        %4066 = vmatpush2.xpose.msra.mxu0 0.0
        %4067 = vmatprep.subr.mxu0 0.0
        %4068 = vmatpush2.xpose.msra.mxu0 0.0
        %4069 = vmatprep.subr.mxu0 0.0
        %4070 = vmatpush2.xpose.msra.mxu0 0.0
        %4071 = vmatprep.subr.mxu0 0.0
        %4072 = vmatpush2.xpose.msra.mxu0 0.0
        %4073 = vmatprep.subr.mxu0 0.0
        %4074 = vmatpush2.xpose.msra.mxu0 0.0
        %4075 = vmatprep.subr.mxu0 0.0
        %4076 = vmatpush2.xpose.msra.mxu0 0.0
        %4077 = vmatprep.subr.mxu0 0.0
        %4078 = vmatpush2.xpose.msra.mxu0 0.0
        %4079 = vmatprep.subr.mxu0 0.0
        %4080 = vmatpush2.xpose.msra.mxu0 0.0
        %4081 = vmatprep.subr.mxu0 0.0
        %4082 = vmatpush2.xpose.msra.mxu0 0.0
        %4083 = vmatprep.subr.mxu0 0.0
        %4084 = vmatpush2.xpose.msra.mxu0 0.0
        %4085 = vmatprep.subr.mxu0 0.0
        %4086 = vmatpush2.xpose.msra.mxu0 0.0
        %4087 = vmatprep.subr.mxu0 0.0
        %4088 = vmatpush2.xpose.msra.mxu0 0.0
        %4089 = vmatprep.subr.mxu0 0.0
        %4090 = vmatpush2.xpose.msra.mxu0 0.0
        %4091 = vmatprep.subr.mxu0 0.0
        %4092 = vmatpush2.xpose.msra.mxu0 0.0
        %4093 = vmatprep.subr.mxu0 0.0
        %4094 = vmatpush2.xpose.msra.mxu0 0.0
        %4095 = vmatprep.mubr.f32.mxu0 0.0
        %4096 = vmatmul.mubr.f32.gmra.mxu0 %v4026
        %v4097 = vpop.f32.mrf.mxu0
        %v4098 = vadd.f32 0.0, %v4097
        %v4099 = vpop.f32.mrf.mxu0
        %4100 = vdwg.mxu0
        %v4102 = vsel %vm4024, %v3793, 0
        %v4105 = vsel %vm4024, %v4005, 0
        %4107 = vmatprep.subr.mxu0 0.0
        %4108 = vmatpush1.xpose.msra.mxu0 0.0
        %4109 = vmatprep.subr.mxu0 0.0
        %4110 = vmatpush1.xpose.msra.mxu0 0.0
        %4111 = vmatprep.subr.mxu0 0.0
        %4112 = vmatpush1.xpose.msra.mxu0 0.0
        %4113 = vmatprep.subr.mxu0 0.0
        %4114 = vmatpush1.xpose.msra.mxu0 0.0
        %4115 = vmatprep.subr.mxu0 0.0
        %4116 = vmatpush1.xpose.msra.mxu0 0.0
        %4117 = vmatprep.subr.mxu0 0.0
        %4118 = vmatpush1.xpose.msra.mxu0 0.0
        %4119 = vmatprep.subr.mxu0 0.0
        %4120 = vmatpush1.xpose.msra.mxu0 0.0
        %4121 = vmatprep.subr.mxu0 0.0
        %4122 = vmatpush1.xpose.msra.mxu0 0.0
        %4123 = vmatprep.subr.mxu0 0.0
        %4124 = vmatpush1.xpose.msra.mxu0 0.0
        %4125 = vmatprep.subr.mxu0 0.0
        %4126 = vmatpush1.xpose.msra.mxu0 0.0
        %4127 = vmatprep.subr.mxu0 0.0
        %4128 = vmatpush1.xpose.msra.mxu0 0.0
        %4129 = vmatprep.subr.mxu0 0.0
        %4130 = vmatpush1.xpose.msra.mxu0 0.0
        %4131 = vmatprep.subr.mxu0 0.0
        %4132 = vmatpush1.xpose.msra.mxu0 0.0
        %4133 = vmatprep.subr.mxu0 0.0
        %4134 = vmatpush1.xpose.msra.mxu0 0.0
        %4135 = vmatprep.subr.mxu0 0.0
        %4136 = vmatpush1.xpose.msra.mxu0 0.0
        %4137 = vmatprep.subr.mxu0 0.0
        %4138 = vmatpush1.xpose.msra.mxu0 %v4105
        %4139 = vmatprep.subr.mxu0 0.0
        %4140 = vmatpush2.xpose.msra.mxu0 0.0
        %4141 = vmatprep.subr.mxu0 0.0
        %4142 = vmatpush2.xpose.msra.mxu0 0.0
        %4143 = vmatprep.subr.mxu0 0.0
        %4144 = vmatpush2.xpose.msra.mxu0 0.0
        %4145 = vmatprep.subr.mxu0 0.0
        %4146 = vmatpush2.xpose.msra.mxu0 0.0
        %4147 = vmatprep.subr.mxu0 0.0
        %4148 = vmatpush2.xpose.msra.mxu0 0.0
        %4149 = vmatprep.subr.mxu0 0.0
        %4150 = vmatpush2.xpose.msra.mxu0 0.0
        %4151 = vmatprep.subr.mxu0 0.0
        %4152 = vmatpush2.xpose.msra.mxu0 0.0
        %4153 = vmatprep.subr.mxu0 0.0
        %4154 = vmatpush2.xpose.msra.mxu0 0.0
        %4155 = vmatprep.subr.mxu0 0.0
        %4156 = vmatpush2.xpose.msra.mxu0 0.0
        %4157 = vmatprep.subr.mxu0 0.0
        %4158 = vmatpush2.xpose.msra.mxu0 0.0
        %4159 = vmatprep.subr.mxu0 0.0
        %4160 = vmatpush2.xpose.msra.mxu0 0.0
        %4161 = vmatprep.subr.mxu0 0.0
        %4162 = vmatpush2.xpose.msra.mxu0 0.0
        %4163 = vmatprep.subr.mxu0 0.0
        %4164 = vmatpush2.xpose.msra.mxu0 0.0
        %4165 = vmatprep.subr.mxu0 0.0
        %4166 = vmatpush2.xpose.msra.mxu0 0.0
        %4167 = vmatprep.subr.mxu0 0.0
        %4168 = vmatpush2.xpose.msra.mxu0 0.0
        %4169 = vmatprep.subr.mxu0 0.0
        %4170 = vmatpush2.xpose.msra.mxu0 0.0
        %4171 = vmatprep.mubr.f32.mxu0 0.0
        %4172 = vmatmul.mubr.f32.gmra.mxu0 %v4102
        %v4173 = vpop.f32.mrf.mxu0
        %v4174 = vadd.f32 0.0, %v4173
        %v4175 = vpop.f32.mrf.mxu0
        %4176 = vdwg.mxu0
        %v4178 = vsel %vm4024, %v3794, 0
        %v4181 = vsel %vm4024, %v4006, 0
        %4183 = vmatprep.subr.mxu0 0.0
        %4184 = vmatpush1.xpose.msra.mxu0 0.0
        %4185 = vmatprep.subr.mxu0 0.0
        %4186 = vmatpush1.xpose.msra.mxu0 0.0
        %4187 = vmatprep.subr.mxu0 0.0
        %4188 = vmatpush1.xpose.msra.mxu0 0.0
        %4189 = vmatprep.subr.mxu0 0.0
        %4190 = vmatpush1.xpose.msra.mxu0 0.0
        %4191 = vmatprep.subr.mxu0 0.0
        %4192 = vmatpush1.xpose.msra.mxu0 0.0
        %4193 = vmatprep.subr.mxu0 0.0
        %4194 = vmatpush1.xpose.msra.mxu0 0.0
        %4195 = vmatprep.subr.mxu0 0.0
        %4196 = vmatpush1.xpose.msra.mxu0 0.0
        %4197 = vmatprep.subr.mxu0 0.0
        %4198 = vmatpush1.xpose.msra.mxu0 0.0
        %4199 = vmatprep.subr.mxu0 0.0
        %4200 = vmatpush1.xpose.msra.mxu0 0.0
        %4201 = vmatprep.subr.mxu0 0.0
        %4202 = vmatpush1.xpose.msra.mxu0 0.0
        %4203 = vmatprep.subr.mxu0 0.0
        %4204 = vmatpush1.xpose.msra.mxu0 0.0
        %4205 = vmatprep.subr.mxu0 0.0
        %4206 = vmatpush1.xpose.msra.mxu0 0.0
        %4207 = vmatprep.subr.mxu0 0.0
        %4208 = vmatpush1.xpose.msra.mxu0 0.0
        %4209 = vmatprep.subr.mxu0 0.0
        %4210 = vmatpush1.xpose.msra.mxu0 0.0
        %4211 = vmatprep.subr.mxu0 0.0
        %4212 = vmatpush1.xpose.msra.mxu0 0.0
        %4213 = vmatprep.subr.mxu0 0.0
        %4214 = vmatpush1.xpose.msra.mxu0 %v4181
        %4215 = vmatprep.subr.mxu0 0.0
        %4216 = vmatpush2.xpose.msra.mxu0 0.0
        %4217 = vmatprep.subr.mxu0 0.0
        %4218 = vmatpush2.xpose.msra.mxu0 0.0
        %4219 = vmatprep.subr.mxu0 0.0
        %4220 = vmatpush2.xpose.msra.mxu0 0.0
        %4221 = vmatprep.subr.mxu0 0.0
        %4222 = vmatpush2.xpose.msra.mxu0 0.0
        %4223 = vmatprep.subr.mxu0 0.0
        %4224 = vmatpush2.xpose.msra.mxu0 0.0
        %4225 = vmatprep.subr.mxu0 0.0
        %4226 = vmatpush2.xpose.msra.mxu0 0.0
        %4227 = vmatprep.subr.mxu0 0.0
        %4228 = vmatpush2.xpose.msra.mxu0 0.0
        %4229 = vmatprep.subr.mxu0 0.0
        %4230 = vmatpush2.xpose.msra.mxu0 0.0
        %4231 = vmatprep.subr.mxu0 0.0
        %4232 = vmatpush2.xpose.msra.mxu0 0.0
        %4233 = vmatprep.subr.mxu0 0.0
        %4234 = vmatpush2.xpose.msra.mxu0 0.0
        %4235 = vmatprep.subr.mxu0 0.0
        %4236 = vmatpush2.xpose.msra.mxu0 0.0
        %4237 = vmatprep.subr.mxu0 0.0
        %4238 = vmatpush2.xpose.msra.mxu0 0.0
        %4239 = vmatprep.subr.mxu0 0.0
        %4240 = vmatpush2.xpose.msra.mxu0 0.0
        %4241 = vmatprep.subr.mxu0 0.0
        %4242 = vmatpush2.xpose.msra.mxu0 0.0
        %4243 = vmatprep.subr.mxu0 0.0
        %4244 = vmatpush2.xpose.msra.mxu0 0.0
        %4245 = vmatprep.subr.mxu0 0.0
        %4246 = vmatpush2.xpose.msra.mxu0 0.0
        %4247 = vmatprep.mubr.f32.mxu0 0.0
        %4248 = vmatmul.mubr.f32.gmra.mxu0 %v4178
        %v4249 = vpop.f32.mrf.mxu0
        %v4250 = vadd.f32 0.0, %v4249
        %v4251 = vpop.f32.mrf.mxu0
        %4252 = vdwg.mxu0
        %v4254 = vsel %vm4024, %v3795, 0
        %v4257 = vsel %vm4024, %v4007, 0
        %4259 = vmatprep.subr.mxu0 0.0
        %4260 = vmatpush1.xpose.msra.mxu0 0.0
        %4261 = vmatprep.subr.mxu0 0.0
        %4262 = vmatpush1.xpose.msra.mxu0 0.0
        %4263 = vmatprep.subr.mxu0 0.0
        %4264 = vmatpush1.xpose.msra.mxu0 0.0
        %4265 = vmatprep.subr.mxu0 0.0
        %4266 = vmatpush1.xpose.msra.mxu0 0.0
        %4267 = vmatprep.subr.mxu0 0.0
        %4268 = vmatpush1.xpose.msra.mxu0 0.0
        %4269 = vmatprep.subr.mxu0 0.0
        %4270 = vmatpush1.xpose.msra.mxu0 0.0
        %4271 = vmatprep.subr.mxu0 0.0
        %4272 = vmatpush1.xpose.msra.mxu0 0.0
        %4273 = vmatprep.subr.mxu0 0.0
        %4274 = vmatpush1.xpose.msra.mxu0 0.0
        %4275 = vmatprep.subr.mxu0 0.0
        %4276 = vmatpush1.xpose.msra.mxu0 0.0
        %4277 = vmatprep.subr.mxu0 0.0
        %4278 = vmatpush1.xpose.msra.mxu0 0.0
        %4279 = vmatprep.subr.mxu0 0.0
        %4280 = vmatpush1.xpose.msra.mxu0 0.0
        %4281 = vmatprep.subr.mxu0 0.0
        %4282 = vmatpush1.xpose.msra.mxu0 0.0
        %4283 = vmatprep.subr.mxu0 0.0
        %4284 = vmatpush1.xpose.msra.mxu0 0.0
        %4285 = vmatprep.subr.mxu0 0.0
        %4286 = vmatpush1.xpose.msra.mxu0 0.0
        %4287 = vmatprep.subr.mxu0 0.0
        %4288 = vmatpush1.xpose.msra.mxu0 0.0
        %4289 = vmatprep.subr.mxu0 0.0
        %4290 = vmatpush1.xpose.msra.mxu0 %v4257
        %4291 = vmatprep.subr.mxu0 0.0
        %4292 = vmatpush2.xpose.msra.mxu0 0.0
        %4293 = vmatprep.subr.mxu0 0.0
        %4294 = vmatpush2.xpose.msra.mxu0 0.0
        %4295 = vmatprep.subr.mxu0 0.0
        %4296 = vmatpush2.xpose.msra.mxu0 0.0
        %4297 = vmatprep.subr.mxu0 0.0
        %4298 = vmatpush2.xpose.msra.mxu0 0.0
        %4299 = vmatprep.subr.mxu0 0.0
        %4300 = vmatpush2.xpose.msra.mxu0 0.0
        %4301 = vmatprep.subr.mxu0 0.0
        %4302 = vmatpush2.xpose.msra.mxu0 0.0
        %4303 = vmatprep.subr.mxu0 0.0
        %4304 = vmatpush2.xpose.msra.mxu0 0.0
        %4305 = vmatprep.subr.mxu0 0.0
        %4306 = vmatpush2.xpose.msra.mxu0 0.0
        %4307 = vmatprep.subr.mxu0 0.0
        %4308 = vmatpush2.xpose.msra.mxu0 0.0
        %4309 = vmatprep.subr.mxu0 0.0
        %4310 = vmatpush2.xpose.msra.mxu0 0.0
        %4311 = vmatprep.subr.mxu0 0.0
        %4312 = vmatpush2.xpose.msra.mxu0 0.0
        %4313 = vmatprep.subr.mxu0 0.0
        %4314 = vmatpush2.xpose.msra.mxu0 0.0
        %4315 = vmatprep.subr.mxu0 0.0
        %4316 = vmatpush2.xpose.msra.mxu0 0.0
        %4317 = vmatprep.subr.mxu0 0.0
        %4318 = vmatpush2.xpose.msra.mxu0 0.0
        %4319 = vmatprep.subr.mxu0 0.0
        %4320 = vmatpush2.xpose.msra.mxu0 0.0
        %4321 = vmatprep.subr.mxu0 0.0
        %4322 = vmatpush2.xpose.msra.mxu0 0.0
        %4323 = vmatprep.mubr.f32.mxu0 0.0
        %4324 = vmatmul.mubr.f32.gmra.mxu0 %v4254
        %v4325 = vpop.f32.mrf.mxu0
        %v4326 = vadd.f32 0.0, %v4325
        %v4327 = vpop.f32.mrf.mxu0
        %4328 = vdwg.mxu0
        %v4330 = vsel %vm4024, %v3796, 0
        %v4333 = vsel %vm4024, %v4008, 0
        %4335 = vmatprep.subr.mxu0 0.0
        %4336 = vmatpush1.xpose.msra.mxu0 0.0
        %4337 = vmatprep.subr.mxu0 0.0
        %4338 = vmatpush1.xpose.msra.mxu0 0.0
        %4339 = vmatprep.subr.mxu0 0.0
        %4340 = vmatpush1.xpose.msra.mxu0 0.0
        %4341 = vmatprep.subr.mxu0 0.0
        %4342 = vmatpush1.xpose.msra.mxu0 0.0
        %4343 = vmatprep.subr.mxu0 0.0
        %4344 = vmatpush1.xpose.msra.mxu0 0.0
        %4345 = vmatprep.subr.mxu0 0.0
        %4346 = vmatpush1.xpose.msra.mxu0 0.0
        %4347 = vmatprep.subr.mxu0 0.0
        %4348 = vmatpush1.xpose.msra.mxu0 0.0
        %4349 = vmatprep.subr.mxu0 0.0
        %4350 = vmatpush1.xpose.msra.mxu0 0.0
        %4351 = vmatprep.subr.mxu0 0.0
        %4352 = vmatpush1.xpose.msra.mxu0 0.0
        %4353 = vmatprep.subr.mxu0 0.0
        %4354 = vmatpush1.xpose.msra.mxu0 0.0
        %4355 = vmatprep.subr.mxu0 0.0
        %4356 = vmatpush1.xpose.msra.mxu0 0.0
        %4357 = vmatprep.subr.mxu0 0.0
        %4358 = vmatpush1.xpose.msra.mxu0 0.0
        %4359 = vmatprep.subr.mxu0 0.0
        %4360 = vmatpush1.xpose.msra.mxu0 0.0
        %4361 = vmatprep.subr.mxu0 0.0
        %4362 = vmatpush1.xpose.msra.mxu0 0.0
        %4363 = vmatprep.subr.mxu0 0.0
        %4364 = vmatpush1.xpose.msra.mxu0 0.0
        %4365 = vmatprep.subr.mxu0 0.0
        %4366 = vmatpush1.xpose.msra.mxu0 %v4333
        %4367 = vmatprep.subr.mxu0 0.0
        %4368 = vmatpush2.xpose.msra.mxu0 0.0
        %4369 = vmatprep.subr.mxu0 0.0
        %4370 = vmatpush2.xpose.msra.mxu0 0.0
        %4371 = vmatprep.subr.mxu0 0.0
        %4372 = vmatpush2.xpose.msra.mxu0 0.0
        %4373 = vmatprep.subr.mxu0 0.0
        %4374 = vmatpush2.xpose.msra.mxu0 0.0
        %4375 = vmatprep.subr.mxu0 0.0
        %4376 = vmatpush2.xpose.msra.mxu0 0.0
        %4377 = vmatprep.subr.mxu0 0.0
        %4378 = vmatpush2.xpose.msra.mxu0 0.0
        %4379 = vmatprep.subr.mxu0 0.0
        %4380 = vmatpush2.xpose.msra.mxu0 0.0
        %4381 = vmatprep.subr.mxu0 0.0
        %4382 = vmatpush2.xpose.msra.mxu0 0.0
        %4383 = vmatprep.subr.mxu0 0.0
        %4384 = vmatpush2.xpose.msra.mxu0 0.0
        %4385 = vmatprep.subr.mxu0 0.0
        %4386 = vmatpush2.xpose.msra.mxu0 0.0
        %4387 = vmatprep.subr.mxu0 0.0
        %4388 = vmatpush2.xpose.msra.mxu0 0.0
        %4389 = vmatprep.subr.mxu0 0.0
        %4390 = vmatpush2.xpose.msra.mxu0 0.0
        %4391 = vmatprep.subr.mxu0 0.0
        %4392 = vmatpush2.xpose.msra.mxu0 0.0
        %4393 = vmatprep.subr.mxu0 0.0
        %4394 = vmatpush2.xpose.msra.mxu0 0.0
        %4395 = vmatprep.subr.mxu0 0.0
        %4396 = vmatpush2.xpose.msra.mxu0 0.0
        %4397 = vmatprep.subr.mxu0 0.0
        %4398 = vmatpush2.xpose.msra.mxu0 0.0
        %4399 = vmatprep.mubr.f32.mxu0 0.0
        %4400 = vmatmul.mubr.f32.gmra.mxu0 %v4330
        %v4401 = vpop.f32.mrf.mxu0
        %v4402 = vadd.f32 0.0, %v4401
        %v4403 = vpop.f32.mrf.mxu0
        %4404 = vdwg.mxu0
        %v4406 = vsel %vm4024, %v3797, 0
        %v4409 = vsel %vm4024, %v4009, 0
        %4411 = vmatprep.subr.mxu0 0.0
        %4412 = vmatpush1.xpose.msra.mxu0 0.0
        %4413 = vmatprep.subr.mxu0 0.0
        %4414 = vmatpush1.xpose.msra.mxu0 0.0
        %4415 = vmatprep.subr.mxu0 0.0
        %4416 = vmatpush1.xpose.msra.mxu0 0.0
        %4417 = vmatprep.subr.mxu0 0.0
        %4418 = vmatpush1.xpose.msra.mxu0 0.0
        %4419 = vmatprep.subr.mxu0 0.0
        %4420 = vmatpush1.xpose.msra.mxu0 0.0
        %4421 = vmatprep.subr.mxu0 0.0
        %4422 = vmatpush1.xpose.msra.mxu0 0.0
        %4423 = vmatprep.subr.mxu0 0.0
        %4424 = vmatpush1.xpose.msra.mxu0 0.0
        %4425 = vmatprep.subr.mxu0 0.0
        %4426 = vmatpush1.xpose.msra.mxu0 0.0
        %4427 = vmatprep.subr.mxu0 0.0
        %4428 = vmatpush1.xpose.msra.mxu0 0.0
        %4429 = vmatprep.subr.mxu0 0.0
        %4430 = vmatpush1.xpose.msra.mxu0 0.0
        %4431 = vmatprep.subr.mxu0 0.0
        %4432 = vmatpush1.xpose.msra.mxu0 0.0
        %4433 = vmatprep.subr.mxu0 0.0
        %4434 = vmatpush1.xpose.msra.mxu0 0.0
        %4435 = vmatprep.subr.mxu0 0.0
        %4436 = vmatpush1.xpose.msra.mxu0 0.0
        %4437 = vmatprep.subr.mxu0 0.0
        %4438 = vmatpush1.xpose.msra.mxu0 0.0
        %4439 = vmatprep.subr.mxu0 0.0
        %4440 = vmatpush1.xpose.msra.mxu0 0.0
        %4441 = vmatprep.subr.mxu0 0.0
        %4442 = vmatpush1.xpose.msra.mxu0 %v4409
        %4443 = vmatprep.subr.mxu0 0.0
        %4444 = vmatpush2.xpose.msra.mxu0 0.0
        %4445 = vmatprep.subr.mxu0 0.0
        %4446 = vmatpush2.xpose.msra.mxu0 0.0
        %4447 = vmatprep.subr.mxu0 0.0
        %4448 = vmatpush2.xpose.msra.mxu0 0.0
        %4449 = vmatprep.subr.mxu0 0.0
        %4450 = vmatpush2.xpose.msra.mxu0 0.0
        %4451 = vmatprep.subr.mxu0 0.0
        %4452 = vmatpush2.xpose.msra.mxu0 0.0
        %4453 = vmatprep.subr.mxu0 0.0
        %4454 = vmatpush2.xpose.msra.mxu0 0.0
        %4455 = vmatprep.subr.mxu0 0.0
        %4456 = vmatpush2.xpose.msra.mxu0 0.0
        %4457 = vmatprep.subr.mxu0 0.0
        %4458 = vmatpush2.xpose.msra.mxu0 0.0
        %4459 = vmatprep.subr.mxu0 0.0
        %4460 = vmatpush2.xpose.msra.mxu0 0.0
        %4461 = vmatprep.subr.mxu0 0.0
        %4462 = vmatpush2.xpose.msra.mxu0 0.0
        %4463 = vmatprep.subr.mxu0 0.0
        %4464 = vmatpush2.xpose.msra.mxu0 0.0
        %4465 = vmatprep.subr.mxu0 0.0
        %4466 = vmatpush2.xpose.msra.mxu0 0.0
        %4467 = vmatprep.subr.mxu0 0.0
        %4468 = vmatpush2.xpose.msra.mxu0 0.0
        %4469 = vmatprep.subr.mxu0 0.0
        %4470 = vmatpush2.xpose.msra.mxu0 0.0
        %4471 = vmatprep.subr.mxu0 0.0
        %4472 = vmatpush2.xpose.msra.mxu0 0.0
        %4473 = vmatprep.subr.mxu0 0.0
        %4474 = vmatpush2.xpose.msra.mxu0 0.0
        %4475 = vmatprep.mubr.f32.mxu0 0.0
        %4476 = vmatmul.mubr.f32.gmra.mxu0 %v4406
        %v4477 = vpop.f32.mrf.mxu0
        %v4478 = vadd.f32 0.0, %v4477
        %v4479 = vpop.f32.mrf.mxu0
        %4480 = vdwg.mxu0
        %v4482 = vsel %vm4024, %v3798, 0
        %v4485 = vsel %vm4024, %v4010, 0
        %4487 = vmatprep.subr.mxu0 0.0
        %4488 = vmatpush1.xpose.msra.mxu0 0.0
        %4489 = vmatprep.subr.mxu0 0.0
        %4490 = vmatpush1.xpose.msra.mxu0 0.0
        %4491 = vmatprep.subr.mxu0 0.0
        %4492 = vmatpush1.xpose.msra.mxu0 0.0
        %4493 = vmatprep.subr.mxu0 0.0
        %4494 = vmatpush1.xpose.msra.mxu0 0.0
        %4495 = vmatprep.subr.mxu0 0.0
        %4496 = vmatpush1.xpose.msra.mxu0 0.0
        %4497 = vmatprep.subr.mxu0 0.0
        %4498 = vmatpush1.xpose.msra.mxu0 0.0
        %4499 = vmatprep.subr.mxu0 0.0
        %4500 = vmatpush1.xpose.msra.mxu0 0.0
        %4501 = vmatprep.subr.mxu0 0.0
        %4502 = vmatpush1.xpose.msra.mxu0 0.0
        %4503 = vmatprep.subr.mxu0 0.0
        %4504 = vmatpush1.xpose.msra.mxu0 0.0
        %4505 = vmatprep.subr.mxu0 0.0
        %4506 = vmatpush1.xpose.msra.mxu0 0.0
        %4507 = vmatprep.subr.mxu0 0.0
        %4508 = vmatpush1.xpose.msra.mxu0 0.0
        %4509 = vmatprep.subr.mxu0 0.0
        %4510 = vmatpush1.xpose.msra.mxu0 0.0
        %4511 = vmatprep.subr.mxu0 0.0
        %4512 = vmatpush1.xpose.msra.mxu0 0.0
        %4513 = vmatprep.subr.mxu0 0.0
        %4514 = vmatpush1.xpose.msra.mxu0 0.0
        %4515 = vmatprep.subr.mxu0 0.0
        %4516 = vmatpush1.xpose.msra.mxu0 0.0
        %4517 = vmatprep.subr.mxu0 0.0
        %4518 = vmatpush1.xpose.msra.mxu0 %v4485
        %4519 = vmatprep.subr.mxu0 0.0
        %4520 = vmatpush2.xpose.msra.mxu0 0.0
        %4521 = vmatprep.subr.mxu0 0.0
        %4522 = vmatpush2.xpose.msra.mxu0 0.0
        %4523 = vmatprep.subr.mxu0 0.0
        %4524 = vmatpush2.xpose.msra.mxu0 0.0
        %4525 = vmatprep.subr.mxu0 0.0
        %4526 = vmatpush2.xpose.msra.mxu0 0.0
        %4527 = vmatprep.subr.mxu0 0.0
        %4528 = vmatpush2.xpose.msra.mxu0 0.0
        %4529 = vmatprep.subr.mxu0 0.0
        %4530 = vmatpush2.xpose.msra.mxu0 0.0
        %4531 = vmatprep.subr.mxu0 0.0
        %4532 = vmatpush2.xpose.msra.mxu0 0.0
        %4533 = vmatprep.subr.mxu0 0.0
        %4534 = vmatpush2.xpose.msra.mxu0 0.0
        %4535 = vmatprep.subr.mxu0 0.0
        %4536 = vmatpush2.xpose.msra.mxu0 0.0
        %4537 = vmatprep.subr.mxu0 0.0
        %4538 = vmatpush2.xpose.msra.mxu0 0.0
        %4539 = vmatprep.subr.mxu0 0.0
        %4540 = vmatpush2.xpose.msra.mxu0 0.0
        %4541 = vmatprep.subr.mxu0 0.0
        %4542 = vmatpush2.xpose.msra.mxu0 0.0
        %4543 = vmatprep.subr.mxu0 0.0
        %4544 = vmatpush2.xpose.msra.mxu0 0.0
        %4545 = vmatprep.subr.mxu0 0.0
        %4546 = vmatpush2.xpose.msra.mxu0 0.0
        %4547 = vmatprep.subr.mxu0 0.0
        %4548 = vmatpush2.xpose.msra.mxu0 0.0
        %4549 = vmatprep.subr.mxu0 0.0
        %4550 = vmatpush2.xpose.msra.mxu0 0.0
        %4551 = vmatprep.mubr.f32.mxu0 0.0
        %4552 = vmatmul.mubr.f32.gmra.mxu0 %v4482
        %v4553 = vpop.f32.mrf.mxu0
        %v4554 = vadd.f32 0.0, %v4553
        %v4555 = vpop.f32.mrf.mxu0
        %4556 = vdwg.mxu0
        %v4558 = vsel %vm4024, %v3799, 0
        %v4561 = vsel %vm4024, %v4011, 0
        %4563 = vmatprep.subr.mxu0 0.0
        %4564 = vmatpush1.xpose.msra.mxu0 0.0
        %4565 = vmatprep.subr.mxu0 0.0
        %4566 = vmatpush1.xpose.msra.mxu0 0.0
        %4567 = vmatprep.subr.mxu0 0.0
        %4568 = vmatpush1.xpose.msra.mxu0 0.0
        %4569 = vmatprep.subr.mxu0 0.0
        %4570 = vmatpush1.xpose.msra.mxu0 0.0
        %4571 = vmatprep.subr.mxu0 0.0
        %4572 = vmatpush1.xpose.msra.mxu0 0.0
        %4573 = vmatprep.subr.mxu0 0.0
        %4574 = vmatpush1.xpose.msra.mxu0 0.0
        %4575 = vmatprep.subr.mxu0 0.0
        %4576 = vmatpush1.xpose.msra.mxu0 0.0
        %4577 = vmatprep.subr.mxu0 0.0
        %4578 = vmatpush1.xpose.msra.mxu0 0.0
        %4579 = vmatprep.subr.mxu0 0.0
        %4580 = vmatpush1.xpose.msra.mxu0 0.0
        %4581 = vmatprep.subr.mxu0 0.0
        %4582 = vmatpush1.xpose.msra.mxu0 0.0
        %4583 = vmatprep.subr.mxu0 0.0
        %4584 = vmatpush1.xpose.msra.mxu0 0.0
        %4585 = vmatprep.subr.mxu0 0.0
        %4586 = vmatpush1.xpose.msra.mxu0 0.0
        %4587 = vmatprep.subr.mxu0 0.0
        %4588 = vmatpush1.xpose.msra.mxu0 0.0
        %4589 = vmatprep.subr.mxu0 0.0
        %4590 = vmatpush1.xpose.msra.mxu0 0.0
        %4591 = vmatprep.subr.mxu0 0.0
        %4592 = vmatpush1.xpose.msra.mxu0 0.0
        %4593 = vmatprep.subr.mxu0 0.0
        %4594 = vmatpush1.xpose.msra.mxu0 %v4561
        %4595 = vmatprep.subr.mxu0 0.0
        %4596 = vmatpush2.xpose.msra.mxu0 0.0
        %4597 = vmatprep.subr.mxu0 0.0
        %4598 = vmatpush2.xpose.msra.mxu0 0.0
        %4599 = vmatprep.subr.mxu0 0.0
        %4600 = vmatpush2.xpose.msra.mxu0 0.0
        %4601 = vmatprep.subr.mxu0 0.0
        %4602 = vmatpush2.xpose.msra.mxu0 0.0
        %4603 = vmatprep.subr.mxu0 0.0
        %4604 = vmatpush2.xpose.msra.mxu0 0.0
        %4605 = vmatprep.subr.mxu0 0.0
        %4606 = vmatpush2.xpose.msra.mxu0 0.0
        %4607 = vmatprep.subr.mxu0 0.0
        %4608 = vmatpush2.xpose.msra.mxu0 0.0
        %4609 = vmatprep.subr.mxu0 0.0
        %4610 = vmatpush2.xpose.msra.mxu0 0.0
        %4611 = vmatprep.subr.mxu0 0.0
        %4612 = vmatpush2.xpose.msra.mxu0 0.0
        %4613 = vmatprep.subr.mxu0 0.0
        %4614 = vmatpush2.xpose.msra.mxu0 0.0
        %4615 = vmatprep.subr.mxu0 0.0
        %4616 = vmatpush2.xpose.msra.mxu0 0.0
        %4617 = vmatprep.subr.mxu0 0.0
        %4618 = vmatpush2.xpose.msra.mxu0 0.0
        %4619 = vmatprep.subr.mxu0 0.0
        %4620 = vmatpush2.xpose.msra.mxu0 0.0
        %4621 = vmatprep.subr.mxu0 0.0
        %4622 = vmatpush2.xpose.msra.mxu0 0.0
        %4623 = vmatprep.subr.mxu0 0.0
        %4624 = vmatpush2.xpose.msra.mxu0 0.0
        %4625 = vmatprep.subr.mxu0 0.0
        %4626 = vmatpush2.xpose.msra.mxu0 0.0
        %4627 = vmatprep.mubr.f32.mxu0 0.0
        %4628 = vmatmul.mubr.f32.gmra.mxu0 %v4558
        %v4629 = vpop.f32.mrf.mxu0
        %v4630 = vadd.f32 0.0, %v4629
        %v4631 = vpop.f32.mrf.mxu0
        %4632 = vdwg.mxu0
        %v4634 = vsel %vm4024, %v3928, 0
        %v4637 = vsel %vm4024, %v4012, 0
        %4639 = vmatprep.subr.mxu0 0.0
        %4640 = vmatpush1.xpose.msra.mxu0 0.0
        %4641 = vmatprep.subr.mxu0 0.0
        %4642 = vmatpush1.xpose.msra.mxu0 0.0
        %4643 = vmatprep.subr.mxu0 0.0
        %4644 = vmatpush1.xpose.msra.mxu0 0.0
        %4645 = vmatprep.subr.mxu0 0.0
        %4646 = vmatpush1.xpose.msra.mxu0 0.0
        %4647 = vmatprep.subr.mxu0 0.0
        %4648 = vmatpush1.xpose.msra.mxu0 0.0
        %4649 = vmatprep.subr.mxu0 0.0
        %4650 = vmatpush1.xpose.msra.mxu0 0.0
        %4651 = vmatprep.subr.mxu0 0.0
        %4652 = vmatpush1.xpose.msra.mxu0 0.0
        %4653 = vmatprep.subr.mxu0 0.0
        %4654 = vmatpush1.xpose.msra.mxu0 0.0
        %4655 = vmatprep.subr.mxu0 0.0
        %4656 = vmatpush1.xpose.msra.mxu0 0.0
        %4657 = vmatprep.subr.mxu0 0.0
        %4658 = vmatpush1.xpose.msra.mxu0 0.0
        %4659 = vmatprep.subr.mxu0 0.0
        %4660 = vmatpush1.xpose.msra.mxu0 0.0
        %4661 = vmatprep.subr.mxu0 0.0
        %4662 = vmatpush1.xpose.msra.mxu0 0.0
        %4663 = vmatprep.subr.mxu0 0.0
        %4664 = vmatpush1.xpose.msra.mxu0 0.0
        %4665 = vmatprep.subr.mxu0 0.0
        %4666 = vmatpush1.xpose.msra.mxu0 0.0
        %4667 = vmatprep.subr.mxu0 0.0
        %4668 = vmatpush1.xpose.msra.mxu0 0.0
        %4669 = vmatprep.subr.mxu0 0.0
        %4670 = vmatpush1.xpose.msra.mxu0 %v4637
        %4671 = vmatprep.subr.mxu0 0.0
        %4672 = vmatpush2.xpose.msra.mxu0 0.0
        %4673 = vmatprep.subr.mxu0 0.0
        %4674 = vmatpush2.xpose.msra.mxu0 0.0
        %4675 = vmatprep.subr.mxu0 0.0
        %4676 = vmatpush2.xpose.msra.mxu0 0.0
        %4677 = vmatprep.subr.mxu0 0.0
        %4678 = vmatpush2.xpose.msra.mxu0 0.0
        %4679 = vmatprep.subr.mxu0 0.0
        %4680 = vmatpush2.xpose.msra.mxu0 0.0
        %4681 = vmatprep.subr.mxu0 0.0
        %4682 = vmatpush2.xpose.msra.mxu0 0.0
        %4683 = vmatprep.subr.mxu0 0.0
        %4684 = vmatpush2.xpose.msra.mxu0 0.0
        %4685 = vmatprep.subr.mxu0 0.0
        %4686 = vmatpush2.xpose.msra.mxu0 0.0
        %4687 = vmatprep.subr.mxu0 0.0
        %4688 = vmatpush2.xpose.msra.mxu0 0.0
        %4689 = vmatprep.subr.mxu0 0.0
        %4690 = vmatpush2.xpose.msra.mxu0 0.0
        %4691 = vmatprep.subr.mxu0 0.0
        %4692 = vmatpush2.xpose.msra.mxu0 0.0
        %4693 = vmatprep.subr.mxu0 0.0
        %4694 = vmatpush2.xpose.msra.mxu0 0.0
        %4695 = vmatprep.subr.mxu0 0.0
        %4696 = vmatpush2.xpose.msra.mxu0 0.0
        %4697 = vmatprep.subr.mxu0 0.0
        %4698 = vmatpush2.xpose.msra.mxu0 0.0
        %4699 = vmatprep.subr.mxu0 0.0
        %4700 = vmatpush2.xpose.msra.mxu0 0.0
        %4701 = vmatprep.subr.mxu0 0.0
        %4702 = vmatpush2.xpose.msra.mxu0 0.0
        %4703 = vmatprep.mubr.f32.mxu0 0.0
        %4704 = vmatmul.mubr.f32.gmra.mxu0 %v4634
        %v4705 = vpop.f32.mrf.mxu0
        %v4706 = vadd.f32 0.0, %v4705
        %v4707 = vpop.f32.mrf.mxu0
        %4708 = vdwg.mxu0
        %v4710 = vsel %vm4024, %v3929, 0
        %v4713 = vsel %vm4024, %v4013, 0
        %4715 = vmatprep.subr.mxu0 0.0
        %4716 = vmatpush1.xpose.msra.mxu0 0.0
        %4717 = vmatprep.subr.mxu0 0.0
        %4718 = vmatpush1.xpose.msra.mxu0 0.0
        %4719 = vmatprep.subr.mxu0 0.0
        %4720 = vmatpush1.xpose.msra.mxu0 0.0
        %4721 = vmatprep.subr.mxu0 0.0
        %4722 = vmatpush1.xpose.msra.mxu0 0.0
        %4723 = vmatprep.subr.mxu0 0.0
        %4724 = vmatpush1.xpose.msra.mxu0 0.0
        %4725 = vmatprep.subr.mxu0 0.0
        %4726 = vmatpush1.xpose.msra.mxu0 0.0
        %4727 = vmatprep.subr.mxu0 0.0
        %4728 = vmatpush1.xpose.msra.mxu0 0.0
        %4729 = vmatprep.subr.mxu0 0.0
        %4730 = vmatpush1.xpose.msra.mxu0 0.0
        %4731 = vmatprep.subr.mxu0 0.0
        %4732 = vmatpush1.xpose.msra.mxu0 0.0
        %4733 = vmatprep.subr.mxu0 0.0
        %4734 = vmatpush1.xpose.msra.mxu0 0.0
        %4735 = vmatprep.subr.mxu0 0.0
        %4736 = vmatpush1.xpose.msra.mxu0 0.0
        %4737 = vmatprep.subr.mxu0 0.0
        %4738 = vmatpush1.xpose.msra.mxu0 0.0
        %4739 = vmatprep.subr.mxu0 0.0
        %4740 = vmatpush1.xpose.msra.mxu0 0.0
        %4741 = vmatprep.subr.mxu0 0.0
        %4742 = vmatpush1.xpose.msra.mxu0 0.0
        %4743 = vmatprep.subr.mxu0 0.0
        %4744 = vmatpush1.xpose.msra.mxu0 0.0
        %4745 = vmatprep.subr.mxu0 0.0
        %4746 = vmatpush1.xpose.msra.mxu0 %v4713
        %4747 = vmatprep.subr.mxu0 0.0
        %4748 = vmatpush2.xpose.msra.mxu0 0.0
        %4749 = vmatprep.subr.mxu0 0.0
        %4750 = vmatpush2.xpose.msra.mxu0 0.0
        %4751 = vmatprep.subr.mxu0 0.0
        %4752 = vmatpush2.xpose.msra.mxu0 0.0
        %4753 = vmatprep.subr.mxu0 0.0
        %4754 = vmatpush2.xpose.msra.mxu0 0.0
        %4755 = vmatprep.subr.mxu0 0.0
        %4756 = vmatpush2.xpose.msra.mxu0 0.0
        %4757 = vmatprep.subr.mxu0 0.0
        %4758 = vmatpush2.xpose.msra.mxu0 0.0
        %4759 = vmatprep.subr.mxu0 0.0
        %4760 = vmatpush2.xpose.msra.mxu0 0.0
        %4761 = vmatprep.subr.mxu0 0.0
        %4762 = vmatpush2.xpose.msra.mxu0 0.0
        %4763 = vmatprep.subr.mxu0 0.0
        %4764 = vmatpush2.xpose.msra.mxu0 0.0
        %4765 = vmatprep.subr.mxu0 0.0
        %4766 = vmatpush2.xpose.msra.mxu0 0.0
        %4767 = vmatprep.subr.mxu0 0.0
        %4768 = vmatpush2.xpose.msra.mxu0 0.0
        %4769 = vmatprep.subr.mxu0 0.0
        %4770 = vmatpush2.xpose.msra.mxu0 0.0
        %4771 = vmatprep.subr.mxu0 0.0
        %4772 = vmatpush2.xpose.msra.mxu0 0.0
        %4773 = vmatprep.subr.mxu0 0.0
        %4774 = vmatpush2.xpose.msra.mxu0 0.0
        %4775 = vmatprep.subr.mxu0 0.0
        %4776 = vmatpush2.xpose.msra.mxu0 0.0
        %4777 = vmatprep.subr.mxu0 0.0
        %4778 = vmatpush2.xpose.msra.mxu0 0.0
        %4779 = vmatprep.mubr.f32.mxu0 0.0
        %4780 = vmatmul.mubr.f32.gmra.mxu0 %v4710
        %v4781 = vpop.f32.mrf.mxu0
        %v4782 = vadd.f32 0.0, %v4781
        %v4783 = vpop.f32.mrf.mxu0
        %4784 = vdwg.mxu0
        %v4786 = vsel %vm4024, %v3930, 0
        %v4789 = vsel %vm4024, %v4014, 0
        %4791 = vmatprep.subr.mxu0 0.0
        %4792 = vmatpush1.xpose.msra.mxu0 0.0
        %4793 = vmatprep.subr.mxu0 0.0
        %4794 = vmatpush1.xpose.msra.mxu0 0.0
        %4795 = vmatprep.subr.mxu0 0.0
        %4796 = vmatpush1.xpose.msra.mxu0 0.0
        %4797 = vmatprep.subr.mxu0 0.0
        %4798 = vmatpush1.xpose.msra.mxu0 0.0
        %4799 = vmatprep.subr.mxu0 0.0
        %4800 = vmatpush1.xpose.msra.mxu0 0.0
        %4801 = vmatprep.subr.mxu0 0.0
        %4802 = vmatpush1.xpose.msra.mxu0 0.0
        %4803 = vmatprep.subr.mxu0 0.0
        %4804 = vmatpush1.xpose.msra.mxu0 0.0
        %4805 = vmatprep.subr.mxu0 0.0
        %4806 = vmatpush1.xpose.msra.mxu0 0.0
        %4807 = vmatprep.subr.mxu0 0.0
        %4808 = vmatpush1.xpose.msra.mxu0 0.0
        %4809 = vmatprep.subr.mxu0 0.0
        %4810 = vmatpush1.xpose.msra.mxu0 0.0
        %4811 = vmatprep.subr.mxu0 0.0
        %4812 = vmatpush1.xpose.msra.mxu0 0.0
        %4813 = vmatprep.subr.mxu0 0.0
        %4814 = vmatpush1.xpose.msra.mxu0 0.0
        %4815 = vmatprep.subr.mxu0 0.0
        %4816 = vmatpush1.xpose.msra.mxu0 0.0
        %4817 = vmatprep.subr.mxu0 0.0
        %4818 = vmatpush1.xpose.msra.mxu0 0.0
        %4819 = vmatprep.subr.mxu0 0.0
        %4820 = vmatpush1.xpose.msra.mxu0 0.0
        %4821 = vmatprep.subr.mxu0 0.0
        %4822 = vmatpush1.xpose.msra.mxu0 %v4789
        %4823 = vmatprep.subr.mxu0 0.0
        %4824 = vmatpush2.xpose.msra.mxu0 0.0
        %4825 = vmatprep.subr.mxu0 0.0
        %4826 = vmatpush2.xpose.msra.mxu0 0.0
        %4827 = vmatprep.subr.mxu0 0.0
        %4828 = vmatpush2.xpose.msra.mxu0 0.0
        %4829 = vmatprep.subr.mxu0 0.0
        %4830 = vmatpush2.xpose.msra.mxu0 0.0
        %4831 = vmatprep.subr.mxu0 0.0
        %4832 = vmatpush2.xpose.msra.mxu0 0.0
        %4833 = vmatprep.subr.mxu0 0.0
        %4834 = vmatpush2.xpose.msra.mxu0 0.0
        %4835 = vmatprep.subr.mxu0 0.0
        %4836 = vmatpush2.xpose.msra.mxu0 0.0
        %4837 = vmatprep.subr.mxu0 0.0
        %4838 = vmatpush2.xpose.msra.mxu0 0.0
        %4839 = vmatprep.subr.mxu0 0.0
        %4840 = vmatpush2.xpose.msra.mxu0 0.0
        %4841 = vmatprep.subr.mxu0 0.0
        %4842 = vmatpush2.xpose.msra.mxu0 0.0
        %4843 = vmatprep.subr.mxu0 0.0
        %4844 = vmatpush2.xpose.msra.mxu0 0.0
        %4845 = vmatprep.subr.mxu0 0.0
        %4846 = vmatpush2.xpose.msra.mxu0 0.0
        %4847 = vmatprep.subr.mxu0 0.0
        %4848 = vmatpush2.xpose.msra.mxu0 0.0
        %4849 = vmatprep.subr.mxu0 0.0
        %4850 = vmatpush2.xpose.msra.mxu0 0.0
        %4851 = vmatprep.subr.mxu0 0.0
        %4852 = vmatpush2.xpose.msra.mxu0 0.0
        %4853 = vmatprep.subr.mxu0 0.0
        %4854 = vmatpush2.xpose.msra.mxu0 0.0
        %4855 = vmatprep.mubr.f32.mxu0 0.0
        %4856 = vmatmul.mubr.f32.gmra.mxu0 %v4786
        %v4857 = vpop.f32.mrf.mxu0
        %v4858 = vadd.f32 0.0, %v4857
        %v4859 = vpop.f32.mrf.mxu0
        %4860 = vdwg.mxu0
        %v4862 = vsel %vm4024, %v3931, 0
        %v4865 = vsel %vm4024, %v4015, 0
        %4867 = vmatprep.subr.mxu0 0.0
        %4868 = vmatpush1.xpose.msra.mxu0 0.0
        %4869 = vmatprep.subr.mxu0 0.0
        %4870 = vmatpush1.xpose.msra.mxu0 0.0
        %4871 = vmatprep.subr.mxu0 0.0
        %4872 = vmatpush1.xpose.msra.mxu0 0.0
        %4873 = vmatprep.subr.mxu0 0.0
        %4874 = vmatpush1.xpose.msra.mxu0 0.0
        %4875 = vmatprep.subr.mxu0 0.0
        %4876 = vmatpush1.xpose.msra.mxu0 0.0
        %4877 = vmatprep.subr.mxu0 0.0
        %4878 = vmatpush1.xpose.msra.mxu0 0.0
        %4879 = vmatprep.subr.mxu0 0.0
        %4880 = vmatpush1.xpose.msra.mxu0 0.0
        %4881 = vmatprep.subr.mxu0 0.0
        %4882 = vmatpush1.xpose.msra.mxu0 0.0
        %4883 = vmatprep.subr.mxu0 0.0
        %4884 = vmatpush1.xpose.msra.mxu0 0.0
        %4885 = vmatprep.subr.mxu0 0.0
        %4886 = vmatpush1.xpose.msra.mxu0 0.0
        %4887 = vmatprep.subr.mxu0 0.0
        %4888 = vmatpush1.xpose.msra.mxu0 0.0
        %4889 = vmatprep.subr.mxu0 0.0
        %4890 = vmatpush1.xpose.msra.mxu0 0.0
        %4891 = vmatprep.subr.mxu0 0.0
        %4892 = vmatpush1.xpose.msra.mxu0 0.0
        %4893 = vmatprep.subr.mxu0 0.0
        %4894 = vmatpush1.xpose.msra.mxu0 0.0
        %4895 = vmatprep.subr.mxu0 0.0
        %4896 = vmatpush1.xpose.msra.mxu0 0.0
        %4897 = vmatprep.subr.mxu0 0.0
        %4898 = vmatpush1.xpose.msra.mxu0 %v4865
        %4899 = vmatprep.subr.mxu0 0.0
        %4900 = vmatpush2.xpose.msra.mxu0 0.0
        %4901 = vmatprep.subr.mxu0 0.0
        %4902 = vmatpush2.xpose.msra.mxu0 0.0
        %4903 = vmatprep.subr.mxu0 0.0
        %4904 = vmatpush2.xpose.msra.mxu0 0.0
        %4905 = vmatprep.subr.mxu0 0.0
        %4906 = vmatpush2.xpose.msra.mxu0 0.0
        %4907 = vmatprep.subr.mxu0 0.0
        %4908 = vmatpush2.xpose.msra.mxu0 0.0
        %4909 = vmatprep.subr.mxu0 0.0
        %4910 = vmatpush2.xpose.msra.mxu0 0.0
        %4911 = vmatprep.subr.mxu0 0.0
        %4912 = vmatpush2.xpose.msra.mxu0 0.0
        %4913 = vmatprep.subr.mxu0 0.0
        %4914 = vmatpush2.xpose.msra.mxu0 0.0
        %4915 = vmatprep.subr.mxu0 0.0
        %4916 = vmatpush2.xpose.msra.mxu0 0.0
        %4917 = vmatprep.subr.mxu0 0.0
        %4918 = vmatpush2.xpose.msra.mxu0 0.0
        %4919 = vmatprep.subr.mxu0 0.0
        %4920 = vmatpush2.xpose.msra.mxu0 0.0
        %4921 = vmatprep.subr.mxu0 0.0
        %4922 = vmatpush2.xpose.msra.mxu0 0.0
        %4923 = vmatprep.subr.mxu0 0.0
        %4924 = vmatpush2.xpose.msra.mxu0 0.0
        %4925 = vmatprep.subr.mxu0 0.0
        %4926 = vmatpush2.xpose.msra.mxu0 0.0
        %4927 = vmatprep.subr.mxu0 0.0
        %4928 = vmatpush2.xpose.msra.mxu0 0.0
        %4929 = vmatprep.subr.mxu0 0.0
        %4930 = vmatpush2.xpose.msra.mxu0 0.0
        %4931 = vmatprep.mubr.f32.mxu0 0.0
        %4932 = vmatmul.mubr.f32.gmra.mxu0 %v4862
        %v4933 = vpop.f32.mrf.mxu0
        %v4934 = vadd.f32 0.0, %v4933
        %v4935 = vpop.f32.mrf.mxu0
        %4936 = vdwg.mxu0
        %v4938 = vsel %vm4024, %v3932, 0
        %v4941 = vsel %vm4024, %v4016, 0
        %4943 = vmatprep.subr.mxu0 0.0
        %4944 = vmatpush1.xpose.msra.mxu0 0.0
        %4945 = vmatprep.subr.mxu0 0.0
        %4946 = vmatpush1.xpose.msra.mxu0 0.0
        %4947 = vmatprep.subr.mxu0 0.0
        %4948 = vmatpush1.xpose.msra.mxu0 0.0
        %4949 = vmatprep.subr.mxu0 0.0
        %4950 = vmatpush1.xpose.msra.mxu0 0.0
        %4951 = vmatprep.subr.mxu0 0.0
        %4952 = vmatpush1.xpose.msra.mxu0 0.0
        %4953 = vmatprep.subr.mxu0 0.0
        %4954 = vmatpush1.xpose.msra.mxu0 0.0
        %4955 = vmatprep.subr.mxu0 0.0
        %4956 = vmatpush1.xpose.msra.mxu0 0.0
        %4957 = vmatprep.subr.mxu0 0.0
        %4958 = vmatpush1.xpose.msra.mxu0 0.0
        %4959 = vmatprep.subr.mxu0 0.0
        %4960 = vmatpush1.xpose.msra.mxu0 0.0
        %4961 = vmatprep.subr.mxu0 0.0
        %4962 = vmatpush1.xpose.msra.mxu0 0.0
        %4963 = vmatprep.subr.mxu0 0.0
        %4964 = vmatpush1.xpose.msra.mxu0 0.0
        %4965 = vmatprep.subr.mxu0 0.0
        %4966 = vmatpush1.xpose.msra.mxu0 0.0
        %4967 = vmatprep.subr.mxu0 0.0
        %4968 = vmatpush1.xpose.msra.mxu0 0.0
        %4969 = vmatprep.subr.mxu0 0.0
        %4970 = vmatpush1.xpose.msra.mxu0 0.0
        %4971 = vmatprep.subr.mxu0 0.0
        %4972 = vmatpush1.xpose.msra.mxu0 0.0
        %4973 = vmatprep.subr.mxu0 0.0
        %4974 = vmatpush1.xpose.msra.mxu0 %v4941
        %4975 = vmatprep.subr.mxu0 0.0
        %4976 = vmatpush2.xpose.msra.mxu0 0.0
        %4977 = vmatprep.subr.mxu0 0.0
        %4978 = vmatpush2.xpose.msra.mxu0 0.0
        %4979 = vmatprep.subr.mxu0 0.0
        %4980 = vmatpush2.xpose.msra.mxu0 0.0
        %4981 = vmatprep.subr.mxu0 0.0
        %4982 = vmatpush2.xpose.msra.mxu0 0.0
        %4983 = vmatprep.subr.mxu0 0.0
        %4984 = vmatpush2.xpose.msra.mxu0 0.0
        %4985 = vmatprep.subr.mxu0 0.0
        %4986 = vmatpush2.xpose.msra.mxu0 0.0
        %4987 = vmatprep.subr.mxu0 0.0
        %4988 = vmatpush2.xpose.msra.mxu0 0.0
        %4989 = vmatprep.subr.mxu0 0.0
        %4990 = vmatpush2.xpose.msra.mxu0 0.0
        %4991 = vmatprep.subr.mxu0 0.0
        %4992 = vmatpush2.xpose.msra.mxu0 0.0
        %4993 = vmatprep.subr.mxu0 0.0
        %4994 = vmatpush2.xpose.msra.mxu0 0.0
        %4995 = vmatprep.subr.mxu0 0.0
        %4996 = vmatpush2.xpose.msra.mxu0 0.0
        %4997 = vmatprep.subr.mxu0 0.0
        %4998 = vmatpush2.xpose.msra.mxu0 0.0
        %4999 = vmatprep.subr.mxu0 0.0
        %5000 = vmatpush2.xpose.msra.mxu0 0.0
        %5001 = vmatprep.subr.mxu0 0.0
        %5002 = vmatpush2.xpose.msra.mxu0 0.0
        %5003 = vmatprep.subr.mxu0 0.0
        %5004 = vmatpush2.xpose.msra.mxu0 0.0
        %5005 = vmatprep.subr.mxu0 0.0
        %5006 = vmatpush2.xpose.msra.mxu0 0.0
        %5007 = vmatprep.mubr.f32.mxu0 0.0
        %5008 = vmatmul.mubr.f32.gmra.mxu0 %v4938
        %v5009 = vpop.f32.mrf.mxu0
        %v5010 = vadd.f32 0.0, %v5009
        %v5011 = vpop.f32.mrf.mxu0
        %5012 = vdwg.mxu0
        %v5014 = vsel %vm4024, %v3933, 0
        %v5017 = vsel %vm4024, %v4017, 0
        %5019 = vmatprep.subr.mxu0 0.0
        %5020 = vmatpush1.xpose.msra.mxu0 0.0
        %5021 = vmatprep.subr.mxu0 0.0
        %5022 = vmatpush1.xpose.msra.mxu0 0.0
        %5023 = vmatprep.subr.mxu0 0.0
        %5024 = vmatpush1.xpose.msra.mxu0 0.0
        %5025 = vmatprep.subr.mxu0 0.0
        %5026 = vmatpush1.xpose.msra.mxu0 0.0
        %5027 = vmatprep.subr.mxu0 0.0
        %5028 = vmatpush1.xpose.msra.mxu0 0.0
        %5029 = vmatprep.subr.mxu0 0.0
        %5030 = vmatpush1.xpose.msra.mxu0 0.0
        %5031 = vmatprep.subr.mxu0 0.0
        %5032 = vmatpush1.xpose.msra.mxu0 0.0
        %5033 = vmatprep.subr.mxu0 0.0
        %5034 = vmatpush1.xpose.msra.mxu0 0.0
        %5035 = vmatprep.subr.mxu0 0.0
        %5036 = vmatpush1.xpose.msra.mxu0 0.0
        %5037 = vmatprep.subr.mxu0 0.0
        %5038 = vmatpush1.xpose.msra.mxu0 0.0
        %5039 = vmatprep.subr.mxu0 0.0
        %5040 = vmatpush1.xpose.msra.mxu0 0.0
        %5041 = vmatprep.subr.mxu0 0.0
        %5042 = vmatpush1.xpose.msra.mxu0 0.0
        %5043 = vmatprep.subr.mxu0 0.0
        %5044 = vmatpush1.xpose.msra.mxu0 0.0
        %5045 = vmatprep.subr.mxu0 0.0
        %5046 = vmatpush1.xpose.msra.mxu0 0.0
        %5047 = vmatprep.subr.mxu0 0.0
        %5048 = vmatpush1.xpose.msra.mxu0 0.0
        %5049 = vmatprep.subr.mxu0 0.0
        %5050 = vmatpush1.xpose.msra.mxu0 %v5017
        %5051 = vmatprep.subr.mxu0 0.0
        %5052 = vmatpush2.xpose.msra.mxu0 0.0
        %5053 = vmatprep.subr.mxu0 0.0
        %5054 = vmatpush2.xpose.msra.mxu0 0.0
        %5055 = vmatprep.subr.mxu0 0.0
        %5056 = vmatpush2.xpose.msra.mxu0 0.0
        %5057 = vmatprep.subr.mxu0 0.0
        %5058 = vmatpush2.xpose.msra.mxu0 0.0
        %5059 = vmatprep.subr.mxu0 0.0
        %5060 = vmatpush2.xpose.msra.mxu0 0.0
        %5061 = vmatprep.subr.mxu0 0.0
        %5062 = vmatpush2.xpose.msra.mxu0 0.0
        %5063 = vmatprep.subr.mxu0 0.0
        %5064 = vmatpush2.xpose.msra.mxu0 0.0
        %5065 = vmatprep.subr.mxu0 0.0
        %5066 = vmatpush2.xpose.msra.mxu0 0.0
        %5067 = vmatprep.subr.mxu0 0.0
        %5068 = vmatpush2.xpose.msra.mxu0 0.0
        %5069 = vmatprep.subr.mxu0 0.0
        %5070 = vmatpush2.xpose.msra.mxu0 0.0
        %5071 = vmatprep.subr.mxu0 0.0
        %5072 = vmatpush2.xpose.msra.mxu0 0.0
        %5073 = vmatprep.subr.mxu0 0.0
        %5074 = vmatpush2.xpose.msra.mxu0 0.0
        %5075 = vmatprep.subr.mxu0 0.0
        %5076 = vmatpush2.xpose.msra.mxu0 0.0
        %5077 = vmatprep.subr.mxu0 0.0
        %5078 = vmatpush2.xpose.msra.mxu0 0.0
        %5079 = vmatprep.subr.mxu0 0.0
        %5080 = vmatpush2.xpose.msra.mxu0 0.0
        %5081 = vmatprep.subr.mxu0 0.0
        %5082 = vmatpush2.xpose.msra.mxu0 0.0
        %5083 = vmatprep.mubr.f32.mxu0 0.0
        %5084 = vmatmul.mubr.f32.gmra.mxu0 %v5014
        %v5085 = vpop.f32.mrf.mxu0
        %v5086 = vadd.f32 0.0, %v5085
        %v5087 = vpop.f32.mrf.mxu0
        %5088 = vdwg.mxu0
        %v5090 = vsel %vm4024, %v3934, 0
        %v5093 = vsel %vm4024, %v4018, 0
        %5095 = vmatprep.subr.mxu0 0.0
        %5096 = vmatpush1.xpose.msra.mxu0 0.0
        %5097 = vmatprep.subr.mxu0 0.0
        %5098 = vmatpush1.xpose.msra.mxu0 0.0
        %5099 = vmatprep.subr.mxu0 0.0
        %5100 = vmatpush1.xpose.msra.mxu0 0.0
        %5101 = vmatprep.subr.mxu0 0.0
        %5102 = vmatpush1.xpose.msra.mxu0 0.0
        %5103 = vmatprep.subr.mxu0 0.0
        %5104 = vmatpush1.xpose.msra.mxu0 0.0
        %5105 = vmatprep.subr.mxu0 0.0
        %5106 = vmatpush1.xpose.msra.mxu0 0.0
        %5107 = vmatprep.subr.mxu0 0.0
        %5108 = vmatpush1.xpose.msra.mxu0 0.0
        %5109 = vmatprep.subr.mxu0 0.0
        %5110 = vmatpush1.xpose.msra.mxu0 0.0
        %5111 = vmatprep.subr.mxu0 0.0
        %5112 = vmatpush1.xpose.msra.mxu0 0.0
        %5113 = vmatprep.subr.mxu0 0.0
        %5114 = vmatpush1.xpose.msra.mxu0 0.0
        %5115 = vmatprep.subr.mxu0 0.0
        %5116 = vmatpush1.xpose.msra.mxu0 0.0
        %5117 = vmatprep.subr.mxu0 0.0
        %5118 = vmatpush1.xpose.msra.mxu0 0.0
        %5119 = vmatprep.subr.mxu0 0.0
        %5120 = vmatpush1.xpose.msra.mxu0 0.0
        %5121 = vmatprep.subr.mxu0 0.0
        %5122 = vmatpush1.xpose.msra.mxu0 0.0
        %5123 = vmatprep.subr.mxu0 0.0
        %5124 = vmatpush1.xpose.msra.mxu0 0.0
        %5125 = vmatprep.subr.mxu0 0.0
        %5126 = vmatpush1.xpose.msra.mxu0 %v5093
        %5127 = vmatprep.subr.mxu0 0.0
        %5128 = vmatpush2.xpose.msra.mxu0 0.0
        %5129 = vmatprep.subr.mxu0 0.0
        %5130 = vmatpush2.xpose.msra.mxu0 0.0
        %5131 = vmatprep.subr.mxu0 0.0
        %5132 = vmatpush2.xpose.msra.mxu0 0.0
        %5133 = vmatprep.subr.mxu0 0.0
        %5134 = vmatpush2.xpose.msra.mxu0 0.0
        %5135 = vmatprep.subr.mxu0 0.0
        %5136 = vmatpush2.xpose.msra.mxu0 0.0
        %5137 = vmatprep.subr.mxu0 0.0
        %5138 = vmatpush2.xpose.msra.mxu0 0.0
        %5139 = vmatprep.subr.mxu0 0.0
        %5140 = vmatpush2.xpose.msra.mxu0 0.0
        %5141 = vmatprep.subr.mxu0 0.0
        %5142 = vmatpush2.xpose.msra.mxu0 0.0
        %5143 = vmatprep.subr.mxu0 0.0
        %5144 = vmatpush2.xpose.msra.mxu0 0.0
        %5145 = vmatprep.subr.mxu0 0.0
        %5146 = vmatpush2.xpose.msra.mxu0 0.0
        %5147 = vmatprep.subr.mxu0 0.0
        %5148 = vmatpush2.xpose.msra.mxu0 0.0
        %5149 = vmatprep.subr.mxu0 0.0
        %5150 = vmatpush2.xpose.msra.mxu0 0.0
        %5151 = vmatprep.subr.mxu0 0.0
        %5152 = vmatpush2.xpose.msra.mxu0 0.0
        %5153 = vmatprep.subr.mxu0 0.0
        %5154 = vmatpush2.xpose.msra.mxu0 0.0
        %5155 = vmatprep.subr.mxu0 0.0
        %5156 = vmatpush2.xpose.msra.mxu0 0.0
        %5157 = vmatprep.subr.mxu0 0.0
        %5158 = vmatpush2.xpose.msra.mxu0 0.0
        %5159 = vmatprep.mubr.f32.mxu0 0.0
        %5160 = vmatmul.mubr.f32.gmra.mxu0 %v5090
        %v5161 = vpop.f32.mrf.mxu0
        %v5162 = vadd.f32 0.0, %v5161
        %v5163 = vpop.f32.mrf.mxu0
        %5164 = vdwg.mxu0
        %v5166 = vsel %vm4024, %v3935, 0
        %v5169 = vsel %vm4024, %v4019, 0
        %5171 = vmatprep.subr.mxu0 0.0
        %5172 = vmatpush1.xpose.msra.mxu0 0.0
        %5173 = vmatprep.subr.mxu0 0.0
        %5174 = vmatpush1.xpose.msra.mxu0 0.0
        %5175 = vmatprep.subr.mxu0 0.0
        %5176 = vmatpush1.xpose.msra.mxu0 0.0
        %5177 = vmatprep.subr.mxu0 0.0
        %5178 = vmatpush1.xpose.msra.mxu0 0.0
        %5179 = vmatprep.subr.mxu0 0.0
        %5180 = vmatpush1.xpose.msra.mxu0 0.0
        %5181 = vmatprep.subr.mxu0 0.0
        %5182 = vmatpush1.xpose.msra.mxu0 0.0
        %5183 = vmatprep.subr.mxu0 0.0
        %5184 = vmatpush1.xpose.msra.mxu0 0.0
        %5185 = vmatprep.subr.mxu0 0.0
        %5186 = vmatpush1.xpose.msra.mxu0 0.0
        %5187 = vmatprep.subr.mxu0 0.0
        %5188 = vmatpush1.xpose.msra.mxu0 0.0
        %5189 = vmatprep.subr.mxu0 0.0
        %5190 = vmatpush1.xpose.msra.mxu0 0.0
        %5191 = vmatprep.subr.mxu0 0.0
        %5192 = vmatpush1.xpose.msra.mxu0 0.0
        %5193 = vmatprep.subr.mxu0 0.0
        %5194 = vmatpush1.xpose.msra.mxu0 0.0
        %5195 = vmatprep.subr.mxu0 0.0
        %5196 = vmatpush1.xpose.msra.mxu0 0.0
        %5197 = vmatprep.subr.mxu0 0.0
        %5198 = vmatpush1.xpose.msra.mxu0 0.0
        %5199 = vmatprep.subr.mxu0 0.0
        %5200 = vmatpush1.xpose.msra.mxu0 0.0
        %5201 = vmatprep.subr.mxu0 0.0
        %5202 = vmatpush1.xpose.msra.mxu0 %v5169
        %5203 = vmatprep.subr.mxu0 0.0
        %5204 = vmatpush2.xpose.msra.mxu0 0.0
        %5205 = vmatprep.subr.mxu0 0.0
        %5206 = vmatpush2.xpose.msra.mxu0 0.0
        %5207 = vmatprep.subr.mxu0 0.0
        %5208 = vmatpush2.xpose.msra.mxu0 0.0
        %5209 = vmatprep.subr.mxu0 0.0
        %5210 = vmatpush2.xpose.msra.mxu0 0.0
        %5211 = vmatprep.subr.mxu0 0.0
        %5212 = vmatpush2.xpose.msra.mxu0 0.0
        %5213 = vmatprep.subr.mxu0 0.0
        %5214 = vmatpush2.xpose.msra.mxu0 0.0
        %5215 = vmatprep.subr.mxu0 0.0
        %5216 = vmatpush2.xpose.msra.mxu0 0.0
        %5217 = vmatprep.subr.mxu0 0.0
        %5218 = vmatpush2.xpose.msra.mxu0 0.0
        %5219 = vmatprep.subr.mxu0 0.0
        %5220 = vmatpush2.xpose.msra.mxu0 0.0
        %5221 = vmatprep.subr.mxu0 0.0
        %5222 = vmatpush2.xpose.msra.mxu0 0.0
        %5223 = vmatprep.subr.mxu0 0.0
        %5224 = vmatpush2.xpose.msra.mxu0 0.0
        %5225 = vmatprep.subr.mxu0 0.0
        %5226 = vmatpush2.xpose.msra.mxu0 0.0
        %5227 = vmatprep.subr.mxu0 0.0
        %5228 = vmatpush2.xpose.msra.mxu0 0.0
        %5229 = vmatprep.subr.mxu0 0.0
        %5230 = vmatpush2.xpose.msra.mxu0 0.0
        %5231 = vmatprep.subr.mxu0 0.0
        %5232 = vmatpush2.xpose.msra.mxu0 0.0
        %5233 = vmatprep.subr.mxu0 0.0
        %5234 = vmatpush2.xpose.msra.mxu0 0.0
        %5235 = vmatprep.mubr.f32.mxu0 0.0
        %5236 = vmatmul.mubr.f32.gmra.mxu0 %v5166
        %v5237 = vpop.f32.mrf.mxu0
        %v5238 = vadd.f32 0.0, %v5237
        %v5239 = vpop.f32.mrf.mxu0
        %5240 = vdwg.mxu0
        %v5242 = vsel %vm4024, %v4000, 0
        %v5245 = vsel %vm4024, %v4020, 0
        %5247 = vmatprep.subr.mxu0 0.0
        %5248 = vmatpush1.xpose.msra.mxu0 0.0
        %5249 = vmatprep.subr.mxu0 0.0
        %5250 = vmatpush1.xpose.msra.mxu0 0.0
        %5251 = vmatprep.subr.mxu0 0.0
        %5252 = vmatpush1.xpose.msra.mxu0 0.0
        %5253 = vmatprep.subr.mxu0 0.0
        %5254 = vmatpush1.xpose.msra.mxu0 0.0
        %5255 = vmatprep.subr.mxu0 0.0
        %5256 = vmatpush1.xpose.msra.mxu0 0.0
        %5257 = vmatprep.subr.mxu0 0.0
        %5258 = vmatpush1.xpose.msra.mxu0 0.0
        %5259 = vmatprep.subr.mxu0 0.0
        %5260 = vmatpush1.xpose.msra.mxu0 0.0
        %5261 = vmatprep.subr.mxu0 0.0
        %5262 = vmatpush1.xpose.msra.mxu0 0.0
        %5263 = vmatprep.subr.mxu0 0.0
        %5264 = vmatpush1.xpose.msra.mxu0 0.0
        %5265 = vmatprep.subr.mxu0 0.0
        %5266 = vmatpush1.xpose.msra.mxu0 0.0
        %5267 = vmatprep.subr.mxu0 0.0
        %5268 = vmatpush1.xpose.msra.mxu0 0.0
        %5269 = vmatprep.subr.mxu0 0.0
        %5270 = vmatpush1.xpose.msra.mxu0 0.0
        %5271 = vmatprep.subr.mxu0 0.0
        %5272 = vmatpush1.xpose.msra.mxu0 0.0
        %5273 = vmatprep.subr.mxu0 0.0
        %5274 = vmatpush1.xpose.msra.mxu0 0.0
        %5275 = vmatprep.subr.mxu0 0.0
        %5276 = vmatpush1.xpose.msra.mxu0 0.0
        %5277 = vmatprep.subr.mxu0 0.0
        %5278 = vmatpush1.xpose.msra.mxu0 %v5245
        %5279 = vmatprep.subr.mxu0 0.0
        %5280 = vmatpush2.xpose.msra.mxu0 0.0
        %5281 = vmatprep.subr.mxu0 0.0
        %5282 = vmatpush2.xpose.msra.mxu0 0.0
        %5283 = vmatprep.subr.mxu0 0.0
        %5284 = vmatpush2.xpose.msra.mxu0 0.0
        %5285 = vmatprep.subr.mxu0 0.0
        %5286 = vmatpush2.xpose.msra.mxu0 0.0
        %5287 = vmatprep.subr.mxu0 0.0
        %5288 = vmatpush2.xpose.msra.mxu0 0.0
        %5289 = vmatprep.subr.mxu0 0.0
        %5290 = vmatpush2.xpose.msra.mxu0 0.0
        %5291 = vmatprep.subr.mxu0 0.0
        %5292 = vmatpush2.xpose.msra.mxu0 0.0
        %5293 = vmatprep.subr.mxu0 0.0
        %5294 = vmatpush2.xpose.msra.mxu0 0.0
        %5295 = vmatprep.subr.mxu0 0.0
        %5296 = vmatpush2.xpose.msra.mxu0 0.0
        %5297 = vmatprep.subr.mxu0 0.0
        %5298 = vmatpush2.xpose.msra.mxu0 0.0
        %5299 = vmatprep.subr.mxu0 0.0
        %5300 = vmatpush2.xpose.msra.mxu0 0.0
        %5301 = vmatprep.subr.mxu0 0.0
        %5302 = vmatpush2.xpose.msra.mxu0 0.0
        %5303 = vmatprep.subr.mxu0 0.0
        %5304 = vmatpush2.xpose.msra.mxu0 0.0
        %5305 = vmatprep.subr.mxu0 0.0
        %5306 = vmatpush2.xpose.msra.mxu0 0.0
        %5307 = vmatprep.subr.mxu0 0.0
        %5308 = vmatpush2.xpose.msra.mxu0 0.0
        %5309 = vmatprep.subr.mxu0 0.0
        %5310 = vmatpush2.xpose.msra.mxu0 0.0
        %5311 = vmatprep.mubr.f32.mxu0 0.0
        %5312 = vmatmul.mubr.f32.gmra.mxu0 %v5242
        %v5313 = vpop.f32.mrf.mxu0
        %v5314 = vadd.f32 0.0, %v5313
        %v5315 = vpop.f32.mrf.mxu0
        %5316 = vdwg.mxu0
        %v5318 = vsel %vm4024, %v4001, 0
        %v5321 = vsel %vm4024, %v4021, 0
        %5323 = vmatprep.subr.mxu0 0.0
        %5324 = vmatpush1.xpose.msra.mxu0 0.0
        %5325 = vmatprep.subr.mxu0 0.0
        %5326 = vmatpush1.xpose.msra.mxu0 0.0
        %5327 = vmatprep.subr.mxu0 0.0
        %5328 = vmatpush1.xpose.msra.mxu0 0.0
        %5329 = vmatprep.subr.mxu0 0.0
        %5330 = vmatpush1.xpose.msra.mxu0 0.0
        %5331 = vmatprep.subr.mxu0 0.0
        %5332 = vmatpush1.xpose.msra.mxu0 0.0
        %5333 = vmatprep.subr.mxu0 0.0
        %5334 = vmatpush1.xpose.msra.mxu0 0.0
        %5335 = vmatprep.subr.mxu0 0.0
        %5336 = vmatpush1.xpose.msra.mxu0 0.0
        %5337 = vmatprep.subr.mxu0 0.0
        %5338 = vmatpush1.xpose.msra.mxu0 0.0
        %5339 = vmatprep.subr.mxu0 0.0
        %5340 = vmatpush1.xpose.msra.mxu0 0.0
        %5341 = vmatprep.subr.mxu0 0.0
        %5342 = vmatpush1.xpose.msra.mxu0 0.0
        %5343 = vmatprep.subr.mxu0 0.0
        %5344 = vmatpush1.xpose.msra.mxu0 0.0
        %5345 = vmatprep.subr.mxu0 0.0
        %5346 = vmatpush1.xpose.msra.mxu0 0.0
        %5347 = vmatprep.subr.mxu0 0.0
        %5348 = vmatpush1.xpose.msra.mxu0 0.0
        %5349 = vmatprep.subr.mxu0 0.0
        %5350 = vmatpush1.xpose.msra.mxu0 0.0
        %5351 = vmatprep.subr.mxu0 0.0
        %5352 = vmatpush1.xpose.msra.mxu0 0.0
        %5353 = vmatprep.subr.mxu0 0.0
        %5354 = vmatpush1.xpose.msra.mxu0 %v5321
        %5355 = vmatprep.subr.mxu0 0.0
        %5356 = vmatpush2.xpose.msra.mxu0 0.0
        %5357 = vmatprep.subr.mxu0 0.0
        %5358 = vmatpush2.xpose.msra.mxu0 0.0
        %5359 = vmatprep.subr.mxu0 0.0
        %5360 = vmatpush2.xpose.msra.mxu0 0.0
        %5361 = vmatprep.subr.mxu0 0.0
        %5362 = vmatpush2.xpose.msra.mxu0 0.0
        %5363 = vmatprep.subr.mxu0 0.0
        %5364 = vmatpush2.xpose.msra.mxu0 0.0
        %5365 = vmatprep.subr.mxu0 0.0
        %5366 = vmatpush2.xpose.msra.mxu0 0.0
        %5367 = vmatprep.subr.mxu0 0.0
        %5368 = vmatpush2.xpose.msra.mxu0 0.0
        %5369 = vmatprep.subr.mxu0 0.0
        %5370 = vmatpush2.xpose.msra.mxu0 0.0
        %5371 = vmatprep.subr.mxu0 0.0
        %5372 = vmatpush2.xpose.msra.mxu0 0.0
        %5373 = vmatprep.subr.mxu0 0.0
        %5374 = vmatpush2.xpose.msra.mxu0 0.0
        %5375 = vmatprep.subr.mxu0 0.0
        %5376 = vmatpush2.xpose.msra.mxu0 0.0
        %5377 = vmatprep.subr.mxu0 0.0
        %5378 = vmatpush2.xpose.msra.mxu0 0.0
        %5379 = vmatprep.subr.mxu0 0.0
        %5380 = vmatpush2.xpose.msra.mxu0 0.0
        %5381 = vmatprep.subr.mxu0 0.0
        %5382 = vmatpush2.xpose.msra.mxu0 0.0
        %5383 = vmatprep.subr.mxu0 0.0
        %5384 = vmatpush2.xpose.msra.mxu0 0.0
        %5385 = vmatprep.subr.mxu0 0.0
        %5386 = vmatpush2.xpose.msra.mxu0 0.0
        %5387 = vmatprep.mubr.f32.mxu0 0.0
        %5388 = vmatmul.mubr.f32.gmra.mxu0 %v5318
        %v5389 = vpop.f32.mrf.mxu0
        %v5390 = vadd.f32 0.0, %v5389
        %v5391 = vpop.f32.mrf.mxu0
        %5392 = vdwg.mxu0
        %v5394 = vsel %vm4024, %v4002, 0
        %v5397 = vsel %vm4024, %v4022, 0
        %5399 = vmatprep.subr.mxu0 0.0
        %5400 = vmatpush1.xpose.msra.mxu0 0.0
        %5401 = vmatprep.subr.mxu0 0.0
        %5402 = vmatpush1.xpose.msra.mxu0 0.0
        %5403 = vmatprep.subr.mxu0 0.0
        %5404 = vmatpush1.xpose.msra.mxu0 0.0
        %5405 = vmatprep.subr.mxu0 0.0
        %5406 = vmatpush1.xpose.msra.mxu0 0.0
        %5407 = vmatprep.subr.mxu0 0.0
        %5408 = vmatpush1.xpose.msra.mxu0 0.0
        %5409 = vmatprep.subr.mxu0 0.0
        %5410 = vmatpush1.xpose.msra.mxu0 0.0
        %5411 = vmatprep.subr.mxu0 0.0
        %5412 = vmatpush1.xpose.msra.mxu0 0.0
        %5413 = vmatprep.subr.mxu0 0.0
        %5414 = vmatpush1.xpose.msra.mxu0 0.0
        %5415 = vmatprep.subr.mxu0 0.0
        %5416 = vmatpush1.xpose.msra.mxu0 0.0
        %5417 = vmatprep.subr.mxu0 0.0
        %5418 = vmatpush1.xpose.msra.mxu0 0.0
        %5419 = vmatprep.subr.mxu0 0.0
        %5420 = vmatpush1.xpose.msra.mxu0 0.0
        %5421 = vmatprep.subr.mxu0 0.0
        %5422 = vmatpush1.xpose.msra.mxu0 0.0
        %5423 = vmatprep.subr.mxu0 0.0
        %5424 = vmatpush1.xpose.msra.mxu0 0.0
        %5425 = vmatprep.subr.mxu0 0.0
        %5426 = vmatpush1.xpose.msra.mxu0 0.0
        %5427 = vmatprep.subr.mxu0 0.0
        %5428 = vmatpush1.xpose.msra.mxu0 0.0
        %5429 = vmatprep.subr.mxu0 0.0
        %5430 = vmatpush1.xpose.msra.mxu0 %v5397
        %5431 = vmatprep.subr.mxu0 0.0
        %5432 = vmatpush2.xpose.msra.mxu0 0.0
        %5433 = vmatprep.subr.mxu0 0.0
        %5434 = vmatpush2.xpose.msra.mxu0 0.0
        %5435 = vmatprep.subr.mxu0 0.0
        %5436 = vmatpush2.xpose.msra.mxu0 0.0
        %5437 = vmatprep.subr.mxu0 0.0
        %5438 = vmatpush2.xpose.msra.mxu0 0.0
        %5439 = vmatprep.subr.mxu0 0.0
        %5440 = vmatpush2.xpose.msra.mxu0 0.0
        %5441 = vmatprep.subr.mxu0 0.0
        %5442 = vmatpush2.xpose.msra.mxu0 0.0
        %5443 = vmatprep.subr.mxu0 0.0
        %5444 = vmatpush2.xpose.msra.mxu0 0.0
        %5445 = vmatprep.subr.mxu0 0.0
        %5446 = vmatpush2.xpose.msra.mxu0 0.0
        %5447 = vmatprep.subr.mxu0 0.0
        %5448 = vmatpush2.xpose.msra.mxu0 0.0
        %5449 = vmatprep.subr.mxu0 0.0
        %5450 = vmatpush2.xpose.msra.mxu0 0.0
        %5451 = vmatprep.subr.mxu0 0.0
        %5452 = vmatpush2.xpose.msra.mxu0 0.0
        %5453 = vmatprep.subr.mxu0 0.0
        %5454 = vmatpush2.xpose.msra.mxu0 0.0
        %5455 = vmatprep.subr.mxu0 0.0
        %5456 = vmatpush2.xpose.msra.mxu0 0.0
        %5457 = vmatprep.subr.mxu0 0.0
        %5458 = vmatpush2.xpose.msra.mxu0 0.0
        %5459 = vmatprep.subr.mxu0 0.0
        %5460 = vmatpush2.xpose.msra.mxu0 0.0
        %5461 = vmatprep.subr.mxu0 0.0
        %5462 = vmatpush2.xpose.msra.mxu0 0.0
        %5463 = vmatprep.mubr.f32.mxu0 0.0
        %5464 = vmatmul.mubr.f32.gmra.mxu0 %v5394
        %v5465 = vpop.f32.mrf.mxu0
        %v5466 = vadd.f32 0.0, %v5465
        %v5467 = vpop.f32.mrf.mxu0
        %5468 = vdwg.mxu0
        %v5470 = vsel %vm4024, %v4003, 0
        %v5473 = vsel %vm4024, %v4023, 0
        %5475 = vmatprep.subr.mxu0 0.0
        %5476 = vmatpush1.xpose.msra.mxu0 0.0
        %5477 = vmatprep.subr.mxu0 0.0
        %5478 = vmatpush1.xpose.msra.mxu0 0.0
        %5479 = vmatprep.subr.mxu0 0.0
        %5480 = vmatpush1.xpose.msra.mxu0 0.0
        %5481 = vmatprep.subr.mxu0 0.0
        %5482 = vmatpush1.xpose.msra.mxu0 0.0
        %5483 = vmatprep.subr.mxu0 0.0
        %5484 = vmatpush1.xpose.msra.mxu0 0.0
        %5485 = vmatprep.subr.mxu0 0.0
        %5486 = vmatpush1.xpose.msra.mxu0 0.0
        %5487 = vmatprep.subr.mxu0 0.0
        %5488 = vmatpush1.xpose.msra.mxu0 0.0
        %5489 = vmatprep.subr.mxu0 0.0
        %5490 = vmatpush1.xpose.msra.mxu0 0.0
        %5491 = vmatprep.subr.mxu0 0.0
        %5492 = vmatpush1.xpose.msra.mxu0 0.0
        %5493 = vmatprep.subr.mxu0 0.0
        %5494 = vmatpush1.xpose.msra.mxu0 0.0
        %5495 = vmatprep.subr.mxu0 0.0
        %5496 = vmatpush1.xpose.msra.mxu0 0.0
        %5497 = vmatprep.subr.mxu0 0.0
        %5498 = vmatpush1.xpose.msra.mxu0 0.0
        %5499 = vmatprep.subr.mxu0 0.0
        %5500 = vmatpush1.xpose.msra.mxu0 0.0
        %5501 = vmatprep.subr.mxu0 0.0
        %5502 = vmatpush1.xpose.msra.mxu0 0.0
        %5503 = vmatprep.subr.mxu0 0.0
        %5504 = vmatpush1.xpose.msra.mxu0 0.0
        %5505 = vmatprep.subr.mxu0 0.0
        %5506 = vmatpush1.xpose.msra.mxu0 %v5473
        %5507 = vmatprep.subr.mxu0 0.0
        %5508 = vmatpush2.xpose.msra.mxu0 0.0
        %5509 = vmatprep.subr.mxu0 0.0
        %5510 = vmatpush2.xpose.msra.mxu0 0.0
        %5511 = vmatprep.subr.mxu0 0.0
        %5512 = vmatpush2.xpose.msra.mxu0 0.0
        %5513 = vmatprep.subr.mxu0 0.0
        %5514 = vmatpush2.xpose.msra.mxu0 0.0
        %5515 = vmatprep.subr.mxu0 0.0
        %5516 = vmatpush2.xpose.msra.mxu0 0.0
        %5517 = vmatprep.subr.mxu0 0.0
        %5518 = vmatpush2.xpose.msra.mxu0 0.0
        %5519 = vmatprep.subr.mxu0 0.0
        %5520 = vmatpush2.xpose.msra.mxu0 0.0
        %5521 = vmatprep.subr.mxu0 0.0
        %5522 = vmatpush2.xpose.msra.mxu0 0.0
        %5523 = vmatprep.subr.mxu0 0.0
        %5524 = vmatpush2.xpose.msra.mxu0 0.0
        %5525 = vmatprep.subr.mxu0 0.0
        %5526 = vmatpush2.xpose.msra.mxu0 0.0
        %5527 = vmatprep.subr.mxu0 0.0
        %5528 = vmatpush2.xpose.msra.mxu0 0.0
        %5529 = vmatprep.subr.mxu0 0.0
        %5530 = vmatpush2.xpose.msra.mxu0 0.0
        %5531 = vmatprep.subr.mxu0 0.0
        %5532 = vmatpush2.xpose.msra.mxu0 0.0
        %5533 = vmatprep.subr.mxu0 0.0
        %5534 = vmatpush2.xpose.msra.mxu0 0.0
        %5535 = vmatprep.subr.mxu0 0.0
        %5536 = vmatpush2.xpose.msra.mxu0 0.0
        %5537 = vmatprep.subr.mxu0 0.0
        %5538 = vmatpush2.xpose.msra.mxu0 0.0
        %5539 = vmatprep.mubr.f32.mxu0 0.0
        %5540 = vmatmul.mubr.f32.gmra.mxu0 %v5470
        %v5541 = vpop.f32.mrf.mxu0
        %v5542 = vadd.f32 0.0, %v5541
        %v5543 = vpop.f32.mrf.mxu0
        %5544 = vdwg.mxu0
        %v5545 = vmul.f32 %v4098, 1.442695
        %v5546 = vpow.pop %v5545
        %v5547 = vmul.f32 %v4174, 1.442695
        %v5548 = vpow.pop %v5547
        %v5549 = vmul.f32 %v4250, 1.442695
        %v5550 = vpow.pop %v5549
        %v5551 = vmul.f32 %v4326, 1.442695
        %v5552 = vpow.pop %v5551
        %v5553 = vmul.f32 %v4402, 1.442695
        %v5554 = vpow.pop %v5553
        %v5555 = vmul.f32 %v4478, 1.442695
        %v5556 = vpow.pop %v5555
        %v5557 = vmul.f32 %v4554, 1.442695
        %v5558 = vpow.pop %v5557
        %v5559 = vmul.f32 %v4630, 1.442695
        %v5560 = vpow.pop %v5559
        %v5561 = vmul.f32 %v4706, 1.442695
        %v5562 = vpow.pop %v5561
        %v5563 = vmul.f32 %v4782, 1.442695
        %v5564 = vpow.pop %v5563
        %v5565 = vmul.f32 %v4858, 1.442695
        %v5566 = vpow.pop %v5565
        %v5567 = vmul.f32 %v4934, 1.442695
        %v5568 = vpow.pop %v5567
        %v5569 = vmul.f32 %v5010, 1.442695
        %v5570 = vpow.pop %v5569
        %v5571 = vmul.f32 %v5086, 1.442695
        %v5572 = vpow.pop %v5571
        %v5573 = vmul.f32 %v5162, 1.442695
        %v5574 = vpow.pop %v5573
        %v5575 = vmul.f32 %v5238, 1.442695
        %v5576 = vpow.pop %v5575
        %v5577 = vmul.f32 %v5314, 1.442695
        %v5578 = vpow.pop %v5577
        %v5579 = vmul.f32 %v5390, 1.442695
        %v5580 = vpow.pop %v5579
        %v5581 = vmul.f32 %v5466, 1.442695
        %v5582 = vpow.pop %v5581
        %v5583 = vmul.f32 %v5542, 1.442695
        %v5584 = vpow.pop %v5583
        %v5585 = vsel %vm3272, %v5546, 0.0
        %5586 = vadd.xlane.f32.xlu0 %v5585
        %v5587 = vpop.xlane.xlu0 %5586
        %v5588 = vsel %vm3272, %v5548, 0.0
        %5589 = vadd.xlane.f32.xlu0 %v5588
        %v5590 = vpop.xlane.xlu0 %5589
        %v5591 = vsel %vm3272, %v5550, 0.0
        %5592 = vadd.xlane.f32.xlu0 %v5591
        %v5593 = vpop.xlane.xlu0 %5592
        %v5594 = vsel %vm3272, %v5552, 0.0
        %5595 = vadd.xlane.f32.xlu0 %v5594
        %v5596 = vpop.xlane.xlu0 %5595
        %v5597 = vsel %vm3272, %v5554, 0.0
        %5598 = vadd.xlane.f32.xlu0 %v5597
        %v5599 = vpop.xlane.xlu0 %5598
        %v5600 = vsel %vm3272, %v5556, 0.0
        %5601 = vadd.xlane.f32.xlu0 %v5600
        %v5602 = vpop.xlane.xlu0 %5601
        %v5603 = vsel %vm3272, %v5558, 0.0
        %5604 = vadd.xlane.f32.xlu0 %v5603
        %v5605 = vpop.xlane.xlu0 %5604
        %v5606 = vsel %vm3272, %v5560, 0.0
        %5607 = vadd.xlane.f32.xlu0 %v5606
        %v5608 = vpop.xlane.xlu0 %5607
        %v5609 = vsel %vm3272, %v5562, 0.0
        %5610 = vadd.xlane.f32.xlu0 %v5609
        %v5611 = vpop.xlane.xlu0 %5610
        %v5612 = vsel %vm3272, %v5564, 0.0
        %5613 = vadd.xlane.f32.xlu0 %v5612
        %v5614 = vpop.xlane.xlu0 %5613
        %v5615 = vsel %vm3272, %v5566, 0.0
        %5616 = vadd.xlane.f32.xlu0 %v5615
        %v5617 = vpop.xlane.xlu0 %5616
        %v5618 = vsel %vm3272, %v5568, 0.0
        %5619 = vadd.xlane.f32.xlu0 %v5618
        %v5620 = vpop.xlane.xlu0 %5619
        %v5621 = vsel %vm3272, %v5570, 0.0
        %5622 = vadd.xlane.f32.xlu0 %v5621
        %v5623 = vpop.xlane.xlu0 %5622
        %v5624 = vsel %vm3272, %v5572, 0.0
        %5625 = vadd.xlane.f32.xlu0 %v5624
        %v5626 = vpop.xlane.xlu0 %5625
        %v5627 = vsel %vm3272, %v5574, 0.0
        %5628 = vadd.xlane.f32.xlu0 %v5627
        %v5629 = vpop.xlane.xlu0 %5628
        %v5630 = vsel %vm3272, %v5576, 0.0
        %5631 = vadd.xlane.f32.xlu0 %v5630
        %v5632 = vpop.xlane.xlu0 %5631
        %v5633 = vsel %vm3272, %v5578, 0.0
        %5634 = vadd.xlane.f32.xlu0 %v5633
        %v5635 = vpop.xlane.xlu0 %5634
        %v5636 = vsel %vm3272, %v5580, 0.0
        %5637 = vadd.xlane.f32.xlu0 %v5636
        %v5638 = vpop.xlane.xlu0 %5637
        %v5639 = vsel %vm3272, %v5582, 0.0
        %5640 = vadd.xlane.f32.xlu0 %v5639
        %v5641 = vpop.xlane.xlu0 %5640
        %v5642 = vsel %vm3272, %v5584, 0.0
        %5643 = vadd.xlane.f32.xlu0 %v5642
        %v5644 = vpop.xlane.xlu0 %5643
        %v5645 = vld [vmem:[#allocation3] sm:$0xff]
        %v5646 = vld [vmem:[#allocation3 + $0x8] sm:$0xff]
        %v5647 = vld [vmem:[#allocation3 + $0x10] sm:$0xff]
        %v5648 = vld [vmem:[#allocation3 + $0x18] sm:$0xff]
        %v5649 = vld [vmem:[#allocation3 + $0x20] sm:$0xff]
        %v5650 = vld [vmem:[#allocation3 + $0x28] sm:$0xff]
        %v5651 = vld [vmem:[#allocation3 + $0x30] sm:$0xff]
        %v5652 = vld [vmem:[#allocation3 + $0x38] sm:$0xff]
        %v5653 = vld [vmem:[#allocation3 + $0x40] sm:$0xff]
        %v5654 = vld [vmem:[#allocation3 + $0x48] sm:$0xff]
        %v5655 = vld [vmem:[#allocation3 + $0x50] sm:$0xff]
        %v5656 = vld [vmem:[#allocation3 + $0x58] sm:$0xff]
        %v5657 = vld [vmem:[#allocation3 + $0x60] sm:$0xff]
        %v5658 = vld [vmem:[#allocation3 + $0x68] sm:$0xff]
        %v5659 = vld [vmem:[#allocation3 + $0x70] sm:$0xff]
        %v5660 = vld [vmem:[#allocation3 + $0x78] sm:$0xff]
        %v5661 = vld [vmem:[#allocation3 + $0x80] sm:$0xff]
        %v5662 = vld [vmem:[#allocation3 + $0x88] sm:$0xff]
        %v5663 = vld [vmem:[#allocation3 + $0x90] sm:$0xff]
        %v5664 = vld [vmem:[#allocation3 + $0x98] sm:$0xff]
        %v5666 = vsel %vm3272, %v5546, 0
        %5668 = vmatprep.subr.mxu0 0.0
        %5669 = vmatpush1.msra.mxu0 0.0
        %5670 = vmatprep.subr.mxu0 0.0
        %5671 = vmatpush1.msra.mxu0 0.0
        %5672 = vmatprep.subr.mxu0 0.0
        %5673 = vmatpush1.msra.mxu0 0.0
        %5674 = vmatprep.subr.mxu0 0.0
        %5675 = vmatpush1.msra.mxu0 0.0
        %5676 = vmatprep.subr.mxu0 0.0
        %5677 = vmatpush1.msra.mxu0 0.0
        %5678 = vmatprep.subr.mxu0 0.0
        %5679 = vmatpush1.msra.mxu0 0.0
        %5680 = vmatprep.subr.mxu0 0.0
        %5681 = vmatpush1.msra.mxu0 0.0
        %5682 = vmatprep.subr.mxu0 0.0
        %5683 = vmatpush1.msra.mxu0 0.0
        %5684 = vmatprep.subr.mxu0 0.0
        %5685 = vmatpush1.msra.mxu0 0.0
        %5686 = vmatprep.subr.mxu0 0.0
        %5687 = vmatpush1.msra.mxu0 0.0
        %5688 = vmatprep.subr.mxu0 0.0
        %5689 = vmatpush1.msra.mxu0 0.0
        %5690 = vmatprep.subr.mxu0 0.0
        %5691 = vmatpush1.msra.mxu0 0.0
        %5692 = vmatprep.subr.mxu0 0.0
        %5693 = vmatpush1.msra.mxu0 0.0
        %5694 = vmatprep.subr.mxu0 0.0
        %5695 = vmatpush1.msra.mxu0 0.0
        %5696 = vmatprep.subr.mxu0 0.0
        %5697 = vmatpush1.msra.mxu0 0.0
        %5698 = vmatprep.subr.mxu0 0.0
        %5699 = vmatpush1.msra.mxu0 %v5645
        %5700 = vmatprep.subr.mxu0 0.0
        %5701 = vmatpush2.msra.mxu0 0.0
        %5702 = vmatprep.subr.mxu0 0.0
        %5703 = vmatpush2.msra.mxu0 0.0
        %5704 = vmatprep.subr.mxu0 0.0
        %5705 = vmatpush2.msra.mxu0 0.0
        %5706 = vmatprep.subr.mxu0 0.0
        %5707 = vmatpush2.msra.mxu0 0.0
        %5708 = vmatprep.subr.mxu0 0.0
        %5709 = vmatpush2.msra.mxu0 0.0
        %5710 = vmatprep.subr.mxu0 0.0
        %5711 = vmatpush2.msra.mxu0 0.0
        %5712 = vmatprep.subr.mxu0 0.0
        %5713 = vmatpush2.msra.mxu0 0.0
        %5714 = vmatprep.subr.mxu0 0.0
        %5715 = vmatpush2.msra.mxu0 0.0
        %5716 = vmatprep.subr.mxu0 0.0
        %5717 = vmatpush2.msra.mxu0 0.0
        %5718 = vmatprep.subr.mxu0 0.0
        %5719 = vmatpush2.msra.mxu0 0.0
        %5720 = vmatprep.subr.mxu0 0.0
        %5721 = vmatpush2.msra.mxu0 0.0
        %5722 = vmatprep.subr.mxu0 0.0
        %5723 = vmatpush2.msra.mxu0 0.0
        %5724 = vmatprep.subr.mxu0 0.0
        %5725 = vmatpush2.msra.mxu0 0.0
        %5726 = vmatprep.subr.mxu0 0.0
        %5727 = vmatpush2.msra.mxu0 0.0
        %5728 = vmatprep.subr.mxu0 0.0
        %5729 = vmatpush2.msra.mxu0 0.0
        %5730 = vmatprep.subr.mxu0 0.0
        %5731 = vmatpush2.msra.mxu0 0.0
        %5732 = vmatprep.mubr.f32.mxu0 0.0
        %5733 = vmatmul.mubr.f32.gmra.mxu0 %v5666
        %v5734 = vpop.f32.mrf.mxu0
        %v5735 = vadd.f32 0.0, %v5734
        %v5736 = vpop.f32.mrf.mxu0
        %5737 = vdwg.mxu0
        %v5739 = vsel %vm3272, %v5548, 0
        %5741 = vmatprep.subr.mxu0 0.0
        %5742 = vmatpush1.msra.mxu0 0.0
        %5743 = vmatprep.subr.mxu0 0.0
        %5744 = vmatpush1.msra.mxu0 0.0
        %5745 = vmatprep.subr.mxu0 0.0
        %5746 = vmatpush1.msra.mxu0 0.0
        %5747 = vmatprep.subr.mxu0 0.0
        %5748 = vmatpush1.msra.mxu0 0.0
        %5749 = vmatprep.subr.mxu0 0.0
        %5750 = vmatpush1.msra.mxu0 0.0
        %5751 = vmatprep.subr.mxu0 0.0
        %5752 = vmatpush1.msra.mxu0 0.0
        %5753 = vmatprep.subr.mxu0 0.0
        %5754 = vmatpush1.msra.mxu0 0.0
        %5755 = vmatprep.subr.mxu0 0.0
        %5756 = vmatpush1.msra.mxu0 0.0
        %5757 = vmatprep.subr.mxu0 0.0
        %5758 = vmatpush1.msra.mxu0 0.0
        %5759 = vmatprep.subr.mxu0 0.0
        %5760 = vmatpush1.msra.mxu0 0.0
        %5761 = vmatprep.subr.mxu0 0.0
        %5762 = vmatpush1.msra.mxu0 0.0
        %5763 = vmatprep.subr.mxu0 0.0
        %5764 = vmatpush1.msra.mxu0 0.0
        %5765 = vmatprep.subr.mxu0 0.0
        %5766 = vmatpush1.msra.mxu0 0.0
        %5767 = vmatprep.subr.mxu0 0.0
        %5768 = vmatpush1.msra.mxu0 0.0
        %5769 = vmatprep.subr.mxu0 0.0
        %5770 = vmatpush1.msra.mxu0 0.0
        %5771 = vmatprep.subr.mxu0 0.0
        %5772 = vmatpush1.msra.mxu0 %v5646
        %5773 = vmatprep.subr.mxu0 0.0
        %5774 = vmatpush2.msra.mxu0 0.0
        %5775 = vmatprep.subr.mxu0 0.0
        %5776 = vmatpush2.msra.mxu0 0.0
        %5777 = vmatprep.subr.mxu0 0.0
        %5778 = vmatpush2.msra.mxu0 0.0
        %5779 = vmatprep.subr.mxu0 0.0
        %5780 = vmatpush2.msra.mxu0 0.0
        %5781 = vmatprep.subr.mxu0 0.0
        %5782 = vmatpush2.msra.mxu0 0.0
        %5783 = vmatprep.subr.mxu0 0.0
        %5784 = vmatpush2.msra.mxu0 0.0
        %5785 = vmatprep.subr.mxu0 0.0
        %5786 = vmatpush2.msra.mxu0 0.0
        %5787 = vmatprep.subr.mxu0 0.0
        %5788 = vmatpush2.msra.mxu0 0.0
        %5789 = vmatprep.subr.mxu0 0.0
        %5790 = vmatpush2.msra.mxu0 0.0
        %5791 = vmatprep.subr.mxu0 0.0
        %5792 = vmatpush2.msra.mxu0 0.0
        %5793 = vmatprep.subr.mxu0 0.0
        %5794 = vmatpush2.msra.mxu0 0.0
        %5795 = vmatprep.subr.mxu0 0.0
        %5796 = vmatpush2.msra.mxu0 0.0
        %5797 = vmatprep.subr.mxu0 0.0
        %5798 = vmatpush2.msra.mxu0 0.0
        %5799 = vmatprep.subr.mxu0 0.0
        %5800 = vmatpush2.msra.mxu0 0.0
        %5801 = vmatprep.subr.mxu0 0.0
        %5802 = vmatpush2.msra.mxu0 0.0
        %5803 = vmatprep.subr.mxu0 0.0
        %5804 = vmatpush2.msra.mxu0 0.0
        %5805 = vmatprep.mubr.f32.mxu0 0.0
        %5806 = vmatmul.mubr.f32.gmra.mxu0 %v5739
        %v5807 = vpop.f32.mrf.mxu0
        %v5808 = vadd.f32 0.0, %v5807
        %v5809 = vpop.f32.mrf.mxu0
        %5810 = vdwg.mxu0
        %v5812 = vsel %vm3272, %v5550, 0
        %5814 = vmatprep.subr.mxu0 0.0
        %5815 = vmatpush1.msra.mxu0 0.0
        %5816 = vmatprep.subr.mxu0 0.0
        %5817 = vmatpush1.msra.mxu0 0.0
        %5818 = vmatprep.subr.mxu0 0.0
        %5819 = vmatpush1.msra.mxu0 0.0
        %5820 = vmatprep.subr.mxu0 0.0
        %5821 = vmatpush1.msra.mxu0 0.0
        %5822 = vmatprep.subr.mxu0 0.0
        %5823 = vmatpush1.msra.mxu0 0.0
        %5824 = vmatprep.subr.mxu0 0.0
        %5825 = vmatpush1.msra.mxu0 0.0
        %5826 = vmatprep.subr.mxu0 0.0
        %5827 = vmatpush1.msra.mxu0 0.0
        %5828 = vmatprep.subr.mxu0 0.0
        %5829 = vmatpush1.msra.mxu0 0.0
        %5830 = vmatprep.subr.mxu0 0.0
        %5831 = vmatpush1.msra.mxu0 0.0
        %5832 = vmatprep.subr.mxu0 0.0
        %5833 = vmatpush1.msra.mxu0 0.0
        %5834 = vmatprep.subr.mxu0 0.0
        %5835 = vmatpush1.msra.mxu0 0.0
        %5836 = vmatprep.subr.mxu0 0.0
        %5837 = vmatpush1.msra.mxu0 0.0
        %5838 = vmatprep.subr.mxu0 0.0
        %5839 = vmatpush1.msra.mxu0 0.0
        %5840 = vmatprep.subr.mxu0 0.0
        %5841 = vmatpush1.msra.mxu0 0.0
        %5842 = vmatprep.subr.mxu0 0.0
        %5843 = vmatpush1.msra.mxu0 0.0
        %5844 = vmatprep.subr.mxu0 0.0
        %5845 = vmatpush1.msra.mxu0 %v5647
        %5846 = vmatprep.subr.mxu0 0.0
        %5847 = vmatpush2.msra.mxu0 0.0
        %5848 = vmatprep.subr.mxu0 0.0
        %5849 = vmatpush2.msra.mxu0 0.0
        %5850 = vmatprep.subr.mxu0 0.0
        %5851 = vmatpush2.msra.mxu0 0.0
        %5852 = vmatprep.subr.mxu0 0.0
        %5853 = vmatpush2.msra.mxu0 0.0
        %5854 = vmatprep.subr.mxu0 0.0
        %5855 = vmatpush2.msra.mxu0 0.0
        %5856 = vmatprep.subr.mxu0 0.0
        %5857 = vmatpush2.msra.mxu0 0.0
        %5858 = vmatprep.subr.mxu0 0.0
        %5859 = vmatpush2.msra.mxu0 0.0
        %5860 = vmatprep.subr.mxu0 0.0
        %5861 = vmatpush2.msra.mxu0 0.0
        %5862 = vmatprep.subr.mxu0 0.0
        %5863 = vmatpush2.msra.mxu0 0.0
        %5864 = vmatprep.subr.mxu0 0.0
        %5865 = vmatpush2.msra.mxu0 0.0
        %5866 = vmatprep.subr.mxu0 0.0
        %5867 = vmatpush2.msra.mxu0 0.0
        %5868 = vmatprep.subr.mxu0 0.0
        %5869 = vmatpush2.msra.mxu0 0.0
        %5870 = vmatprep.subr.mxu0 0.0
        %5871 = vmatpush2.msra.mxu0 0.0
        %5872 = vmatprep.subr.mxu0 0.0
        %5873 = vmatpush2.msra.mxu0 0.0
        %5874 = vmatprep.subr.mxu0 0.0
        %5875 = vmatpush2.msra.mxu0 0.0
        %5876 = vmatprep.subr.mxu0 0.0
        %5877 = vmatpush2.msra.mxu0 0.0
        %5878 = vmatprep.mubr.f32.mxu0 0.0
        %5879 = vmatmul.mubr.f32.gmra.mxu0 %v5812
        %v5880 = vpop.f32.mrf.mxu0
        %v5881 = vadd.f32 0.0, %v5880
        %v5882 = vpop.f32.mrf.mxu0
        %5883 = vdwg.mxu0
        %v5885 = vsel %vm3272, %v5552, 0
        %5887 = vmatprep.subr.mxu0 0.0
        %5888 = vmatpush1.msra.mxu0 0.0
        %5889 = vmatprep.subr.mxu0 0.0
        %5890 = vmatpush1.msra.mxu0 0.0
        %5891 = vmatprep.subr.mxu0 0.0
        %5892 = vmatpush1.msra.mxu0 0.0
        %5893 = vmatprep.subr.mxu0 0.0
        %5894 = vmatpush1.msra.mxu0 0.0
        %5895 = vmatprep.subr.mxu0 0.0
        %5896 = vmatpush1.msra.mxu0 0.0
        %5897 = vmatprep.subr.mxu0 0.0
        %5898 = vmatpush1.msra.mxu0 0.0
        %5899 = vmatprep.subr.mxu0 0.0
        %5900 = vmatpush1.msra.mxu0 0.0
        %5901 = vmatprep.subr.mxu0 0.0
        %5902 = vmatpush1.msra.mxu0 0.0
        %5903 = vmatprep.subr.mxu0 0.0
        %5904 = vmatpush1.msra.mxu0 0.0
        %5905 = vmatprep.subr.mxu0 0.0
        %5906 = vmatpush1.msra.mxu0 0.0
        %5907 = vmatprep.subr.mxu0 0.0
        %5908 = vmatpush1.msra.mxu0 0.0
        %5909 = vmatprep.subr.mxu0 0.0
        %5910 = vmatpush1.msra.mxu0 0.0
        %5911 = vmatprep.subr.mxu0 0.0
        %5912 = vmatpush1.msra.mxu0 0.0
        %5913 = vmatprep.subr.mxu0 0.0
        %5914 = vmatpush1.msra.mxu0 0.0
        %5915 = vmatprep.subr.mxu0 0.0
        %5916 = vmatpush1.msra.mxu0 0.0
        %5917 = vmatprep.subr.mxu0 0.0
        %5918 = vmatpush1.msra.mxu0 %v5648
        %5919 = vmatprep.subr.mxu0 0.0
        %5920 = vmatpush2.msra.mxu0 0.0
        %5921 = vmatprep.subr.mxu0 0.0
        %5922 = vmatpush2.msra.mxu0 0.0
        %5923 = vmatprep.subr.mxu0 0.0
        %5924 = vmatpush2.msra.mxu0 0.0
        %5925 = vmatprep.subr.mxu0 0.0
        %5926 = vmatpush2.msra.mxu0 0.0
        %5927 = vmatprep.subr.mxu0 0.0
        %5928 = vmatpush2.msra.mxu0 0.0
        %5929 = vmatprep.subr.mxu0 0.0
        %5930 = vmatpush2.msra.mxu0 0.0
        %5931 = vmatprep.subr.mxu0 0.0
        %5932 = vmatpush2.msra.mxu0 0.0
        %5933 = vmatprep.subr.mxu0 0.0
        %5934 = vmatpush2.msra.mxu0 0.0
        %5935 = vmatprep.subr.mxu0 0.0
        %5936 = vmatpush2.msra.mxu0 0.0
        %5937 = vmatprep.subr.mxu0 0.0
        %5938 = vmatpush2.msra.mxu0 0.0
        %5939 = vmatprep.subr.mxu0 0.0
        %5940 = vmatpush2.msra.mxu0 0.0
        %5941 = vmatprep.subr.mxu0 0.0
        %5942 = vmatpush2.msra.mxu0 0.0
        %5943 = vmatprep.subr.mxu0 0.0
        %5944 = vmatpush2.msra.mxu0 0.0
        %5945 = vmatprep.subr.mxu0 0.0
        %5946 = vmatpush2.msra.mxu0 0.0
        %5947 = vmatprep.subr.mxu0 0.0
        %5948 = vmatpush2.msra.mxu0 0.0
        %5949 = vmatprep.subr.mxu0 0.0
        %5950 = vmatpush2.msra.mxu0 0.0
        %5951 = vmatprep.mubr.f32.mxu0 0.0
        %5952 = vmatmul.mubr.f32.gmra.mxu0 %v5885
        %v5953 = vpop.f32.mrf.mxu0
        %v5954 = vadd.f32 0.0, %v5953
        %v5955 = vpop.f32.mrf.mxu0
        %5956 = vdwg.mxu0
        %v5958 = vsel %vm3272, %v5554, 0
        %5960 = vmatprep.subr.mxu0 0.0
        %5961 = vmatpush1.msra.mxu0 0.0
        %5962 = vmatprep.subr.mxu0 0.0
        %5963 = vmatpush1.msra.mxu0 0.0
        %5964 = vmatprep.subr.mxu0 0.0
        %5965 = vmatpush1.msra.mxu0 0.0
        %5966 = vmatprep.subr.mxu0 0.0
        %5967 = vmatpush1.msra.mxu0 0.0
        %5968 = vmatprep.subr.mxu0 0.0
        %5969 = vmatpush1.msra.mxu0 0.0
        %5970 = vmatprep.subr.mxu0 0.0
        %5971 = vmatpush1.msra.mxu0 0.0
        %5972 = vmatprep.subr.mxu0 0.0
        %5973 = vmatpush1.msra.mxu0 0.0
        %5974 = vmatprep.subr.mxu0 0.0
        %5975 = vmatpush1.msra.mxu0 0.0
        %5976 = vmatprep.subr.mxu0 0.0
        %5977 = vmatpush1.msra.mxu0 0.0
        %5978 = vmatprep.subr.mxu0 0.0
        %5979 = vmatpush1.msra.mxu0 0.0
        %5980 = vmatprep.subr.mxu0 0.0
        %5981 = vmatpush1.msra.mxu0 0.0
        %5982 = vmatprep.subr.mxu0 0.0
        %5983 = vmatpush1.msra.mxu0 0.0
        %5984 = vmatprep.subr.mxu0 0.0
        %5985 = vmatpush1.msra.mxu0 0.0
        %5986 = vmatprep.subr.mxu0 0.0
        %5987 = vmatpush1.msra.mxu0 0.0
        %5988 = vmatprep.subr.mxu0 0.0
        %5989 = vmatpush1.msra.mxu0 0.0
        %5990 = vmatprep.subr.mxu0 0.0
        %5991 = vmatpush1.msra.mxu0 %v5649
        %5992 = vmatprep.subr.mxu0 0.0
        %5993 = vmatpush2.msra.mxu0 0.0
        %5994 = vmatprep.subr.mxu0 0.0
        %5995 = vmatpush2.msra.mxu0 0.0
        %5996 = vmatprep.subr.mxu0 0.0
        %5997 = vmatpush2.msra.mxu0 0.0
        %5998 = vmatprep.subr.mxu0 0.0
        %5999 = vmatpush2.msra.mxu0 0.0
        %6000 = vmatprep.subr.mxu0 0.0
        %6001 = vmatpush2.msra.mxu0 0.0
        %6002 = vmatprep.subr.mxu0 0.0
        %6003 = vmatpush2.msra.mxu0 0.0
        %6004 = vmatprep.subr.mxu0 0.0
        %6005 = vmatpush2.msra.mxu0 0.0
        %6006 = vmatprep.subr.mxu0 0.0
        %6007 = vmatpush2.msra.mxu0 0.0
        %6008 = vmatprep.subr.mxu0 0.0
        %6009 = vmatpush2.msra.mxu0 0.0
        %6010 = vmatprep.subr.mxu0 0.0
        %6011 = vmatpush2.msra.mxu0 0.0
        %6012 = vmatprep.subr.mxu0 0.0
        %6013 = vmatpush2.msra.mxu0 0.0
        %6014 = vmatprep.subr.mxu0 0.0
        %6015 = vmatpush2.msra.mxu0 0.0
        %6016 = vmatprep.subr.mxu0 0.0
        %6017 = vmatpush2.msra.mxu0 0.0
        %6018 = vmatprep.subr.mxu0 0.0
        %6019 = vmatpush2.msra.mxu0 0.0
        %6020 = vmatprep.subr.mxu0 0.0
        %6021 = vmatpush2.msra.mxu0 0.0
        %6022 = vmatprep.subr.mxu0 0.0
        %6023 = vmatpush2.msra.mxu0 0.0
        %6024 = vmatprep.mubr.f32.mxu0 0.0
        %6025 = vmatmul.mubr.f32.gmra.mxu0 %v5958
        %v6026 = vpop.f32.mrf.mxu0
        %v6027 = vadd.f32 0.0, %v6026
        %v6028 = vpop.f32.mrf.mxu0
        %6029 = vdwg.mxu0
        %v6031 = vsel %vm3272, %v5556, 0
        %6033 = vmatprep.subr.mxu0 0.0
        %6034 = vmatpush1.msra.mxu0 0.0
        %6035 = vmatprep.subr.mxu0 0.0
        %6036 = vmatpush1.msra.mxu0 0.0
        %6037 = vmatprep.subr.mxu0 0.0
        %6038 = vmatpush1.msra.mxu0 0.0
        %6039 = vmatprep.subr.mxu0 0.0
        %6040 = vmatpush1.msra.mxu0 0.0
        %6041 = vmatprep.subr.mxu0 0.0
        %6042 = vmatpush1.msra.mxu0 0.0
        %6043 = vmatprep.subr.mxu0 0.0
        %6044 = vmatpush1.msra.mxu0 0.0
        %6045 = vmatprep.subr.mxu0 0.0
        %6046 = vmatpush1.msra.mxu0 0.0
        %6047 = vmatprep.subr.mxu0 0.0
        %6048 = vmatpush1.msra.mxu0 0.0
        %6049 = vmatprep.subr.mxu0 0.0
        %6050 = vmatpush1.msra.mxu0 0.0
        %6051 = vmatprep.subr.mxu0 0.0
        %6052 = vmatpush1.msra.mxu0 0.0
        %6053 = vmatprep.subr.mxu0 0.0
        %6054 = vmatpush1.msra.mxu0 0.0
        %6055 = vmatprep.subr.mxu0 0.0
        %6056 = vmatpush1.msra.mxu0 0.0
        %6057 = vmatprep.subr.mxu0 0.0
        %6058 = vmatpush1.msra.mxu0 0.0
        %6059 = vmatprep.subr.mxu0 0.0
        %6060 = vmatpush1.msra.mxu0 0.0
        %6061 = vmatprep.subr.mxu0 0.0
        %6062 = vmatpush1.msra.mxu0 0.0
        %6063 = vmatprep.subr.mxu0 0.0
        %6064 = vmatpush1.msra.mxu0 %v5650
        %6065 = vmatprep.subr.mxu0 0.0
        %6066 = vmatpush2.msra.mxu0 0.0
        %6067 = vmatprep.subr.mxu0 0.0
        %6068 = vmatpush2.msra.mxu0 0.0
        %6069 = vmatprep.subr.mxu0 0.0
        %6070 = vmatpush2.msra.mxu0 0.0
        %6071 = vmatprep.subr.mxu0 0.0
        %6072 = vmatpush2.msra.mxu0 0.0
        %6073 = vmatprep.subr.mxu0 0.0
        %6074 = vmatpush2.msra.mxu0 0.0
        %6075 = vmatprep.subr.mxu0 0.0
        %6076 = vmatpush2.msra.mxu0 0.0
        %6077 = vmatprep.subr.mxu0 0.0
        %6078 = vmatpush2.msra.mxu0 0.0
        %6079 = vmatprep.subr.mxu0 0.0
        %6080 = vmatpush2.msra.mxu0 0.0
        %6081 = vmatprep.subr.mxu0 0.0
        %6082 = vmatpush2.msra.mxu0 0.0
        %6083 = vmatprep.subr.mxu0 0.0
        %6084 = vmatpush2.msra.mxu0 0.0
        %6085 = vmatprep.subr.mxu0 0.0
        %6086 = vmatpush2.msra.mxu0 0.0
        %6087 = vmatprep.subr.mxu0 0.0
        %6088 = vmatpush2.msra.mxu0 0.0
        %6089 = vmatprep.subr.mxu0 0.0
        %6090 = vmatpush2.msra.mxu0 0.0
        %6091 = vmatprep.subr.mxu0 0.0
        %6092 = vmatpush2.msra.mxu0 0.0
        %6093 = vmatprep.subr.mxu0 0.0
        %6094 = vmatpush2.msra.mxu0 0.0
        %6095 = vmatprep.subr.mxu0 0.0
        %6096 = vmatpush2.msra.mxu0 0.0
        %6097 = vmatprep.mubr.f32.mxu0 0.0
        %6098 = vmatmul.mubr.f32.gmra.mxu0 %v6031
        %v6099 = vpop.f32.mrf.mxu0
        %v6100 = vadd.f32 0.0, %v6099
        %v6101 = vpop.f32.mrf.mxu0
        %6102 = vdwg.mxu0
        %v6104 = vsel %vm3272, %v5558, 0
        %6106 = vmatprep.subr.mxu0 0.0
        %6107 = vmatpush1.msra.mxu0 0.0
        %6108 = vmatprep.subr.mxu0 0.0
        %6109 = vmatpush1.msra.mxu0 0.0
        %6110 = vmatprep.subr.mxu0 0.0
        %6111 = vmatpush1.msra.mxu0 0.0
        %6112 = vmatprep.subr.mxu0 0.0
        %6113 = vmatpush1.msra.mxu0 0.0
        %6114 = vmatprep.subr.mxu0 0.0
        %6115 = vmatpush1.msra.mxu0 0.0
        %6116 = vmatprep.subr.mxu0 0.0
        %6117 = vmatpush1.msra.mxu0 0.0
        %6118 = vmatprep.subr.mxu0 0.0
        %6119 = vmatpush1.msra.mxu0 0.0
        %6120 = vmatprep.subr.mxu0 0.0
        %6121 = vmatpush1.msra.mxu0 0.0
        %6122 = vmatprep.subr.mxu0 0.0
        %6123 = vmatpush1.msra.mxu0 0.0
        %6124 = vmatprep.subr.mxu0 0.0
        %6125 = vmatpush1.msra.mxu0 0.0
        %6126 = vmatprep.subr.mxu0 0.0
        %6127 = vmatpush1.msra.mxu0 0.0
        %6128 = vmatprep.subr.mxu0 0.0
        %6129 = vmatpush1.msra.mxu0 0.0
        %6130 = vmatprep.subr.mxu0 0.0
        %6131 = vmatpush1.msra.mxu0 0.0
        %6132 = vmatprep.subr.mxu0 0.0
        %6133 = vmatpush1.msra.mxu0 0.0
        %6134 = vmatprep.subr.mxu0 0.0
        %6135 = vmatpush1.msra.mxu0 0.0
        %6136 = vmatprep.subr.mxu0 0.0
        %6137 = vmatpush1.msra.mxu0 %v5651
        %6138 = vmatprep.subr.mxu0 0.0
        %6139 = vmatpush2.msra.mxu0 0.0
        %6140 = vmatprep.subr.mxu0 0.0
        %6141 = vmatpush2.msra.mxu0 0.0
        %6142 = vmatprep.subr.mxu0 0.0
        %6143 = vmatpush2.msra.mxu0 0.0
        %6144 = vmatprep.subr.mxu0 0.0
        %6145 = vmatpush2.msra.mxu0 0.0
        %6146 = vmatprep.subr.mxu0 0.0
        %6147 = vmatpush2.msra.mxu0 0.0
        %6148 = vmatprep.subr.mxu0 0.0
        %6149 = vmatpush2.msra.mxu0 0.0
        %6150 = vmatprep.subr.mxu0 0.0
        %6151 = vmatpush2.msra.mxu0 0.0
        %6152 = vmatprep.subr.mxu0 0.0
        %6153 = vmatpush2.msra.mxu0 0.0
        %6154 = vmatprep.subr.mxu0 0.0
        %6155 = vmatpush2.msra.mxu0 0.0
        %6156 = vmatprep.subr.mxu0 0.0
        %6157 = vmatpush2.msra.mxu0 0.0
        %6158 = vmatprep.subr.mxu0 0.0
        %6159 = vmatpush2.msra.mxu0 0.0
        %6160 = vmatprep.subr.mxu0 0.0
        %6161 = vmatpush2.msra.mxu0 0.0
        %6162 = vmatprep.subr.mxu0 0.0
        %6163 = vmatpush2.msra.mxu0 0.0
        %6164 = vmatprep.subr.mxu0 0.0
        %6165 = vmatpush2.msra.mxu0 0.0
        %6166 = vmatprep.subr.mxu0 0.0
        %6167 = vmatpush2.msra.mxu0 0.0
        %6168 = vmatprep.subr.mxu0 0.0
        %6169 = vmatpush2.msra.mxu0 0.0
        %6170 = vmatprep.mubr.f32.mxu0 0.0
        %6171 = vmatmul.mubr.f32.gmra.mxu0 %v6104
        %v6172 = vpop.f32.mrf.mxu0
        %v6173 = vadd.f32 0.0, %v6172
        %v6174 = vpop.f32.mrf.mxu0
        %6175 = vdwg.mxu0
        %v6177 = vsel %vm3272, %v5560, 0
        %6179 = vmatprep.subr.mxu0 0.0
        %6180 = vmatpush1.msra.mxu0 0.0
        %6181 = vmatprep.subr.mxu0 0.0
        %6182 = vmatpush1.msra.mxu0 0.0
        %6183 = vmatprep.subr.mxu0 0.0
        %6184 = vmatpush1.msra.mxu0 0.0
        %6185 = vmatprep.subr.mxu0 0.0
        %6186 = vmatpush1.msra.mxu0 0.0
        %6187 = vmatprep.subr.mxu0 0.0
        %6188 = vmatpush1.msra.mxu0 0.0
        %6189 = vmatprep.subr.mxu0 0.0
        %6190 = vmatpush1.msra.mxu0 0.0
        %6191 = vmatprep.subr.mxu0 0.0
        %6192 = vmatpush1.msra.mxu0 0.0
        %6193 = vmatprep.subr.mxu0 0.0
        %6194 = vmatpush1.msra.mxu0 0.0
        %6195 = vmatprep.subr.mxu0 0.0
        %6196 = vmatpush1.msra.mxu0 0.0
        %6197 = vmatprep.subr.mxu0 0.0
        %6198 = vmatpush1.msra.mxu0 0.0
        %6199 = vmatprep.subr.mxu0 0.0
        %6200 = vmatpush1.msra.mxu0 0.0
        %6201 = vmatprep.subr.mxu0 0.0
        %6202 = vmatpush1.msra.mxu0 0.0
        %6203 = vmatprep.subr.mxu0 0.0
        %6204 = vmatpush1.msra.mxu0 0.0
        %6205 = vmatprep.subr.mxu0 0.0
        %6206 = vmatpush1.msra.mxu0 0.0
        %6207 = vmatprep.subr.mxu0 0.0
        %6208 = vmatpush1.msra.mxu0 0.0
        %6209 = vmatprep.subr.mxu0 0.0
        %6210 = vmatpush1.msra.mxu0 %v5652
        %6211 = vmatprep.subr.mxu0 0.0
        %6212 = vmatpush2.msra.mxu0 0.0
        %6213 = vmatprep.subr.mxu0 0.0
        %6214 = vmatpush2.msra.mxu0 0.0
        %6215 = vmatprep.subr.mxu0 0.0
        %6216 = vmatpush2.msra.mxu0 0.0
        %6217 = vmatprep.subr.mxu0 0.0
        %6218 = vmatpush2.msra.mxu0 0.0
        %6219 = vmatprep.subr.mxu0 0.0
        %6220 = vmatpush2.msra.mxu0 0.0
        %6221 = vmatprep.subr.mxu0 0.0
        %6222 = vmatpush2.msra.mxu0 0.0
        %6223 = vmatprep.subr.mxu0 0.0
        %6224 = vmatpush2.msra.mxu0 0.0
        %6225 = vmatprep.subr.mxu0 0.0
        %6226 = vmatpush2.msra.mxu0 0.0
        %6227 = vmatprep.subr.mxu0 0.0
        %6228 = vmatpush2.msra.mxu0 0.0
        %6229 = vmatprep.subr.mxu0 0.0
        %6230 = vmatpush2.msra.mxu0 0.0
        %6231 = vmatprep.subr.mxu0 0.0
        %6232 = vmatpush2.msra.mxu0 0.0
        %6233 = vmatprep.subr.mxu0 0.0
        %6234 = vmatpush2.msra.mxu0 0.0
        %6235 = vmatprep.subr.mxu0 0.0
        %6236 = vmatpush2.msra.mxu0 0.0
        %6237 = vmatprep.subr.mxu0 0.0
        %6238 = vmatpush2.msra.mxu0 0.0
        %6239 = vmatprep.subr.mxu0 0.0
        %6240 = vmatpush2.msra.mxu0 0.0
        %6241 = vmatprep.subr.mxu0 0.0
        %6242 = vmatpush2.msra.mxu0 0.0
        %6243 = vmatprep.mubr.f32.mxu0 0.0
        %6244 = vmatmul.mubr.f32.gmra.mxu0 %v6177
        %v6245 = vpop.f32.mrf.mxu0
        %v6246 = vadd.f32 0.0, %v6245
        %v6247 = vpop.f32.mrf.mxu0
        %6248 = vdwg.mxu0
        %v6250 = vsel %vm3272, %v5562, 0
        %6252 = vmatprep.subr.mxu0 0.0
        %6253 = vmatpush1.msra.mxu0 0.0
        %6254 = vmatprep.subr.mxu0 0.0
        %6255 = vmatpush1.msra.mxu0 0.0
        %6256 = vmatprep.subr.mxu0 0.0
        %6257 = vmatpush1.msra.mxu0 0.0
        %6258 = vmatprep.subr.mxu0 0.0
        %6259 = vmatpush1.msra.mxu0 0.0
        %6260 = vmatprep.subr.mxu0 0.0
        %6261 = vmatpush1.msra.mxu0 0.0
        %6262 = vmatprep.subr.mxu0 0.0
        %6263 = vmatpush1.msra.mxu0 0.0
        %6264 = vmatprep.subr.mxu0 0.0
        %6265 = vmatpush1.msra.mxu0 0.0
        %6266 = vmatprep.subr.mxu0 0.0
        %6267 = vmatpush1.msra.mxu0 0.0
        %6268 = vmatprep.subr.mxu0 0.0
        %6269 = vmatpush1.msra.mxu0 0.0
        %6270 = vmatprep.subr.mxu0 0.0
        %6271 = vmatpush1.msra.mxu0 0.0
        %6272 = vmatprep.subr.mxu0 0.0
        %6273 = vmatpush1.msra.mxu0 0.0
        %6274 = vmatprep.subr.mxu0 0.0
        %6275 = vmatpush1.msra.mxu0 0.0
        %6276 = vmatprep.subr.mxu0 0.0
        %6277 = vmatpush1.msra.mxu0 0.0
        %6278 = vmatprep.subr.mxu0 0.0
        %6279 = vmatpush1.msra.mxu0 0.0
        %6280 = vmatprep.subr.mxu0 0.0
        %6281 = vmatpush1.msra.mxu0 0.0
        %6282 = vmatprep.subr.mxu0 0.0
        %6283 = vmatpush1.msra.mxu0 %v5653
        %6284 = vmatprep.subr.mxu0 0.0
        %6285 = vmatpush2.msra.mxu0 0.0
        %6286 = vmatprep.subr.mxu0 0.0
        %6287 = vmatpush2.msra.mxu0 0.0
        %6288 = vmatprep.subr.mxu0 0.0
        %6289 = vmatpush2.msra.mxu0 0.0
        %6290 = vmatprep.subr.mxu0 0.0
        %6291 = vmatpush2.msra.mxu0 0.0
        %6292 = vmatprep.subr.mxu0 0.0
        %6293 = vmatpush2.msra.mxu0 0.0
        %6294 = vmatprep.subr.mxu0 0.0
        %6295 = vmatpush2.msra.mxu0 0.0
        %6296 = vmatprep.subr.mxu0 0.0
        %6297 = vmatpush2.msra.mxu0 0.0
        %6298 = vmatprep.subr.mxu0 0.0
        %6299 = vmatpush2.msra.mxu0 0.0
        %6300 = vmatprep.subr.mxu0 0.0
        %6301 = vmatpush2.msra.mxu0 0.0
        %6302 = vmatprep.subr.mxu0 0.0
        %6303 = vmatpush2.msra.mxu0 0.0
        %6304 = vmatprep.subr.mxu0 0.0
        %6305 = vmatpush2.msra.mxu0 0.0
        %6306 = vmatprep.subr.mxu0 0.0
        %6307 = vmatpush2.msra.mxu0 0.0
        %6308 = vmatprep.subr.mxu0 0.0
        %6309 = vmatpush2.msra.mxu0 0.0
        %6310 = vmatprep.subr.mxu0 0.0
        %6311 = vmatpush2.msra.mxu0 0.0
        %6312 = vmatprep.subr.mxu0 0.0
        %6313 = vmatpush2.msra.mxu0 0.0
        %6314 = vmatprep.subr.mxu0 0.0
        %6315 = vmatpush2.msra.mxu0 0.0
        %6316 = vmatprep.mubr.f32.mxu0 0.0
        %6317 = vmatmul.mubr.f32.gmra.mxu0 %v6250
        %v6318 = vpop.f32.mrf.mxu0
        %v6319 = vadd.f32 0.0, %v6318
        %v6320 = vpop.f32.mrf.mxu0
        %6321 = vdwg.mxu0
        %v6323 = vsel %vm3272, %v5564, 0
        %6325 = vmatprep.subr.mxu0 0.0
        %6326 = vmatpush1.msra.mxu0 0.0
        %6327 = vmatprep.subr.mxu0 0.0
        %6328 = vmatpush1.msra.mxu0 0.0
        %6329 = vmatprep.subr.mxu0 0.0
        %6330 = vmatpush1.msra.mxu0 0.0
        %6331 = vmatprep.subr.mxu0 0.0
        %6332 = vmatpush1.msra.mxu0 0.0
        %6333 = vmatprep.subr.mxu0 0.0
        %6334 = vmatpush1.msra.mxu0 0.0
        %6335 = vmatprep.subr.mxu0 0.0
        %6336 = vmatpush1.msra.mxu0 0.0
        %6337 = vmatprep.subr.mxu0 0.0
        %6338 = vmatpush1.msra.mxu0 0.0
        %6339 = vmatprep.subr.mxu0 0.0
        %6340 = vmatpush1.msra.mxu0 0.0
        %6341 = vmatprep.subr.mxu0 0.0
        %6342 = vmatpush1.msra.mxu0 0.0
        %6343 = vmatprep.subr.mxu0 0.0
        %6344 = vmatpush1.msra.mxu0 0.0
        %6345 = vmatprep.subr.mxu0 0.0
        %6346 = vmatpush1.msra.mxu0 0.0
        %6347 = vmatprep.subr.mxu0 0.0
        %6348 = vmatpush1.msra.mxu0 0.0
        %6349 = vmatprep.subr.mxu0 0.0
        %6350 = vmatpush1.msra.mxu0 0.0
        %6351 = vmatprep.subr.mxu0 0.0
        %6352 = vmatpush1.msra.mxu0 0.0
        %6353 = vmatprep.subr.mxu0 0.0
        %6354 = vmatpush1.msra.mxu0 0.0
        %6355 = vmatprep.subr.mxu0 0.0
        %6356 = vmatpush1.msra.mxu0 %v5654
        %6357 = vmatprep.subr.mxu0 0.0
        %6358 = vmatpush2.msra.mxu0 0.0
        %6359 = vmatprep.subr.mxu0 0.0
        %6360 = vmatpush2.msra.mxu0 0.0
        %6361 = vmatprep.subr.mxu0 0.0
        %6362 = vmatpush2.msra.mxu0 0.0
        %6363 = vmatprep.subr.mxu0 0.0
        %6364 = vmatpush2.msra.mxu0 0.0
        %6365 = vmatprep.subr.mxu0 0.0
        %6366 = vmatpush2.msra.mxu0 0.0
        %6367 = vmatprep.subr.mxu0 0.0
        %6368 = vmatpush2.msra.mxu0 0.0
        %6369 = vmatprep.subr.mxu0 0.0
        %6370 = vmatpush2.msra.mxu0 0.0
        %6371 = vmatprep.subr.mxu0 0.0
        %6372 = vmatpush2.msra.mxu0 0.0
        %6373 = vmatprep.subr.mxu0 0.0
        %6374 = vmatpush2.msra.mxu0 0.0
        %6375 = vmatprep.subr.mxu0 0.0
        %6376 = vmatpush2.msra.mxu0 0.0
        %6377 = vmatprep.subr.mxu0 0.0
        %6378 = vmatpush2.msra.mxu0 0.0
        %6379 = vmatprep.subr.mxu0 0.0
        %6380 = vmatpush2.msra.mxu0 0.0
        %6381 = vmatprep.subr.mxu0 0.0
        %6382 = vmatpush2.msra.mxu0 0.0
        %6383 = vmatprep.subr.mxu0 0.0
        %6384 = vmatpush2.msra.mxu0 0.0
        %6385 = vmatprep.subr.mxu0 0.0
        %6386 = vmatpush2.msra.mxu0 0.0
        %6387 = vmatprep.subr.mxu0 0.0
        %6388 = vmatpush2.msra.mxu0 0.0
        %6389 = vmatprep.mubr.f32.mxu0 0.0
        %6390 = vmatmul.mubr.f32.gmra.mxu0 %v6323
        %v6391 = vpop.f32.mrf.mxu0
        %v6392 = vadd.f32 0.0, %v6391
        %v6393 = vpop.f32.mrf.mxu0
        %6394 = vdwg.mxu0
        %v6396 = vsel %vm3272, %v5566, 0
        %6398 = vmatprep.subr.mxu0 0.0
        %6399 = vmatpush1.msra.mxu0 0.0
        %6400 = vmatprep.subr.mxu0 0.0
        %6401 = vmatpush1.msra.mxu0 0.0
        %6402 = vmatprep.subr.mxu0 0.0
        %6403 = vmatpush1.msra.mxu0 0.0
        %6404 = vmatprep.subr.mxu0 0.0
        %6405 = vmatpush1.msra.mxu0 0.0
        %6406 = vmatprep.subr.mxu0 0.0
        %6407 = vmatpush1.msra.mxu0 0.0
        %6408 = vmatprep.subr.mxu0 0.0
        %6409 = vmatpush1.msra.mxu0 0.0
        %6410 = vmatprep.subr.mxu0 0.0
        %6411 = vmatpush1.msra.mxu0 0.0
        %6412 = vmatprep.subr.mxu0 0.0
        %6413 = vmatpush1.msra.mxu0 0.0
        %6414 = vmatprep.subr.mxu0 0.0
        %6415 = vmatpush1.msra.mxu0 0.0
        %6416 = vmatprep.subr.mxu0 0.0
        %6417 = vmatpush1.msra.mxu0 0.0
        %6418 = vmatprep.subr.mxu0 0.0
        %6419 = vmatpush1.msra.mxu0 0.0
        %6420 = vmatprep.subr.mxu0 0.0
        %6421 = vmatpush1.msra.mxu0 0.0
        %6422 = vmatprep.subr.mxu0 0.0
        %6423 = vmatpush1.msra.mxu0 0.0
        %6424 = vmatprep.subr.mxu0 0.0
        %6425 = vmatpush1.msra.mxu0 0.0
        %6426 = vmatprep.subr.mxu0 0.0
        %6427 = vmatpush1.msra.mxu0 0.0
        %6428 = vmatprep.subr.mxu0 0.0
        %6429 = vmatpush1.msra.mxu0 %v5655
        %6430 = vmatprep.subr.mxu0 0.0
        %6431 = vmatpush2.msra.mxu0 0.0
        %6432 = vmatprep.subr.mxu0 0.0
        %6433 = vmatpush2.msra.mxu0 0.0
        %6434 = vmatprep.subr.mxu0 0.0
        %6435 = vmatpush2.msra.mxu0 0.0
        %6436 = vmatprep.subr.mxu0 0.0
        %6437 = vmatpush2.msra.mxu0 0.0
        %6438 = vmatprep.subr.mxu0 0.0
        %6439 = vmatpush2.msra.mxu0 0.0
        %6440 = vmatprep.subr.mxu0 0.0
        %6441 = vmatpush2.msra.mxu0 0.0
        %6442 = vmatprep.subr.mxu0 0.0
        %6443 = vmatpush2.msra.mxu0 0.0
        %6444 = vmatprep.subr.mxu0 0.0
        %6445 = vmatpush2.msra.mxu0 0.0
        %6446 = vmatprep.subr.mxu0 0.0
        %6447 = vmatpush2.msra.mxu0 0.0
        %6448 = vmatprep.subr.mxu0 0.0
        %6449 = vmatpush2.msra.mxu0 0.0
        %6450 = vmatprep.subr.mxu0 0.0
        %6451 = vmatpush2.msra.mxu0 0.0
        %6452 = vmatprep.subr.mxu0 0.0
        %6453 = vmatpush2.msra.mxu0 0.0
        %6454 = vmatprep.subr.mxu0 0.0
        %6455 = vmatpush2.msra.mxu0 0.0
        %6456 = vmatprep.subr.mxu0 0.0
        %6457 = vmatpush2.msra.mxu0 0.0
        %6458 = vmatprep.subr.mxu0 0.0
        %6459 = vmatpush2.msra.mxu0 0.0
        %6460 = vmatprep.subr.mxu0 0.0
        %6461 = vmatpush2.msra.mxu0 0.0
        %6462 = vmatprep.mubr.f32.mxu0 0.0
        %6463 = vmatmul.mubr.f32.gmra.mxu0 %v6396
        %v6464 = vpop.f32.mrf.mxu0
        %v6465 = vadd.f32 0.0, %v6464
        %v6466 = vpop.f32.mrf.mxu0
        %6467 = vdwg.mxu0
        %v6469 = vsel %vm3272, %v5568, 0
        %6471 = vmatprep.subr.mxu0 0.0
        %6472 = vmatpush1.msra.mxu0 0.0
        %6473 = vmatprep.subr.mxu0 0.0
        %6474 = vmatpush1.msra.mxu0 0.0
        %6475 = vmatprep.subr.mxu0 0.0
        %6476 = vmatpush1.msra.mxu0 0.0
        %6477 = vmatprep.subr.mxu0 0.0
        %6478 = vmatpush1.msra.mxu0 0.0
        %6479 = vmatprep.subr.mxu0 0.0
        %6480 = vmatpush1.msra.mxu0 0.0
        %6481 = vmatprep.subr.mxu0 0.0
        %6482 = vmatpush1.msra.mxu0 0.0
        %6483 = vmatprep.subr.mxu0 0.0
        %6484 = vmatpush1.msra.mxu0 0.0
        %6485 = vmatprep.subr.mxu0 0.0
        %6486 = vmatpush1.msra.mxu0 0.0
        %6487 = vmatprep.subr.mxu0 0.0
        %6488 = vmatpush1.msra.mxu0 0.0
        %6489 = vmatprep.subr.mxu0 0.0
        %6490 = vmatpush1.msra.mxu0 0.0
        %6491 = vmatprep.subr.mxu0 0.0
        %6492 = vmatpush1.msra.mxu0 0.0
        %6493 = vmatprep.subr.mxu0 0.0
        %6494 = vmatpush1.msra.mxu0 0.0
        %6495 = vmatprep.subr.mxu0 0.0
        %6496 = vmatpush1.msra.mxu0 0.0
        %6497 = vmatprep.subr.mxu0 0.0
        %6498 = vmatpush1.msra.mxu0 0.0
        %6499 = vmatprep.subr.mxu0 0.0
        %6500 = vmatpush1.msra.mxu0 0.0
        %6501 = vmatprep.subr.mxu0 0.0
        %6502 = vmatpush1.msra.mxu0 %v5656
        %6503 = vmatprep.subr.mxu0 0.0
        %6504 = vmatpush2.msra.mxu0 0.0
        %6505 = vmatprep.subr.mxu0 0.0
        %6506 = vmatpush2.msra.mxu0 0.0
        %6507 = vmatprep.subr.mxu0 0.0
        %6508 = vmatpush2.msra.mxu0 0.0
        %6509 = vmatprep.subr.mxu0 0.0
        %6510 = vmatpush2.msra.mxu0 0.0
        %6511 = vmatprep.subr.mxu0 0.0
        %6512 = vmatpush2.msra.mxu0 0.0
        %6513 = vmatprep.subr.mxu0 0.0
        %6514 = vmatpush2.msra.mxu0 0.0
        %6515 = vmatprep.subr.mxu0 0.0
        %6516 = vmatpush2.msra.mxu0 0.0
        %6517 = vmatprep.subr.mxu0 0.0
        %6518 = vmatpush2.msra.mxu0 0.0
        %6519 = vmatprep.subr.mxu0 0.0
        %6520 = vmatpush2.msra.mxu0 0.0
        %6521 = vmatprep.subr.mxu0 0.0
        %6522 = vmatpush2.msra.mxu0 0.0
        %6523 = vmatprep.subr.mxu0 0.0
        %6524 = vmatpush2.msra.mxu0 0.0
        %6525 = vmatprep.subr.mxu0 0.0
        %6526 = vmatpush2.msra.mxu0 0.0
        %6527 = vmatprep.subr.mxu0 0.0
        %6528 = vmatpush2.msra.mxu0 0.0
        %6529 = vmatprep.subr.mxu0 0.0
        %6530 = vmatpush2.msra.mxu0 0.0
        %6531 = vmatprep.subr.mxu0 0.0
        %6532 = vmatpush2.msra.mxu0 0.0
        %6533 = vmatprep.subr.mxu0 0.0
        %6534 = vmatpush2.msra.mxu0 0.0
        %6535 = vmatprep.mubr.f32.mxu0 0.0
        %6536 = vmatmul.mubr.f32.gmra.mxu0 %v6469
        %v6537 = vpop.f32.mrf.mxu0
        %v6538 = vadd.f32 0.0, %v6537
        %v6539 = vpop.f32.mrf.mxu0
        %6540 = vdwg.mxu0
        %v6542 = vsel %vm3272, %v5570, 0
        %6544 = vmatprep.subr.mxu0 0.0
        %6545 = vmatpush1.msra.mxu0 0.0
        %6546 = vmatprep.subr.mxu0 0.0
        %6547 = vmatpush1.msra.mxu0 0.0
        %6548 = vmatprep.subr.mxu0 0.0
        %6549 = vmatpush1.msra.mxu0 0.0
        %6550 = vmatprep.subr.mxu0 0.0
        %6551 = vmatpush1.msra.mxu0 0.0
        %6552 = vmatprep.subr.mxu0 0.0
        %6553 = vmatpush1.msra.mxu0 0.0
        %6554 = vmatprep.subr.mxu0 0.0
        %6555 = vmatpush1.msra.mxu0 0.0
        %6556 = vmatprep.subr.mxu0 0.0
        %6557 = vmatpush1.msra.mxu0 0.0
        %6558 = vmatprep.subr.mxu0 0.0
        %6559 = vmatpush1.msra.mxu0 0.0
        %6560 = vmatprep.subr.mxu0 0.0
        %6561 = vmatpush1.msra.mxu0 0.0
        %6562 = vmatprep.subr.mxu0 0.0
        %6563 = vmatpush1.msra.mxu0 0.0
        %6564 = vmatprep.subr.mxu0 0.0
        %6565 = vmatpush1.msra.mxu0 0.0
        %6566 = vmatprep.subr.mxu0 0.0
        %6567 = vmatpush1.msra.mxu0 0.0
        %6568 = vmatprep.subr.mxu0 0.0
        %6569 = vmatpush1.msra.mxu0 0.0
        %6570 = vmatprep.subr.mxu0 0.0
        %6571 = vmatpush1.msra.mxu0 0.0
        %6572 = vmatprep.subr.mxu0 0.0
        %6573 = vmatpush1.msra.mxu0 0.0
        %6574 = vmatprep.subr.mxu0 0.0
        %6575 = vmatpush1.msra.mxu0 %v5657
        %6576 = vmatprep.subr.mxu0 0.0
        %6577 = vmatpush2.msra.mxu0 0.0
        %6578 = vmatprep.subr.mxu0 0.0
        %6579 = vmatpush2.msra.mxu0 0.0
        %6580 = vmatprep.subr.mxu0 0.0
        %6581 = vmatpush2.msra.mxu0 0.0
        %6582 = vmatprep.subr.mxu0 0.0
        %6583 = vmatpush2.msra.mxu0 0.0
        %6584 = vmatprep.subr.mxu0 0.0
        %6585 = vmatpush2.msra.mxu0 0.0
        %6586 = vmatprep.subr.mxu0 0.0
        %6587 = vmatpush2.msra.mxu0 0.0
        %6588 = vmatprep.subr.mxu0 0.0
        %6589 = vmatpush2.msra.mxu0 0.0
        %6590 = vmatprep.subr.mxu0 0.0
        %6591 = vmatpush2.msra.mxu0 0.0
        %6592 = vmatprep.subr.mxu0 0.0
        %6593 = vmatpush2.msra.mxu0 0.0
        %6594 = vmatprep.subr.mxu0 0.0
        %6595 = vmatpush2.msra.mxu0 0.0
        %6596 = vmatprep.subr.mxu0 0.0
        %6597 = vmatpush2.msra.mxu0 0.0
        %6598 = vmatprep.subr.mxu0 0.0
        %6599 = vmatpush2.msra.mxu0 0.0
        %6600 = vmatprep.subr.mxu0 0.0
        %6601 = vmatpush2.msra.mxu0 0.0
        %6602 = vmatprep.subr.mxu0 0.0
        %6603 = vmatpush2.msra.mxu0 0.0
        %6604 = vmatprep.subr.mxu0 0.0
        %6605 = vmatpush2.msra.mxu0 0.0
        %6606 = vmatprep.subr.mxu0 0.0
        %6607 = vmatpush2.msra.mxu0 0.0
        %6608 = vmatprep.mubr.f32.mxu0 0.0
        %6609 = vmatmul.mubr.f32.gmra.mxu0 %v6542
        %v6610 = vpop.f32.mrf.mxu0
        %v6611 = vadd.f32 0.0, %v6610
        %v6612 = vpop.f32.mrf.mxu0
        %6613 = vdwg.mxu0
        %v6615 = vsel %vm3272, %v5572, 0
        %6617 = vmatprep.subr.mxu0 0.0
        %6618 = vmatpush1.msra.mxu0 0.0
        %6619 = vmatprep.subr.mxu0 0.0
        %6620 = vmatpush1.msra.mxu0 0.0
        %6621 = vmatprep.subr.mxu0 0.0
        %6622 = vmatpush1.msra.mxu0 0.0
        %6623 = vmatprep.subr.mxu0 0.0
        %6624 = vmatpush1.msra.mxu0 0.0
        %6625 = vmatprep.subr.mxu0 0.0
        %6626 = vmatpush1.msra.mxu0 0.0
        %6627 = vmatprep.subr.mxu0 0.0
        %6628 = vmatpush1.msra.mxu0 0.0
        %6629 = vmatprep.subr.mxu0 0.0
        %6630 = vmatpush1.msra.mxu0 0.0
        %6631 = vmatprep.subr.mxu0 0.0
        %6632 = vmatpush1.msra.mxu0 0.0
        %6633 = vmatprep.subr.mxu0 0.0
        %6634 = vmatpush1.msra.mxu0 0.0
        %6635 = vmatprep.subr.mxu0 0.0
        %6636 = vmatpush1.msra.mxu0 0.0
        %6637 = vmatprep.subr.mxu0 0.0
        %6638 = vmatpush1.msra.mxu0 0.0
        %6639 = vmatprep.subr.mxu0 0.0
        %6640 = vmatpush1.msra.mxu0 0.0
        %6641 = vmatprep.subr.mxu0 0.0
        %6642 = vmatpush1.msra.mxu0 0.0
        %6643 = vmatprep.subr.mxu0 0.0
        %6644 = vmatpush1.msra.mxu0 0.0
        %6645 = vmatprep.subr.mxu0 0.0
        %6646 = vmatpush1.msra.mxu0 0.0
        %6647 = vmatprep.subr.mxu0 0.0
        %6648 = vmatpush1.msra.mxu0 %v5658
        %6649 = vmatprep.subr.mxu0 0.0
        %6650 = vmatpush2.msra.mxu0 0.0
        %6651 = vmatprep.subr.mxu0 0.0
        %6652 = vmatpush2.msra.mxu0 0.0
        %6653 = vmatprep.subr.mxu0 0.0
        %6654 = vmatpush2.msra.mxu0 0.0
        %6655 = vmatprep.subr.mxu0 0.0
        %6656 = vmatpush2.msra.mxu0 0.0
        %6657 = vmatprep.subr.mxu0 0.0
        %6658 = vmatpush2.msra.mxu0 0.0
        %6659 = vmatprep.subr.mxu0 0.0
        %6660 = vmatpush2.msra.mxu0 0.0
        %6661 = vmatprep.subr.mxu0 0.0
        %6662 = vmatpush2.msra.mxu0 0.0
        %6663 = vmatprep.subr.mxu0 0.0
        %6664 = vmatpush2.msra.mxu0 0.0
        %6665 = vmatprep.subr.mxu0 0.0
        %6666 = vmatpush2.msra.mxu0 0.0
        %6667 = vmatprep.subr.mxu0 0.0
        %6668 = vmatpush2.msra.mxu0 0.0
        %6669 = vmatprep.subr.mxu0 0.0
        %6670 = vmatpush2.msra.mxu0 0.0
        %6671 = vmatprep.subr.mxu0 0.0
        %6672 = vmatpush2.msra.mxu0 0.0
        %6673 = vmatprep.subr.mxu0 0.0
        %6674 = vmatpush2.msra.mxu0 0.0
        %6675 = vmatprep.subr.mxu0 0.0
        %6676 = vmatpush2.msra.mxu0 0.0
        %6677 = vmatprep.subr.mxu0 0.0
        %6678 = vmatpush2.msra.mxu0 0.0
        %6679 = vmatprep.subr.mxu0 0.0
        %6680 = vmatpush2.msra.mxu0 0.0
        %6681 = vmatprep.mubr.f32.mxu0 0.0
        %6682 = vmatmul.mubr.f32.gmra.mxu0 %v6615
        %v6683 = vpop.f32.mrf.mxu0
        %v6684 = vadd.f32 0.0, %v6683
        %v6685 = vpop.f32.mrf.mxu0
        %6686 = vdwg.mxu0
        %v6688 = vsel %vm3272, %v5574, 0
        %6690 = vmatprep.subr.mxu0 0.0
        %6691 = vmatpush1.msra.mxu0 0.0
        %6692 = vmatprep.subr.mxu0 0.0
        %6693 = vmatpush1.msra.mxu0 0.0
        %6694 = vmatprep.subr.mxu0 0.0
        %6695 = vmatpush1.msra.mxu0 0.0
        %6696 = vmatprep.subr.mxu0 0.0
        %6697 = vmatpush1.msra.mxu0 0.0
        %6698 = vmatprep.subr.mxu0 0.0
        %6699 = vmatpush1.msra.mxu0 0.0
        %6700 = vmatprep.subr.mxu0 0.0
        %6701 = vmatpush1.msra.mxu0 0.0
        %6702 = vmatprep.subr.mxu0 0.0
        %6703 = vmatpush1.msra.mxu0 0.0
        %6704 = vmatprep.subr.mxu0 0.0
        %6705 = vmatpush1.msra.mxu0 0.0
        %6706 = vmatprep.subr.mxu0 0.0
        %6707 = vmatpush1.msra.mxu0 0.0
        %6708 = vmatprep.subr.mxu0 0.0
        %6709 = vmatpush1.msra.mxu0 0.0
        %6710 = vmatprep.subr.mxu0 0.0
        %6711 = vmatpush1.msra.mxu0 0.0
        %6712 = vmatprep.subr.mxu0 0.0
        %6713 = vmatpush1.msra.mxu0 0.0
        %6714 = vmatprep.subr.mxu0 0.0
        %6715 = vmatpush1.msra.mxu0 0.0
        %6716 = vmatprep.subr.mxu0 0.0
        %6717 = vmatpush1.msra.mxu0 0.0
        %6718 = vmatprep.subr.mxu0 0.0
        %6719 = vmatpush1.msra.mxu0 0.0
        %6720 = vmatprep.subr.mxu0 0.0
        %6721 = vmatpush1.msra.mxu0 %v5659
        %6722 = vmatprep.subr.mxu0 0.0
        %6723 = vmatpush2.msra.mxu0 0.0
        %6724 = vmatprep.subr.mxu0 0.0
        %6725 = vmatpush2.msra.mxu0 0.0
        %6726 = vmatprep.subr.mxu0 0.0
        %6727 = vmatpush2.msra.mxu0 0.0
        %6728 = vmatprep.subr.mxu0 0.0
        %6729 = vmatpush2.msra.mxu0 0.0
        %6730 = vmatprep.subr.mxu0 0.0
        %6731 = vmatpush2.msra.mxu0 0.0
        %6732 = vmatprep.subr.mxu0 0.0
        %6733 = vmatpush2.msra.mxu0 0.0
        %6734 = vmatprep.subr.mxu0 0.0
        %6735 = vmatpush2.msra.mxu0 0.0
        %6736 = vmatprep.subr.mxu0 0.0
        %6737 = vmatpush2.msra.mxu0 0.0
        %6738 = vmatprep.subr.mxu0 0.0
        %6739 = vmatpush2.msra.mxu0 0.0
        %6740 = vmatprep.subr.mxu0 0.0
        %6741 = vmatpush2.msra.mxu0 0.0
        %6742 = vmatprep.subr.mxu0 0.0
        %6743 = vmatpush2.msra.mxu0 0.0
        %6744 = vmatprep.subr.mxu0 0.0
        %6745 = vmatpush2.msra.mxu0 0.0
        %6746 = vmatprep.subr.mxu0 0.0
        %6747 = vmatpush2.msra.mxu0 0.0
        %6748 = vmatprep.subr.mxu0 0.0
        %6749 = vmatpush2.msra.mxu0 0.0
        %6750 = vmatprep.subr.mxu0 0.0
        %6751 = vmatpush2.msra.mxu0 0.0
        %6752 = vmatprep.subr.mxu0 0.0
        %6753 = vmatpush2.msra.mxu0 0.0
        %6754 = vmatprep.mubr.f32.mxu0 0.0
        %6755 = vmatmul.mubr.f32.gmra.mxu0 %v6688
        %v6756 = vpop.f32.mrf.mxu0
        %v6757 = vadd.f32 0.0, %v6756
        %v6758 = vpop.f32.mrf.mxu0
        %6759 = vdwg.mxu0
        %v6761 = vsel %vm3272, %v5576, 0
        %6763 = vmatprep.subr.mxu0 0.0
        %6764 = vmatpush1.msra.mxu0 0.0
        %6765 = vmatprep.subr.mxu0 0.0
        %6766 = vmatpush1.msra.mxu0 0.0
        %6767 = vmatprep.subr.mxu0 0.0
        %6768 = vmatpush1.msra.mxu0 0.0
        %6769 = vmatprep.subr.mxu0 0.0
        %6770 = vmatpush1.msra.mxu0 0.0
        %6771 = vmatprep.subr.mxu0 0.0
        %6772 = vmatpush1.msra.mxu0 0.0
        %6773 = vmatprep.subr.mxu0 0.0
        %6774 = vmatpush1.msra.mxu0 0.0
        %6775 = vmatprep.subr.mxu0 0.0
        %6776 = vmatpush1.msra.mxu0 0.0
        %6777 = vmatprep.subr.mxu0 0.0
        %6778 = vmatpush1.msra.mxu0 0.0
        %6779 = vmatprep.subr.mxu0 0.0
        %6780 = vmatpush1.msra.mxu0 0.0
        %6781 = vmatprep.subr.mxu0 0.0
        %6782 = vmatpush1.msra.mxu0 0.0
        %6783 = vmatprep.subr.mxu0 0.0
        %6784 = vmatpush1.msra.mxu0 0.0
        %6785 = vmatprep.subr.mxu0 0.0
        %6786 = vmatpush1.msra.mxu0 0.0
        %6787 = vmatprep.subr.mxu0 0.0
        %6788 = vmatpush1.msra.mxu0 0.0
        %6789 = vmatprep.subr.mxu0 0.0
        %6790 = vmatpush1.msra.mxu0 0.0
        %6791 = vmatprep.subr.mxu0 0.0
        %6792 = vmatpush1.msra.mxu0 0.0
        %6793 = vmatprep.subr.mxu0 0.0
        %6794 = vmatpush1.msra.mxu0 %v5660
        %6795 = vmatprep.subr.mxu0 0.0
        %6796 = vmatpush2.msra.mxu0 0.0
        %6797 = vmatprep.subr.mxu0 0.0
        %6798 = vmatpush2.msra.mxu0 0.0
        %6799 = vmatprep.subr.mxu0 0.0
        %6800 = vmatpush2.msra.mxu0 0.0
        %6801 = vmatprep.subr.mxu0 0.0
        %6802 = vmatpush2.msra.mxu0 0.0
        %6803 = vmatprep.subr.mxu0 0.0
        %6804 = vmatpush2.msra.mxu0 0.0
        %6805 = vmatprep.subr.mxu0 0.0
        %6806 = vmatpush2.msra.mxu0 0.0
        %6807 = vmatprep.subr.mxu0 0.0
        %6808 = vmatpush2.msra.mxu0 0.0
        %6809 = vmatprep.subr.mxu0 0.0
        %6810 = vmatpush2.msra.mxu0 0.0
        %6811 = vmatprep.subr.mxu0 0.0
        %6812 = vmatpush2.msra.mxu0 0.0
        %6813 = vmatprep.subr.mxu0 0.0
        %6814 = vmatpush2.msra.mxu0 0.0
        %6815 = vmatprep.subr.mxu0 0.0
        %6816 = vmatpush2.msra.mxu0 0.0
        %6817 = vmatprep.subr.mxu0 0.0
        %6818 = vmatpush2.msra.mxu0 0.0
        %6819 = vmatprep.subr.mxu0 0.0
        %6820 = vmatpush2.msra.mxu0 0.0
        %6821 = vmatprep.subr.mxu0 0.0
        %6822 = vmatpush2.msra.mxu0 0.0
        %6823 = vmatprep.subr.mxu0 0.0
        %6824 = vmatpush2.msra.mxu0 0.0
        %6825 = vmatprep.subr.mxu0 0.0
        %6826 = vmatpush2.msra.mxu0 0.0
        %6827 = vmatprep.mubr.f32.mxu0 0.0
        %6828 = vmatmul.mubr.f32.gmra.mxu0 %v6761
        %v6829 = vpop.f32.mrf.mxu0
        %v6830 = vadd.f32 0.0, %v6829
        %v6831 = vpop.f32.mrf.mxu0
        %6832 = vdwg.mxu0
        %v6834 = vsel %vm3272, %v5578, 0
        %6836 = vmatprep.subr.mxu0 0.0
        %6837 = vmatpush1.msra.mxu0 0.0
        %6838 = vmatprep.subr.mxu0 0.0
        %6839 = vmatpush1.msra.mxu0 0.0
        %6840 = vmatprep.subr.mxu0 0.0
        %6841 = vmatpush1.msra.mxu0 0.0
        %6842 = vmatprep.subr.mxu0 0.0
        %6843 = vmatpush1.msra.mxu0 0.0
        %6844 = vmatprep.subr.mxu0 0.0
        %6845 = vmatpush1.msra.mxu0 0.0
        %6846 = vmatprep.subr.mxu0 0.0
        %6847 = vmatpush1.msra.mxu0 0.0
        %6848 = vmatprep.subr.mxu0 0.0
        %6849 = vmatpush1.msra.mxu0 0.0
        %6850 = vmatprep.subr.mxu0 0.0
        %6851 = vmatpush1.msra.mxu0 0.0
        %6852 = vmatprep.subr.mxu0 0.0
        %6853 = vmatpush1.msra.mxu0 0.0
        %6854 = vmatprep.subr.mxu0 0.0
        %6855 = vmatpush1.msra.mxu0 0.0
        %6856 = vmatprep.subr.mxu0 0.0
        %6857 = vmatpush1.msra.mxu0 0.0
        %6858 = vmatprep.subr.mxu0 0.0
        %6859 = vmatpush1.msra.mxu0 0.0
        %6860 = vmatprep.subr.mxu0 0.0
        %6861 = vmatpush1.msra.mxu0 0.0
        %6862 = vmatprep.subr.mxu0 0.0
        %6863 = vmatpush1.msra.mxu0 0.0
        %6864 = vmatprep.subr.mxu0 0.0
        %6865 = vmatpush1.msra.mxu0 0.0
        %6866 = vmatprep.subr.mxu0 0.0
        %6867 = vmatpush1.msra.mxu0 %v5661
        %6868 = vmatprep.subr.mxu0 0.0
        %6869 = vmatpush2.msra.mxu0 0.0
        %6870 = vmatprep.subr.mxu0 0.0
        %6871 = vmatpush2.msra.mxu0 0.0
        %6872 = vmatprep.subr.mxu0 0.0
        %6873 = vmatpush2.msra.mxu0 0.0
        %6874 = vmatprep.subr.mxu0 0.0
        %6875 = vmatpush2.msra.mxu0 0.0
        %6876 = vmatprep.subr.mxu0 0.0
        %6877 = vmatpush2.msra.mxu0 0.0
        %6878 = vmatprep.subr.mxu0 0.0
        %6879 = vmatpush2.msra.mxu0 0.0
        %6880 = vmatprep.subr.mxu0 0.0
        %6881 = vmatpush2.msra.mxu0 0.0
        %6882 = vmatprep.subr.mxu0 0.0
        %6883 = vmatpush2.msra.mxu0 0.0
        %6884 = vmatprep.subr.mxu0 0.0
        %6885 = vmatpush2.msra.mxu0 0.0
        %6886 = vmatprep.subr.mxu0 0.0
        %6887 = vmatpush2.msra.mxu0 0.0
        %6888 = vmatprep.subr.mxu0 0.0
        %6889 = vmatpush2.msra.mxu0 0.0
        %6890 = vmatprep.subr.mxu0 0.0
        %6891 = vmatpush2.msra.mxu0 0.0
        %6892 = vmatprep.subr.mxu0 0.0
        %6893 = vmatpush2.msra.mxu0 0.0
        %6894 = vmatprep.subr.mxu0 0.0
        %6895 = vmatpush2.msra.mxu0 0.0
        %6896 = vmatprep.subr.mxu0 0.0
        %6897 = vmatpush2.msra.mxu0 0.0
        %6898 = vmatprep.subr.mxu0 0.0
        %6899 = vmatpush2.msra.mxu0 0.0
        %6900 = vmatprep.mubr.f32.mxu0 0.0
        %6901 = vmatmul.mubr.f32.gmra.mxu0 %v6834
        %v6902 = vpop.f32.mrf.mxu0
        %v6903 = vadd.f32 0.0, %v6902
        %v6904 = vpop.f32.mrf.mxu0
        %6905 = vdwg.mxu0
        %v6907 = vsel %vm3272, %v5580, 0
        %6909 = vmatprep.subr.mxu0 0.0
        %6910 = vmatpush1.msra.mxu0 0.0
        %6911 = vmatprep.subr.mxu0 0.0
        %6912 = vmatpush1.msra.mxu0 0.0
        %6913 = vmatprep.subr.mxu0 0.0
        %6914 = vmatpush1.msra.mxu0 0.0
        %6915 = vmatprep.subr.mxu0 0.0
        %6916 = vmatpush1.msra.mxu0 0.0
        %6917 = vmatprep.subr.mxu0 0.0
        %6918 = vmatpush1.msra.mxu0 0.0
        %6919 = vmatprep.subr.mxu0 0.0
        %6920 = vmatpush1.msra.mxu0 0.0
        %6921 = vmatprep.subr.mxu0 0.0
        %6922 = vmatpush1.msra.mxu0 0.0
        %6923 = vmatprep.subr.mxu0 0.0
        %6924 = vmatpush1.msra.mxu0 0.0
        %6925 = vmatprep.subr.mxu0 0.0
        %6926 = vmatpush1.msra.mxu0 0.0
        %6927 = vmatprep.subr.mxu0 0.0
        %6928 = vmatpush1.msra.mxu0 0.0
        %6929 = vmatprep.subr.mxu0 0.0
        %6930 = vmatpush1.msra.mxu0 0.0
        %6931 = vmatprep.subr.mxu0 0.0
        %6932 = vmatpush1.msra.mxu0 0.0
        %6933 = vmatprep.subr.mxu0 0.0
        %6934 = vmatpush1.msra.mxu0 0.0
        %6935 = vmatprep.subr.mxu0 0.0
        %6936 = vmatpush1.msra.mxu0 0.0
        %6937 = vmatprep.subr.mxu0 0.0
        %6938 = vmatpush1.msra.mxu0 0.0
        %6939 = vmatprep.subr.mxu0 0.0
        %6940 = vmatpush1.msra.mxu0 %v5662
        %6941 = vmatprep.subr.mxu0 0.0
        %6942 = vmatpush2.msra.mxu0 0.0
        %6943 = vmatprep.subr.mxu0 0.0
        %6944 = vmatpush2.msra.mxu0 0.0
        %6945 = vmatprep.subr.mxu0 0.0
        %6946 = vmatpush2.msra.mxu0 0.0
        %6947 = vmatprep.subr.mxu0 0.0
        %6948 = vmatpush2.msra.mxu0 0.0
        %6949 = vmatprep.subr.mxu0 0.0
        %6950 = vmatpush2.msra.mxu0 0.0
        %6951 = vmatprep.subr.mxu0 0.0
        %6952 = vmatpush2.msra.mxu0 0.0
        %6953 = vmatprep.subr.mxu0 0.0
        %6954 = vmatpush2.msra.mxu0 0.0
        %6955 = vmatprep.subr.mxu0 0.0
        %6956 = vmatpush2.msra.mxu0 0.0
        %6957 = vmatprep.subr.mxu0 0.0
        %6958 = vmatpush2.msra.mxu0 0.0
        %6959 = vmatprep.subr.mxu0 0.0
        %6960 = vmatpush2.msra.mxu0 0.0
        %6961 = vmatprep.subr.mxu0 0.0
        %6962 = vmatpush2.msra.mxu0 0.0
        %6963 = vmatprep.subr.mxu0 0.0
        %6964 = vmatpush2.msra.mxu0 0.0
        %6965 = vmatprep.subr.mxu0 0.0
        %6966 = vmatpush2.msra.mxu0 0.0
        %6967 = vmatprep.subr.mxu0 0.0
        %6968 = vmatpush2.msra.mxu0 0.0
        %6969 = vmatprep.subr.mxu0 0.0
        %6970 = vmatpush2.msra.mxu0 0.0
        %6971 = vmatprep.subr.mxu0 0.0
        %6972 = vmatpush2.msra.mxu0 0.0
        %6973 = vmatprep.mubr.f32.mxu0 0.0
        %6974 = vmatmul.mubr.f32.gmra.mxu0 %v6907
        %v6975 = vpop.f32.mrf.mxu0
        %v6976 = vadd.f32 0.0, %v6975
        %v6977 = vpop.f32.mrf.mxu0
        %6978 = vdwg.mxu0
        %v6980 = vsel %vm3272, %v5582, 0
        %6982 = vmatprep.subr.mxu0 0.0
        %6983 = vmatpush1.msra.mxu0 0.0
        %6984 = vmatprep.subr.mxu0 0.0
        %6985 = vmatpush1.msra.mxu0 0.0
        %6986 = vmatprep.subr.mxu0 0.0
        %6987 = vmatpush1.msra.mxu0 0.0
        %6988 = vmatprep.subr.mxu0 0.0
        %6989 = vmatpush1.msra.mxu0 0.0
        %6990 = vmatprep.subr.mxu0 0.0
        %6991 = vmatpush1.msra.mxu0 0.0
        %6992 = vmatprep.subr.mxu0 0.0
        %6993 = vmatpush1.msra.mxu0 0.0
        %6994 = vmatprep.subr.mxu0 0.0
        %6995 = vmatpush1.msra.mxu0 0.0
        %6996 = vmatprep.subr.mxu0 0.0
        %6997 = vmatpush1.msra.mxu0 0.0
        %6998 = vmatprep.subr.mxu0 0.0
        %6999 = vmatpush1.msra.mxu0 0.0
        %7000 = vmatprep.subr.mxu0 0.0
        %7001 = vmatpush1.msra.mxu0 0.0
        %7002 = vmatprep.subr.mxu0 0.0
        %7003 = vmatpush1.msra.mxu0 0.0
        %7004 = vmatprep.subr.mxu0 0.0
        %7005 = vmatpush1.msra.mxu0 0.0
        %7006 = vmatprep.subr.mxu0 0.0
        %7007 = vmatpush1.msra.mxu0 0.0
        %7008 = vmatprep.subr.mxu0 0.0
        %7009 = vmatpush1.msra.mxu0 0.0
        %7010 = vmatprep.subr.mxu0 0.0
        %7011 = vmatpush1.msra.mxu0 0.0
        %7012 = vmatprep.subr.mxu0 0.0
        %7013 = vmatpush1.msra.mxu0 %v5663
        %7014 = vmatprep.subr.mxu0 0.0
        %7015 = vmatpush2.msra.mxu0 0.0
        %7016 = vmatprep.subr.mxu0 0.0
        %7017 = vmatpush2.msra.mxu0 0.0
        %7018 = vmatprep.subr.mxu0 0.0
        %7019 = vmatpush2.msra.mxu0 0.0
        %7020 = vmatprep.subr.mxu0 0.0
        %7021 = vmatpush2.msra.mxu0 0.0
        %7022 = vmatprep.subr.mxu0 0.0
        %7023 = vmatpush2.msra.mxu0 0.0
        %7024 = vmatprep.subr.mxu0 0.0
        %7025 = vmatpush2.msra.mxu0 0.0
        %7026 = vmatprep.subr.mxu0 0.0
        %7027 = vmatpush2.msra.mxu0 0.0
        %7028 = vmatprep.subr.mxu0 0.0
        %7029 = vmatpush2.msra.mxu0 0.0
        %7030 = vmatprep.subr.mxu0 0.0
        %7031 = vmatpush2.msra.mxu0 0.0
        %7032 = vmatprep.subr.mxu0 0.0
        %7033 = vmatpush2.msra.mxu0 0.0
        %7034 = vmatprep.subr.mxu0 0.0
        %7035 = vmatpush2.msra.mxu0 0.0
        %7036 = vmatprep.subr.mxu0 0.0
        %7037 = vmatpush2.msra.mxu0 0.0
        %7038 = vmatprep.subr.mxu0 0.0
        %7039 = vmatpush2.msra.mxu0 0.0
        %7040 = vmatprep.subr.mxu0 0.0
        %7041 = vmatpush2.msra.mxu0 0.0
        %7042 = vmatprep.subr.mxu0 0.0
        %7043 = vmatpush2.msra.mxu0 0.0
        %7044 = vmatprep.subr.mxu0 0.0
        %7045 = vmatpush2.msra.mxu0 0.0
        %7046 = vmatprep.mubr.f32.mxu0 0.0
        %7047 = vmatmul.mubr.f32.gmra.mxu0 %v6980
        %v7048 = vpop.f32.mrf.mxu0
        %v7049 = vadd.f32 0.0, %v7048
        %v7050 = vpop.f32.mrf.mxu0
        %7051 = vdwg.mxu0
        %v7053 = vsel %vm3272, %v5584, 0
        %7055 = vmatprep.subr.mxu0 0.0
        %7056 = vmatpush1.msra.mxu0 0.0
        %7057 = vmatprep.subr.mxu0 0.0
        %7058 = vmatpush1.msra.mxu0 0.0
        %7059 = vmatprep.subr.mxu0 0.0
        %7060 = vmatpush1.msra.mxu0 0.0
        %7061 = vmatprep.subr.mxu0 0.0
        %7062 = vmatpush1.msra.mxu0 0.0
        %7063 = vmatprep.subr.mxu0 0.0
        %7064 = vmatpush1.msra.mxu0 0.0
        %7065 = vmatprep.subr.mxu0 0.0
        %7066 = vmatpush1.msra.mxu0 0.0
        %7067 = vmatprep.subr.mxu0 0.0
        %7068 = vmatpush1.msra.mxu0 0.0
        %7069 = vmatprep.subr.mxu0 0.0
        %7070 = vmatpush1.msra.mxu0 0.0
        %7071 = vmatprep.subr.mxu0 0.0
        %7072 = vmatpush1.msra.mxu0 0.0
        %7073 = vmatprep.subr.mxu0 0.0
        %7074 = vmatpush1.msra.mxu0 0.0
        %7075 = vmatprep.subr.mxu0 0.0
        %7076 = vmatpush1.msra.mxu0 0.0
        %7077 = vmatprep.subr.mxu0 0.0
        %7078 = vmatpush1.msra.mxu0 0.0
        %7079 = vmatprep.subr.mxu0 0.0
        %7080 = vmatpush1.msra.mxu0 0.0
        %7081 = vmatprep.subr.mxu0 0.0
        %7082 = vmatpush1.msra.mxu0 0.0
        %7083 = vmatprep.subr.mxu0 0.0
        %7084 = vmatpush1.msra.mxu0 0.0
        %7085 = vmatprep.subr.mxu0 0.0
        %7086 = vmatpush1.msra.mxu0 %v5664
        %7087 = vmatprep.subr.mxu0 0.0
        %7088 = vmatpush2.msra.mxu0 0.0
        %7089 = vmatprep.subr.mxu0 0.0
        %7090 = vmatpush2.msra.mxu0 0.0
        %7091 = vmatprep.subr.mxu0 0.0
        %7092 = vmatpush2.msra.mxu0 0.0
        %7093 = vmatprep.subr.mxu0 0.0
        %7094 = vmatpush2.msra.mxu0 0.0
        %7095 = vmatprep.subr.mxu0 0.0
        %7096 = vmatpush2.msra.mxu0 0.0
        %7097 = vmatprep.subr.mxu0 0.0
        %7098 = vmatpush2.msra.mxu0 0.0
        %7099 = vmatprep.subr.mxu0 0.0
        %7100 = vmatpush2.msra.mxu0 0.0
        %7101 = vmatprep.subr.mxu0 0.0
        %7102 = vmatpush2.msra.mxu0 0.0
        %7103 = vmatprep.subr.mxu0 0.0
        %7104 = vmatpush2.msra.mxu0 0.0
        %7105 = vmatprep.subr.mxu0 0.0
        %7106 = vmatpush2.msra.mxu0 0.0
        %7107 = vmatprep.subr.mxu0 0.0
        %7108 = vmatpush2.msra.mxu0 0.0
        %7109 = vmatprep.subr.mxu0 0.0
        %7110 = vmatpush2.msra.mxu0 0.0
        %7111 = vmatprep.subr.mxu0 0.0
        %7112 = vmatpush2.msra.mxu0 0.0
        %7113 = vmatprep.subr.mxu0 0.0
        %7114 = vmatpush2.msra.mxu0 0.0
        %7115 = vmatprep.subr.mxu0 0.0
        %7116 = vmatpush2.msra.mxu0 0.0
        %7117 = vmatprep.subr.mxu0 0.0
        %7118 = vmatpush2.msra.mxu0 0.0
        %7119 = vmatprep.mubr.f32.mxu0 0.0
        %7120 = vmatmul.mubr.f32.gmra.mxu0 %v7053
        %v7121 = vpop.f32.mrf.mxu0
        %v7122 = vadd.f32 0.0, %v7121
        %v7123 = vpop.f32.mrf.mxu0
        %7124 = vdwg.mxu0
        %v7125 = vadd.f32 %v5587, 1e-08
        %v7126 = vadd.f32 %v5590, 1e-08
        %v7127 = vadd.f32 %v5593, 1e-08
        %v7128 = vadd.f32 %v5596, 1e-08
        %v7129 = vadd.f32 %v5599, 1e-08
        %v7130 = vadd.f32 %v5602, 1e-08
        %v7131 = vadd.f32 %v5605, 1e-08
        %v7132 = vadd.f32 %v5608, 1e-08
        %v7133 = vadd.f32 %v5611, 1e-08
        %v7134 = vadd.f32 %v5614, 1e-08
        %v7135 = vadd.f32 %v5617, 1e-08
        %v7136 = vadd.f32 %v5620, 1e-08
        %v7137 = vadd.f32 %v5623, 1e-08
        %v7138 = vadd.f32 %v5626, 1e-08
        %v7139 = vadd.f32 %v5629, 1e-08
        %v7140 = vadd.f32 %v5632, 1e-08
        %v7141 = vadd.f32 %v5635, 1e-08
        %v7142 = vadd.f32 %v5638, 1e-08
        %v7143 = vadd.f32 %v5641, 1e-08
        %v7144 = vadd.f32 %v5644, 1e-08
        %v7145 = vrcp.pop %v7125
        %v7146 = vrcp.pop %v7126
        %v7147 = vrcp.pop %v7127
        %v7148 = vrcp.pop %v7128
        %v7149 = vrcp.pop %v7129
        %v7150 = vrcp.pop %v7130
        %v7151 = vrcp.pop %v7131
        %v7152 = vrcp.pop %v7132
        %v7153 = vrcp.pop %v7133
        %v7154 = vrcp.pop %v7134
        %v7155 = vrcp.pop %v7135
        %v7156 = vrcp.pop %v7136
        %v7157 = vrcp.pop %v7137
        %v7158 = vrcp.pop %v7138
        %v7159 = vrcp.pop %v7139
        %v7160 = vrcp.pop %v7140
        %v7161 = vrcp.pop %v7141
        %v7162 = vrcp.pop %v7142
        %v7163 = vrcp.pop %v7143
        %v7164 = vrcp.pop %v7144
        %v7165 = vmul.f32 %v5735, %v7145
        %v7166 = vmul.f32 %v5808, %v7146
        %v7167 = vmul.f32 %v5881, %v7147
        %v7168 = vmul.f32 %v5954, %v7148
        %v7169 = vmul.f32 %v6027, %v7149
        %v7170 = vmul.f32 %v6100, %v7150
        %v7171 = vmul.f32 %v6173, %v7151
        %v7172 = vmul.f32 %v6246, %v7152
        %v7173 = vmul.f32 %v6319, %v7153
        %v7174 = vmul.f32 %v6392, %v7154
        %v7175 = vmul.f32 %v6465, %v7155
        %v7176 = vmul.f32 %v6538, %v7156
        %v7177 = vmul.f32 %v6611, %v7157
        %v7178 = vmul.f32 %v6684, %v7158
        %v7179 = vmul.f32 %v6757, %v7159
        %v7180 = vmul.f32 %v6830, %v7160
        %v7181 = vmul.f32 %v6903, %v7161
        %v7182 = vmul.f32 %v6976, %v7162
        %v7183 = vmul.f32 %v7049, %v7163
        %v7184 = vmul.f32 %v7122, %v7164
        %v7185 = vcombine.low %v7165, %v7167
        %v7186 = vcombine.high %v7165, %v7167
        %v7188 = vunpack.c.l.s4 1983009808
        %v7189 = vunpack.c.0.s8 %v7188
        %v7190 = vlaneseq
        %v7191 = vshrl.u32 %v7190, 7
        %v7192 = vsub.s32 %v7189, %v7191
        %v7193 = vrot.slane %v7185, %v7192
        %v7195 = vunpack.c.l.s4 1983009808
        %v7196 = vunpack.c.0.s8 %v7195
        %v7197 = vlaneseq
        %v7198 = vshrl.u32 %v7197, 7
        %v7199 = vsub.s32 %v7196, %v7198
        %v7200 = vrot.slane %v7186, %v7199
        %v7201 = vcombine.low %v7166, %v7168
        %v7202 = vcombine.high %v7166, %v7168
        %v7204 = vunpack.c.l.s4 1983009808
        %v7205 = vunpack.c.0.s8 %v7204
        %v7206 = vlaneseq
        %v7207 = vshrl.u32 %v7206, 7
        %v7208 = vsub.s32 %v7205, %v7207
        %v7209 = vrot.slane %v7201, %v7208
        %v7211 = vunpack.c.l.s4 1983009808
        %v7212 = vunpack.c.0.s8 %v7211
        %v7213 = vlaneseq
        %v7214 = vshrl.u32 %v7213, 7
        %v7215 = vsub.s32 %v7212, %v7214
        %v7216 = vrot.slane %v7202, %v7215
        %v7217 = vcombine.low %v7169, %v7171
        %v7218 = vcombine.high %v7169, %v7171
        %v7220 = vunpack.c.l.s4 1983009808
        %v7221 = vunpack.c.0.s8 %v7220
        %v7222 = vlaneseq
        %v7223 = vshrl.u32 %v7222, 7
        %v7224 = vsub.s32 %v7221, %v7223
        %v7225 = vrot.slane %v7217, %v7224
        %v7227 = vunpack.c.l.s4 1983009808
        %v7228 = vunpack.c.0.s8 %v7227
        %v7229 = vlaneseq
        %v7230 = vshrl.u32 %v7229, 7
        %v7231 = vsub.s32 %v7228, %v7230
        %v7232 = vrot.slane %v7218, %v7231
        %v7233 = vcombine.low %v7170, %v7172
        %v7234 = vcombine.high %v7170, %v7172
        %v7236 = vunpack.c.l.s4 1983009808
        %v7237 = vunpack.c.0.s8 %v7236
        %v7238 = vlaneseq
        %v7239 = vshrl.u32 %v7238, 7
        %v7240 = vsub.s32 %v7237, %v7239
        %v7241 = vrot.slane %v7233, %v7240
        %v7243 = vunpack.c.l.s4 1983009808
        %v7244 = vunpack.c.0.s8 %v7243
        %v7245 = vlaneseq
        %v7246 = vshrl.u32 %v7245, 7
        %v7247 = vsub.s32 %v7244, %v7246
        %v7248 = vrot.slane %v7234, %v7247
        %v7249 = vcombine.low %v7193, %v7209
        %v7250 = vcombine.high %v7193, %v7209
        %v7252 = vunpack.c.l.s4 1934713408
        %v7253 = vunpack.c.0.s8 %v7252
        %v7254 = vlaneseq
        %v7255 = vshrl.u32 %v7254, 7
        %v7256 = vsub.s32 %v7253, %v7255
        %v7257 = vrot.slane %v7249, %v7256
        %v7259 = vunpack.c.l.s4 1934713408
        %v7260 = vunpack.c.0.s8 %v7259
        %v7261 = vlaneseq
        %v7262 = vshrl.u32 %v7261, 7
        %v7263 = vsub.s32 %v7260, %v7262
        %v7264 = vrot.slane %v7250, %v7263
        %v7265 = vcombine.low %v7200, %v7216
        %v7266 = vcombine.high %v7200, %v7216
        %v7268 = vunpack.c.l.s4 1934713408
        %v7269 = vunpack.c.0.s8 %v7268
        %v7270 = vlaneseq
        %v7271 = vshrl.u32 %v7270, 7
        %v7272 = vsub.s32 %v7269, %v7271
        %v7273 = vrot.slane %v7265, %v7272
        %v7275 = vunpack.c.l.s4 1934713408
        %v7276 = vunpack.c.0.s8 %v7275
        %v7277 = vlaneseq
        %v7278 = vshrl.u32 %v7277, 7
        %v7279 = vsub.s32 %v7276, %v7278
        %v7280 = vrot.slane %v7266, %v7279
        %v7281 = vcombine.low %v7225, %v7241
        %v7282 = vcombine.high %v7225, %v7241
        %v7284 = vunpack.c.l.s4 1934713408
        %v7285 = vunpack.c.0.s8 %v7284
        %v7286 = vlaneseq
        %v7287 = vshrl.u32 %v7286, 7
        %v7288 = vsub.s32 %v7285, %v7287
        %v7289 = vrot.slane %v7281, %v7288
        %v7291 = vunpack.c.l.s4 1934713408
        %v7292 = vunpack.c.0.s8 %v7291
        %v7293 = vlaneseq
        %v7294 = vshrl.u32 %v7293, 7
        %v7295 = vsub.s32 %v7292, %v7294
        %v7296 = vrot.slane %v7282, %v7295
        %v7297 = vcombine.low %v7232, %v7248
        %v7298 = vcombine.high %v7232, %v7248
        %v7300 = vunpack.c.l.s4 1934713408
        %v7301 = vunpack.c.0.s8 %v7300
        %v7302 = vlaneseq
        %v7303 = vshrl.u32 %v7302, 7
        %v7304 = vsub.s32 %v7301, %v7303
        %v7305 = vrot.slane %v7297, %v7304
        %v7307 = vunpack.c.l.s4 1934713408
        %v7308 = vunpack.c.0.s8 %v7307
        %v7309 = vlaneseq
        %v7310 = vshrl.u32 %v7309, 7
        %v7311 = vsub.s32 %v7308, %v7310
        %v7312 = vrot.slane %v7298, %v7311
        %v7313 = vcombine.low %v7257, %v7289
        %v7314 = vcombine.high %v7257, %v7289
        %v7315 = vcombine.low %v7264, %v7296
        %v7316 = vcombine.high %v7264, %v7296
        %v7317 = vcombine.low %v7273, %v7305
        %v7318 = vcombine.high %v7273, %v7305
        %v7319 = vcombine.low %v7280, %v7312
        %v7320 = vcombine.high %v7280, %v7312
        %v7321 = vcombine.low %v7173, %v7175
        %v7322 = vcombine.high %v7173, %v7175
        %v7324 = vunpack.c.l.s4 1983009808
        %v7325 = vunpack.c.0.s8 %v7324
        %v7326 = vlaneseq
        %v7327 = vshrl.u32 %v7326, 7
        %v7328 = vsub.s32 %v7325, %v7327
        %v7329 = vrot.slane %v7321, %v7328
        %v7331 = vunpack.c.l.s4 1983009808
        %v7332 = vunpack.c.0.s8 %v7331
        %v7333 = vlaneseq
        %v7334 = vshrl.u32 %v7333, 7
        %v7335 = vsub.s32 %v7332, %v7334
        %v7336 = vrot.slane %v7322, %v7335
        %v7337 = vcombine.low %v7174, %v7176
        %v7338 = vcombine.high %v7174, %v7176
        %v7340 = vunpack.c.l.s4 1983009808
        %v7341 = vunpack.c.0.s8 %v7340
        %v7342 = vlaneseq
        %v7343 = vshrl.u32 %v7342, 7
        %v7344 = vsub.s32 %v7341, %v7343
        %v7345 = vrot.slane %v7337, %v7344
        %v7347 = vunpack.c.l.s4 1983009808
        %v7348 = vunpack.c.0.s8 %v7347
        %v7349 = vlaneseq
        %v7350 = vshrl.u32 %v7349, 7
        %v7351 = vsub.s32 %v7348, %v7350
        %v7352 = vrot.slane %v7338, %v7351
        %v7353 = vcombine.low %v7177, %v7179
        %v7354 = vcombine.high %v7177, %v7179
        %v7356 = vunpack.c.l.s4 1983009808
        %v7357 = vunpack.c.0.s8 %v7356
        %v7358 = vlaneseq
        %v7359 = vshrl.u32 %v7358, 7
        %v7360 = vsub.s32 %v7357, %v7359
        %v7361 = vrot.slane %v7353, %v7360
        %v7363 = vunpack.c.l.s4 1983009808
        %v7364 = vunpack.c.0.s8 %v7363
        %v7365 = vlaneseq
        %v7366 = vshrl.u32 %v7365, 7
        %v7367 = vsub.s32 %v7364, %v7366
        %v7368 = vrot.slane %v7354, %v7367
        %v7369 = vcombine.low %v7178, %v7180
        %v7370 = vcombine.high %v7178, %v7180
        %v7372 = vunpack.c.l.s4 1983009808
        %v7373 = vunpack.c.0.s8 %v7372
        %v7374 = vlaneseq
        %v7375 = vshrl.u32 %v7374, 7
        %v7376 = vsub.s32 %v7373, %v7375
        %v7377 = vrot.slane %v7369, %v7376
        %v7379 = vunpack.c.l.s4 1983009808
        %v7380 = vunpack.c.0.s8 %v7379
        %v7381 = vlaneseq
        %v7382 = vshrl.u32 %v7381, 7
        %v7383 = vsub.s32 %v7380, %v7382
        %v7384 = vrot.slane %v7370, %v7383
        %v7385 = vcombine.low %v7329, %v7345
        %v7386 = vcombine.high %v7329, %v7345
        %v7388 = vunpack.c.l.s4 1934713408
        %v7389 = vunpack.c.0.s8 %v7388
        %v7390 = vlaneseq
        %v7391 = vshrl.u32 %v7390, 7
        %v7392 = vsub.s32 %v7389, %v7391
        %v7393 = vrot.slane %v7385, %v7392
        %v7395 = vunpack.c.l.s4 1934713408
        %v7396 = vunpack.c.0.s8 %v7395
        %v7397 = vlaneseq
        %v7398 = vshrl.u32 %v7397, 7
        %v7399 = vsub.s32 %v7396, %v7398
        %v7400 = vrot.slane %v7386, %v7399
        %v7401 = vcombine.low %v7336, %v7352
        %v7402 = vcombine.high %v7336, %v7352
        %v7404 = vunpack.c.l.s4 1934713408
        %v7405 = vunpack.c.0.s8 %v7404
        %v7406 = vlaneseq
        %v7407 = vshrl.u32 %v7406, 7
        %v7408 = vsub.s32 %v7405, %v7407
        %v7409 = vrot.slane %v7401, %v7408
        %v7411 = vunpack.c.l.s4 1934713408
        %v7412 = vunpack.c.0.s8 %v7411
        %v7413 = vlaneseq
        %v7414 = vshrl.u32 %v7413, 7
        %v7415 = vsub.s32 %v7412, %v7414
        %v7416 = vrot.slane %v7402, %v7415
        %v7417 = vcombine.low %v7361, %v7377
        %v7418 = vcombine.high %v7361, %v7377
        %v7420 = vunpack.c.l.s4 1934713408
        %v7421 = vunpack.c.0.s8 %v7420
        %v7422 = vlaneseq
        %v7423 = vshrl.u32 %v7422, 7
        %v7424 = vsub.s32 %v7421, %v7423
        %v7425 = vrot.slane %v7417, %v7424
        %v7427 = vunpack.c.l.s4 1934713408
        %v7428 = vunpack.c.0.s8 %v7427
        %v7429 = vlaneseq
        %v7430 = vshrl.u32 %v7429, 7
        %v7431 = vsub.s32 %v7428, %v7430
        %v7432 = vrot.slane %v7418, %v7431
        %v7433 = vcombine.low %v7368, %v7384
        %v7434 = vcombine.high %v7368, %v7384
        %v7436 = vunpack.c.l.s4 1934713408
        %v7437 = vunpack.c.0.s8 %v7436
        %v7438 = vlaneseq
        %v7439 = vshrl.u32 %v7438, 7
        %v7440 = vsub.s32 %v7437, %v7439
        %v7441 = vrot.slane %v7433, %v7440
        %v7443 = vunpack.c.l.s4 1934713408
        %v7444 = vunpack.c.0.s8 %v7443
        %v7445 = vlaneseq
        %v7446 = vshrl.u32 %v7445, 7
        %v7447 = vsub.s32 %v7444, %v7446
        %v7448 = vrot.slane %v7434, %v7447
        %v7449 = vcombine.low %v7393, %v7425
        %v7450 = vcombine.high %v7393, %v7425
        %v7451 = vcombine.low %v7400, %v7432
        %v7452 = vcombine.high %v7400, %v7432
        %v7453 = vcombine.low %v7409, %v7441
        %v7454 = vcombine.high %v7409, %v7441
        %v7455 = vcombine.low %v7416, %v7448
        %v7456 = vcombine.high %v7416, %v7448
        %v7457 = vcombine.low %v7181, %v7183
        %v7458 = vcombine.high %v7181, %v7183
        %v7460 = vunpack.c.l.s4 1983009808
        %v7461 = vunpack.c.0.s8 %v7460
        %v7462 = vlaneseq
        %v7463 = vshrl.u32 %v7462, 7
        %v7464 = vsub.s32 %v7461, %v7463
        %v7465 = vrot.slane %v7457, %v7464
        %v7467 = vunpack.c.l.s4 1983009808
        %v7468 = vunpack.c.0.s8 %v7467
        %v7469 = vlaneseq
        %v7470 = vshrl.u32 %v7469, 7
        %v7471 = vsub.s32 %v7468, %v7470
        %v7472 = vrot.slane %v7458, %v7471
        %v7473 = vcombine.low %v7182, %v7184
        %v7474 = vcombine.high %v7182, %v7184
        %v7476 = vunpack.c.l.s4 1983009808
        %v7477 = vunpack.c.0.s8 %v7476
        %v7478 = vlaneseq
        %v7479 = vshrl.u32 %v7478, 7
        %v7480 = vsub.s32 %v7477, %v7479
        %v7481 = vrot.slane %v7473, %v7480
        %v7483 = vunpack.c.l.s4 1983009808
        %v7484 = vunpack.c.0.s8 %v7483
        %v7485 = vlaneseq
        %v7486 = vshrl.u32 %v7485, 7
        %v7487 = vsub.s32 %v7484, %v7486
        %v7488 = vrot.slane %v7474, %v7487
        %v7489 = vcombine.low %v7465, %v7481
        %v7490 = vcombine.high %v7465, %v7481
        %v7492 = vunpack.c.l.s4 1934713408
        %v7493 = vunpack.c.0.s8 %v7492
        %v7494 = vlaneseq
        %v7495 = vshrl.u32 %v7494, 7
        %v7496 = vsub.s32 %v7493, %v7495
        %v7497 = vrot.slane %v7489, %v7496
        %v7499 = vunpack.c.l.s4 1934713408
        %v7500 = vunpack.c.0.s8 %v7499
        %v7501 = vlaneseq
        %v7502 = vshrl.u32 %v7501, 7
        %v7503 = vsub.s32 %v7500, %v7502
        %v7504 = vrot.slane %v7490, %v7503
        %v7505 = vcombine.low %v7472, %v7488
        %v7506 = vcombine.high %v7472, %v7488
        %v7508 = vunpack.c.l.s4 1934713408
        %v7509 = vunpack.c.0.s8 %v7508
        %v7510 = vlaneseq
        %v7511 = vshrl.u32 %v7510, 7
        %v7512 = vsub.s32 %v7509, %v7511
        %v7513 = vrot.slane %v7505, %v7512
        %v7515 = vunpack.c.l.s4 1934713408
        %v7516 = vunpack.c.0.s8 %v7515
        %v7517 = vlaneseq
        %v7518 = vshrl.u32 %v7517, 7
        %v7519 = vsub.s32 %v7516, %v7518
        %v7520 = vrot.slane %v7506, %v7519
        %v7521 = vcombine.high %v7497, 0.0
        %v7522 = vcombine.high %v7504, 0.0
        %v7523 = vcombine.high %v7513, 0.0
        %v7524 = vcombine.high %v7520, 0.0
        %v7525 = vcombine.low %v7313, %v7315
        %v7526 = vcombine.high %v7313, %v7315
        %v7528 = vunpack.c.l.s4 1983009808
        %v7529 = vunpack.c.0.s8 %v7528
        %v7530 = vlaneseq
        %v7531 = vshrl.u32 %v7530, 7
        %v7532 = vsub.s32 %v7529, %v7531
        %v7533 = vrot.slane %v7525, %v7532
        %v7535 = vunpack.c.l.s4 1983009808
        %v7536 = vunpack.c.0.s8 %v7535
        %v7537 = vlaneseq
        %v7538 = vshrl.u32 %v7537, 7
        %v7539 = vsub.s32 %v7536, %v7538
        %v7540 = vrot.slane %v7526, %v7539
        %v7541 = vcombine.low %v7314, %v7316
        %v7542 = vcombine.high %v7314, %v7316
        %v7544 = vunpack.c.l.s4 1983009808
        %v7545 = vunpack.c.0.s8 %v7544
        %v7546 = vlaneseq
        %v7547 = vshrl.u32 %v7546, 7
        %v7548 = vsub.s32 %v7545, %v7547
        %v7549 = vrot.slane %v7541, %v7548
        %v7551 = vunpack.c.l.s4 1983009808
        %v7552 = vunpack.c.0.s8 %v7551
        %v7553 = vlaneseq
        %v7554 = vshrl.u32 %v7553, 7
        %v7555 = vsub.s32 %v7552, %v7554
        %v7556 = vrot.slane %v7542, %v7555
        %v7557 = vcombine.low %v7317, %v7319
        %v7558 = vcombine.high %v7317, %v7319
        %v7560 = vunpack.c.l.s4 1983009808
        %v7561 = vunpack.c.0.s8 %v7560
        %v7562 = vlaneseq
        %v7563 = vshrl.u32 %v7562, 7
        %v7564 = vsub.s32 %v7561, %v7563
        %v7565 = vrot.slane %v7557, %v7564
        %v7567 = vunpack.c.l.s4 1983009808
        %v7568 = vunpack.c.0.s8 %v7567
        %v7569 = vlaneseq
        %v7570 = vshrl.u32 %v7569, 7
        %v7571 = vsub.s32 %v7568, %v7570
        %v7572 = vrot.slane %v7558, %v7571
        %v7573 = vcombine.low %v7318, %v7320
        %v7574 = vcombine.high %v7318, %v7320
        %v7576 = vunpack.c.l.s4 1983009808
        %v7577 = vunpack.c.0.s8 %v7576
        %v7578 = vlaneseq
        %v7579 = vshrl.u32 %v7578, 7
        %v7580 = vsub.s32 %v7577, %v7579
        %v7581 = vrot.slane %v7573, %v7580
        %v7583 = vunpack.c.l.s4 1983009808
        %v7584 = vunpack.c.0.s8 %v7583
        %v7585 = vlaneseq
        %v7586 = vshrl.u32 %v7585, 7
        %v7587 = vsub.s32 %v7584, %v7586
        %v7588 = vrot.slane %v7574, %v7587
        %v7589 = vcombine.low %v7533, %v7549
        %v7590 = vcombine.high %v7533, %v7549
        %v7592 = vunpack.c.l.s4 1934713408
        %v7593 = vunpack.c.0.s8 %v7592
        %v7594 = vlaneseq
        %v7595 = vshrl.u32 %v7594, 7
        %v7596 = vsub.s32 %v7593, %v7595
        %v7597 = vrot.slane %v7589, %v7596
        %v7599 = vunpack.c.l.s4 1934713408
        %v7600 = vunpack.c.0.s8 %v7599
        %v7601 = vlaneseq
        %v7602 = vshrl.u32 %v7601, 7
        %v7603 = vsub.s32 %v7600, %v7602
        %v7604 = vrot.slane %v7590, %v7603
        %v7605 = vcombine.low %v7540, %v7556
        %v7606 = vcombine.high %v7540, %v7556
        %v7608 = vunpack.c.l.s4 1934713408
        %v7609 = vunpack.c.0.s8 %v7608
        %v7610 = vlaneseq
        %v7611 = vshrl.u32 %v7610, 7
        %v7612 = vsub.s32 %v7609, %v7611
        %v7613 = vrot.slane %v7605, %v7612
        %v7615 = vunpack.c.l.s4 1934713408
        %v7616 = vunpack.c.0.s8 %v7615
        %v7617 = vlaneseq
        %v7618 = vshrl.u32 %v7617, 7
        %v7619 = vsub.s32 %v7616, %v7618
        %v7620 = vrot.slane %v7606, %v7619
        %v7621 = vcombine.low %v7565, %v7581
        %v7622 = vcombine.high %v7565, %v7581
        %v7624 = vunpack.c.l.s4 1934713408
        %v7625 = vunpack.c.0.s8 %v7624
        %v7626 = vlaneseq
        %v7627 = vshrl.u32 %v7626, 7
        %v7628 = vsub.s32 %v7625, %v7627
        %v7629 = vrot.slane %v7621, %v7628
        %v7631 = vunpack.c.l.s4 1934713408
        %v7632 = vunpack.c.0.s8 %v7631
        %v7633 = vlaneseq
        %v7634 = vshrl.u32 %v7633, 7
        %v7635 = vsub.s32 %v7632, %v7634
        %v7636 = vrot.slane %v7622, %v7635
        %v7637 = vcombine.low %v7572, %v7588
        %v7638 = vcombine.high %v7572, %v7588
        %v7640 = vunpack.c.l.s4 1934713408
        %v7641 = vunpack.c.0.s8 %v7640
        %v7642 = vlaneseq
        %v7643 = vshrl.u32 %v7642, 7
        %v7644 = vsub.s32 %v7641, %v7643
        %v7645 = vrot.slane %v7637, %v7644
        %v7647 = vunpack.c.l.s4 1934713408
        %v7648 = vunpack.c.0.s8 %v7647
        %v7649 = vlaneseq
        %v7650 = vshrl.u32 %v7649, 7
        %v7651 = vsub.s32 %v7648, %v7650
        %v7652 = vrot.slane %v7638, %v7651
        %v7653 = vcombine.low %v7597, %v7629
        %v7654 = vcombine.high %v7597, %v7629
        %v7655 = vcombine.low %v7604, %v7636
        %v7656 = vcombine.high %v7604, %v7636
        %v7657 = vcombine.low %v7613, %v7645
        %v7658 = vcombine.high %v7613, %v7645
        %v7659 = vcombine.low %v7620, %v7652
        %v7660 = vcombine.high %v7620, %v7652
        %v7661 = vcombine.low %v7449, %v7451
        %v7662 = vcombine.high %v7449, %v7451
        %v7664 = vunpack.c.l.s4 1983009808
        %v7665 = vunpack.c.0.s8 %v7664
        %v7666 = vlaneseq
        %v7667 = vshrl.u32 %v7666, 7
        %v7668 = vsub.s32 %v7665, %v7667
        %v7669 = vrot.slane %v7661, %v7668
        %v7671 = vunpack.c.l.s4 1983009808
        %v7672 = vunpack.c.0.s8 %v7671
        %v7673 = vlaneseq
        %v7674 = vshrl.u32 %v7673, 7
        %v7675 = vsub.s32 %v7672, %v7674
        %v7676 = vrot.slane %v7662, %v7675
        %v7677 = vcombine.low %v7450, %v7452
        %v7678 = vcombine.high %v7450, %v7452
        %v7680 = vunpack.c.l.s4 1983009808
        %v7681 = vunpack.c.0.s8 %v7680
        %v7682 = vlaneseq
        %v7683 = vshrl.u32 %v7682, 7
        %v7684 = vsub.s32 %v7681, %v7683
        %v7685 = vrot.slane %v7677, %v7684
        %v7687 = vunpack.c.l.s4 1983009808
        %v7688 = vunpack.c.0.s8 %v7687
        %v7689 = vlaneseq
        %v7690 = vshrl.u32 %v7689, 7
        %v7691 = vsub.s32 %v7688, %v7690
        %v7692 = vrot.slane %v7678, %v7691
        %v7693 = vcombine.low %v7453, %v7455
        %v7694 = vcombine.high %v7453, %v7455
        %v7696 = vunpack.c.l.s4 1983009808
        %v7697 = vunpack.c.0.s8 %v7696
        %v7698 = vlaneseq
        %v7699 = vshrl.u32 %v7698, 7
        %v7700 = vsub.s32 %v7697, %v7699
        %v7701 = vrot.slane %v7693, %v7700
        %v7703 = vunpack.c.l.s4 1983009808
        %v7704 = vunpack.c.0.s8 %v7703
        %v7705 = vlaneseq
        %v7706 = vshrl.u32 %v7705, 7
        %v7707 = vsub.s32 %v7704, %v7706
        %v7708 = vrot.slane %v7694, %v7707
        %v7709 = vcombine.low %v7454, %v7456
        %v7710 = vcombine.high %v7454, %v7456
        %v7712 = vunpack.c.l.s4 1983009808
        %v7713 = vunpack.c.0.s8 %v7712
        %v7714 = vlaneseq
        %v7715 = vshrl.u32 %v7714, 7
        %v7716 = vsub.s32 %v7713, %v7715
        %v7717 = vrot.slane %v7709, %v7716
        %v7719 = vunpack.c.l.s4 1983009808
        %v7720 = vunpack.c.0.s8 %v7719
        %v7721 = vlaneseq
        %v7722 = vshrl.u32 %v7721, 7
        %v7723 = vsub.s32 %v7720, %v7722
        %v7724 = vrot.slane %v7710, %v7723
        %v7725 = vcombine.low %v7669, %v7685
        %v7726 = vcombine.high %v7669, %v7685
        %v7728 = vunpack.c.l.s4 1934713408
        %v7729 = vunpack.c.0.s8 %v7728
        %v7730 = vlaneseq
        %v7731 = vshrl.u32 %v7730, 7
        %v7732 = vsub.s32 %v7729, %v7731
        %v7733 = vrot.slane %v7725, %v7732
        %v7735 = vunpack.c.l.s4 1934713408
        %v7736 = vunpack.c.0.s8 %v7735
        %v7737 = vlaneseq
        %v7738 = vshrl.u32 %v7737, 7
        %v7739 = vsub.s32 %v7736, %v7738
        %v7740 = vrot.slane %v7726, %v7739
        %v7741 = vcombine.low %v7676, %v7692
        %v7742 = vcombine.high %v7676, %v7692
        %v7744 = vunpack.c.l.s4 1934713408
        %v7745 = vunpack.c.0.s8 %v7744
        %v7746 = vlaneseq
        %v7747 = vshrl.u32 %v7746, 7
        %v7748 = vsub.s32 %v7745, %v7747
        %v7749 = vrot.slane %v7741, %v7748
        %v7751 = vunpack.c.l.s4 1934713408
        %v7752 = vunpack.c.0.s8 %v7751
        %v7753 = vlaneseq
        %v7754 = vshrl.u32 %v7753, 7
        %v7755 = vsub.s32 %v7752, %v7754
        %v7756 = vrot.slane %v7742, %v7755
        %v7757 = vcombine.low %v7701, %v7717
        %v7758 = vcombine.high %v7701, %v7717
        %v7760 = vunpack.c.l.s4 1934713408
        %v7761 = vunpack.c.0.s8 %v7760
        %v7762 = vlaneseq
        %v7763 = vshrl.u32 %v7762, 7
        %v7764 = vsub.s32 %v7761, %v7763
        %v7765 = vrot.slane %v7757, %v7764
        %v7767 = vunpack.c.l.s4 1934713408
        %v7768 = vunpack.c.0.s8 %v7767
        %v7769 = vlaneseq
        %v7770 = vshrl.u32 %v7769, 7
        %v7771 = vsub.s32 %v7768, %v7770
        %v7772 = vrot.slane %v7758, %v7771
        %v7773 = vcombine.low %v7708, %v7724
        %v7774 = vcombine.high %v7708, %v7724
        %v7776 = vunpack.c.l.s4 1934713408
        %v7777 = vunpack.c.0.s8 %v7776
        %v7778 = vlaneseq
        %v7779 = vshrl.u32 %v7778, 7
        %v7780 = vsub.s32 %v7777, %v7779
        %v7781 = vrot.slane %v7773, %v7780
        %v7783 = vunpack.c.l.s4 1934713408
        %v7784 = vunpack.c.0.s8 %v7783
        %v7785 = vlaneseq
        %v7786 = vshrl.u32 %v7785, 7
        %v7787 = vsub.s32 %v7784, %v7786
        %v7788 = vrot.slane %v7774, %v7787
        %v7789 = vcombine.low %v7733, %v7765
        %v7790 = vcombine.high %v7733, %v7765
        %v7791 = vcombine.low %v7740, %v7772
        %v7792 = vcombine.high %v7740, %v7772
        %v7793 = vcombine.low %v7749, %v7781
        %v7794 = vcombine.high %v7749, %v7781
        %v7795 = vcombine.low %v7756, %v7788
        %v7796 = vcombine.high %v7756, %v7788
        %v7797 = vcombine.low %v7497, %v7504
        %v7799 = vunpack.c.l.s4 1983009808
        %v7800 = vunpack.c.0.s8 %v7799
        %v7801 = vlaneseq
        %v7802 = vshrl.u32 %v7801, 7
        %v7803 = vsub.s32 %v7800, %v7802
        %v7804 = vrot.slane %v7797, %v7803
        %v7805 = vcombine.low %v7521, %v7522
        %v7807 = vunpack.c.l.s4 1983009808
        %v7808 = vunpack.c.0.s8 %v7807
        %v7809 = vlaneseq
        %v7810 = vshrl.u32 %v7809, 7
        %v7811 = vsub.s32 %v7808, %v7810
        %v7812 = vrot.slane %v7805, %v7811
        %v7813 = vcombine.low %v7513, %v7520
        %v7815 = vunpack.c.l.s4 1983009808
        %v7816 = vunpack.c.0.s8 %v7815
        %v7817 = vlaneseq
        %v7818 = vshrl.u32 %v7817, 7
        %v7819 = vsub.s32 %v7816, %v7818
        %v7820 = vrot.slane %v7813, %v7819
        %v7821 = vcombine.low %v7523, %v7524
        %v7823 = vunpack.c.l.s4 1983009808
        %v7824 = vunpack.c.0.s8 %v7823
        %v7825 = vlaneseq
        %v7826 = vshrl.u32 %v7825, 7
        %v7827 = vsub.s32 %v7824, %v7826
        %v7828 = vrot.slane %v7821, %v7827
        %v7829 = vcombine.low %v7804, %v7812
        %v7830 = vcombine.high %v7804, %v7812
        %v7832 = vunpack.c.l.s4 1934713408
        %v7833 = vunpack.c.0.s8 %v7832
        %v7834 = vlaneseq
        %v7835 = vshrl.u32 %v7834, 7
        %v7836 = vsub.s32 %v7833, %v7835
        %v7837 = vrot.slane %v7829, %v7836
        %v7839 = vunpack.c.l.s4 1934713408
        %v7840 = vunpack.c.0.s8 %v7839
        %v7841 = vlaneseq
        %v7842 = vshrl.u32 %v7841, 7
        %v7843 = vsub.s32 %v7840, %v7842
        %v7844 = vrot.slane %v7830, %v7843
        %v7845 = vcombine.low %v7820, %v7828
        %v7846 = vcombine.high %v7820, %v7828
        %v7848 = vunpack.c.l.s4 1934713408
        %v7849 = vunpack.c.0.s8 %v7848
        %v7850 = vlaneseq
        %v7851 = vshrl.u32 %v7850, 7
        %v7852 = vsub.s32 %v7849, %v7851
        %v7853 = vrot.slane %v7845, %v7852
        %v7855 = vunpack.c.l.s4 1934713408
        %v7856 = vunpack.c.0.s8 %v7855
        %v7857 = vlaneseq
        %v7858 = vshrl.u32 %v7857, 7
        %v7859 = vsub.s32 %v7856, %v7858
        %v7860 = vrot.slane %v7846, %v7859
        %v7861 = vcombine.low %v7837, %v7853
        %v7862 = vcombine.high %v7837, %v7853
        %v7863 = vcombine.low %v7844, %v7860
        %v7864 = vcombine.high %v7844, %v7860
        %7866 = vrot.lane.b32.xlu0 %v7654, 20
        %v7867 = vpop.permute.xlu0 %7866
        %7870 = vrot.lane.b32.xlu0 %v7655, 40
        %v7871 = vpop.permute.xlu0 %7870
        %7874 = vrot.lane.b32.xlu0 %v7656, 60
        %v7875 = vpop.permute.xlu0 %7874
        %7878 = vrot.lane.b32.xlu0 %v7657, 80
        %v7879 = vpop.permute.xlu0 %7878
        %7882 = vrot.lane.b32.xlu0 %v7658, 100
        %v7883 = vpop.permute.xlu0 %7882
        %7886 = vrot.lane.b32.xlu0 %v7659, 120
        %v7887 = vpop.permute.xlu0 %7886
        %7890 = vrot.lane.b32.xlu0 %v7660, 12
        %v7891 = vpop.permute.xlu0 %7890
        %7894 = vrot.lane.b32.xlu0 %v7789, 32
        %v7895 = vpop.permute.xlu0 %7894
        %7898 = vrot.lane.b32.xlu0 %v7790, 52
        %v7899 = vpop.permute.xlu0 %7898
        %7902 = vrot.lane.b32.xlu0 %v7791, 72
        %v7903 = vpop.permute.xlu0 %7902
        %7906 = vrot.lane.b32.xlu0 %v7792, 92
        %v7907 = vpop.permute.xlu0 %7906
        %7910 = vrot.lane.b32.xlu0 %v7793, 112
        %v7911 = vpop.permute.xlu0 %7910
        %7914 = vrot.lane.b32.xlu0 %v7794, 4
        %v7915 = vpop.permute.xlu0 %7914
        %7918 = vrot.lane.b32.xlu0 %v7795, 24
        %v7919 = vpop.permute.xlu0 %7918
        %7922 = vrot.lane.b32.xlu0 %v7796, 44
        %v7923 = vpop.permute.xlu0 %7922
        %7926 = vrot.lane.b32.xlu0 %v7861, 64
        %v7927 = vpop.permute.xlu0 %7926
        %7930 = vrot.lane.b32.xlu0 %v7862, 84
        %v7931 = vpop.permute.xlu0 %7930
        %7934 = vrot.lane.b32.xlu0 %v7863, 104
        %v7935 = vpop.permute.xlu0 %7934
        %7938 = vrot.lane.b32.xlu0 %v7864, 124
        %v7939 = vpop.permute.xlu0 %7938
        %v7941 = vsel %vm4024, %v7653, %v7867
        %vm7942 = vcmask 326656
        %v7943 = vsel %vm7942, %v7941, %v7871
        %vm7944 = vcmask 490496
        %v7945 = vsel %vm7944, %v7943, %v7875
        %vm7946 = vcmask 654336
        %v7947 = vsel %vm7946, %v7945, %v7879
        %vm7948 = vcmask 818176
        %v7949 = vsel %vm7948, %v7947, %v7883
        %vm7950 = vcmask 982016
        %v7951 = vsel %vm7950, %v7949, %v7887
        %vm7952 = vcmask 97280
        %v7953 = vsel %vm7952, %v7887, %v7891
        %vm7954 = vcmask 261120
        %v7955 = vsel %vm7954, %v7953, %v7895
        %vm7956 = vcmask 424960
        %v7957 = vsel %vm7956, %v7955, %v7899
        %vm7958 = vcmask 588800
        %v7959 = vsel %vm7958, %v7957, %v7903
        %vm7960 = vcmask 752640
        %v7961 = vsel %vm7960, %v7959, %v7907
        %vm7962 = vcmask 916480
        %v7963 = vsel %vm7962, %v7961, %v7911
        %v7964 = vsel %vm3321, %v7911, %v7915
        %vm7965 = vcmask 195584
        %v7966 = vsel %vm7965, %v7964, %v7919
        %v7967 = vsel %vm2946, %v7966, %v7923
        %vm7968 = vcmask 523264
        %v7969 = vsel %vm7968, %v7967, %v7927
        %vm7970 = vcmask 687104
        %v7971 = vsel %vm7970, %v7969, %v7931
        %vm7972 = vcmask 850944
        %v7973 = vsel %vm7972, %v7971, %v7935
        %vm7974 = vcmask 1014784
        %v7975 = vsel %vm7974, %v7973, %v7939
        %7976 = vst [vmem:[%s258] sm:$0xff] %v7951
        %7977 = vst [vmem:[%s258 + $0x8] sm:$0xff] %v7963
        %7978 = vst [vmem:[%s258 + $0x10] sm:$0xff] %v7975
        %7979 = vst.msk [vmem:[%s258 + $0x18] sm:$0xff] %vm3295, %v7939
        %s7980 = sand.u32 %s173, 1
        %s7981 = scalar_lea.sflag [#allocation5], %s7980
        %s7982 = sand.u32 %s173, 1
        %s7983 = smul.addr %s7982, 32
        %s7984 = scalar_lea.vmem [#allocation4], %s7983
        // Predicated region
        $region49: #{tpu_custom_call.1} parent=43 // pred_check
          %p7985 = pneg %p183
        $region50: #{tpu_custom_call.1} parent=43 // pred_check_branch
          %7987 = sbr.rel (%p7985) target = $region52
        $region51: #{tpu_custom_call.1} parent=43 // pred_region
          %s7989 = ssub.s32 512, 512
          %7990 = vsyncadd %s7981, %s7989
          %s7991 = smul.addr %s25, 4
          %s7992 = smul.addr %s24, 4
          %s7993 = sadd.s32 %s7991, %s7992
          %s7994 = smul.addr %s7993, 128
          %s7995 = scalar_lea.hbm %s6, %s7994
          %s7997 = sshll.u32 %s7984, 4
          %s7998 = int_to_ptr.vmem [resolvable:$true] %s7997
          %8000 = dma.vmem_to_hbm [thread:$0]  %s7998, 512, %s7995, %s7981
        $region52: #{tpu_custom_call.1} parent=43 // pred_fallthru
          _
      $region44: #{tpu_custom_call.1} parent=5 // pred_fallthru
        _
      %p8001 = scmp.le.s32.totalorder 2, %s15
      // Predicated region
      $region53: #{tpu_custom_call.1} parent=5 // pred_check
        %p8002 = pneg %p8001
      $region54: #{tpu_custom_call.1} parent=5 // pred_check_branch
        %8004 = sbr.rel (%p8002) target = $region56
      $region55: #{tpu_custom_call.1} parent=5 // pred_region
        %s8005 = ssub.s32 %s15, 2
        // Predicated region
        $region57: #{tpu_custom_call.1} parent=55 // pred_check
          %p8006 = pneg %p189
        $region58: #{tpu_custom_call.1} parent=55 // pred_check_branch
          %8008 = sbr.rel (%p8006) target = $region60
        $region59: #{tpu_custom_call.1} parent=55 // pred_region
          %s8009 = sand.u32 %s174, 1
          %s8010 = scalar_lea.sflag [#allocation5], %s8009
          %s8011 = sand.u32 %s174, 1
          %s8012 = smul.addr %s8011, 32
          %s8013 = scalar_lea.vmem [#allocation4], %s8012
          %8014 = dma.done %s8010, 512
        $region60: #{tpu_custom_call.1} parent=55 // pred_fallthru
          _
      $region56: #{tpu_custom_call.1} parent=5 // pred_fallthru
        _
    $region6: #{tpu_custom_call.1} parent=1 // loop_footer
      %s19 = sadd.s32 1, %s15
    $region7: #{tpu_custom_call.1} parent=1 // loop_footer_branch
      %14 = sbr.rel target = $region3
    $region8: #{tpu_custom_call.1} parent=1 // loop_exit
      _
    %8015 = vsyncpa [#allocation5], 1
    %s8016 = scalar_lea.sflag [#allocation5], 1
    %8017 = vsyncpa %s8016, 1

</llo_original>
